<compile_context>
chip_gen: v7x
topology: tpu7x:2x2x1
jax: 0.10.0
libtpu: 0.0.40
codegen_flags: <defaults>
</compile_context>

<pallas_src>
import functools

import jax
import jax.numpy as jnp
from jax.experimental import pallas as pl
from jax.experimental.pallas import tpu as pltpu

BN_EPS = 1e-5          # PyTorch BatchNorm2d default
SAFE_LOG_EPS = 1e-6    # braindecode safe_log eps


def _create_base_kernel(x_ref, w_ref, b_ref, pm_ref, o_ref, acc_ref, *, kt, t_out):
    # x_ref:   (1, T, C_pad)       raw signal for one batch element (time on sublanes)
    # w_ref:   (kt, C_pad, F_pad)  folded conv_time*conv_spat*BN weight, one slice per tap k
    # b_ref:   (1, F_pad)          folded bias
    # pm_ref:  (P, T_out)          average-pooling matrix (1/pool_len inside each window)
    # o_ref:   (1, P, F_pad)       log(clamp(avgpool(square(conv_bn)), eps))
    # acc_ref: (T_out, F_pad) f32  VMEM scratch accumulator
    acc_ref[...] = jnp.dot(x_ref[0, pl.ds(0, t_out), :], w_ref[0],
                           preferred_element_type=jnp.float32)
    for k in range(1, kt):  # static unroll: kt shifted slices of the VMEM-resident block
        acc_ref[...] += jnp.dot(x_ref[0, pl.ds(k, t_out), :], w_ref[k],
                                preferred_element_type=jnp.float32)
    y = acc_ref[...] + b_ref[...]                   # (T_out, F_pad) conv + BN output
    q = y * y                                       # conv_nonlin = square
    pooled = jnp.dot(pm_ref[...], q,
                     preferred_element_type=jnp.float32)   # (P, F_pad) avg pool over time
    o_ref[0] = jnp.log(jnp.maximum(pooled, SAFE_LOG_EPS))  # pool_nonlin = safe_log
    # TODO(synk): Dropout(p=0.5) is identity in eval mode; training-mode dropout not implemented.


@functools.partial(jax.jit, static_argnames=("pool_time_length", "pool_time_stride"))
def create_base_forward(data, conv_time_w, conv_time_b, conv_spat_w,
                        bn_gamma, bn_beta, bn_mean, bn_var,
                        *, pool_time_length, pool_time_stride):
    """Forward pass of CreateBase (eval mode).

    data:        (N, in_chans, T, 1)
    conv_time_w: (F_t, 1, kt, 1),  conv_time_b: (F_t,)
    conv_spat_w: (F_s, F_t, 1, in_chans)   (no bias: batch_norm=True)
    bn_*:        (F_s,)  BatchNorm2d affine params + running stats
    returns      (N, F_s, P, 1)
    """
    N, C, T, W1 = data.shape
    assert W1 == 1, "last spatial dim of the input must be 1"
    F_t, _, kt, _ = conv_time_w.shape
    F_s = conv_spat_w.shape[0]
    T_out = T - kt + 1
    P = (T_out - pool_time_length) // pool_time_stride + 1
    assert P >= 1, "time axis too short for the pooling window"
    f32 = jnp.float32

    # ---- fold conv_time -> conv_spat -> BatchNorm(eval) into one linear map ----
    Wt = conv_time_w[:, 0, :, 0].astype(f32)                    # (F_t, kt)
    Ws = conv_spat_w[:, :, 0, :].astype(f32)                    # (F_s, F_t, C)
    W_eff = jnp.einsum("fgc,gk->fck", Ws, Wt)                   # (F_s, C, kt)
    b_eff = jnp.einsum("fgc,g->f", Ws, conv_time_b.astype(f32))  # (F_s,)
    # TODO(synk): BatchNorm uses running stats (eval mode); training-mode batch stats not implemented.
    s = bn_gamma.astype(f32) / jnp.sqrt(bn_var.astype(f32) + BN_EPS)
    W_eff = W_eff * s[:, None, None]
    b_eff = b_eff * s + (bn_beta.astype(f32) - bn_mean.astype(f32) * s)

    # ---- padding: filters -> multiple of 128 lanes (lane-dense), channels -> multiple of 8 ----
    F_pad = ((F_s + 127) // 128) * 128
    C_pad = ((C + 7) // 8) * 8
    w_kern = jnp.zeros((kt, C_pad, F_pad), f32)
    w_kern = w_kern.at[:, :C, :F_s].set(jnp.transpose(W_eff, (2, 1, 0)))
    b_kern = jnp.zeros((1, F_pad), f32).at[0, :F_s].set(b_eff)

    # ---- average pooling over time as a (P, T_out) matmul ----
    t_idx = jnp.arange(T_out)[None, :]
    p0 = (jnp.arange(P) * pool_time_stride)[:, None]
    pool_mat = (((t_idx >= p0) & (t_idx < p0 + pool_time_length))
                .astype(f32) / float(pool_time_length))          # (P, T_out)

    # ---- raw signal, time-major, channel-padded (no im2col buffer in HBM) ----
    x_ntc = jnp.transpose(data[..., 0], (0, 2, 1)).astype(f32)   # (N, T, C)
    x_ntc = jnp.pad(x_ntc, ((0, 0), (0, 0), (0, C_pad - C)))     # (N, T, C_pad)

    kernel = functools.partial(_create_base_kernel, kt=kt, t_out=T_out)

    out = pl.pallas_call(
        kernel,
        out_shape=jax.ShapeDtypeStruct((N, P, F_pad), f32),
        grid=(N,),
        in_specs=[
            pl.BlockSpec((1, T, C_pad), lambda n: (n, 0, 0)),        # per-batch signal
            pl.BlockSpec((kt, C_pad, F_pad), lambda n: (0, 0, 0)),   # VMEM-resident weights
            pl.BlockSpec((1, F_pad), lambda n: (0, 0)),              # folded bias
            pl.BlockSpec((P, T_out), lambda n: (0, 0)),              # pooling matrix
        ],
        out_specs=pl.BlockSpec((1, P, F_pad), lambda n: (n, 0, 0)),
        scratch_shapes=[pltpu.VMEM((T_out, F_pad), f32)],
        compiler_params=pltpu.CompilerParams(
            dimension_semantics=("parallel",)),
    )(x_ntc, w_kern, b_kern, pool_mat)

    out = out[:, :, :F_s]                            # drop padded filter lanes
    out = jnp.transpose(out, (0, 2, 1))[..., None]   # (N, F_s, P, 1)
    return out


# ---------------- pure-JAX reference (for correctness check) ----------------
def _reference_forward(data, conv_time_w, conv_time_b, conv_spat_w,
                       bn_gamma, bn_beta, bn_mean, bn_var,
                       *, pool_time_length, pool_time_stride):
    x = jnp.transpose(data, (0, 3, 2, 1))            # _transpose_time_to_spat
    z = jax.lax.conv_general_dilated(
        x, conv_time_w, (1, 1), "VALID",
        dimension_numbers=("NCHW", "OIHW", "NCHW")) + conv_time_b.reshape(1, -1, 1, 1)
    y = jax.lax.conv_general_dilated(
        z, conv_spat_w, (1, 1), "VALID",
        dimension_numbers=("NCHW", "OIHW", "NCHW"))
    rs = lambda v: v.reshape(1, -1, 1, 1)
    y = (y - rs(bn_mean)) / jnp.sqrt(rs(bn_var) + BN_EPS) * rs(bn_gamma) + rs(bn_beta)
    q = y * y
    pooled = jax.lax.reduce_window(
        q, 0.0, jax.lax.add,
        window_dimensions=(1, 1, pool_time_length, 1),
        window_strides=(1, 1, pool_time_stride, 1),
        padding="VALID") / float(pool_time_length)
    return jnp.log(jnp.maximum(pooled, SAFE_LOG_EPS))


def _xavier_uniform(key, shape):
    out_ch, in_ch, kh, kw = shape
    fan_in = in_ch * kh * kw
    fan_out = out_ch * kh * kw
    limit = (6.0 / (fan_in + fan_out)) ** 0.5
    return jax.random.uniform(key, shape, jnp.float32, -limit, limit)


if __name__ == "__main__":
    # Small shapes consistent with CreateBase defaults:
    #   n_filters_time = n_filters_spat = 40, filter_time_length = 25,
    #   pool_time_length = 75, pool_time_stride = 15; batch=2, in_chans=4, T=128.
    N, in_chans, T = 2, 4, 128
    F_t, F_s, kt = 40, 40, 25
    pool_len, pool_stride = 75, 15

    key = jax.random.PRNGKey(0)
    kd, ktw, ksw = jax.random.split(key, 3)
    data = jax.random.normal(kd, (N, in_chans, T, 1), jnp.float32)
    conv_time_w = _xavier_uniform(ktw, (F_t, 1, kt, 1))        # xavier_uniform_, gain=1
    conv_time_b = jnp.zeros((F_t,), jnp.float32)               # init.constant_(bias, 0)
    conv_spat_w = _xavier_uniform(ksw, (F_s, F_t, 1, in_chans))
    bn_gamma = jnp.ones((F_s,), jnp.float32)                   # init.constant_(weight, 1)
    bn_beta = jnp.zeros((F_s,), jnp.float32)                   # init.constant_(bias, 0)
    bn_mean = jnp.zeros((F_s,), jnp.float32)
    bn_var = jnp.ones((F_s,), jnp.float32)

    out = create_base_forward(
        data, conv_time_w, conv_time_b, conv_spat_w,
        bn_gamma, bn_beta, bn_mean, bn_var,
        pool_time_length=pool_len, pool_time_stride=pool_stride)
    out = jax.block_until_ready(out)

    ref = _reference_forward(
        data, conv_time_w, conv_time_b, conv_spat_w,
        bn_gamma, bn_beta, bn_mean, bn_var,
        pool_time_length=pool_len, pool_time_stride=pool_stride)

    P = (T - kt + 1 - pool_len) // pool_stride + 1
    assert out.shape == ref.shape == (N, F_s, P, 1), (out.shape, ref.shape)
    assert jnp.allclose(out, ref, atol=1e-4, rtol=1e-4), float(jnp.max(jnp.abs(out - ref)))

    print("KERNEL_OK")
</pallas_src>

<mosaic_0001>
module attributes {stable_mosaic.version = 11 : i64} {
  func.func @_create_base_kernel(%arg0: i32, %arg1: memref<1x128x8xf32, #tpu.memory_space<vmem>>, %arg2: memref<25x8x128xf32, #tpu.memory_space<vmem>>, %arg3: memref<1x128xf32, #tpu.memory_space<vmem>>, %arg4: memref<2x104xf32, #tpu.memory_space<vmem>>, %arg5: memref<1x2x128xf32, #tpu.memory_space<vmem>>, %arg6: memref<104x128xf32, #tpu.memory_space<vmem>>) attributes {dimension_semantics = [#tpu.dimension_semantics<parallel>], iteration_bounds = array<i64: 2>, scalar_prefetch = 0 : i64, scratch_operands = 1 : i64, tpu.core_type = #tpu.core_type<tc>, window_params = [{transform_indices = @transform_0, window_bounds = array<i64: 1, 128, 8>}, {pipeline_mode = #tpu.pipeline_mode<synchronous>, transform_indices = @transform_1, window_bounds = array<i64: 25, 8, 128>}, {pipeline_mode = #tpu.pipeline_mode<synchronous>, transform_indices = @transform_2, window_bounds = array<i64: 1, 128>}, {pipeline_mode = #tpu.pipeline_mode<synchronous>, transform_indices = @transform_3, window_bounds = array<i64: 2, 104>}, {transform_indices = @transform_4, window_bounds = array<i64: 1, 2, 128>}]} {
    %c0 = arith.constant 0 : index
    %c0_0 = arith.constant 0 : index
    %c0_1 = arith.constant 0 : index
    %0 = vector.load %arg1[%c0, %c0_0, %c0_1] : memref<1x128x8xf32, #tpu.memory_space<vmem>>, vector<1x104x8xf32>
    %1 = vector.shape_cast %0 : vector<1x104x8xf32> to vector<104x8xf32>
    %c0_2 = arith.constant 0 : index
    %c0_3 = arith.constant 0 : index
    %c0_4 = arith.constant 0 : index
    %2 = vector.load %arg2[%c0_2, %c0_3, %c0_4] : memref<25x8x128xf32, #tpu.memory_space<vmem>>, vector<1x8x128xf32>
    %3 = vector.shape_cast %2 : vector<1x8x128xf32> to vector<8x128xf32>
    %cst = arith.constant dense<0.000000e+00> : vector<104x128xf32>
    %4 = tpu.matmul %1, %3, %cst {dimension_numbers = #tpu.dot_dimension_numbers<[1], [0], [0], [1], [0, 0, 1, 1], [], []>} : vector<104x8xf32>, vector<8x128xf32>, vector<104x128xf32> -> vector<104x128xf32>
    %c0_5 = arith.constant 0 : index
    %c0_6 = arith.constant 0 : index
    %5 = vector.load %arg6[%c0_5, %c0_6] : memref<104x128xf32, #tpu.memory_space<vmem>>, vector<104x128xf32>
    tpu.vector_store %arg6[%c0_5, %c0_6], %4 {strides = array<i32>} : memref<104x128xf32, #tpu.memory_space<vmem>>, vector<104x128xf32>,
    %c0_7 = arith.constant 0 : index
    %c0_8 = arith.constant 0 : index
    %6 = vector.load %arg6[%c0_7, %c0_8] : memref<104x128xf32, #tpu.memory_space<vmem>>, vector<104x128xf32>
    %c0_9 = arith.constant 0 : index
    %c1 = arith.constant 1 : index
    %c0_10 = arith.constant 0 : index
    %7 = vector.load %arg1[%c0_9, %c1, %c0_10] : memref<1x128x8xf32, #tpu.memory_space<vmem>>, vector<1x104x8xf32>
    %8 = vector.shape_cast %7 : vector<1x104x8xf32> to vector<104x8xf32>
    %c1_11 = arith.constant 1 : index
    %c0_12 = arith.constant 0 : index
    %c0_13 = arith.constant 0 : index
    %9 = vector.load %arg2[%c1_11, %c0_12, %c0_13] : memref<25x8x128xf32, #tpu.memory_space<vmem>>, vector<1x8x128xf32>
    %10 = vector.shape_cast %9 : vector<1x8x128xf32> to vector<8x128xf32>
    %cst_14 = arith.constant dense<0.000000e+00> : vector<104x128xf32>
    %11 = tpu.matmul %8, %10, %cst_14 {dimension_numbers = #tpu.dot_dimension_numbers<[1], [0], [0], [1], [0, 0, 1, 1], [], []>} : vector<104x8xf32>, vector<8x128xf32>, vector<104x128xf32> -> vector<104x128xf32>
    %12 = arith.addf %6, %11 : vector<104x128xf32>
    %c0_15 = arith.constant 0 : index
    %c0_16 = arith.constant 0 : index
    %13 = vector.load %arg6[%c0_15, %c0_16] : memref<104x128xf32, #tpu.memory_space<vmem>>, vector<104x128xf32>
    tpu.vector_store %arg6[%c0_15, %c0_16], %12 {strides = array<i32>} : memref<104x128xf32, #tpu.memory_space<vmem>>, vector<104x128xf32>,
    %c0_17 = arith.constant 0 : index
    %c0_18 = arith.constant 0 : index
    %14 = vector.load %arg6[%c0_17, %c0_18] : memref<104x128xf32, #tpu.memory_space<vmem>>, vector<104x128xf32>
    %c0_19 = arith.constant 0 : index
    %c2 = arith.constant 2 : index
    %c0_20 = arith.constant 0 : index
    %15 = vector.load %arg1[%c0_19, %c2, %c0_20] : memref<1x128x8xf32, #tpu.memory_space<vmem>>, vector<1x104x8xf32>
    %16 = vector.shape_cast %15 : vector<1x104x8xf32> to vector<104x8xf32>
    %c2_21 = arith.constant 2 : index
    %c0_22 = arith.constant 0 : index
    %c0_23 = arith.constant 0 : index
    %17 = vector.load %arg2[%c2_21, %c0_22, %c0_23] : memref<25x8x128xf32, #tpu.memory_space<vmem>>, vector<1x8x128xf32>
    %18 = vector.shape_cast %17 : vector<1x8x128xf32> to vector<8x128xf32>
    %cst_24 = arith.constant dense<0.000000e+00> : vector<104x128xf32>
    %19 = tpu.matmul %16, %18, %cst_24 {dimension_numbers = #tpu.dot_dimension_numbers<[1], [0], [0], [1], [0, 0, 1, 1], [], []>} : vector<104x8xf32>, vector<8x128xf32>, vector<104x128xf32> -> vector<104x128xf32>
    %20 = arith.addf %14, %19 : vector<104x128xf32>
    %c0_25 = arith.constant 0 : index
    %c0_26 = arith.constant 0 : index
    %21 = vector.load %arg6[%c0_25, %c0_26] : memref<104x128xf32, #tpu.memory_space<vmem>>, vector<104x128xf32>
    tpu.vector_store %arg6[%c0_25, %c0_26], %20 {strides = array<i32>} : memref<104x128xf32, #tpu.memory_space<vmem>>, vector<104x128xf32>,
    %c0_27 = arith.constant 0 : index
    %c0_28 = arith.constant 0 : index
    %22 = vector.load %arg6[%c0_27, %c0_28] : memref<104x128xf32, #tpu.memory_space<vmem>>, vector<104x128xf32>
    %c0_29 = arith.constant 0 : index
    %c3 = arith.constant 3 : index
    %c0_30 = arith.constant 0 : index
    %23 = vector.load %arg1[%c0_29, %c3, %c0_30] : memref<1x128x8xf32, #tpu.memory_space<vmem>>, vector<1x104x8xf32>
    %24 = vector.shape_cast %23 : vector<1x104x8xf32> to vector<104x8xf32>
    %c3_31 = arith.constant 3 : index
    %c0_32 = arith.constant 0 : index
    %c0_33 = arith.constant 0 : index
    %25 = vector.load %arg2[%c3_31, %c0_32, %c0_33] : memref<25x8x128xf32, #tpu.memory_space<vmem>>, vector<1x8x128xf32>
    %26 = vector.shape_cast %25 : vector<1x8x128xf32> to vector<8x128xf32>
    %cst_34 = arith.constant dense<0.000000e+00> : vector<104x128xf32>
    %27 = tpu.matmul %24, %26, %cst_34 {dimension_numbers = #tpu.dot_dimension_numbers<[1], [0], [0], [1], [0, 0, 1, 1], [], []>} : vector<104x8xf32>, vector<8x128xf32>, vector<104x128xf32> -> vector<104x128xf32>
    %28 = arith.addf %22, %27 : vector<104x128xf32>
    %c0_35 = arith.constant 0 : index
    %c0_36 = arith.constant 0 : index
    %29 = vector.load %arg6[%c0_35, %c0_36] : memref<104x128xf32, #tpu.memory_space<vmem>>, vector<104x128xf32>
    tpu.vector_store %arg6[%c0_35, %c0_36], %28 {strides = array<i32>} : memref<104x128xf32, #tpu.memory_space<vmem>>, vector<104x128xf32>,
    %c0_37 = arith.constant 0 : index
    %c0_38 = arith.constant 0 : index
    %30 = vector.load %arg6[%c0_37, %c0_38] : memref<104x128xf32, #tpu.memory_space<vmem>>, vector<104x128xf32>
    %c0_39 = arith.constant 0 : index
    %c4 = arith.constant 4 : index
    %c0_40 = arith.constant 0 : index
    %31 = vector.load %arg1[%c0_39, %c4, %c0_40] : memref<1x128x8xf32, #tpu.memory_space<vmem>>, vector<1x104x8xf32>
    %32 = vector.shape_cast %31 : vector<1x104x8xf32> to vector<104x8xf32>
    %c4_41 = arith.constant 4 : index
    %c0_42 = arith.constant 0 : index
    %c0_43 = arith.constant 0 : index
    %33 = vector.load %arg2[%c4_41, %c0_42, %c0_43] : memref<25x8x128xf32, #tpu.memory_space<vmem>>, vector<1x8x128xf32>
    %34 = vector.shape_cast %33 : vector<1x8x128xf32> to vector<8x128xf32>
    %cst_44 = arith.constant dense<0.000000e+00> : vector<104x128xf32>
    %35 = tpu.matmul %32, %34, %cst_44 {dimension_numbers = #tpu.dot_dimension_numbers<[1], [0], [0], [1], [0, 0, 1, 1], [], []>} : vector<104x8xf32>, vector<8x128xf32>, vector<104x128xf32> -> vector<104x128xf32>
    %36 = arith.addf %30, %35 : vector<104x128xf32>
    %c0_45 = arith.constant 0 : index
    %c0_46 = arith.constant 0 : index
    %37 = vector.load %arg6[%c0_45, %c0_46] : memref<104x128xf32, #tpu.memory_space<vmem>>, vector<104x128xf32>
    tpu.vector_store %arg6[%c0_45, %c0_46], %36 {strides = array<i32>} : memref<104x128xf32, #tpu.memory_space<vmem>>, vector<104x128xf32>,
    %c0_47 = arith.constant 0 : index
    %c0_48 = arith.constant 0 : index
    %38 = vector.load %arg6[%c0_47, %c0_48] : memref<104x128xf32, #tpu.memory_space<vmem>>, vector<104x128xf32>
    %c0_49 = arith.constant 0 : index
    %c5 = arith.constant 5 : index
    %c0_50 = arith.constant 0 : index
    %39 = vector.load %arg1[%c0_49, %c5, %c0_50] : memref<1x128x8xf32, #tpu.memory_space<vmem>>, vector<1x104x8xf32>
    %40 = vector.shape_cast %39 : vector<1x104x8xf32> to vector<104x8xf32>
    %c5_51 = arith.constant 5 : index
    %c0_52 = arith.constant 0 : index
    %c0_53 = arith.constant 0 : index
    %41 = vector.load %arg2[%c5_51, %c0_52, %c0_53] : memref<25x8x128xf32, #tpu.memory_space<vmem>>, vector<1x8x128xf32>
    %42 = vector.shape_cast %41 : vector<1x8x128xf32> to vector<8x128xf32>
    %cst_54 = arith.constant dense<0.000000e+00> : vector<104x128xf32>
    %43 = tpu.matmul %40, %42, %cst_54 {dimension_numbers = #tpu.dot_dimension_numbers<[1], [0], [0], [1], [0, 0, 1, 1], [], []>} : vector<104x8xf32>, vector<8x128xf32>, vector<104x128xf32> -> vector<104x128xf32>
    %44 = arith.addf %38, %43 : vector<104x128xf32>
    %c0_55 = arith.constant 0 : index
    %c0_56 = arith.constant 0 : index
    %45 = vector.load %arg6[%c0_55, %c0_56] : memref<104x128xf32, #tpu.memory_space<vmem>>, vector<104x128xf32>
    tpu.vector_store %arg6[%c0_55, %c0_56], %44 {strides = array<i32>} : memref<104x128xf32, #tpu.memory_space<vmem>>, vector<104x128xf32>,
    %c0_57 = arith.constant 0 : index
    %c0_58 = arith.constant 0 : index
    %46 = vector.load %arg6[%c0_57, %c0_58] : memref<104x128xf32, #tpu.memory_space<vmem>>, vector<104x128xf32>
    %c0_59 = arith.constant 0 : index
    %c6 = arith.constant 6 : index
    %c0_60 = arith.constant 0 : index
    %47 = vector.load %arg1[%c0_59, %c6, %c0_60] : memref<1x128x8xf32, #tpu.memory_space<vmem>>, vector<1x104x8xf32>
    %48 = vector.shape_cast %47 : vector<1x104x8xf32> to vector<104x8xf32>
    %c6_61 = arith.constant 6 : index
    %c0_62 = arith.constant 0 : index
    %c0_63 = arith.constant 0 : index
    %49 = vector.load %arg2[%c6_61, %c0_62, %c0_63] : memref<25x8x128xf32, #tpu.memory_space<vmem>>, vector<1x8x128xf32>
    %50 = vector.shape_cast %49 : vector<1x8x128xf32> to vector<8x128xf32>
    %cst_64 = arith.constant dense<0.000000e+00> : vector<104x128xf32>
    %51 = tpu.matmul %48, %50, %cst_64 {dimension_numbers = #tpu.dot_dimension_numbers<[1], [0], [0], [1], [0, 0, 1, 1], [], []>} : vector<104x8xf32>, vector<8x128xf32>, vector<104x128xf32> -> vector<104x128xf32>
    %52 = arith.addf %46, %51 : vector<104x128xf32>
    %c0_65 = arith.constant 0 : index
    %c0_66 = arith.constant 0 : index
    %53 = vector.load %arg6[%c0_65, %c0_66] : memref<104x128xf32, #tpu.memory_space<vmem>>, vector<104x128xf32>
    tpu.vector_store %arg6[%c0_65, %c0_66], %52 {strides = array<i32>} : memref<104x128xf32, #tpu.memory_space<vmem>>, vector<104x128xf32>,
    %c0_67 = arith.constant 0 : index
    %c0_68 = arith.constant 0 : index
    %54 = vector.load %arg6[%c0_67, %c0_68] : memref<104x128xf32, #tpu.memory_space<vmem>>, vector<104x128xf32>
    %c0_69 = arith.constant 0 : index
    %c7 = arith.constant 7 : index
    %c0_70 = arith.constant 0 : index
    %55 = vector.load %arg1[%c0_69, %c7, %c0_70] : memref<1x128x8xf32, #tpu.memory_space<vmem>>, vector<1x104x8xf32>
    %56 = vector.shape_cast %55 : vector<1x104x8xf32> to vector<104x8xf32>
    %c7_71 = arith.constant 7 : index
    %c0_72 = arith.constant 0 : index
    %c0_73 = arith.constant 0 : index
    %57 = vector.load %arg2[%c7_71, %c0_72, %c0_73] : memref<25x8x128xf32, #tpu.memory_space<vmem>>, vector<1x8x128xf32>
    %58 = vector.shape_cast %57 : vector<1x8x128xf32> to vector<8x128xf32>
    %cst_74 = arith.constant dense<0.000000e+00> : vector<104x128xf32>
    %59 = tpu.matmul %56, %58, %cst_74 {dimension_numbers = #tpu.dot_dimension_numbers<[1], [0], [0], [1], [0, 0, 1, 1], [], []>} : vector<104x8xf32>, vector<8x128xf32>, vector<104x128xf32> -> vector<104x128xf32>
    %60 = arith.addf %54, %59 : vector<104x128xf32>
    %c0_75 = arith.constant 0 : index
    %c0_76 = arith.constant 0 : index
    %61 = vector.load %arg6[%c0_75, %c0_76] : memref<104x128xf32, #tpu.memory_space<vmem>>, vector<104x128xf32>
    tpu.vector_store %arg6[%c0_75, %c0_76], %60 {strides = array<i32>} : memref<104x128xf32, #tpu.memory_space<vmem>>, vector<104x128xf32>,
    %c0_77 = arith.constant 0 : index
    %c0_78 = arith.constant 0 : index
    %62 = vector.load %arg6[%c0_77, %c0_78] : memref<104x128xf32, #tpu.memory_space<vmem>>, vector<104x128xf32>
    %c0_79 = arith.constant 0 : index
    %c8 = arith.constant 8 : index
    %c0_80 = arith.constant 0 : index
    %63 = vector.load %arg1[%c0_79, %c8, %c0_80] : memref<1x128x8xf32, #tpu.memory_space<vmem>>, vector<1x104x8xf32>
    %64 = vector.shape_cast %63 : vector<1x104x8xf32> to vector<104x8xf32>
    %c8_81 = arith.constant 8 : index
    %c0_82 = arith.constant 0 : index
    %c0_83 = arith.constant 0 : index
    %65 = vector.load %arg2[%c8_81, %c0_82, %c0_83] : memref<25x8x128xf32, #tpu.memory_space<vmem>>, vector<1x8x128xf32>
    %66 = vector.shape_cast %65 : vector<1x8x128xf32> to vector<8x128xf32>
    %cst_84 = arith.constant dense<0.000000e+00> : vector<104x128xf32>
    %67 = tpu.matmul %64, %66, %cst_84 {dimension_numbers = #tpu.dot_dimension_numbers<[1], [0], [0], [1], [0, 0, 1, 1], [], []>} : vector<104x8xf32>, vector<8x128xf32>, vector<104x128xf32> -> vector<104x128xf32>
    %68 = arith.addf %62, %67 : vector<104x128xf32>
    %c0_85 = arith.constant 0 : index
    %c0_86 = arith.constant 0 : index
    %69 = vector.load %arg6[%c0_85, %c0_86] : memref<104x128xf32, #tpu.memory_space<vmem>>, vector<104x128xf32>
    tpu.vector_store %arg6[%c0_85, %c0_86], %68 {strides = array<i32>} : memref<104x128xf32, #tpu.memory_space<vmem>>, vector<104x128xf32>,
    %c0_87 = arith.constant 0 : index
    %c0_88 = arith.constant 0 : index
    %70 = vector.load %arg6[%c0_87, %c0_88] : memref<104x128xf32, #tpu.memory_space<vmem>>, vector<104x128xf32>
    %c0_89 = arith.constant 0 : index
    %c9 = arith.constant 9 : index
    %c0_90 = arith.constant 0 : index
    %71 = vector.load %arg1[%c0_89, %c9, %c0_90] : memref<1x128x8xf32, #tpu.memory_space<vmem>>, vector<1x104x8xf32>
    %72 = vector.shape_cast %71 : vector<1x104x8xf32> to vector<104x8xf32>
    %c9_91 = arith.constant 9 : index
    %c0_92 = arith.constant 0 : index
    %c0_93 = arith.constant 0 : index
    %73 = vector.load %arg2[%c9_91, %c0_92, %c0_93] : memref<25x8x128xf32, #tpu.memory_space<vmem>>, vector<1x8x128xf32>
    %74 = vector.shape_cast %73 : vector<1x8x128xf32> to vector<8x128xf32>
    %cst_94 = arith.constant dense<0.000000e+00> : vector<104x128xf32>
    %75 = tpu.matmul %72, %74, %cst_94 {dimension_numbers = #tpu.dot_dimension_numbers<[1], [0], [0], [1], [0, 0, 1, 1], [], []>} : vector<104x8xf32>, vector<8x128xf32>, vector<104x128xf32> -> vector<104x128xf32>
    %76 = arith.addf %70, %75 : vector<104x128xf32>
    %c0_95 = arith.constant 0 : index
    %c0_96 = arith.constant 0 : index
    %77 = vector.load %arg6[%c0_95, %c0_96] : memref<104x128xf32, #tpu.memory_space<vmem>>, vector<104x128xf32>
    tpu.vector_store %arg6[%c0_95, %c0_96], %76 {strides = array<i32>} : memref<104x128xf32, #tpu.memory_space<vmem>>, vector<104x128xf32>,
    %c0_97 = arith.constant 0 : index
    %c0_98 = arith.constant 0 : index
    %78 = vector.load %arg6[%c0_97, %c0_98] : memref<104x128xf32, #tpu.memory_space<vmem>>, vector<104x128xf32>
    %c0_99 = arith.constant 0 : index
    %c10 = arith.constant 10 : index
    %c0_100 = arith.constant 0 : index
    %79 = vector.load %arg1[%c0_99, %c10, %c0_100] : memref<1x128x8xf32, #tpu.memory_space<vmem>>, vector<1x104x8xf32>
    %80 = vector.shape_cast %79 : vector<1x104x8xf32> to vector<104x8xf32>
    %c10_101 = arith.constant 10 : index
    %c0_102 = arith.constant 0 : index
    %c0_103 = arith.constant 0 : index
    %81 = vector.load %arg2[%c10_101, %c0_102, %c0_103] : memref<25x8x128xf32, #tpu.memory_space<vmem>>, vector<1x8x128xf32>
    %82 = vector.shape_cast %81 : vector<1x8x128xf32> to vector<8x128xf32>
    %cst_104 = arith.constant dense<0.000000e+00> : vector<104x128xf32>
    %83 = tpu.matmul %80, %82, %cst_104 {dimension_numbers = #tpu.dot_dimension_numbers<[1], [0], [0], [1], [0, 0, 1, 1], [], []>} : vector<104x8xf32>, vector<8x128xf32>, vector<104x128xf32> -> vector<104x128xf32>
    %84 = arith.addf %78, %83 : vector<104x128xf32>
    %c0_105 = arith.constant 0 : index
    %c0_106 = arith.constant 0 : index
    %85 = vector.load %arg6[%c0_105, %c0_106] : memref<104x128xf32, #tpu.memory_space<vmem>>, vector<104x128xf32>
    tpu.vector_store %arg6[%c0_105, %c0_106], %84 {strides = array<i32>} : memref<104x128xf32, #tpu.memory_space<vmem>>, vector<104x128xf32>,
    %c0_107 = arith.constant 0 : index
    %c0_108 = arith.constant 0 : index
    %86 = vector.load %arg6[%c0_107, %c0_108] : memref<104x128xf32, #tpu.memory_space<vmem>>, vector<104x128xf32>
    %c0_109 = arith.constant 0 : index
    %c11 = arith.constant 11 : index
    %c0_110 = arith.constant 0 : index
    %87 = vector.load %arg1[%c0_109, %c11, %c0_110] : memref<1x128x8xf32, #tpu.memory_space<vmem>>, vector<1x104x8xf32>
    %88 = vector.shape_cast %87 : vector<1x104x8xf32> to vector<104x8xf32>
    %c11_111 = arith.constant 11 : index
    %c0_112 = arith.constant 0 : index
    %c0_113 = arith.constant 0 : index
    %89 = vector.load %arg2[%c11_111, %c0_112, %c0_113] : memref<25x8x128xf32, #tpu.memory_space<vmem>>, vector<1x8x128xf32>
    %90 = vector.shape_cast %89 : vector<1x8x128xf32> to vector<8x128xf32>
    %cst_114 = arith.constant dense<0.000000e+00> : vector<104x128xf32>
    %91 = tpu.matmul %88, %90, %cst_114 {dimension_numbers = #tpu.dot_dimension_numbers<[1], [0], [0], [1], [0, 0, 1, 1], [], []>} : vector<104x8xf32>, vector<8x128xf32>, vector<104x128xf32> -> vector<104x128xf32>
    %92 = arith.addf %86, %91 : vector<104x128xf32>
    %c0_115 = arith.constant 0 : index
    %c0_116 = arith.constant 0 : index
    %93 = vector.load %arg6[%c0_115, %c0_116] : memref<104x128xf32, #tpu.memory_space<vmem>>, vector<104x128xf32>
    tpu.vector_store %arg6[%c0_115, %c0_116], %92 {strides = array<i32>} : memref<104x128xf32, #tpu.memory_space<vmem>>, vector<104x128xf32>,
    %c0_117 = arith.constant 0 : index
    %c0_118 = arith.constant 0 : index
    %94 = vector.load %arg6[%c0_117, %c0_118] : memref<104x128xf32, #tpu.memory_space<vmem>>, vector<104x128xf32>
    %c0_119 = arith.constant 0 : index
    %c12 = arith.constant 12 : index
    %c0_120 = arith.constant 0 : index
    %95 = vector.load %arg1[%c0_119, %c12, %c0_120] : memref<1x128x8xf32, #tpu.memory_space<vmem>>, vector<1x104x8xf32>
    %96 = vector.shape_cast %95 : vector<1x104x8xf32> to vector<104x8xf32>
    %c12_121 = arith.constant 12 : index
    %c0_122 = arith.constant 0 : index
    %c0_123 = arith.constant 0 : index
    %97 = vector.load %arg2[%c12_121, %c0_122, %c0_123] : memref<25x8x128xf32, #tpu.memory_space<vmem>>, vector<1x8x128xf32>
    %98 = vector.shape_cast %97 : vector<1x8x128xf32> to vector<8x128xf32>
    %cst_124 = arith.constant dense<0.000000e+00> : vector<104x128xf32>
    %99 = tpu.matmul %96, %98, %cst_124 {dimension_numbers = #tpu.dot_dimension_numbers<[1], [0], [0], [1], [0, 0, 1, 1], [], []>} : vector<104x8xf32>, vector<8x128xf32>, vector<104x128xf32> -> vector<104x128xf32>
    %100 = arith.addf %94, %99 : vector<104x128xf32>
    %c0_125 = arith.constant 0 : index
    %c0_126 = arith.constant 0 : index
    %101 = vector.load %arg6[%c0_125, %c0_126] : memref<104x128xf32, #tpu.memory_space<vmem>>, vector<104x128xf32>
    tpu.vector_store %arg6[%c0_125, %c0_126], %100 {strides = array<i32>} : memref<104x128xf32, #tpu.memory_space<vmem>>, vector<104x128xf32>,
    %c0_127 = arith.constant 0 : index
    %c0_128 = arith.constant 0 : index
    %102 = vector.load %arg6[%c0_127, %c0_128] : memref<104x128xf32, #tpu.memory_space<vmem>>, vector<104x128xf32>
    %c0_129 = arith.constant 0 : index
    %c13 = arith.constant 13 : index
    %c0_130 = arith.constant 0 : index
    %103 = vector.load %arg1[%c0_129, %c13, %c0_130] : memref<1x128x8xf32, #tpu.memory_space<vmem>>, vector<1x104x8xf32>
    %104 = vector.shape_cast %103 : vector<1x104x8xf32> to vector<104x8xf32>
    %c13_131 = arith.constant 13 : index
    %c0_132 = arith.constant 0 : index
    %c0_133 = arith.constant 0 : index
    %105 = vector.load %arg2[%c13_131, %c0_132, %c0_133] : memref<25x8x128xf32, #tpu.memory_space<vmem>>, vector<1x8x128xf32>
    %106 = vector.shape_cast %105 : vector<1x8x128xf32> to vector<8x128xf32>
    %cst_134 = arith.constant dense<0.000000e+00> : vector<104x128xf32>
    %107 = tpu.matmul %104, %106, %cst_134 {dimension_numbers = #tpu.dot_dimension_numbers<[1], [0], [0], [1], [0, 0, 1, 1], [], []>} : vector<104x8xf32>, vector<8x128xf32>, vector<104x128xf32> -> vector<104x128xf32>
    %108 = arith.addf %102, %107 : vector<104x128xf32>
    %c0_135 = arith.constant 0 : index
    %c0_136 = arith.constant 0 : index
    %109 = vector.load %arg6[%c0_135, %c0_136] : memref<104x128xf32, #tpu.memory_space<vmem>>, vector<104x128xf32>
    tpu.vector_store %arg6[%c0_135, %c0_136], %108 {strides = array<i32>} : memref<104x128xf32, #tpu.memory_space<vmem>>, vector<104x128xf32>,
    %c0_137 = arith.constant 0 : index
    %c0_138 = arith.constant 0 : index
    %110 = vector.load %arg6[%c0_137, %c0_138] : memref<104x128xf32, #tpu.memory_space<vmem>>, vector<104x128xf32>
    %c0_139 = arith.constant 0 : index
    %c14 = arith.constant 14 : index
    %c0_140 = arith.constant 0 : index
    %111 = vector.load %arg1[%c0_139, %c14, %c0_140] : memref<1x128x8xf32, #tpu.memory_space<vmem>>, vector<1x104x8xf32>
    %112 = vector.shape_cast %111 : vector<1x104x8xf32> to vector<104x8xf32>
    %c14_141 = arith.constant 14 : index
    %c0_142 = arith.constant 0 : index
    %c0_143 = arith.constant 0 : index
    %113 = vector.load %arg2[%c14_141, %c0_142, %c0_143] : memref<25x8x128xf32, #tpu.memory_space<vmem>>, vector<1x8x128xf32>
    %114 = vector.shape_cast %113 : vector<1x8x128xf32> to vector<8x128xf32>
    %cst_144 = arith.constant dense<0.000000e+00> : vector<104x128xf32>
    %115 = tpu.matmul %112, %114, %cst_144 {dimension_numbers = #tpu.dot_dimension_numbers<[1], [0], [0], [1], [0, 0, 1, 1], [], []>} : vector<104x8xf32>, vector<8x128xf32>, vector<104x128xf32> -> vector<104x128xf32>
    %116 = arith.addf %110, %115 : vector<104x128xf32>
    %c0_145 = arith.constant 0 : index
    %c0_146 = arith.constant 0 : index
    %117 = vector.load %arg6[%c0_145, %c0_146] : memref<104x128xf32, #tpu.memory_space<vmem>>, vector<104x128xf32>
    tpu.vector_store %arg6[%c0_145, %c0_146], %116 {strides = array<i32>} : memref<104x128xf32, #tpu.memory_space<vmem>>, vector<104x128xf32>,
    %c0_147 = arith.constant 0 : index
    %c0_148 = arith.constant 0 : index
    %118 = vector.load %arg6[%c0_147, %c0_148] : memref<104x128xf32, #tpu.memory_space<vmem>>, vector<104x128xf32>
    %c0_149 = arith.constant 0 : index
    %c15 = arith.constant 15 : index
    %c0_150 = arith.constant 0 : index
    %119 = vector.load %arg1[%c0_149, %c15, %c0_150] : memref<1x128x8xf32, #tpu.memory_space<vmem>>, vector<1x104x8xf32>
    %120 = vector.shape_cast %119 : vector<1x104x8xf32> to vector<104x8xf32>
    %c15_151 = arith.constant 15 : index
    %c0_152 = arith.constant 0 : index
    %c0_153 = arith.constant 0 : index
    %121 = vector.load %arg2[%c15_151, %c0_152, %c0_153] : memref<25x8x128xf32, #tpu.memory_space<vmem>>, vector<1x8x128xf32>
    %122 = vector.shape_cast %121 : vector<1x8x128xf32> to vector<8x128xf32>
    %cst_154 = arith.constant dense<0.000000e+00> : vector<104x128xf32>
    %123 = tpu.matmul %120, %122, %cst_154 {dimension_numbers = #tpu.dot_dimension_numbers<[1], [0], [0], [1], [0, 0, 1, 1], [], []>} : vector<104x8xf32>, vector<8x128xf32>, vector<104x128xf32> -> vector<104x128xf32>
    %124 = arith.addf %118, %123 : vector<104x128xf32>
    %c0_155 = arith.constant 0 : index
    %c0_156 = arith.constant 0 : index
    %125 = vector.load %arg6[%c0_155, %c0_156] : memref<104x128xf32, #tpu.memory_space<vmem>>, vector<104x128xf32>
    tpu.vector_store %arg6[%c0_155, %c0_156], %124 {strides = array<i32>} : memref<104x128xf32, #tpu.memory_space<vmem>>, vector<104x128xf32>,
    %c0_157 = arith.constant 0 : index
    %c0_158 = arith.constant 0 : index
    %126 = vector.load %arg6[%c0_157, %c0_158] : memref<104x128xf32, #tpu.memory_space<vmem>>, vector<104x128xf32>
    %c0_159 = arith.constant 0 : index
    %c16 = arith.constant 16 : index
    %c0_160 = arith.constant 0 : index
    %127 = vector.load %arg1[%c0_159, %c16, %c0_160] : memref<1x128x8xf32, #tpu.memory_space<vmem>>, vector<1x104x8xf32>
    %128 = vector.shape_cast %127 : vector<1x104x8xf32> to vector<104x8xf32>
    %c16_161 = arith.constant 16 : index
    %c0_162 = arith.constant 0 : index
    %c0_163 = arith.constant 0 : index
    %129 = vector.load %arg2[%c16_161, %c0_162, %c0_163] : memref<25x8x128xf32, #tpu.memory_space<vmem>>, vector<1x8x128xf32>
    %130 = vector.shape_cast %129 : vector<1x8x128xf32> to vector<8x128xf32>
    %cst_164 = arith.constant dense<0.000000e+00> : vector<104x128xf32>
    %131 = tpu.matmul %128, %130, %cst_164 {dimension_numbers = #tpu.dot_dimension_numbers<[1], [0], [0], [1], [0, 0, 1, 1], [], []>} : vector<104x8xf32>, vector<8x128xf32>, vector<104x128xf32> -> vector<104x128xf32>
    %132 = arith.addf %126, %131 : vector<104x128xf32>
    %c0_165 = arith.constant 0 : index
    %c0_166 = arith.constant 0 : index
    %133 = vector.load %arg6[%c0_165, %c0_166] : memref<104x128xf32, #tpu.memory_space<vmem>>, vector<104x128xf32>
    tpu.vector_store %arg6[%c0_165, %c0_166], %132 {strides = array<i32>} : memref<104x128xf32, #tpu.memory_space<vmem>>, vector<104x128xf32>,
    %c0_167 = arith.constant 0 : index
    %c0_168 = arith.constant 0 : index
    %134 = vector.load %arg6[%c0_167, %c0_168] : memref<104x128xf32, #tpu.memory_space<vmem>>, vector<104x128xf32>
    %c0_169 = arith.constant 0 : index
    %c17 = arith.constant 17 : index
    %c0_170 = arith.constant 0 : index
    %135 = vector.load %arg1[%c0_169, %c17, %c0_170] : memref<1x128x8xf32, #tpu.memory_space<vmem>>, vector<1x104x8xf32>
    %136 = vector.shape_cast %135 : vector<1x104x8xf32> to vector<104x8xf32>
    %c17_171 = arith.constant 17 : index
    %c0_172 = arith.constant 0 : index
    %c0_173 = arith.constant 0 : index
    %137 = vector.load %arg2[%c17_171, %c0_172, %c0_173] : memref<25x8x128xf32, #tpu.memory_space<vmem>>, vector<1x8x128xf32>
    %138 = vector.shape_cast %137 : vector<1x8x128xf32> to vector<8x128xf32>
    %cst_174 = arith.constant dense<0.000000e+00> : vector<104x128xf32>
    %139 = tpu.matmul %136, %138, %cst_174 {dimension_numbers = #tpu.dot_dimension_numbers<[1], [0], [0], [1], [0, 0, 1, 1], [], []>} : vector<104x8xf32>, vector<8x128xf32>, vector<104x128xf32> -> vector<104x128xf32>
    %140 = arith.addf %134, %139 : vector<104x128xf32>
    %c0_175 = arith.constant 0 : index
    %c0_176 = arith.constant 0 : index
    %141 = vector.load %arg6[%c0_175, %c0_176] : memref<104x128xf32, #tpu.memory_space<vmem>>, vector<104x128xf32>
    tpu.vector_store %arg6[%c0_175, %c0_176], %140 {strides = array<i32>} : memref<104x128xf32, #tpu.memory_space<vmem>>, vector<104x128xf32>,
    %c0_177 = arith.constant 0 : index
    %c0_178 = arith.constant 0 : index
    %142 = vector.load %arg6[%c0_177, %c0_178] : memref<104x128xf32, #tpu.memory_space<vmem>>, vector<104x128xf32>
    %c0_179 = arith.constant 0 : index
    %c18 = arith.constant 18 : index
    %c0_180 = arith.constant 0 : index
    %143 = vector.load %arg1[%c0_179, %c18, %c0_180] : memref<1x128x8xf32, #tpu.memory_space<vmem>>, vector<1x104x8xf32>
    %144 = vector.shape_cast %143 : vector<1x104x8xf32> to vector<104x8xf32>
    %c18_181 = arith.constant 18 : index
    %c0_182 = arith.constant 0 : index
    %c0_183 = arith.constant 0 : index
    %145 = vector.load %arg2[%c18_181, %c0_182, %c0_183] : memref<25x8x128xf32, #tpu.memory_space<vmem>>, vector<1x8x128xf32>
    %146 = vector.shape_cast %145 : vector<1x8x128xf32> to vector<8x128xf32>
    %cst_184 = arith.constant dense<0.000000e+00> : vector<104x128xf32>
    %147 = tpu.matmul %144, %146, %cst_184 {dimension_numbers = #tpu.dot_dimension_numbers<[1], [0], [0], [1], [0, 0, 1, 1], [], []>} : vector<104x8xf32>, vector<8x128xf32>, vector<104x128xf32> -> vector<104x128xf32>
    %148 = arith.addf %142, %147 : vector<104x128xf32>
    %c0_185 = arith.constant 0 : index
    %c0_186 = arith.constant 0 : index
    %149 = vector.load %arg6[%c0_185, %c0_186] : memref<104x128xf32, #tpu.memory_space<vmem>>, vector<104x128xf32>
    tpu.vector_store %arg6[%c0_185, %c0_186], %148 {strides = array<i32>} : memref<104x128xf32, #tpu.memory_space<vmem>>, vector<104x128xf32>,
    %c0_187 = arith.constant 0 : index
    %c0_188 = arith.constant 0 : index
    %150 = vector.load %arg6[%c0_187, %c0_188] : memref<104x128xf32, #tpu.memory_space<vmem>>, vector<104x128xf32>
    %c0_189 = arith.constant 0 : index
    %c19 = arith.constant 19 : index
    %c0_190 = arith.constant 0 : index
    %151 = vector.load %arg1[%c0_189, %c19, %c0_190] : memref<1x128x8xf32, #tpu.memory_space<vmem>>, vector<1x104x8xf32>
    %152 = vector.shape_cast %151 : vector<1x104x8xf32> to vector<104x8xf32>
    %c19_191 = arith.constant 19 : index
    %c0_192 = arith.constant 0 : index
    %c0_193 = arith.constant 0 : index
    %153 = vector.load %arg2[%c19_191, %c0_192, %c0_193] : memref<25x8x128xf32, #tpu.memory_space<vmem>>, vector<1x8x128xf32>
    %154 = vector.shape_cast %153 : vector<1x8x128xf32> to vector<8x128xf32>
    %cst_194 = arith.constant dense<0.000000e+00> : vector<104x128xf32>
    %155 = tpu.matmul %152, %154, %cst_194 {dimension_numbers = #tpu.dot_dimension_numbers<[1], [0], [0], [1], [0, 0, 1, 1], [], []>} : vector<104x8xf32>, vector<8x128xf32>, vector<104x128xf32> -> vector<104x128xf32>
    %156 = arith.addf %150, %155 : vector<104x128xf32>
    %c0_195 = arith.constant 0 : index
    %c0_196 = arith.constant 0 : index
    %157 = vector.load %arg6[%c0_195, %c0_196] : memref<104x128xf32, #tpu.memory_space<vmem>>, vector<104x128xf32>
    tpu.vector_store %arg6[%c0_195, %c0_196], %156 {strides = array<i32>} : memref<104x128xf32, #tpu.memory_space<vmem>>, vector<104x128xf32>,
    %c0_197 = arith.constant 0 : index
    %c0_198 = arith.constant 0 : index
    %158 = vector.load %arg6[%c0_197, %c0_198] : memref<104x128xf32, #tpu.memory_space<vmem>>, vector<104x128xf32>
    %c0_199 = arith.constant 0 : index
    %c20 = arith.constant 20 : index
    %c0_200 = arith.constant 0 : index
    %159 = vector.load %arg1[%c0_199, %c20, %c0_200] : memref<1x128x8xf32, #tpu.memory_space<vmem>>, vector<1x104x8xf32>
    %160 = vector.shape_cast %159 : vector<1x104x8xf32> to vector<104x8xf32>
    %c20_201 = arith.constant 20 : index
    %c0_202 = arith.constant 0 : index
    %c0_203 = arith.constant 0 : index
    %161 = vector.load %arg2[%c20_201, %c0_202, %c0_203] : memref<25x8x128xf32, #tpu.memory_space<vmem>>, vector<1x8x128xf32>
    %162 = vector.shape_cast %161 : vector<1x8x128xf32> to vector<8x128xf32>
    %cst_204 = arith.constant dense<0.000000e+00> : vector<104x128xf32>
    %163 = tpu.matmul %160, %162, %cst_204 {dimension_numbers = #tpu.dot_dimension_numbers<[1], [0], [0], [1], [0, 0, 1, 1], [], []>} : vector<104x8xf32>, vector<8x128xf32>, vector<104x128xf32> -> vector<104x128xf32>
    %164 = arith.addf %158, %163 : vector<104x128xf32>
    %c0_205 = arith.constant 0 : index
    %c0_206 = arith.constant 0 : index
    %165 = vector.load %arg6[%c0_205, %c0_206] : memref<104x128xf32, #tpu.memory_space<vmem>>, vector<104x128xf32>
    tpu.vector_store %arg6[%c0_205, %c0_206], %164 {strides = array<i32>} : memref<104x128xf32, #tpu.memory_space<vmem>>, vector<104x128xf32>,
    %c0_207 = arith.constant 0 : index
    %c0_208 = arith.constant 0 : index
    %166 = vector.load %arg6[%c0_207, %c0_208] : memref<104x128xf32, #tpu.memory_space<vmem>>, vector<104x128xf32>
    %c0_209 = arith.constant 0 : index
    %c21 = arith.constant 21 : index
    %c0_210 = arith.constant 0 : index
    %167 = vector.load %arg1[%c0_209, %c21, %c0_210] : memref<1x128x8xf32, #tpu.memory_space<vmem>>, vector<1x104x8xf32>
    %168 = vector.shape_cast %167 : vector<1x104x8xf32> to vector<104x8xf32>
    %c21_211 = arith.constant 21 : index
    %c0_212 = arith.constant 0 : index
    %c0_213 = arith.constant 0 : index
    %169 = vector.load %arg2[%c21_211, %c0_212, %c0_213] : memref<25x8x128xf32, #tpu.memory_space<vmem>>, vector<1x8x128xf32>
    %170 = vector.shape_cast %169 : vector<1x8x128xf32> to vector<8x128xf32>
    %cst_214 = arith.constant dense<0.000000e+00> : vector<104x128xf32>
    %171 = tpu.matmul %168, %170, %cst_214 {dimension_numbers = #tpu.dot_dimension_numbers<[1], [0], [0], [1], [0, 0, 1, 1], [], []>} : vector<104x8xf32>, vector<8x128xf32>, vector<104x128xf32> -> vector<104x128xf32>
    %172 = arith.addf %166, %171 : vector<104x128xf32>
    %c0_215 = arith.constant 0 : index
    %c0_216 = arith.constant 0 : index
    %173 = vector.load %arg6[%c0_215, %c0_216] : memref<104x128xf32, #tpu.memory_space<vmem>>, vector<104x128xf32>
    tpu.vector_store %arg6[%c0_215, %c0_216], %172 {strides = array<i32>} : memref<104x128xf32, #tpu.memory_space<vmem>>, vector<104x128xf32>,
    %c0_217 = arith.constant 0 : index
    %c0_218 = arith.constant 0 : index
    %174 = vector.load %arg6[%c0_217, %c0_218] : memref<104x128xf32, #tpu.memory_space<vmem>>, vector<104x128xf32>
    %c0_219 = arith.constant 0 : index
    %c22 = arith.constant 22 : index
    %c0_220 = arith.constant 0 : index
    %175 = vector.load %arg1[%c0_219, %c22, %c0_220] : memref<1x128x8xf32, #tpu.memory_space<vmem>>, vector<1x104x8xf32>
    %176 = vector.shape_cast %175 : vector<1x104x8xf32> to vector<104x8xf32>
    %c22_221 = arith.constant 22 : index
    %c0_222 = arith.constant 0 : index
    %c0_223 = arith.constant 0 : index
    %177 = vector.load %arg2[%c22_221, %c0_222, %c0_223] : memref<25x8x128xf32, #tpu.memory_space<vmem>>, vector<1x8x128xf32>
    %178 = vector.shape_cast %177 : vector<1x8x128xf32> to vector<8x128xf32>
    %cst_224 = arith.constant dense<0.000000e+00> : vector<104x128xf32>
    %179 = tpu.matmul %176, %178, %cst_224 {dimension_numbers = #tpu.dot_dimension_numbers<[1], [0], [0], [1], [0, 0, 1, 1], [], []>} : vector<104x8xf32>, vector<8x128xf32>, vector<104x128xf32> -> vector<104x128xf32>
    %180 = arith.addf %174, %179 : vector<104x128xf32>
    %c0_225 = arith.constant 0 : index
    %c0_226 = arith.constant 0 : index
    %181 = vector.load %arg6[%c0_225, %c0_226] : memref<104x128xf32, #tpu.memory_space<vmem>>, vector<104x128xf32>
    tpu.vector_store %arg6[%c0_225, %c0_226], %180 {strides = array<i32>} : memref<104x128xf32, #tpu.memory_space<vmem>>, vector<104x128xf32>,
    %c0_227 = arith.constant 0 : index
    %c0_228 = arith.constant 0 : index
    %182 = vector.load %arg6[%c0_227, %c0_228] : memref<104x128xf32, #tpu.memory_space<vmem>>, vector<104x128xf32>
    %c0_229 = arith.constant 0 : index
    %c23 = arith.constant 23 : index
    %c0_230 = arith.constant 0 : index
    %183 = vector.load %arg1[%c0_229, %c23, %c0_230] : memref<1x128x8xf32, #tpu.memory_space<vmem>>, vector<1x104x8xf32>
    %184 = vector.shape_cast %183 : vector<1x104x8xf32> to vector<104x8xf32>
    %c23_231 = arith.constant 23 : index
    %c0_232 = arith.constant 0 : index
    %c0_233 = arith.constant 0 : index
    %185 = vector.load %arg2[%c23_231, %c0_232, %c0_233] : memref<25x8x128xf32, #tpu.memory_space<vmem>>, vector<1x8x128xf32>
    %186 = vector.shape_cast %185 : vector<1x8x128xf32> to vector<8x128xf32>
    %cst_234 = arith.constant dense<0.000000e+00> : vector<104x128xf32>
    %187 = tpu.matmul %184, %186, %cst_234 {dimension_numbers = #tpu.dot_dimension_numbers<[1], [0], [0], [1], [0, 0, 1, 1], [], []>} : vector<104x8xf32>, vector<8x128xf32>, vector<104x128xf32> -> vector<104x128xf32>
    %188 = arith.addf %182, %187 : vector<104x128xf32>
    %c0_235 = arith.constant 0 : index
    %c0_236 = arith.constant 0 : index
    %189 = vector.load %arg6[%c0_235, %c0_236] : memref<104x128xf32, #tpu.memory_space<vmem>>, vector<104x128xf32>
    tpu.vector_store %arg6[%c0_235, %c0_236], %188 {strides = array<i32>} : memref<104x128xf32, #tpu.memory_space<vmem>>, vector<104x128xf32>,
    %c0_237 = arith.constant 0 : index
    %c0_238 = arith.constant 0 : index
    %190 = vector.load %arg6[%c0_237, %c0_238] : memref<104x128xf32, #tpu.memory_space<vmem>>, vector<104x128xf32>
    %c0_239 = arith.constant 0 : index
    %c24 = arith.constant 24 : index
    %c0_240 = arith.constant 0 : index
    %191 = vector.load %arg1[%c0_239, %c24, %c0_240] : memref<1x128x8xf32, #tpu.memory_space<vmem>>, vector<1x104x8xf32>
    %192 = vector.shape_cast %191 : vector<1x104x8xf32> to vector<104x8xf32>
    %c24_241 = arith.constant 24 : index
    %c0_242 = arith.constant 0 : index
    %c0_243 = arith.constant 0 : index
    %193 = vector.load %arg2[%c24_241, %c0_242, %c0_243] : memref<25x8x128xf32, #tpu.memory_space<vmem>>, vector<1x8x128xf32>
    %194 = vector.shape_cast %193 : vector<1x8x128xf32> to vector<8x128xf32>
    %cst_244 = arith.constant dense<0.000000e+00> : vector<104x128xf32>
    %195 = tpu.matmul %192, %194, %cst_244 {dimension_numbers = #tpu.dot_dimension_numbers<[1], [0], [0], [1], [0, 0, 1, 1], [], []>} : vector<104x8xf32>, vector<8x128xf32>, vector<104x128xf32> -> vector<104x128xf32>
    %196 = arith.addf %190, %195 : vector<104x128xf32>
    %c0_245 = arith.constant 0 : index
    %c0_246 = arith.constant 0 : index
    %197 = vector.load %arg6[%c0_245, %c0_246] : memref<104x128xf32, #tpu.memory_space<vmem>>, vector<104x128xf32>
    tpu.vector_store %arg6[%c0_245, %c0_246], %196 {strides = array<i32>} : memref<104x128xf32, #tpu.memory_space<vmem>>, vector<104x128xf32>,
    %c0_247 = arith.constant 0 : index
    %c0_248 = arith.constant 0 : index
    %198 = vector.load %arg6[%c0_247, %c0_248] : memref<104x128xf32, #tpu.memory_space<vmem>>, vector<104x128xf32>
    %c0_249 = arith.constant 0 : index
    %c0_250 = arith.constant 0 : index
    %199 = vector.load %arg3[%c0_249, %c0_250] : memref<1x128xf32, #tpu.memory_space<vmem>>, vector<1x128xf32>
    %200 = vector.broadcast %199 : vector<1x128xf32> to vector<104x128xf32>
    %201 = arith.addf %198, %200 : vector<104x128xf32>
    %202 = arith.mulf %201, %201 : vector<104x128xf32>
    %c0_251 = arith.constant 0 : index
    %c0_252 = arith.constant 0 : index
    %203 = vector.load %arg4[%c0_251, %c0_252] : memref<2x104xf32, #tpu.memory_space<vmem>>, vector<2x104xf32>
    %cst_253 = arith.constant dense<0.000000e+00> : vector<2x128xf32>
    %204 = tpu.matmul %203, %202, %cst_253 {dimension_numbers = #tpu.dot_dimension_numbers<[1], [0], [0], [1], [0, 0, 1, 1], [], []>} : vector<2x104xf32>, vector<104x128xf32>, vector<2x128xf32> -> vector<2x128xf32>
    %cst_254 = arith.constant 9.99999997E-7 : f32
    %205 = vector.broadcast %cst_254 : f32 to vector<2x128xf32>
    %206 = arith.maximumf %204, %205 : vector<2x128xf32>
    %207 = math.log %206 : vector<2x128xf32>
    %c0_255 = arith.constant 0 : index
    %c0_256 = arith.constant 0 : index
    %c0_257 = arith.constant 0 : index
    %208 = vector.load %arg5[%c0_255, %c0_256, %c0_257] : memref<1x2x128xf32, #tpu.memory_space<vmem>>, vector<1x2x128xf32>
    %209 = vector.shape_cast %208 : vector<1x2x128xf32> to vector<2x128xf32>
    %210 = vector.shape_cast %207 : vector<2x128xf32> to vector<1x2x128xf32>
    tpu.vector_store %arg5[%c0_255, %c0_256, %c0_257], %210 {strides = array<i32>} : memref<1x2x128xf32, #tpu.memory_space<vmem>>, vector<1x2x128xf32>,
    return
  }
  func.func @transform_0(%arg0: i32) -> (i32, i32, i32) {
    %c0_i32 = arith.constant 0 : i32
    %c0_i32_0 = arith.constant 0 : i32
    %c0_i32_1 = arith.constant 0 : i32
    return %arg0, %c0_i32, %c0_i32_0 : i32, i32, i32
  }
  func.func @transform_1(%arg0: i32) -> (i32, i32, i32) {
    %c0_i32 = arith.constant 0 : i32
    %c0_i32_0 = arith.constant 0 : i32
    %c0_i32_1 = arith.constant 0 : i32
    %c0_i32_2 = arith.constant 0 : i32
    return %c0_i32, %c0_i32_0, %c0_i32_1 : i32, i32, i32
  }
  func.func @transform_2(%arg0: i32) -> (i32, i32) {
    %c0_i32 = arith.constant 0 : i32
    %c0_i32_0 = arith.constant 0 : i32
    %c0_i32_1 = arith.constant 0 : i32
    return %c0_i32, %c0_i32_0 : i32, i32
  }
  func.func @transform_3(%arg0: i32) -> (i32, i32) {
    %c0_i32 = arith.constant 0 : i32
    %c0_i32_0 = arith.constant 0 : i32
    %c0_i32_1 = arith.constant 0 : i32
    return %c0_i32, %c0_i32_0 : i32, i32
  }
  func.func @transform_4(%arg0: i32) -> (i32, i32, i32) {
    %c0_i32 = arith.constant 0 : i32
    %c0_i32_0 = arith.constant 0 : i32
    %c0_i32_1 = arith.constant 0 : i32
    return %arg0, %c0_i32, %c0_i32_0 : i32, i32, i32
  }
}

</mosaic_0001>

<llo_original>
// kernel: create_base_forward.1
$region0: #{create_base_forward.1}
  #allocation0 [shape = 'u32[]', space=smem, size = 0x4, offset = 0x4, fixed_abs, tag = 'smem constant byte address 0x4 - core index']
  #allocation1 [shape = 'u32[144,128]{1,0:T(1,128)}', space=vmem, size = 0x12000, scoped, tag = 'internal scratch']
  #allocation2 [shape = 'f32[104,128]{1,0:T(8,128)}', space=vmem, size = 0xd000, scoped, tag = 'scratch operand']
  %s0 = inlined_call_operand.vmem [shape: f32[2,128,8], index: 0, kind: input, shape index: {}]
  %s1 = inlined_call_operand.vmem [shape: f32[25,8,128], index: 1, kind: input, shape index: {}]
  %s2 = inlined_call_operand.vmem [shape: f32[1,128], index: 2, kind: input, shape index: {}]
  %s3 = inlined_call_operand.vmem [shape: f32[2,104], index: 3, kind: input, shape index: {}]
  %s4 = inlined_call_operand.hbm [shape: f32[2,2,128], index: 4, kind: output, shape index: {}]
  %s5 = sld [smem:[#allocation0]]
  $region49: #{create_base_forward.1} parent=0
    _
  %s7 = ssub.s32 1, %s5
  %s8 = scalar_select 0, %s7, %s5
  $region1: #{create_base_forward.1} parent=0
    #allocation3 [shape = 'u8[2048]{0}', space=vmem, size = 0x800, scoped, tag = 'output window, operand 0']
    #allocation4 [shape = 's32[2]{0}', space=sflag, size = 0x8, scoped, tag = 'scoped memory for create_base_forward.1']
    %9 = vsyncpa [#allocation4], 0
    %s10 = scalar_lea.sflag [#allocation4], 1
    %11 = vsyncpa %s10, 0
    loop: start=0, step=1, limit=4
    $region2: #{create_base_forward.1} parent=1 // loop_pre_header
      _
    $region3: #{create_base_forward.1} parent=1 // loop_header
      %s13 = sphi 0, %s17
      %p14 = scmp.ge.s32.totalorder %s13, 4
      %s23 = sphi 0, %s25
      %s26 = sphi 0, %s23
      %s27 = sphi 0, %s26
      %s43 = sphi 0, %s27
      %s47 = sphi 0, %s47
      %s49 = sphi 0, %s47
      %s50 = sphi 0, %s49
      %s64 = sphi 0, %s50
      %s68 = sphi 0, %s68
      %s70 = sphi 0, %s68
      %s71 = sphi 0, %s70
      %s85 = sphi 0, %s71
      %s89 = sphi 0, %s89
      %s91 = sphi 0, %s89
      %s92 = sphi 0, %s91
      %s106 = sphi 0, %s92
      %s112 = sphi 0, %s114
      %s115 = sphi 0, %s112
      %s116 = sphi 0, %s115
      %s132 = sphi 0, %s116
    $region4: #{create_base_forward.1} parent=1 // loop_header_branch
      %16 = sbr.rel (%p14) target = $region8
    $region5: #{create_base_forward.1} parent=1 // loop_body
      %s18 = ssub.s32 %s13, 1
      %s19 = ssub.s32 %s13, 2
      %s20 = sadd.s32 %s13, 1
      %s21 = ssub.s32 %s13, %s20
      %p22 = scmp.eq.s32.totalorder %s21, 0
      %s24 = sadd.s32 %s23, 1
      %s25 = scalar_select %p22, %s23, %s24
      %p28 = pneg %p22
      %p29 = scmp.eq.s32.totalorder %s13, 1
      %p30 = por %p28, %p29
      %p31 = scmp.ne.s32.totalorder %s23, %s26
      %p32 = scmp.eq.s32.totalorder %s13, 0
      %p33 = por %p31, %p32
      %p34 = scmp.ne.s32.totalorder %s23, %s26
      %p35 = scmp.eq.s32.totalorder %s18, 1
      %p36 = por %p34, %p35
      %p37 = scmp.ne.s32.totalorder %s26, %s27
      %p38 = scmp.eq.s32.totalorder %s18, 0
      %p39 = por %p37, %p38
      %p40 = scmp.ne.s32.totalorder %s26, %s27
      %p41 = scmp.eq.s32.totalorder %s19, 1
      %p42 = por %p40, %p41
      %p44 = scmp.ne.s32.totalorder %s27, %s43
      %p45 = scmp.eq.s32.totalorder %s19, 0
      %p46 = por %p44, %p45
      %s48 = sadd.s32 %s47, 1
      %p51 = scmp.eq.s32.totalorder %s13, 1
      %p52 = scmp.ne.s32.totalorder %s47, %s49
      %p53 = scmp.eq.s32.totalorder %s13, 0
      %p54 = por %p52, %p53
      %p55 = scmp.ne.s32.totalorder %s47, %s49
      %p56 = scmp.eq.s32.totalorder %s18, 1
      %p57 = por %p55, %p56
      %p58 = scmp.ne.s32.totalorder %s49, %s50
      %p59 = scmp.eq.s32.totalorder %s18, 0
      %p60 = por %p58, %p59
      %p61 = scmp.ne.s32.totalorder %s49, %s50
      %p62 = scmp.eq.s32.totalorder %s19, 1
      %p63 = por %p61, %p62
      %p65 = scmp.ne.s32.totalorder %s50, %s64
      %p66 = scmp.eq.s32.totalorder %s19, 0
      %p67 = por %p65, %p66
      %s69 = sadd.s32 %s68, 1
      %p72 = scmp.eq.s32.totalorder %s13, 1
      %p73 = scmp.ne.s32.totalorder %s68, %s70
      %p74 = scmp.eq.s32.totalorder %s13, 0
      %p75 = por %p73, %p74
      %p76 = scmp.ne.s32.totalorder %s68, %s70
      %p77 = scmp.eq.s32.totalorder %s18, 1
      %p78 = por %p76, %p77
      %p79 = scmp.ne.s32.totalorder %s70, %s71
      %p80 = scmp.eq.s32.totalorder %s18, 0
      %p81 = por %p79, %p80
      %p82 = scmp.ne.s32.totalorder %s70, %s71
      %p83 = scmp.eq.s32.totalorder %s19, 1
      %p84 = por %p82, %p83
      %p86 = scmp.ne.s32.totalorder %s71, %s85
      %p87 = scmp.eq.s32.totalorder %s19, 0
      %p88 = por %p86, %p87
      %s90 = sadd.s32 %s89, 1
      %p93 = scmp.eq.s32.totalorder %s13, 1
      %p94 = scmp.ne.s32.totalorder %s89, %s91
      %p95 = scmp.eq.s32.totalorder %s13, 0
      %p96 = por %p94, %p95
      %p97 = scmp.ne.s32.totalorder %s89, %s91
      %p98 = scmp.eq.s32.totalorder %s18, 1
      %p99 = por %p97, %p98
      %p100 = scmp.ne.s32.totalorder %s91, %s92
      %p101 = scmp.eq.s32.totalorder %s18, 0
      %p102 = por %p100, %p101
      %p103 = scmp.ne.s32.totalorder %s91, %s92
      %p104 = scmp.eq.s32.totalorder %s19, 1
      %p105 = por %p103, %p104
      %p107 = scmp.ne.s32.totalorder %s92, %s106
      %p108 = scmp.eq.s32.totalorder %s19, 0
      %p109 = por %p107, %p108
      %s110 = ssub.s32 %s13, %s20
      %p111 = scmp.eq.s32.totalorder %s110, 0
      %s113 = sadd.s32 %s112, 1
      %s114 = scalar_select %p111, %s112, %s113
      %p117 = pneg %p111
      %p118 = scmp.eq.s32.totalorder %s13, 1
      %p119 = por %p117, %p118
      %p120 = scmp.ne.s32.totalorder %s112, %s115
      %p121 = scmp.eq.s32.totalorder %s13, 0
      %p122 = por %p120, %p121
      %p123 = scmp.ne.s32.totalorder %s112, %s115
      %p124 = scmp.eq.s32.totalorder %s18, 1
      %p125 = por %p123, %p124
      %p126 = scmp.ne.s32.totalorder %s115, %s116
      %p127 = scmp.eq.s32.totalorder %s18, 0
      %p128 = por %p126, %p127
      %p129 = scmp.ne.s32.totalorder %s115, %s116
      %p130 = scmp.eq.s32.totalorder %s19, 1
      %p131 = por %p129, %p130
      %p133 = scmp.ne.s32.totalorder %s116, %s132
      %p134 = scmp.eq.s32.totalorder %s19, 0
      %p135 = por %p133, %p134
      %p136 = scmp.le.s32.totalorder 1, %s13
      %p137 = scmp.lt.s32.totalorder %s13, 3
      %p138 = pnand %p136, %p137
      %p139 = pneg %p138
      // Predicated region
      $region9: #{create_base_forward.1} parent=5 // pred_check
        _
      $region10: #{create_base_forward.1} parent=5 // pred_check_branch
        %141 = sbr.rel (%p138) target = $region12
      $region11: #{create_base_forward.1} parent=5 // pred_region
        %s142 = ssub.s32 %s13, 1
        // Predicated region
        $region13: #{create_base_forward.1} parent=11 // pred_check
          %p143 = pneg %p60
        $region14: #{create_base_forward.1} parent=11 // pred_check_branch
          %145 = sbr.rel (%p143) target = $region16
        $region15: #{create_base_forward.1} parent=11 // pred_region
          _
        $region16: #{create_base_forward.1} parent=11 // pred_fallthru
          _
        // Predicated region
        $region17: #{create_base_forward.1} parent=11 // pred_check
          %p146 = pneg %p81
        $region18: #{create_base_forward.1} parent=11 // pred_check_branch
          %148 = sbr.rel (%p146) target = $region20
        $region19: #{create_base_forward.1} parent=11 // pred_region
          _
        $region20: #{create_base_forward.1} parent=11 // pred_fallthru
          _
        // Predicated region
        $region21: #{create_base_forward.1} parent=11 // pred_check
          %p149 = pneg %p102
        $region22: #{create_base_forward.1} parent=11 // pred_check_branch
          %151 = sbr.rel (%p149) target = $region24
        $region23: #{create_base_forward.1} parent=11 // pred_region
          _
        $region24: #{create_base_forward.1} parent=11 // pred_fallthru
          _
      $region12: #{create_base_forward.1} parent=5 // pred_fallthru
        _
      %p152 = scmp.lt.s32.totalorder %s13, 2
      // Predicated region
      $region25: #{create_base_forward.1} parent=5 // pred_check
        %p153 = pneg %p152
      $region26: #{create_base_forward.1} parent=5 // pred_check_branch
        %155 = sbr.rel (%p153) target = $region28
      $region27: #{create_base_forward.1} parent=5 // pred_region
        // Predicated region
        $region29: #{create_base_forward.1} parent=27 // pred_check
          %p156 = pneg %p33
        $region30: #{create_base_forward.1} parent=27 // pred_check_branch
          %158 = sbr.rel (%p156) target = $region32
        $region31: #{create_base_forward.1} parent=27 // pred_region
          %p159 = scmp.lt.s32.totalorder %s13, 1
          %s160 = scalar_select %p159, %s13, 1
          %s161 = smul.addr %s160, 16
          %s162 = smul.addr %s161, 8
          %s163 = scalar_lea.vmem %s0, %s162
        $region32: #{create_base_forward.1} parent=27 // pred_fallthru
          _
      $region28: #{create_base_forward.1} parent=5 // pred_fallthru
        _
      %p164 = scmp.le.s32.totalorder 1, %s13
      %p165 = scmp.lt.s32.totalorder %s13, 3
      %p166 = pnand %p164, %p165
      %p167 = pneg %p166
      // Predicated region
      $region33: #{create_base_forward.1} parent=5 // pred_check
        _
      $region34: #{create_base_forward.1} parent=5 // pred_check_branch
        %169 = sbr.rel (%p166) target = $region36
      $region35: #{create_base_forward.1} parent=5 // pred_region
        %s170 = ssub.s32 %s13, 1
        %p171 = scmp.lt.s32.totalorder %s18, 1
        %s172 = scalar_select %p171, %s18, 1
        %s173 = smul.addr %s172, 16
        %s174 = smul.addr %s173, 8
        %s175 = scalar_lea.vmem %s0, %s174
        %p176 = pneg %p39
        %p177 = pneg %p36
        %p178 = pneg %p60
        %p179 = pneg %p57
        %p180 = pneg %p81
        %p181 = pneg %p78
        %p182 = pneg %p102
        %p183 = pneg %p99
        %p184 = pneg %p128
        %p185 = pneg %p125
        %s186 = sand.u32 %s115, 1
        %s187 = scalar_lea.sflag [#allocation4], %s186
        %s188 = sand.u32 %s115, 1
        %s189 = smul.addr %s188, 2
        %s190 = scalar_lea.vmem [#allocation3], %s189
        %p191 = scmp.lt.s32.totalorder %s18, 1
        %s192 = scalar_select %p191, %s18, 1
        %s193 = smul.addr %s192, 16
        %s194 = smul.addr %s193, 8
        %s195 = scalar_lea.vmem %s0, %s194
        %v196 = vld [vmem:[%s195] sm:$0xff]
        %v197 = vld [vmem:[%s195 + $0x8] sm:$0xff]
        %v198 = vld [vmem:[%s195 + $0x10] sm:$0xff]
        %v199 = vld [vmem:[%s195 + $0x18] sm:$0xff]
        %v200 = vld [vmem:[%s195 + $0x20] sm:$0xff]
        %v201 = vld [vmem:[%s195 + $0x28] sm:$0xff]
        %v202 = vld [vmem:[%s195 + $0x30] sm:$0xff]
        %v203 = vld [vmem:[%s195 + $0x38] sm:$0xff]
        %v204 = vld [vmem:[%s195 + $0x40] sm:$0xff]
        %v205 = vld [vmem:[%s195 + $0x48] sm:$0xff]
        %v206 = vld [vmem:[%s195 + $0x50] sm:$0xff]
        %v207 = vld [vmem:[%s195 + $0x58] sm:$0xff]
        %v208 = vld [vmem:[%s195 + $0x60] sm:$0xff]
        %v209 = vld [vmem:[%s1] sm:$0xff]
        %vm210 = vcmask 64512
        %v212 = vsel %vm210, %v196, 0
        %v215 = vsel %vm210, %v197, 0
        %v218 = vsel %vm210, %v198, 0
        %v221 = vsel %vm210, %v199, 0
        %v224 = vsel %vm210, %v200, 0
        %v227 = vsel %vm210, %v201, 0
        %v230 = vsel %vm210, %v202, 0
        %v233 = vsel %vm210, %v203, 0
        %v236 = vsel %vm210, %v204, 0
        %v239 = vsel %vm210, %v205, 0
        %v242 = vsel %vm210, %v206, 0
        %v245 = vsel %vm210, %v207, 0
        %v248 = vsel %vm210, %v208, 0
        %250 = vmatprep.subr.mxu0 0.0
        %251 = vmatpush1.msra.mxu0 %v209
        %252 = vmatprep.subr.mxu0 0.0
        %253 = vmatpush1.msra.mxu0 0.0
        %254 = vmatprep.subr.mxu0 0.0
        %255 = vmatpush1.msra.mxu0 0.0
        %256 = vmatprep.subr.mxu0 0.0
        %257 = vmatpush1.msra.mxu0 0.0
        %258 = vmatprep.subr.mxu0 0.0
        %259 = vmatpush1.msra.mxu0 0.0
        %260 = vmatprep.subr.mxu0 0.0
        %261 = vmatpush1.msra.mxu0 0.0
        %262 = vmatprep.subr.mxu0 0.0
        %263 = vmatpush1.msra.mxu0 0.0
        %264 = vmatprep.subr.mxu0 0.0
        %265 = vmatpush1.msra.mxu0 0.0
        %266 = vmatprep.subr.mxu0 0.0
        %267 = vmatpush1.msra.mxu0 0.0
        %268 = vmatprep.subr.mxu0 0.0
        %269 = vmatpush1.msra.mxu0 0.0
        %270 = vmatprep.subr.mxu0 0.0
        %271 = vmatpush1.msra.mxu0 0.0
        %272 = vmatprep.subr.mxu0 0.0
        %273 = vmatpush1.msra.mxu0 0.0
        %274 = vmatprep.subr.mxu0 0.0
        %275 = vmatpush1.msra.mxu0 0.0
        %276 = vmatprep.subr.mxu0 0.0
        %277 = vmatpush1.msra.mxu0 0.0
        %278 = vmatprep.subr.mxu0 0.0
        %279 = vmatpush1.msra.mxu0 0.0
        %280 = vmatprep.subr.mxu0 0.0
        %281 = vmatpush1.msra.mxu0 0.0
        %282 = vmatprep.subr.mxu0 0.0
        %283 = vmatpush1.msra.mxu0 0.0
        %284 = vmatprep.subr.mxu0 0.0
        %285 = vmatpush1.msra.mxu0 0.0
        %286 = vmatprep.subr.mxu0 0.0
        %287 = vmatpush1.msra.mxu0 0.0
        %288 = vmatprep.subr.mxu0 0.0
        %289 = vmatpush1.msra.mxu0 0.0
        %290 = vmatprep.subr.mxu0 0.0
        %291 = vmatpush1.msra.mxu0 0.0
        %292 = vmatprep.subr.mxu0 0.0
        %293 = vmatpush1.msra.mxu0 0.0
        %294 = vmatprep.subr.mxu0 0.0
        %295 = vmatpush1.msra.mxu0 0.0
        %296 = vmatprep.subr.mxu0 0.0
        %297 = vmatpush1.msra.mxu0 0.0
        %298 = vmatprep.subr.mxu0 0.0
        %299 = vmatpush1.msra.mxu0 0.0
        %300 = vmatprep.subr.mxu0 0.0
        %301 = vmatpush1.msra.mxu0 0.0
        %302 = vmatprep.subr.mxu0 0.0
        %303 = vmatpush1.msra.mxu0 0.0
        %304 = vmatprep.subr.mxu0 0.0
        %305 = vmatpush1.msra.mxu0 0.0
        %306 = vmatprep.subr.mxu0 0.0
        %307 = vmatpush1.msra.mxu0 0.0
        %308 = vmatprep.subr.mxu0 0.0
        %309 = vmatpush1.msra.mxu0 0.0
        %310 = vmatprep.subr.mxu0 0.0
        %311 = vmatpush1.msra.mxu0 0.0
        %312 = vmatprep.subr.mxu0 0.0
        %313 = vmatpush1.msra.mxu0 0.0
        %314 = vmatprep.mubr.f32.mxu0 0.0
        %315 = vmatmul.mubr.f32.gmra.mrb[0].mxu0 %v212
        %v316 = vpop.f32.mrb[0].mxu0
        %v317 = vadd.f32 0.0, %v316
        %v318 = vpop.f32.mrb[0].mxu0
        %319 = vmatprep.mubr.f32.mxu0 0.0
        %320 = vmatmul.mubr.f32.gmra.mrb[0].mxu0 %v215
        %v321 = vpop.f32.mrb[0].mxu0
        %v322 = vadd.f32 0.0, %v321
        %v323 = vpop.f32.mrb[0].mxu0
        %324 = vmatprep.mubr.f32.mxu0 0.0
        %325 = vmatmul.mubr.f32.gmra.mrb[0].mxu0 %v218
        %v326 = vpop.f32.mrb[0].mxu0
        %v327 = vadd.f32 0.0, %v326
        %v328 = vpop.f32.mrb[0].mxu0
        %329 = vmatprep.mubr.f32.mxu0 0.0
        %330 = vmatmul.mubr.f32.gmra.mrb[0].mxu0 %v221
        %v331 = vpop.f32.mrb[0].mxu0
        %v332 = vadd.f32 0.0, %v331
        %v333 = vpop.f32.mrb[0].mxu0
        %334 = vmatprep.mubr.f32.mxu0 0.0
        %335 = vmatmul.mubr.f32.gmra.mrb[0].mxu0 %v224
        %v336 = vpop.f32.mrb[0].mxu0
        %v337 = vadd.f32 0.0, %v336
        %v338 = vpop.f32.mrb[0].mxu0
        %339 = vmatprep.mubr.f32.mxu0 0.0
        %340 = vmatmul.mubr.f32.gmra.mrb[0].mxu0 %v227
        %v341 = vpop.f32.mrb[0].mxu0
        %v342 = vadd.f32 0.0, %v341
        %v343 = vpop.f32.mrb[0].mxu0
        %344 = vmatprep.mubr.f32.mxu0 0.0
        %345 = vmatmul.mubr.f32.gmra.mrb[0].mxu0 %v230
        %v346 = vpop.f32.mrb[0].mxu0
        %v347 = vadd.f32 0.0, %v346
        %v348 = vpop.f32.mrb[0].mxu0
        %349 = vmatprep.mubr.f32.mxu0 0.0
        %350 = vmatmul.mubr.f32.gmra.mrb[0].mxu0 %v233
        %v351 = vpop.f32.mrb[0].mxu0
        %v352 = vadd.f32 0.0, %v351
        %v353 = vpop.f32.mrb[0].mxu0
        %354 = vmatprep.mubr.f32.mxu0 0.0
        %355 = vmatmul.mubr.f32.gmra.mrb[0].mxu0 %v236
        %v356 = vpop.f32.mrb[0].mxu0
        %v357 = vadd.f32 0.0, %v356
        %v358 = vpop.f32.mrb[0].mxu0
        %359 = vmatprep.mubr.f32.mxu0 0.0
        %360 = vmatmul.mubr.f32.gmra.mrb[0].mxu0 %v239
        %v361 = vpop.f32.mrb[0].mxu0
        %v362 = vadd.f32 0.0, %v361
        %v363 = vpop.f32.mrb[0].mxu0
        %364 = vmatprep.mubr.f32.mxu0 0.0
        %365 = vmatmul.mubr.f32.gmra.mrb[0].mxu0 %v242
        %v366 = vpop.f32.mrb[0].mxu0
        %v367 = vadd.f32 0.0, %v366
        %v368 = vpop.f32.mrb[0].mxu0
        %369 = vmatprep.mubr.f32.mxu0 0.0
        %370 = vmatmul.mubr.f32.gmra.mrb[0].mxu0 %v245
        %v371 = vpop.f32.mrb[0].mxu0
        %v372 = vadd.f32 0.0, %v371
        %v373 = vpop.f32.mrb[0].mxu0
        %374 = vmatprep.mubr.f32.mxu0 0.0
        %375 = vmatmul.mubr.f32.gmra.mrb[0].mxu0 %v248
        %v376 = vpop.f32.mrb[0].mxu0
        %v377 = vadd.f32 0.0, %v376
        %v378 = vpop.f32.mrb[0].mxu0
        %379 = vdwg.mxu0
        %380 = vst [vmem:[#allocation2] sm:$0xff] %v317
        %381 = vst [vmem:[#allocation2 + $0x8] sm:$0xff] %v322
        %382 = vst [vmem:[#allocation2 + $0x10] sm:$0xff] %v327
        %383 = vst [vmem:[#allocation2 + $0x18] sm:$0xff] %v332
        %384 = vst [vmem:[#allocation2 + $0x20] sm:$0xff] %v337
        %385 = vst [vmem:[#allocation2 + $0x28] sm:$0xff] %v342
        %386 = vst [vmem:[#allocation2 + $0x30] sm:$0xff] %v347
        %387 = vst [vmem:[#allocation2 + $0x38] sm:$0xff] %v352
        %388 = vst [vmem:[#allocation2 + $0x40] sm:$0xff] %v357
        %389 = vst [vmem:[#allocation2 + $0x48] sm:$0xff] %v362
        %390 = vst [vmem:[#allocation2 + $0x50] sm:$0xff] %v367
        %391 = vst [vmem:[#allocation2 + $0x58] sm:$0xff] %v372
        %392 = vst [vmem:[#allocation2 + $0x60] sm:$0xff] %v377
        %v393 = vld [vmem:[#allocation2] sm:$0xff]
        %v394 = vld [vmem:[#allocation2 + $0x8] sm:$0xff]
        %v395 = vld [vmem:[#allocation2 + $0x10] sm:$0xff]
        %v396 = vld [vmem:[#allocation2 + $0x18] sm:$0xff]
        %v397 = vld [vmem:[#allocation2 + $0x20] sm:$0xff]
        %v398 = vld [vmem:[#allocation2 + $0x28] sm:$0xff]
        %v399 = vld [vmem:[#allocation2 + $0x30] sm:$0xff]
        %v400 = vld [vmem:[#allocation2 + $0x38] sm:$0xff]
        %v401 = vld [vmem:[#allocation2 + $0x40] sm:$0xff]
        %v402 = vld [vmem:[#allocation2 + $0x48] sm:$0xff]
        %v403 = vld [vmem:[#allocation2 + $0x50] sm:$0xff]
        %v404 = vld [vmem:[#allocation2 + $0x58] sm:$0xff]
        %v405 = vld [vmem:[#allocation2 + $0x60] sm:$0xff]
        %v406 = vld [vmem:[%s195 + $0x1] sm:$0xff]
        %v407 = vld [vmem:[%s195 + $0x9] sm:$0xff]
        %v408 = vld [vmem:[%s195 + $0x11] sm:$0xff]
        %v409 = vld [vmem:[%s195 + $0x19] sm:$0xff]
        %v410 = vld [vmem:[%s195 + $0x21] sm:$0xff]
        %v411 = vld [vmem:[%s195 + $0x29] sm:$0xff]
        %v412 = vld [vmem:[%s195 + $0x31] sm:$0xff]
        %v413 = vld [vmem:[%s195 + $0x39] sm:$0xff]
        %v414 = vld [vmem:[%s195 + $0x41] sm:$0xff]
        %v415 = vld [vmem:[%s195 + $0x49] sm:$0xff]
        %v416 = vld [vmem:[%s195 + $0x51] sm:$0xff]
        %v417 = vld [vmem:[%s195 + $0x59] sm:$0xff]
        %v418 = vld [vmem:[%s195 + $0x61] sm:$0xff]
        %s419 = scalar_lea.vmem %s1, 8
        %v420 = vld [vmem:[%s419] sm:$0xff]
        %v422 = vsel %vm210, %v406, 0
        %v425 = vsel %vm210, %v407, 0
        %v428 = vsel %vm210, %v408, 0
        %v431 = vsel %vm210, %v409, 0
        %v434 = vsel %vm210, %v410, 0
        %v437 = vsel %vm210, %v411, 0
        %v440 = vsel %vm210, %v412, 0
        %v443 = vsel %vm210, %v413, 0
        %v446 = vsel %vm210, %v414, 0
        %v449 = vsel %vm210, %v415, 0
        %v452 = vsel %vm210, %v416, 0
        %v455 = vsel %vm210, %v417, 0
        %v458 = vsel %vm210, %v418, 0
        %460 = vmatprep.subr.mxu0 0.0
        %461 = vmatpush1.msra.mxu0 %v420
        %462 = vmatprep.subr.mxu0 0.0
        %463 = vmatpush1.msra.mxu0 0.0
        %464 = vmatprep.subr.mxu0 0.0
        %465 = vmatpush1.msra.mxu0 0.0
        %466 = vmatprep.subr.mxu0 0.0
        %467 = vmatpush1.msra.mxu0 0.0
        %468 = vmatprep.subr.mxu0 0.0
        %469 = vmatpush1.msra.mxu0 0.0
        %470 = vmatprep.subr.mxu0 0.0
        %471 = vmatpush1.msra.mxu0 0.0
        %472 = vmatprep.subr.mxu0 0.0
        %473 = vmatpush1.msra.mxu0 0.0
        %474 = vmatprep.subr.mxu0 0.0
        %475 = vmatpush1.msra.mxu0 0.0
        %476 = vmatprep.subr.mxu0 0.0
        %477 = vmatpush1.msra.mxu0 0.0
        %478 = vmatprep.subr.mxu0 0.0
        %479 = vmatpush1.msra.mxu0 0.0
        %480 = vmatprep.subr.mxu0 0.0
        %481 = vmatpush1.msra.mxu0 0.0
        %482 = vmatprep.subr.mxu0 0.0
        %483 = vmatpush1.msra.mxu0 0.0
        %484 = vmatprep.subr.mxu0 0.0
        %485 = vmatpush1.msra.mxu0 0.0
        %486 = vmatprep.subr.mxu0 0.0
        %487 = vmatpush1.msra.mxu0 0.0
        %488 = vmatprep.subr.mxu0 0.0
        %489 = vmatpush1.msra.mxu0 0.0
        %490 = vmatprep.subr.mxu0 0.0
        %491 = vmatpush1.msra.mxu0 0.0
        %492 = vmatprep.subr.mxu0 0.0
        %493 = vmatpush1.msra.mxu0 0.0
        %494 = vmatprep.subr.mxu0 0.0
        %495 = vmatpush1.msra.mxu0 0.0
        %496 = vmatprep.subr.mxu0 0.0
        %497 = vmatpush1.msra.mxu0 0.0
        %498 = vmatprep.subr.mxu0 0.0
        %499 = vmatpush1.msra.mxu0 0.0
        %500 = vmatprep.subr.mxu0 0.0
        %501 = vmatpush1.msra.mxu0 0.0
        %502 = vmatprep.subr.mxu0 0.0
        %503 = vmatpush1.msra.mxu0 0.0
        %504 = vmatprep.subr.mxu0 0.0
        %505 = vmatpush1.msra.mxu0 0.0
        %506 = vmatprep.subr.mxu0 0.0
        %507 = vmatpush1.msra.mxu0 0.0
        %508 = vmatprep.subr.mxu0 0.0
        %509 = vmatpush1.msra.mxu0 0.0
        %510 = vmatprep.subr.mxu0 0.0
        %511 = vmatpush1.msra.mxu0 0.0
        %512 = vmatprep.subr.mxu0 0.0
        %513 = vmatpush1.msra.mxu0 0.0
        %514 = vmatprep.subr.mxu0 0.0
        %515 = vmatpush1.msra.mxu0 0.0
        %516 = vmatprep.subr.mxu0 0.0
        %517 = vmatpush1.msra.mxu0 0.0
        %518 = vmatprep.subr.mxu0 0.0
        %519 = vmatpush1.msra.mxu0 0.0
        %520 = vmatprep.subr.mxu0 0.0
        %521 = vmatpush1.msra.mxu0 0.0
        %522 = vmatprep.subr.mxu0 0.0
        %523 = vmatpush1.msra.mxu0 0.0
        %524 = vmatprep.mubr.f32.mxu0 0.0
        %525 = vmatmul.mubr.f32.gmra.mrb[0].mxu0 %v422
        %v526 = vpop.f32.mrb[0].mxu0
        %v527 = vadd.f32 0.0, %v526
        %v528 = vpop.f32.mrb[0].mxu0
        %529 = vmatprep.mubr.f32.mxu0 0.0
        %530 = vmatmul.mubr.f32.gmra.mrb[0].mxu0 %v425
        %v531 = vpop.f32.mrb[0].mxu0
        %v532 = vadd.f32 0.0, %v531
        %v533 = vpop.f32.mrb[0].mxu0
        %534 = vmatprep.mubr.f32.mxu0 0.0
        %535 = vmatmul.mubr.f32.gmra.mrb[0].mxu0 %v428
        %v536 = vpop.f32.mrb[0].mxu0
        %v537 = vadd.f32 0.0, %v536
        %v538 = vpop.f32.mrb[0].mxu0
        %539 = vmatprep.mubr.f32.mxu0 0.0
        %540 = vmatmul.mubr.f32.gmra.mrb[0].mxu0 %v431
        %v541 = vpop.f32.mrb[0].mxu0
        %v542 = vadd.f32 0.0, %v541
        %v543 = vpop.f32.mrb[0].mxu0
        %544 = vmatprep.mubr.f32.mxu0 0.0
        %545 = vmatmul.mubr.f32.gmra.mrb[0].mxu0 %v434
        %v546 = vpop.f32.mrb[0].mxu0
        %v547 = vadd.f32 0.0, %v546
        %v548 = vpop.f32.mrb[0].mxu0
        %549 = vmatprep.mubr.f32.mxu0 0.0
        %550 = vmatmul.mubr.f32.gmra.mrb[0].mxu0 %v437
        %v551 = vpop.f32.mrb[0].mxu0
        %v552 = vadd.f32 0.0, %v551
        %v553 = vpop.f32.mrb[0].mxu0
        %554 = vmatprep.mubr.f32.mxu0 0.0
        %555 = vmatmul.mubr.f32.gmra.mrb[0].mxu0 %v440
        %v556 = vpop.f32.mrb[0].mxu0
        %v557 = vadd.f32 0.0, %v556
        %v558 = vpop.f32.mrb[0].mxu0
        %559 = vmatprep.mubr.f32.mxu0 0.0
        %560 = vmatmul.mubr.f32.gmra.mrb[0].mxu0 %v443
        %v561 = vpop.f32.mrb[0].mxu0
        %v562 = vadd.f32 0.0, %v561
        %v563 = vpop.f32.mrb[0].mxu0
        %564 = vmatprep.mubr.f32.mxu0 0.0
        %565 = vmatmul.mubr.f32.gmra.mrb[0].mxu0 %v446
        %v566 = vpop.f32.mrb[0].mxu0
        %v567 = vadd.f32 0.0, %v566
        %v568 = vpop.f32.mrb[0].mxu0
        %569 = vmatprep.mubr.f32.mxu0 0.0
        %570 = vmatmul.mubr.f32.gmra.mrb[0].mxu0 %v449
        %v571 = vpop.f32.mrb[0].mxu0
        %v572 = vadd.f32 0.0, %v571
        %v573 = vpop.f32.mrb[0].mxu0
        %574 = vmatprep.mubr.f32.mxu0 0.0
        %575 = vmatmul.mubr.f32.gmra.mrb[0].mxu0 %v452
        %v576 = vpop.f32.mrb[0].mxu0
        %v577 = vadd.f32 0.0, %v576
        %v578 = vpop.f32.mrb[0].mxu0
        %579 = vmatprep.mubr.f32.mxu0 0.0
        %580 = vmatmul.mubr.f32.gmra.mrb[0].mxu0 %v455
        %v581 = vpop.f32.mrb[0].mxu0
        %v582 = vadd.f32 0.0, %v581
        %v583 = vpop.f32.mrb[0].mxu0
        %584 = vmatprep.mubr.f32.mxu0 0.0
        %585 = vmatmul.mubr.f32.gmra.mrb[0].mxu0 %v458
        %v586 = vpop.f32.mrb[0].mxu0
        %v587 = vadd.f32 0.0, %v586
        %v588 = vpop.f32.mrb[0].mxu0
        %589 = vdwg.mxu0
        %v590 = vadd.f32 %v393, %v527
        %v591 = vadd.f32 %v394, %v532
        %v592 = vadd.f32 %v395, %v537
        %v593 = vadd.f32 %v396, %v542
        %v594 = vadd.f32 %v397, %v547
        %v595 = vadd.f32 %v398, %v552
        %v596 = vadd.f32 %v399, %v557
        %v597 = vadd.f32 %v400, %v562
        %v598 = vadd.f32 %v401, %v567
        %v599 = vadd.f32 %v402, %v572
        %v600 = vadd.f32 %v403, %v577
        %v601 = vadd.f32 %v404, %v582
        %v602 = vadd.f32 %v405, %v587
        %603 = vst [vmem:[#allocation2] sm:$0xff] %v590
        %604 = vst [vmem:[#allocation2 + $0x8] sm:$0xff] %v591
        %605 = vst [vmem:[#allocation2 + $0x10] sm:$0xff] %v592
        %606 = vst [vmem:[#allocation2 + $0x18] sm:$0xff] %v593
        %607 = vst [vmem:[#allocation2 + $0x20] sm:$0xff] %v594
        %608 = vst [vmem:[#allocation2 + $0x28] sm:$0xff] %v595
        %609 = vst [vmem:[#allocation2 + $0x30] sm:$0xff] %v596
        %610 = vst [vmem:[#allocation2 + $0x38] sm:$0xff] %v597
        %611 = vst [vmem:[#allocation2 + $0x40] sm:$0xff] %v598
        %612 = vst [vmem:[#allocation2 + $0x48] sm:$0xff] %v599
        %613 = vst [vmem:[#allocation2 + $0x50] sm:$0xff] %v600
        %614 = vst [vmem:[#allocation2 + $0x58] sm:$0xff] %v601
        %615 = vst [vmem:[#allocation2 + $0x60] sm:$0xff] %v602
        %v616 = vld [vmem:[#allocation2] sm:$0xff]
        %v617 = vld [vmem:[#allocation2 + $0x8] sm:$0xff]
        %v618 = vld [vmem:[#allocation2 + $0x10] sm:$0xff]
        %v619 = vld [vmem:[#allocation2 + $0x18] sm:$0xff]
        %v620 = vld [vmem:[#allocation2 + $0x20] sm:$0xff]
        %v621 = vld [vmem:[#allocation2 + $0x28] sm:$0xff]
        %v622 = vld [vmem:[#allocation2 + $0x30] sm:$0xff]
        %v623 = vld [vmem:[#allocation2 + $0x38] sm:$0xff]
        %v624 = vld [vmem:[#allocation2 + $0x40] sm:$0xff]
        %v625 = vld [vmem:[#allocation2 + $0x48] sm:$0xff]
        %v626 = vld [vmem:[#allocation2 + $0x50] sm:$0xff]
        %v627 = vld [vmem:[#allocation2 + $0x58] sm:$0xff]
        %v628 = vld [vmem:[#allocation2 + $0x60] sm:$0xff]
        %v629 = vld [vmem:[%s195 + $0x2] sm:$0xff]
        %v630 = vld [vmem:[%s195 + $0xa] sm:$0xff]
        %v631 = vld [vmem:[%s195 + $0x12] sm:$0xff]
        %v632 = vld [vmem:[%s195 + $0x1a] sm:$0xff]
        %v633 = vld [vmem:[%s195 + $0x22] sm:$0xff]
        %v634 = vld [vmem:[%s195 + $0x2a] sm:$0xff]
        %v635 = vld [vmem:[%s195 + $0x32] sm:$0xff]
        %v636 = vld [vmem:[%s195 + $0x3a] sm:$0xff]
        %v637 = vld [vmem:[%s195 + $0x42] sm:$0xff]
        %v638 = vld [vmem:[%s195 + $0x4a] sm:$0xff]
        %v639 = vld [vmem:[%s195 + $0x52] sm:$0xff]
        %v640 = vld [vmem:[%s195 + $0x5a] sm:$0xff]
        %v641 = vld [vmem:[%s195 + $0x62] sm:$0xff]
        %s642 = scalar_lea.vmem %s1, 16
        %v643 = vld [vmem:[%s642] sm:$0xff]
        %v645 = vsel %vm210, %v629, 0
        %v648 = vsel %vm210, %v630, 0
        %v651 = vsel %vm210, %v631, 0
        %v654 = vsel %vm210, %v632, 0
        %v657 = vsel %vm210, %v633, 0
        %v660 = vsel %vm210, %v634, 0
        %v663 = vsel %vm210, %v635, 0
        %v666 = vsel %vm210, %v636, 0
        %v669 = vsel %vm210, %v637, 0
        %v672 = vsel %vm210, %v638, 0
        %v675 = vsel %vm210, %v639, 0
        %v678 = vsel %vm210, %v640, 0
        %v681 = vsel %vm210, %v641, 0
        %683 = vmatprep.subr.mxu0 0.0
        %684 = vmatpush1.msra.mxu0 %v643
        %685 = vmatprep.subr.mxu0 0.0
        %686 = vmatpush1.msra.mxu0 0.0
        %687 = vmatprep.subr.mxu0 0.0
        %688 = vmatpush1.msra.mxu0 0.0
        %689 = vmatprep.subr.mxu0 0.0
        %690 = vmatpush1.msra.mxu0 0.0
        %691 = vmatprep.subr.mxu0 0.0
        %692 = vmatpush1.msra.mxu0 0.0
        %693 = vmatprep.subr.mxu0 0.0
        %694 = vmatpush1.msra.mxu0 0.0
        %695 = vmatprep.subr.mxu0 0.0
        %696 = vmatpush1.msra.mxu0 0.0
        %697 = vmatprep.subr.mxu0 0.0
        %698 = vmatpush1.msra.mxu0 0.0
        %699 = vmatprep.subr.mxu0 0.0
        %700 = vmatpush1.msra.mxu0 0.0
        %701 = vmatprep.subr.mxu0 0.0
        %702 = vmatpush1.msra.mxu0 0.0
        %703 = vmatprep.subr.mxu0 0.0
        %704 = vmatpush1.msra.mxu0 0.0
        %705 = vmatprep.subr.mxu0 0.0
        %706 = vmatpush1.msra.mxu0 0.0
        %707 = vmatprep.subr.mxu0 0.0
        %708 = vmatpush1.msra.mxu0 0.0
        %709 = vmatprep.subr.mxu0 0.0
        %710 = vmatpush1.msra.mxu0 0.0
        %711 = vmatprep.subr.mxu0 0.0
        %712 = vmatpush1.msra.mxu0 0.0
        %713 = vmatprep.subr.mxu0 0.0
        %714 = vmatpush1.msra.mxu0 0.0
        %715 = vmatprep.subr.mxu0 0.0
        %716 = vmatpush1.msra.mxu0 0.0
        %717 = vmatprep.subr.mxu0 0.0
        %718 = vmatpush1.msra.mxu0 0.0
        %719 = vmatprep.subr.mxu0 0.0
        %720 = vmatpush1.msra.mxu0 0.0
        %721 = vmatprep.subr.mxu0 0.0
        %722 = vmatpush1.msra.mxu0 0.0
        %723 = vmatprep.subr.mxu0 0.0
        %724 = vmatpush1.msra.mxu0 0.0
        %725 = vmatprep.subr.mxu0 0.0
        %726 = vmatpush1.msra.mxu0 0.0
        %727 = vmatprep.subr.mxu0 0.0
        %728 = vmatpush1.msra.mxu0 0.0
        %729 = vmatprep.subr.mxu0 0.0
        %730 = vmatpush1.msra.mxu0 0.0
        %731 = vmatprep.subr.mxu0 0.0
        %732 = vmatpush1.msra.mxu0 0.0
        %733 = vmatprep.subr.mxu0 0.0
        %734 = vmatpush1.msra.mxu0 0.0
        %735 = vmatprep.subr.mxu0 0.0
        %736 = vmatpush1.msra.mxu0 0.0
        %737 = vmatprep.subr.mxu0 0.0
        %738 = vmatpush1.msra.mxu0 0.0
        %739 = vmatprep.subr.mxu0 0.0
        %740 = vmatpush1.msra.mxu0 0.0
        %741 = vmatprep.subr.mxu0 0.0
        %742 = vmatpush1.msra.mxu0 0.0
        %743 = vmatprep.subr.mxu0 0.0
        %744 = vmatpush1.msra.mxu0 0.0
        %745 = vmatprep.subr.mxu0 0.0
        %746 = vmatpush1.msra.mxu0 0.0
        %747 = vmatprep.mubr.f32.mxu0 0.0
        %748 = vmatmul.mubr.f32.gmra.mrb[0].mxu0 %v645
        %v749 = vpop.f32.mrb[0].mxu0
        %v750 = vadd.f32 0.0, %v749
        %v751 = vpop.f32.mrb[0].mxu0
        %752 = vmatprep.mubr.f32.mxu0 0.0
        %753 = vmatmul.mubr.f32.gmra.mrb[0].mxu0 %v648
        %v754 = vpop.f32.mrb[0].mxu0
        %v755 = vadd.f32 0.0, %v754
        %v756 = vpop.f32.mrb[0].mxu0
        %757 = vmatprep.mubr.f32.mxu0 0.0
        %758 = vmatmul.mubr.f32.gmra.mrb[0].mxu0 %v651
        %v759 = vpop.f32.mrb[0].mxu0
        %v760 = vadd.f32 0.0, %v759
        %v761 = vpop.f32.mrb[0].mxu0
        %762 = vmatprep.mubr.f32.mxu0 0.0
        %763 = vmatmul.mubr.f32.gmra.mrb[0].mxu0 %v654
        %v764 = vpop.f32.mrb[0].mxu0
        %v765 = vadd.f32 0.0, %v764
        %v766 = vpop.f32.mrb[0].mxu0
        %767 = vmatprep.mubr.f32.mxu0 0.0
        %768 = vmatmul.mubr.f32.gmra.mrb[0].mxu0 %v657
        %v769 = vpop.f32.mrb[0].mxu0
        %v770 = vadd.f32 0.0, %v769
        %v771 = vpop.f32.mrb[0].mxu0
        %772 = vmatprep.mubr.f32.mxu0 0.0
        %773 = vmatmul.mubr.f32.gmra.mrb[0].mxu0 %v660
        %v774 = vpop.f32.mrb[0].mxu0
        %v775 = vadd.f32 0.0, %v774
        %v776 = vpop.f32.mrb[0].mxu0
        %777 = vmatprep.mubr.f32.mxu0 0.0
        %778 = vmatmul.mubr.f32.gmra.mrb[0].mxu0 %v663
        %v779 = vpop.f32.mrb[0].mxu0
        %v780 = vadd.f32 0.0, %v779
        %v781 = vpop.f32.mrb[0].mxu0
        %782 = vmatprep.mubr.f32.mxu0 0.0
        %783 = vmatmul.mubr.f32.gmra.mrb[0].mxu0 %v666
        %v784 = vpop.f32.mrb[0].mxu0
        %v785 = vadd.f32 0.0, %v784
        %v786 = vpop.f32.mrb[0].mxu0
        %787 = vmatprep.mubr.f32.mxu0 0.0
        %788 = vmatmul.mubr.f32.gmra.mrb[0].mxu0 %v669
        %v789 = vpop.f32.mrb[0].mxu0
        %v790 = vadd.f32 0.0, %v789
        %v791 = vpop.f32.mrb[0].mxu0
        %792 = vmatprep.mubr.f32.mxu0 0.0
        %793 = vmatmul.mubr.f32.gmra.mrb[0].mxu0 %v672
        %v794 = vpop.f32.mrb[0].mxu0
        %v795 = vadd.f32 0.0, %v794
        %v796 = vpop.f32.mrb[0].mxu0
        %797 = vmatprep.mubr.f32.mxu0 0.0
        %798 = vmatmul.mubr.f32.gmra.mrb[0].mxu0 %v675
        %v799 = vpop.f32.mrb[0].mxu0
        %v800 = vadd.f32 0.0, %v799
        %v801 = vpop.f32.mrb[0].mxu0
        %802 = vmatprep.mubr.f32.mxu0 0.0
        %803 = vmatmul.mubr.f32.gmra.mrb[0].mxu0 %v678
        %v804 = vpop.f32.mrb[0].mxu0
        %v805 = vadd.f32 0.0, %v804
        %v806 = vpop.f32.mrb[0].mxu0
        %807 = vmatprep.mubr.f32.mxu0 0.0
        %808 = vmatmul.mubr.f32.gmra.mrb[0].mxu0 %v681
        %v809 = vpop.f32.mrb[0].mxu0
        %v810 = vadd.f32 0.0, %v809
        %v811 = vpop.f32.mrb[0].mxu0
        %812 = vdwg.mxu0
        %v813 = vadd.f32 %v616, %v750
        %v814 = vadd.f32 %v617, %v755
        %v815 = vadd.f32 %v618, %v760
        %v816 = vadd.f32 %v619, %v765
        %v817 = vadd.f32 %v620, %v770
        %v818 = vadd.f32 %v621, %v775
        %v819 = vadd.f32 %v622, %v780
        %v820 = vadd.f32 %v623, %v785
        %v821 = vadd.f32 %v624, %v790
        %v822 = vadd.f32 %v625, %v795
        %v823 = vadd.f32 %v626, %v800
        %v824 = vadd.f32 %v627, %v805
        %v825 = vadd.f32 %v628, %v810
        %826 = vst [vmem:[#allocation2] sm:$0xff] %v813
        %827 = vst [vmem:[#allocation2 + $0x8] sm:$0xff] %v814
        %828 = vst [vmem:[#allocation2 + $0x10] sm:$0xff] %v815
        %829 = vst [vmem:[#allocation2 + $0x18] sm:$0xff] %v816
        %830 = vst [vmem:[#allocation2 + $0x20] sm:$0xff] %v817
        %831 = vst [vmem:[#allocation2 + $0x28] sm:$0xff] %v818
        %832 = vst [vmem:[#allocation2 + $0x30] sm:$0xff] %v819
        %833 = vst [vmem:[#allocation2 + $0x38] sm:$0xff] %v820
        %834 = vst [vmem:[#allocation2 + $0x40] sm:$0xff] %v821
        %835 = vst [vmem:[#allocation2 + $0x48] sm:$0xff] %v822
        %836 = vst [vmem:[#allocation2 + $0x50] sm:$0xff] %v823
        %837 = vst [vmem:[#allocation2 + $0x58] sm:$0xff] %v824
        %838 = vst [vmem:[#allocation2 + $0x60] sm:$0xff] %v825
        %v839 = vld [vmem:[#allocation2] sm:$0xff]
        %v840 = vld [vmem:[#allocation2 + $0x8] sm:$0xff]
        %v841 = vld [vmem:[#allocation2 + $0x10] sm:$0xff]
        %v842 = vld [vmem:[#allocation2 + $0x18] sm:$0xff]
        %v843 = vld [vmem:[#allocation2 + $0x20] sm:$0xff]
        %v844 = vld [vmem:[#allocation2 + $0x28] sm:$0xff]
        %v845 = vld [vmem:[#allocation2 + $0x30] sm:$0xff]
        %v846 = vld [vmem:[#allocation2 + $0x38] sm:$0xff]
        %v847 = vld [vmem:[#allocation2 + $0x40] sm:$0xff]
        %v848 = vld [vmem:[#allocation2 + $0x48] sm:$0xff]
        %v849 = vld [vmem:[#allocation2 + $0x50] sm:$0xff]
        %v850 = vld [vmem:[#allocation2 + $0x58] sm:$0xff]
        %v851 = vld [vmem:[#allocation2 + $0x60] sm:$0xff]
        %v852 = vld [vmem:[%s195 + $0x3] sm:$0xff]
        %v853 = vld [vmem:[%s195 + $0xb] sm:$0xff]
        %v854 = vld [vmem:[%s195 + $0x13] sm:$0xff]
        %v855 = vld [vmem:[%s195 + $0x1b] sm:$0xff]
        %v856 = vld [vmem:[%s195 + $0x23] sm:$0xff]
        %v857 = vld [vmem:[%s195 + $0x2b] sm:$0xff]
        %v858 = vld [vmem:[%s195 + $0x33] sm:$0xff]
        %v859 = vld [vmem:[%s195 + $0x3b] sm:$0xff]
        %v860 = vld [vmem:[%s195 + $0x43] sm:$0xff]
        %v861 = vld [vmem:[%s195 + $0x4b] sm:$0xff]
        %v862 = vld [vmem:[%s195 + $0x53] sm:$0xff]
        %v863 = vld [vmem:[%s195 + $0x5b] sm:$0xff]
        %v864 = vld [vmem:[%s195 + $0x63] sm:$0xff]
        %s865 = scalar_lea.vmem %s1, 24
        %v866 = vld [vmem:[%s865] sm:$0xff]
        %v868 = vsel %vm210, %v852, 0
        %v871 = vsel %vm210, %v853, 0
        %v874 = vsel %vm210, %v854, 0
        %v877 = vsel %vm210, %v855, 0
        %v880 = vsel %vm210, %v856, 0
        %v883 = vsel %vm210, %v857, 0
        %v886 = vsel %vm210, %v858, 0
        %v889 = vsel %vm210, %v859, 0
        %v892 = vsel %vm210, %v860, 0
        %v895 = vsel %vm210, %v861, 0
        %v898 = vsel %vm210, %v862, 0
        %v901 = vsel %vm210, %v863, 0
        %v904 = vsel %vm210, %v864, 0
        %906 = vmatprep.subr.mxu0 0.0
        %907 = vmatpush1.msra.mxu0 %v866
        %908 = vmatprep.subr.mxu0 0.0
        %909 = vmatpush1.msra.mxu0 0.0
        %910 = vmatprep.subr.mxu0 0.0
        %911 = vmatpush1.msra.mxu0 0.0
        %912 = vmatprep.subr.mxu0 0.0
        %913 = vmatpush1.msra.mxu0 0.0
        %914 = vmatprep.subr.mxu0 0.0
        %915 = vmatpush1.msra.mxu0 0.0
        %916 = vmatprep.subr.mxu0 0.0
        %917 = vmatpush1.msra.mxu0 0.0
        %918 = vmatprep.subr.mxu0 0.0
        %919 = vmatpush1.msra.mxu0 0.0
        %920 = vmatprep.subr.mxu0 0.0
        %921 = vmatpush1.msra.mxu0 0.0
        %922 = vmatprep.subr.mxu0 0.0
        %923 = vmatpush1.msra.mxu0 0.0
        %924 = vmatprep.subr.mxu0 0.0
        %925 = vmatpush1.msra.mxu0 0.0
        %926 = vmatprep.subr.mxu0 0.0
        %927 = vmatpush1.msra.mxu0 0.0
        %928 = vmatprep.subr.mxu0 0.0
        %929 = vmatpush1.msra.mxu0 0.0
        %930 = vmatprep.subr.mxu0 0.0
        %931 = vmatpush1.msra.mxu0 0.0
        %932 = vmatprep.subr.mxu0 0.0
        %933 = vmatpush1.msra.mxu0 0.0
        %934 = vmatprep.subr.mxu0 0.0
        %935 = vmatpush1.msra.mxu0 0.0
        %936 = vmatprep.subr.mxu0 0.0
        %937 = vmatpush1.msra.mxu0 0.0
        %938 = vmatprep.subr.mxu0 0.0
        %939 = vmatpush1.msra.mxu0 0.0
        %940 = vmatprep.subr.mxu0 0.0
        %941 = vmatpush1.msra.mxu0 0.0
        %942 = vmatprep.subr.mxu0 0.0
        %943 = vmatpush1.msra.mxu0 0.0
        %944 = vmatprep.subr.mxu0 0.0
        %945 = vmatpush1.msra.mxu0 0.0
        %946 = vmatprep.subr.mxu0 0.0
        %947 = vmatpush1.msra.mxu0 0.0
        %948 = vmatprep.subr.mxu0 0.0
        %949 = vmatpush1.msra.mxu0 0.0
        %950 = vmatprep.subr.mxu0 0.0
        %951 = vmatpush1.msra.mxu0 0.0
        %952 = vmatprep.subr.mxu0 0.0
        %953 = vmatpush1.msra.mxu0 0.0
        %954 = vmatprep.subr.mxu0 0.0
        %955 = vmatpush1.msra.mxu0 0.0
        %956 = vmatprep.subr.mxu0 0.0
        %957 = vmatpush1.msra.mxu0 0.0
        %958 = vmatprep.subr.mxu0 0.0
        %959 = vmatpush1.msra.mxu0 0.0
        %960 = vmatprep.subr.mxu0 0.0
        %961 = vmatpush1.msra.mxu0 0.0
        %962 = vmatprep.subr.mxu0 0.0
        %963 = vmatpush1.msra.mxu0 0.0
        %964 = vmatprep.subr.mxu0 0.0
        %965 = vmatpush1.msra.mxu0 0.0
        %966 = vmatprep.subr.mxu0 0.0
        %967 = vmatpush1.msra.mxu0 0.0
        %968 = vmatprep.subr.mxu0 0.0
        %969 = vmatpush1.msra.mxu0 0.0
        %970 = vmatprep.mubr.f32.mxu0 0.0
        %971 = vmatmul.mubr.f32.gmra.mrb[0].mxu0 %v868
        %v972 = vpop.f32.mrb[0].mxu0
        %v973 = vadd.f32 0.0, %v972
        %v974 = vpop.f32.mrb[0].mxu0
        %975 = vmatprep.mubr.f32.mxu0 0.0
        %976 = vmatmul.mubr.f32.gmra.mrb[0].mxu0 %v871
        %v977 = vpop.f32.mrb[0].mxu0
        %v978 = vadd.f32 0.0, %v977
        %v979 = vpop.f32.mrb[0].mxu0
        %980 = vmatprep.mubr.f32.mxu0 0.0
        %981 = vmatmul.mubr.f32.gmra.mrb[0].mxu0 %v874
        %v982 = vpop.f32.mrb[0].mxu0
        %v983 = vadd.f32 0.0, %v982
        %v984 = vpop.f32.mrb[0].mxu0
        %985 = vmatprep.mubr.f32.mxu0 0.0
        %986 = vmatmul.mubr.f32.gmra.mrb[0].mxu0 %v877
        %v987 = vpop.f32.mrb[0].mxu0
        %v988 = vadd.f32 0.0, %v987
        %v989 = vpop.f32.mrb[0].mxu0
        %990 = vmatprep.mubr.f32.mxu0 0.0
        %991 = vmatmul.mubr.f32.gmra.mrb[0].mxu0 %v880
        %v992 = vpop.f32.mrb[0].mxu0
        %v993 = vadd.f32 0.0, %v992
        %v994 = vpop.f32.mrb[0].mxu0
        %995 = vmatprep.mubr.f32.mxu0 0.0
        %996 = vmatmul.mubr.f32.gmra.mrb[0].mxu0 %v883
        %v997 = vpop.f32.mrb[0].mxu0
        %v998 = vadd.f32 0.0, %v997
        %v999 = vpop.f32.mrb[0].mxu0
        %1000 = vmatprep.mubr.f32.mxu0 0.0
        %1001 = vmatmul.mubr.f32.gmra.mrb[0].mxu0 %v886
        %v1002 = vpop.f32.mrb[0].mxu0
        %v1003 = vadd.f32 0.0, %v1002
        %v1004 = vpop.f32.mrb[0].mxu0
        %1005 = vmatprep.mubr.f32.mxu0 0.0
        %1006 = vmatmul.mubr.f32.gmra.mrb[0].mxu0 %v889
        %v1007 = vpop.f32.mrb[0].mxu0
        %v1008 = vadd.f32 0.0, %v1007
        %v1009 = vpop.f32.mrb[0].mxu0
        %1010 = vmatprep.mubr.f32.mxu0 0.0
        %1011 = vmatmul.mubr.f32.gmra.mrb[0].mxu0 %v892
        %v1012 = vpop.f32.mrb[0].mxu0
        %v1013 = vadd.f32 0.0, %v1012
        %v1014 = vpop.f32.mrb[0].mxu0
        %1015 = vmatprep.mubr.f32.mxu0 0.0
        %1016 = vmatmul.mubr.f32.gmra.mrb[0].mxu0 %v895
        %v1017 = vpop.f32.mrb[0].mxu0
        %v1018 = vadd.f32 0.0, %v1017
        %v1019 = vpop.f32.mrb[0].mxu0
        %1020 = vmatprep.mubr.f32.mxu0 0.0
        %1021 = vmatmul.mubr.f32.gmra.mrb[0].mxu0 %v898
        %v1022 = vpop.f32.mrb[0].mxu0
        %v1023 = vadd.f32 0.0, %v1022
        %v1024 = vpop.f32.mrb[0].mxu0
        %1025 = vmatprep.mubr.f32.mxu0 0.0
        %1026 = vmatmul.mubr.f32.gmra.mrb[0].mxu0 %v901
        %v1027 = vpop.f32.mrb[0].mxu0
        %v1028 = vadd.f32 0.0, %v1027
        %v1029 = vpop.f32.mrb[0].mxu0
        %1030 = vmatprep.mubr.f32.mxu0 0.0
        %1031 = vmatmul.mubr.f32.gmra.mrb[0].mxu0 %v904
        %v1032 = vpop.f32.mrb[0].mxu0
        %v1033 = vadd.f32 0.0, %v1032
        %v1034 = vpop.f32.mrb[0].mxu0
        %1035 = vdwg.mxu0
        %v1036 = vadd.f32 %v839, %v973
        %v1037 = vadd.f32 %v840, %v978
        %v1038 = vadd.f32 %v841, %v983
        %v1039 = vadd.f32 %v842, %v988
        %v1040 = vadd.f32 %v843, %v993
        %v1041 = vadd.f32 %v844, %v998
        %v1042 = vadd.f32 %v845, %v1003
        %v1043 = vadd.f32 %v846, %v1008
        %v1044 = vadd.f32 %v847, %v1013
        %v1045 = vadd.f32 %v848, %v1018
        %v1046 = vadd.f32 %v849, %v1023
        %v1047 = vadd.f32 %v850, %v1028
        %v1048 = vadd.f32 %v851, %v1033
        %1049 = vst [vmem:[#allocation2] sm:$0xff] %v1036
        %1050 = vst [vmem:[#allocation2 + $0x8] sm:$0xff] %v1037
        %1051 = vst [vmem:[#allocation2 + $0x10] sm:$0xff] %v1038
        %1052 = vst [vmem:[#allocation2 + $0x18] sm:$0xff] %v1039
        %1053 = vst [vmem:[#allocation2 + $0x20] sm:$0xff] %v1040
        %1054 = vst [vmem:[#allocation2 + $0x28] sm:$0xff] %v1041
        %1055 = vst [vmem:[#allocation2 + $0x30] sm:$0xff] %v1042
        %1056 = vst [vmem:[#allocation2 + $0x38] sm:$0xff] %v1043
        %1057 = vst [vmem:[#allocation2 + $0x40] sm:$0xff] %v1044
        %1058 = vst [vmem:[#allocation2 + $0x48] sm:$0xff] %v1045
        %1059 = vst [vmem:[#allocation2 + $0x50] sm:$0xff] %v1046
        %1060 = vst [vmem:[#allocation2 + $0x58] sm:$0xff] %v1047
        %1061 = vst [vmem:[#allocation2 + $0x60] sm:$0xff] %v1048
        %v1062 = vld [vmem:[#allocation2] sm:$0xff]
        %v1063 = vld [vmem:[#allocation2 + $0x8] sm:$0xff]
        %v1064 = vld [vmem:[#allocation2 + $0x10] sm:$0xff]
        %v1065 = vld [vmem:[#allocation2 + $0x18] sm:$0xff]
        %v1066 = vld [vmem:[#allocation2 + $0x20] sm:$0xff]
        %v1067 = vld [vmem:[#allocation2 + $0x28] sm:$0xff]
        %v1068 = vld [vmem:[#allocation2 + $0x30] sm:$0xff]
        %v1069 = vld [vmem:[#allocation2 + $0x38] sm:$0xff]
        %v1070 = vld [vmem:[#allocation2 + $0x40] sm:$0xff]
        %v1071 = vld [vmem:[#allocation2 + $0x48] sm:$0xff]
        %v1072 = vld [vmem:[#allocation2 + $0x50] sm:$0xff]
        %v1073 = vld [vmem:[#allocation2 + $0x58] sm:$0xff]
        %v1074 = vld [vmem:[#allocation2 + $0x60] sm:$0xff]
        %v1075 = vld [vmem:[%s195 + $0x4] sm:$0xff]
        %v1076 = vld [vmem:[%s195 + $0xc] sm:$0xff]
        %v1077 = vld [vmem:[%s195 + $0x14] sm:$0xff]
        %v1078 = vld [vmem:[%s195 + $0x1c] sm:$0xff]
        %v1079 = vld [vmem:[%s195 + $0x24] sm:$0xff]
        %v1080 = vld [vmem:[%s195 + $0x2c] sm:$0xff]
        %v1081 = vld [vmem:[%s195 + $0x34] sm:$0xff]
        %v1082 = vld [vmem:[%s195 + $0x3c] sm:$0xff]
        %v1083 = vld [vmem:[%s195 + $0x44] sm:$0xff]
        %v1084 = vld [vmem:[%s195 + $0x4c] sm:$0xff]
        %v1085 = vld [vmem:[%s195 + $0x54] sm:$0xff]
        %v1086 = vld [vmem:[%s195 + $0x5c] sm:$0xff]
        %v1087 = vld [vmem:[%s195 + $0x64] sm:$0xff]
        %s1088 = scalar_lea.vmem %s1, 32
        %v1089 = vld [vmem:[%s1088] sm:$0xff]
        %v1091 = vsel %vm210, %v1075, 0
        %v1094 = vsel %vm210, %v1076, 0
        %v1097 = vsel %vm210, %v1077, 0
        %v1100 = vsel %vm210, %v1078, 0
        %v1103 = vsel %vm210, %v1079, 0
        %v1106 = vsel %vm210, %v1080, 0
        %v1109 = vsel %vm210, %v1081, 0
        %v1112 = vsel %vm210, %v1082, 0
        %v1115 = vsel %vm210, %v1083, 0
        %v1118 = vsel %vm210, %v1084, 0
        %v1121 = vsel %vm210, %v1085, 0
        %v1124 = vsel %vm210, %v1086, 0
        %v1127 = vsel %vm210, %v1087, 0
        %1129 = vmatprep.subr.mxu0 0.0
        %1130 = vmatpush1.msra.mxu0 %v1089
        %1131 = vmatprep.subr.mxu0 0.0
        %1132 = vmatpush1.msra.mxu0 0.0
        %1133 = vmatprep.subr.mxu0 0.0
        %1134 = vmatpush1.msra.mxu0 0.0
        %1135 = vmatprep.subr.mxu0 0.0
        %1136 = vmatpush1.msra.mxu0 0.0
        %1137 = vmatprep.subr.mxu0 0.0
        %1138 = vmatpush1.msra.mxu0 0.0
        %1139 = vmatprep.subr.mxu0 0.0
        %1140 = vmatpush1.msra.mxu0 0.0
        %1141 = vmatprep.subr.mxu0 0.0
        %1142 = vmatpush1.msra.mxu0 0.0
        %1143 = vmatprep.subr.mxu0 0.0
        %1144 = vmatpush1.msra.mxu0 0.0
        %1145 = vmatprep.subr.mxu0 0.0
        %1146 = vmatpush1.msra.mxu0 0.0
        %1147 = vmatprep.subr.mxu0 0.0
        %1148 = vmatpush1.msra.mxu0 0.0
        %1149 = vmatprep.subr.mxu0 0.0
        %1150 = vmatpush1.msra.mxu0 0.0
        %1151 = vmatprep.subr.mxu0 0.0
        %1152 = vmatpush1.msra.mxu0 0.0
        %1153 = vmatprep.subr.mxu0 0.0
        %1154 = vmatpush1.msra.mxu0 0.0
        %1155 = vmatprep.subr.mxu0 0.0
        %1156 = vmatpush1.msra.mxu0 0.0
        %1157 = vmatprep.subr.mxu0 0.0
        %1158 = vmatpush1.msra.mxu0 0.0
        %1159 = vmatprep.subr.mxu0 0.0
        %1160 = vmatpush1.msra.mxu0 0.0
        %1161 = vmatprep.subr.mxu0 0.0
        %1162 = vmatpush1.msra.mxu0 0.0
        %1163 = vmatprep.subr.mxu0 0.0
        %1164 = vmatpush1.msra.mxu0 0.0
        %1165 = vmatprep.subr.mxu0 0.0
        %1166 = vmatpush1.msra.mxu0 0.0
        %1167 = vmatprep.subr.mxu0 0.0
        %1168 = vmatpush1.msra.mxu0 0.0
        %1169 = vmatprep.subr.mxu0 0.0
        %1170 = vmatpush1.msra.mxu0 0.0
        %1171 = vmatprep.subr.mxu0 0.0
        %1172 = vmatpush1.msra.mxu0 0.0
        %1173 = vmatprep.subr.mxu0 0.0
        %1174 = vmatpush1.msra.mxu0 0.0
        %1175 = vmatprep.subr.mxu0 0.0
        %1176 = vmatpush1.msra.mxu0 0.0
        %1177 = vmatprep.subr.mxu0 0.0
        %1178 = vmatpush1.msra.mxu0 0.0
        %1179 = vmatprep.subr.mxu0 0.0
        %1180 = vmatpush1.msra.mxu0 0.0
        %1181 = vmatprep.subr.mxu0 0.0
        %1182 = vmatpush1.msra.mxu0 0.0
        %1183 = vmatprep.subr.mxu0 0.0
        %1184 = vmatpush1.msra.mxu0 0.0
        %1185 = vmatprep.subr.mxu0 0.0
        %1186 = vmatpush1.msra.mxu0 0.0
        %1187 = vmatprep.subr.mxu0 0.0
        %1188 = vmatpush1.msra.mxu0 0.0
        %1189 = vmatprep.subr.mxu0 0.0
        %1190 = vmatpush1.msra.mxu0 0.0
        %1191 = vmatprep.subr.mxu0 0.0
        %1192 = vmatpush1.msra.mxu0 0.0
        %1193 = vmatprep.mubr.f32.mxu0 0.0
        %1194 = vmatmul.mubr.f32.gmra.mrb[0].mxu0 %v1091
        %v1195 = vpop.f32.mrb[0].mxu0
        %v1196 = vadd.f32 0.0, %v1195
        %v1197 = vpop.f32.mrb[0].mxu0
        %1198 = vmatprep.mubr.f32.mxu0 0.0
        %1199 = vmatmul.mubr.f32.gmra.mrb[0].mxu0 %v1094
        %v1200 = vpop.f32.mrb[0].mxu0
        %v1201 = vadd.f32 0.0, %v1200
        %v1202 = vpop.f32.mrb[0].mxu0
        %1203 = vmatprep.mubr.f32.mxu0 0.0
        %1204 = vmatmul.mubr.f32.gmra.mrb[0].mxu0 %v1097
        %v1205 = vpop.f32.mrb[0].mxu0
        %v1206 = vadd.f32 0.0, %v1205
        %v1207 = vpop.f32.mrb[0].mxu0
        %1208 = vmatprep.mubr.f32.mxu0 0.0
        %1209 = vmatmul.mubr.f32.gmra.mrb[0].mxu0 %v1100
        %v1210 = vpop.f32.mrb[0].mxu0
        %v1211 = vadd.f32 0.0, %v1210
        %v1212 = vpop.f32.mrb[0].mxu0
        %1213 = vmatprep.mubr.f32.mxu0 0.0
        %1214 = vmatmul.mubr.f32.gmra.mrb[0].mxu0 %v1103
        %v1215 = vpop.f32.mrb[0].mxu0
        %v1216 = vadd.f32 0.0, %v1215
        %v1217 = vpop.f32.mrb[0].mxu0
        %1218 = vmatprep.mubr.f32.mxu0 0.0
        %1219 = vmatmul.mubr.f32.gmra.mrb[0].mxu0 %v1106
        %v1220 = vpop.f32.mrb[0].mxu0
        %v1221 = vadd.f32 0.0, %v1220
        %v1222 = vpop.f32.mrb[0].mxu0
        %1223 = vmatprep.mubr.f32.mxu0 0.0
        %1224 = vmatmul.mubr.f32.gmra.mrb[0].mxu0 %v1109
        %v1225 = vpop.f32.mrb[0].mxu0
        %v1226 = vadd.f32 0.0, %v1225
        %v1227 = vpop.f32.mrb[0].mxu0
        %1228 = vmatprep.mubr.f32.mxu0 0.0
        %1229 = vmatmul.mubr.f32.gmra.mrb[0].mxu0 %v1112
        %v1230 = vpop.f32.mrb[0].mxu0
        %v1231 = vadd.f32 0.0, %v1230
        %v1232 = vpop.f32.mrb[0].mxu0
        %1233 = vmatprep.mubr.f32.mxu0 0.0
        %1234 = vmatmul.mubr.f32.gmra.mrb[0].mxu0 %v1115
        %v1235 = vpop.f32.mrb[0].mxu0
        %v1236 = vadd.f32 0.0, %v1235
        %v1237 = vpop.f32.mrb[0].mxu0
        %1238 = vmatprep.mubr.f32.mxu0 0.0
        %1239 = vmatmul.mubr.f32.gmra.mrb[0].mxu0 %v1118
        %v1240 = vpop.f32.mrb[0].mxu0
        %v1241 = vadd.f32 0.0, %v1240
        %v1242 = vpop.f32.mrb[0].mxu0
        %1243 = vmatprep.mubr.f32.mxu0 0.0
        %1244 = vmatmul.mubr.f32.gmra.mrb[0].mxu0 %v1121
        %v1245 = vpop.f32.mrb[0].mxu0
        %v1246 = vadd.f32 0.0, %v1245
        %v1247 = vpop.f32.mrb[0].mxu0
        %1248 = vmatprep.mubr.f32.mxu0 0.0
        %1249 = vmatmul.mubr.f32.gmra.mrb[0].mxu0 %v1124
        %v1250 = vpop.f32.mrb[0].mxu0
        %v1251 = vadd.f32 0.0, %v1250
        %v1252 = vpop.f32.mrb[0].mxu0
        %1253 = vmatprep.mubr.f32.mxu0 0.0
        %1254 = vmatmul.mubr.f32.gmra.mrb[0].mxu0 %v1127
        %v1255 = vpop.f32.mrb[0].mxu0
        %v1256 = vadd.f32 0.0, %v1255
        %v1257 = vpop.f32.mrb[0].mxu0
        %1258 = vdwg.mxu0
        %v1259 = vadd.f32 %v1062, %v1196
        %v1260 = vadd.f32 %v1063, %v1201
        %v1261 = vadd.f32 %v1064, %v1206
        %v1262 = vadd.f32 %v1065, %v1211
        %v1263 = vadd.f32 %v1066, %v1216
        %v1264 = vadd.f32 %v1067, %v1221
        %v1265 = vadd.f32 %v1068, %v1226
        %v1266 = vadd.f32 %v1069, %v1231
        %v1267 = vadd.f32 %v1070, %v1236
        %v1268 = vadd.f32 %v1071, %v1241
        %v1269 = vadd.f32 %v1072, %v1246
        %v1270 = vadd.f32 %v1073, %v1251
        %v1271 = vadd.f32 %v1074, %v1256
        %1272 = vst [vmem:[#allocation2] sm:$0xff] %v1259
        %1273 = vst [vmem:[#allocation2 + $0x8] sm:$0xff] %v1260
        %1274 = vst [vmem:[#allocation2 + $0x10] sm:$0xff] %v1261
        %1275 = vst [vmem:[#allocation2 + $0x18] sm:$0xff] %v1262
        %1276 = vst [vmem:[#allocation2 + $0x20] sm:$0xff] %v1263
        %1277 = vst [vmem:[#allocation2 + $0x28] sm:$0xff] %v1264
        %1278 = vst [vmem:[#allocation2 + $0x30] sm:$0xff] %v1265
        %1279 = vst [vmem:[#allocation2 + $0x38] sm:$0xff] %v1266
        %1280 = vst [vmem:[#allocation2 + $0x40] sm:$0xff] %v1267
        %1281 = vst [vmem:[#allocation2 + $0x48] sm:$0xff] %v1268
        %1282 = vst [vmem:[#allocation2 + $0x50] sm:$0xff] %v1269
        %1283 = vst [vmem:[#allocation2 + $0x58] sm:$0xff] %v1270
        %1284 = vst [vmem:[#allocation2 + $0x60] sm:$0xff] %v1271
        %v1285 = vld [vmem:[#allocation2] sm:$0xff]
        %v1286 = vld [vmem:[#allocation2 + $0x8] sm:$0xff]
        %v1287 = vld [vmem:[#allocation2 + $0x10] sm:$0xff]
        %v1288 = vld [vmem:[#allocation2 + $0x18] sm:$0xff]
        %v1289 = vld [vmem:[#allocation2 + $0x20] sm:$0xff]
        %v1290 = vld [vmem:[#allocation2 + $0x28] sm:$0xff]
        %v1291 = vld [vmem:[#allocation2 + $0x30] sm:$0xff]
        %v1292 = vld [vmem:[#allocation2 + $0x38] sm:$0xff]
        %v1293 = vld [vmem:[#allocation2 + $0x40] sm:$0xff]
        %v1294 = vld [vmem:[#allocation2 + $0x48] sm:$0xff]
        %v1295 = vld [vmem:[#allocation2 + $0x50] sm:$0xff]
        %v1296 = vld [vmem:[#allocation2 + $0x58] sm:$0xff]
        %v1297 = vld [vmem:[#allocation2 + $0x60] sm:$0xff]
        %v1298 = vld [vmem:[%s195 + $0x5] sm:$0xff]
        %v1299 = vld [vmem:[%s195 + $0xd] sm:$0xff]
        %v1300 = vld [vmem:[%s195 + $0x15] sm:$0xff]
        %v1301 = vld [vmem:[%s195 + $0x1d] sm:$0xff]
        %v1302 = vld [vmem:[%s195 + $0x25] sm:$0xff]
        %v1303 = vld [vmem:[%s195 + $0x2d] sm:$0xff]
        %v1304 = vld [vmem:[%s195 + $0x35] sm:$0xff]
        %v1305 = vld [vmem:[%s195 + $0x3d] sm:$0xff]
        %v1306 = vld [vmem:[%s195 + $0x45] sm:$0xff]
        %v1307 = vld [vmem:[%s195 + $0x4d] sm:$0xff]
        %v1308 = vld [vmem:[%s195 + $0x55] sm:$0xff]
        %v1309 = vld [vmem:[%s195 + $0x5d] sm:$0xff]
        %v1310 = vld [vmem:[%s195 + $0x65] sm:$0xff]
        %s1311 = scalar_lea.vmem %s1, 40
        %v1312 = vld [vmem:[%s1311] sm:$0xff]
        %v1314 = vsel %vm210, %v1298, 0
        %v1317 = vsel %vm210, %v1299, 0
        %v1320 = vsel %vm210, %v1300, 0
        %v1323 = vsel %vm210, %v1301, 0
        %v1326 = vsel %vm210, %v1302, 0
        %v1329 = vsel %vm210, %v1303, 0
        %v1332 = vsel %vm210, %v1304, 0
        %v1335 = vsel %vm210, %v1305, 0
        %v1338 = vsel %vm210, %v1306, 0
        %v1341 = vsel %vm210, %v1307, 0
        %v1344 = vsel %vm210, %v1308, 0
        %v1347 = vsel %vm210, %v1309, 0
        %v1350 = vsel %vm210, %v1310, 0
        %1352 = vmatprep.subr.mxu0 0.0
        %1353 = vmatpush1.msra.mxu0 %v1312
        %1354 = vmatprep.subr.mxu0 0.0
        %1355 = vmatpush1.msra.mxu0 0.0
        %1356 = vmatprep.subr.mxu0 0.0
        %1357 = vmatpush1.msra.mxu0 0.0
        %1358 = vmatprep.subr.mxu0 0.0
        %1359 = vmatpush1.msra.mxu0 0.0
        %1360 = vmatprep.subr.mxu0 0.0
        %1361 = vmatpush1.msra.mxu0 0.0
        %1362 = vmatprep.subr.mxu0 0.0
        %1363 = vmatpush1.msra.mxu0 0.0
        %1364 = vmatprep.subr.mxu0 0.0
        %1365 = vmatpush1.msra.mxu0 0.0
        %1366 = vmatprep.subr.mxu0 0.0
        %1367 = vmatpush1.msra.mxu0 0.0
        %1368 = vmatprep.subr.mxu0 0.0
        %1369 = vmatpush1.msra.mxu0 0.0
        %1370 = vmatprep.subr.mxu0 0.0
        %1371 = vmatpush1.msra.mxu0 0.0
        %1372 = vmatprep.subr.mxu0 0.0
        %1373 = vmatpush1.msra.mxu0 0.0
        %1374 = vmatprep.subr.mxu0 0.0
        %1375 = vmatpush1.msra.mxu0 0.0
        %1376 = vmatprep.subr.mxu0 0.0
        %1377 = vmatpush1.msra.mxu0 0.0
        %1378 = vmatprep.subr.mxu0 0.0
        %1379 = vmatpush1.msra.mxu0 0.0
        %1380 = vmatprep.subr.mxu0 0.0
        %1381 = vmatpush1.msra.mxu0 0.0
        %1382 = vmatprep.subr.mxu0 0.0
        %1383 = vmatpush1.msra.mxu0 0.0
        %1384 = vmatprep.subr.mxu0 0.0
        %1385 = vmatpush1.msra.mxu0 0.0
        %1386 = vmatprep.subr.mxu0 0.0
        %1387 = vmatpush1.msra.mxu0 0.0
        %1388 = vmatprep.subr.mxu0 0.0
        %1389 = vmatpush1.msra.mxu0 0.0
        %1390 = vmatprep.subr.mxu0 0.0
        %1391 = vmatpush1.msra.mxu0 0.0
        %1392 = vmatprep.subr.mxu0 0.0
        %1393 = vmatpush1.msra.mxu0 0.0
        %1394 = vmatprep.subr.mxu0 0.0
        %1395 = vmatpush1.msra.mxu0 0.0
        %1396 = vmatprep.subr.mxu0 0.0
        %1397 = vmatpush1.msra.mxu0 0.0
        %1398 = vmatprep.subr.mxu0 0.0
        %1399 = vmatpush1.msra.mxu0 0.0
        %1400 = vmatprep.subr.mxu0 0.0
        %1401 = vmatpush1.msra.mxu0 0.0
        %1402 = vmatprep.subr.mxu0 0.0
        %1403 = vmatpush1.msra.mxu0 0.0
        %1404 = vmatprep.subr.mxu0 0.0
        %1405 = vmatpush1.msra.mxu0 0.0
        %1406 = vmatprep.subr.mxu0 0.0
        %1407 = vmatpush1.msra.mxu0 0.0
        %1408 = vmatprep.subr.mxu0 0.0
        %1409 = vmatpush1.msra.mxu0 0.0
        %1410 = vmatprep.subr.mxu0 0.0
        %1411 = vmatpush1.msra.mxu0 0.0
        %1412 = vmatprep.subr.mxu0 0.0
        %1413 = vmatpush1.msra.mxu0 0.0
        %1414 = vmatprep.subr.mxu0 0.0
        %1415 = vmatpush1.msra.mxu0 0.0
        %1416 = vmatprep.mubr.f32.mxu0 0.0
        %1417 = vmatmul.mubr.f32.gmra.mrb[0].mxu0 %v1314
        %v1418 = vpop.f32.mrb[0].mxu0
        %v1419 = vadd.f32 0.0, %v1418
        %v1420 = vpop.f32.mrb[0].mxu0
        %1421 = vmatprep.mubr.f32.mxu0 0.0
        %1422 = vmatmul.mubr.f32.gmra.mrb[0].mxu0 %v1317
        %v1423 = vpop.f32.mrb[0].mxu0
        %v1424 = vadd.f32 0.0, %v1423
        %v1425 = vpop.f32.mrb[0].mxu0
        %1426 = vmatprep.mubr.f32.mxu0 0.0
        %1427 = vmatmul.mubr.f32.gmra.mrb[0].mxu0 %v1320
        %v1428 = vpop.f32.mrb[0].mxu0
        %v1429 = vadd.f32 0.0, %v1428
        %v1430 = vpop.f32.mrb[0].mxu0
        %1431 = vmatprep.mubr.f32.mxu0 0.0
        %1432 = vmatmul.mubr.f32.gmra.mrb[0].mxu0 %v1323
        %v1433 = vpop.f32.mrb[0].mxu0
        %v1434 = vadd.f32 0.0, %v1433
        %v1435 = vpop.f32.mrb[0].mxu0
        %1436 = vmatprep.mubr.f32.mxu0 0.0
        %1437 = vmatmul.mubr.f32.gmra.mrb[0].mxu0 %v1326
        %v1438 = vpop.f32.mrb[0].mxu0
        %v1439 = vadd.f32 0.0, %v1438
        %v1440 = vpop.f32.mrb[0].mxu0
        %1441 = vmatprep.mubr.f32.mxu0 0.0
        %1442 = vmatmul.mubr.f32.gmra.mrb[0].mxu0 %v1329
        %v1443 = vpop.f32.mrb[0].mxu0
        %v1444 = vadd.f32 0.0, %v1443
        %v1445 = vpop.f32.mrb[0].mxu0
        %1446 = vmatprep.mubr.f32.mxu0 0.0
        %1447 = vmatmul.mubr.f32.gmra.mrb[0].mxu0 %v1332
        %v1448 = vpop.f32.mrb[0].mxu0
        %v1449 = vadd.f32 0.0, %v1448
        %v1450 = vpop.f32.mrb[0].mxu0
        %1451 = vmatprep.mubr.f32.mxu0 0.0
        %1452 = vmatmul.mubr.f32.gmra.mrb[0].mxu0 %v1335
        %v1453 = vpop.f32.mrb[0].mxu0
        %v1454 = vadd.f32 0.0, %v1453
        %v1455 = vpop.f32.mrb[0].mxu0
        %1456 = vmatprep.mubr.f32.mxu0 0.0
        %1457 = vmatmul.mubr.f32.gmra.mrb[0].mxu0 %v1338
        %v1458 = vpop.f32.mrb[0].mxu0
        %v1459 = vadd.f32 0.0, %v1458
        %v1460 = vpop.f32.mrb[0].mxu0
        %1461 = vmatprep.mubr.f32.mxu0 0.0
        %1462 = vmatmul.mubr.f32.gmra.mrb[0].mxu0 %v1341
        %v1463 = vpop.f32.mrb[0].mxu0
        %v1464 = vadd.f32 0.0, %v1463
        %v1465 = vpop.f32.mrb[0].mxu0
        %1466 = vmatprep.mubr.f32.mxu0 0.0
        %1467 = vmatmul.mubr.f32.gmra.mrb[0].mxu0 %v1344
        %v1468 = vpop.f32.mrb[0].mxu0
        %v1469 = vadd.f32 0.0, %v1468
        %v1470 = vpop.f32.mrb[0].mxu0
        %1471 = vmatprep.mubr.f32.mxu0 0.0
        %1472 = vmatmul.mubr.f32.gmra.mrb[0].mxu0 %v1347
        %v1473 = vpop.f32.mrb[0].mxu0
        %v1474 = vadd.f32 0.0, %v1473
        %v1475 = vpop.f32.mrb[0].mxu0
        %1476 = vmatprep.mubr.f32.mxu0 0.0
        %1477 = vmatmul.mubr.f32.gmra.mrb[0].mxu0 %v1350
        %v1478 = vpop.f32.mrb[0].mxu0
        %v1479 = vadd.f32 0.0, %v1478
        %v1480 = vpop.f32.mrb[0].mxu0
        %1481 = vdwg.mxu0
        %v1482 = vadd.f32 %v1285, %v1419
        %v1483 = vadd.f32 %v1286, %v1424
        %v1484 = vadd.f32 %v1287, %v1429
        %v1485 = vadd.f32 %v1288, %v1434
        %v1486 = vadd.f32 %v1289, %v1439
        %v1487 = vadd.f32 %v1290, %v1444
        %v1488 = vadd.f32 %v1291, %v1449
        %v1489 = vadd.f32 %v1292, %v1454
        %v1490 = vadd.f32 %v1293, %v1459
        %v1491 = vadd.f32 %v1294, %v1464
        %v1492 = vadd.f32 %v1295, %v1469
        %v1493 = vadd.f32 %v1296, %v1474
        %v1494 = vadd.f32 %v1297, %v1479
        %1495 = vst [vmem:[#allocation2] sm:$0xff] %v1482
        %1496 = vst [vmem:[#allocation2 + $0x8] sm:$0xff] %v1483
        %1497 = vst [vmem:[#allocation2 + $0x10] sm:$0xff] %v1484
        %1498 = vst [vmem:[#allocation2 + $0x18] sm:$0xff] %v1485
        %1499 = vst [vmem:[#allocation2 + $0x20] sm:$0xff] %v1486
        %1500 = vst [vmem:[#allocation2 + $0x28] sm:$0xff] %v1487
        %1501 = vst [vmem:[#allocation2 + $0x30] sm:$0xff] %v1488
        %1502 = vst [vmem:[#allocation2 + $0x38] sm:$0xff] %v1489
        %1503 = vst [vmem:[#allocation2 + $0x40] sm:$0xff] %v1490
        %1504 = vst [vmem:[#allocation2 + $0x48] sm:$0xff] %v1491
        %1505 = vst [vmem:[#allocation2 + $0x50] sm:$0xff] %v1492
        %1506 = vst [vmem:[#allocation2 + $0x58] sm:$0xff] %v1493
        %1507 = vst [vmem:[#allocation2 + $0x60] sm:$0xff] %v1494
        %v1508 = vld [vmem:[#allocation2] sm:$0xff]
        %v1509 = vld [vmem:[#allocation2 + $0x8] sm:$0xff]
        %v1510 = vld [vmem:[#allocation2 + $0x10] sm:$0xff]
        %v1511 = vld [vmem:[#allocation2 + $0x18] sm:$0xff]
        %v1512 = vld [vmem:[#allocation2 + $0x20] sm:$0xff]
        %v1513 = vld [vmem:[#allocation2 + $0x28] sm:$0xff]
        %v1514 = vld [vmem:[#allocation2 + $0x30] sm:$0xff]
        %v1515 = vld [vmem:[#allocation2 + $0x38] sm:$0xff]
        %v1516 = vld [vmem:[#allocation2 + $0x40] sm:$0xff]
        %v1517 = vld [vmem:[#allocation2 + $0x48] sm:$0xff]
        %v1518 = vld [vmem:[#allocation2 + $0x50] sm:$0xff]
        %v1519 = vld [vmem:[#allocation2 + $0x58] sm:$0xff]
        %v1520 = vld [vmem:[#allocation2 + $0x60] sm:$0xff]
        %v1521 = vld [vmem:[%s195 + $0x6] sm:$0xff]
        %v1522 = vld [vmem:[%s195 + $0xe] sm:$0xff]
        %v1523 = vld [vmem:[%s195 + $0x16] sm:$0xff]
        %v1524 = vld [vmem:[%s195 + $0x1e] sm:$0xff]
        %v1525 = vld [vmem:[%s195 + $0x26] sm:$0xff]
        %v1526 = vld [vmem:[%s195 + $0x2e] sm:$0xff]
        %v1527 = vld [vmem:[%s195 + $0x36] sm:$0xff]
        %v1528 = vld [vmem:[%s195 + $0x3e] sm:$0xff]
        %v1529 = vld [vmem:[%s195 + $0x46] sm:$0xff]
        %v1530 = vld [vmem:[%s195 + $0x4e] sm:$0xff]
        %v1531 = vld [vmem:[%s195 + $0x56] sm:$0xff]
        %v1532 = vld [vmem:[%s195 + $0x5e] sm:$0xff]
        %v1533 = vld [vmem:[%s195 + $0x66] sm:$0xff]
        %s1534 = scalar_lea.vmem %s1, 48
        %v1535 = vld [vmem:[%s1534] sm:$0xff]
        %v1537 = vsel %vm210, %v1521, 0
        %v1540 = vsel %vm210, %v1522, 0
        %v1543 = vsel %vm210, %v1523, 0
        %v1546 = vsel %vm210, %v1524, 0
        %v1549 = vsel %vm210, %v1525, 0
        %v1552 = vsel %vm210, %v1526, 0
        %v1555 = vsel %vm210, %v1527, 0
        %v1558 = vsel %vm210, %v1528, 0
        %v1561 = vsel %vm210, %v1529, 0
        %v1564 = vsel %vm210, %v1530, 0
        %v1567 = vsel %vm210, %v1531, 0
        %v1570 = vsel %vm210, %v1532, 0
        %v1573 = vsel %vm210, %v1533, 0
        %1575 = vmatprep.subr.mxu0 0.0
        %1576 = vmatpush1.msra.mxu0 %v1535
        %1577 = vmatprep.subr.mxu0 0.0
        %1578 = vmatpush1.msra.mxu0 0.0
        %1579 = vmatprep.subr.mxu0 0.0
        %1580 = vmatpush1.msra.mxu0 0.0
        %1581 = vmatprep.subr.mxu0 0.0
        %1582 = vmatpush1.msra.mxu0 0.0
        %1583 = vmatprep.subr.mxu0 0.0
        %1584 = vmatpush1.msra.mxu0 0.0
        %1585 = vmatprep.subr.mxu0 0.0
        %1586 = vmatpush1.msra.mxu0 0.0
        %1587 = vmatprep.subr.mxu0 0.0
        %1588 = vmatpush1.msra.mxu0 0.0
        %1589 = vmatprep.subr.mxu0 0.0
        %1590 = vmatpush1.msra.mxu0 0.0
        %1591 = vmatprep.subr.mxu0 0.0
        %1592 = vmatpush1.msra.mxu0 0.0
        %1593 = vmatprep.subr.mxu0 0.0
        %1594 = vmatpush1.msra.mxu0 0.0
        %1595 = vmatprep.subr.mxu0 0.0
        %1596 = vmatpush1.msra.mxu0 0.0
        %1597 = vmatprep.subr.mxu0 0.0
        %1598 = vmatpush1.msra.mxu0 0.0
        %1599 = vmatprep.subr.mxu0 0.0
        %1600 = vmatpush1.msra.mxu0 0.0
        %1601 = vmatprep.subr.mxu0 0.0
        %1602 = vmatpush1.msra.mxu0 0.0
        %1603 = vmatprep.subr.mxu0 0.0
        %1604 = vmatpush1.msra.mxu0 0.0
        %1605 = vmatprep.subr.mxu0 0.0
        %1606 = vmatpush1.msra.mxu0 0.0
        %1607 = vmatprep.subr.mxu0 0.0
        %1608 = vmatpush1.msra.mxu0 0.0
        %1609 = vmatprep.subr.mxu0 0.0
        %1610 = vmatpush1.msra.mxu0 0.0
        %1611 = vmatprep.subr.mxu0 0.0
        %1612 = vmatpush1.msra.mxu0 0.0
        %1613 = vmatprep.subr.mxu0 0.0
        %1614 = vmatpush1.msra.mxu0 0.0
        %1615 = vmatprep.subr.mxu0 0.0
        %1616 = vmatpush1.msra.mxu0 0.0
        %1617 = vmatprep.subr.mxu0 0.0
        %1618 = vmatpush1.msra.mxu0 0.0
        %1619 = vmatprep.subr.mxu0 0.0
        %1620 = vmatpush1.msra.mxu0 0.0
        %1621 = vmatprep.subr.mxu0 0.0
        %1622 = vmatpush1.msra.mxu0 0.0
        %1623 = vmatprep.subr.mxu0 0.0
        %1624 = vmatpush1.msra.mxu0 0.0
        %1625 = vmatprep.subr.mxu0 0.0
        %1626 = vmatpush1.msra.mxu0 0.0
        %1627 = vmatprep.subr.mxu0 0.0
        %1628 = vmatpush1.msra.mxu0 0.0
        %1629 = vmatprep.subr.mxu0 0.0
        %1630 = vmatpush1.msra.mxu0 0.0
        %1631 = vmatprep.subr.mxu0 0.0
        %1632 = vmatpush1.msra.mxu0 0.0
        %1633 = vmatprep.subr.mxu0 0.0
        %1634 = vmatpush1.msra.mxu0 0.0
        %1635 = vmatprep.subr.mxu0 0.0
        %1636 = vmatpush1.msra.mxu0 0.0
        %1637 = vmatprep.subr.mxu0 0.0
        %1638 = vmatpush1.msra.mxu0 0.0
        %1639 = vmatprep.mubr.f32.mxu0 0.0
        %1640 = vmatmul.mubr.f32.gmra.mrb[0].mxu0 %v1537
        %v1641 = vpop.f32.mrb[0].mxu0
        %v1642 = vadd.f32 0.0, %v1641
        %v1643 = vpop.f32.mrb[0].mxu0
        %1644 = vmatprep.mubr.f32.mxu0 0.0
        %1645 = vmatmul.mubr.f32.gmra.mrb[0].mxu0 %v1540
        %v1646 = vpop.f32.mrb[0].mxu0
        %v1647 = vadd.f32 0.0, %v1646
        %v1648 = vpop.f32.mrb[0].mxu0
        %1649 = vmatprep.mubr.f32.mxu0 0.0
        %1650 = vmatmul.mubr.f32.gmra.mrb[0].mxu0 %v1543
        %v1651 = vpop.f32.mrb[0].mxu0
        %v1652 = vadd.f32 0.0, %v1651
        %v1653 = vpop.f32.mrb[0].mxu0
        %1654 = vmatprep.mubr.f32.mxu0 0.0
        %1655 = vmatmul.mubr.f32.gmra.mrb[0].mxu0 %v1546
        %v1656 = vpop.f32.mrb[0].mxu0
        %v1657 = vadd.f32 0.0, %v1656
        %v1658 = vpop.f32.mrb[0].mxu0
        %1659 = vmatprep.mubr.f32.mxu0 0.0
        %1660 = vmatmul.mubr.f32.gmra.mrb[0].mxu0 %v1549
        %v1661 = vpop.f32.mrb[0].mxu0
        %v1662 = vadd.f32 0.0, %v1661
        %v1663 = vpop.f32.mrb[0].mxu0
        %1664 = vmatprep.mubr.f32.mxu0 0.0
        %1665 = vmatmul.mubr.f32.gmra.mrb[0].mxu0 %v1552
        %v1666 = vpop.f32.mrb[0].mxu0
        %v1667 = vadd.f32 0.0, %v1666
        %v1668 = vpop.f32.mrb[0].mxu0
        %1669 = vmatprep.mubr.f32.mxu0 0.0
        %1670 = vmatmul.mubr.f32.gmra.mrb[0].mxu0 %v1555
        %v1671 = vpop.f32.mrb[0].mxu0
        %v1672 = vadd.f32 0.0, %v1671
        %v1673 = vpop.f32.mrb[0].mxu0
        %1674 = vmatprep.mubr.f32.mxu0 0.0
        %1675 = vmatmul.mubr.f32.gmra.mrb[0].mxu0 %v1558
        %v1676 = vpop.f32.mrb[0].mxu0
        %v1677 = vadd.f32 0.0, %v1676
        %v1678 = vpop.f32.mrb[0].mxu0
        %1679 = vmatprep.mubr.f32.mxu0 0.0
        %1680 = vmatmul.mubr.f32.gmra.mrb[0].mxu0 %v1561
        %v1681 = vpop.f32.mrb[0].mxu0
        %v1682 = vadd.f32 0.0, %v1681
        %v1683 = vpop.f32.mrb[0].mxu0
        %1684 = vmatprep.mubr.f32.mxu0 0.0
        %1685 = vmatmul.mubr.f32.gmra.mrb[0].mxu0 %v1564
        %v1686 = vpop.f32.mrb[0].mxu0
        %v1687 = vadd.f32 0.0, %v1686
        %v1688 = vpop.f32.mrb[0].mxu0
        %1689 = vmatprep.mubr.f32.mxu0 0.0
        %1690 = vmatmul.mubr.f32.gmra.mrb[0].mxu0 %v1567
        %v1691 = vpop.f32.mrb[0].mxu0
        %v1692 = vadd.f32 0.0, %v1691
        %v1693 = vpop.f32.mrb[0].mxu0
        %1694 = vmatprep.mubr.f32.mxu0 0.0
        %1695 = vmatmul.mubr.f32.gmra.mrb[0].mxu0 %v1570
        %v1696 = vpop.f32.mrb[0].mxu0
        %v1697 = vadd.f32 0.0, %v1696
        %v1698 = vpop.f32.mrb[0].mxu0
        %1699 = vmatprep.mubr.f32.mxu0 0.0
        %1700 = vmatmul.mubr.f32.gmra.mrb[0].mxu0 %v1573
        %v1701 = vpop.f32.mrb[0].mxu0
        %v1702 = vadd.f32 0.0, %v1701
        %v1703 = vpop.f32.mrb[0].mxu0
        %1704 = vdwg.mxu0
        %v1705 = vadd.f32 %v1508, %v1642
        %v1706 = vadd.f32 %v1509, %v1647
        %v1707 = vadd.f32 %v1510, %v1652
        %v1708 = vadd.f32 %v1511, %v1657
        %v1709 = vadd.f32 %v1512, %v1662
        %v1710 = vadd.f32 %v1513, %v1667
        %v1711 = vadd.f32 %v1514, %v1672
        %v1712 = vadd.f32 %v1515, %v1677
        %v1713 = vadd.f32 %v1516, %v1682
        %v1714 = vadd.f32 %v1517, %v1687
        %v1715 = vadd.f32 %v1518, %v1692
        %v1716 = vadd.f32 %v1519, %v1697
        %v1717 = vadd.f32 %v1520, %v1702
        %1718 = vst [vmem:[#allocation2] sm:$0xff] %v1705
        %1719 = vst [vmem:[#allocation2 + $0x8] sm:$0xff] %v1706
        %1720 = vst [vmem:[#allocation2 + $0x10] sm:$0xff] %v1707
        %1721 = vst [vmem:[#allocation2 + $0x18] sm:$0xff] %v1708
        %1722 = vst [vmem:[#allocation2 + $0x20] sm:$0xff] %v1709
        %1723 = vst [vmem:[#allocation2 + $0x28] sm:$0xff] %v1710
        %1724 = vst [vmem:[#allocation2 + $0x30] sm:$0xff] %v1711
        %1725 = vst [vmem:[#allocation2 + $0x38] sm:$0xff] %v1712
        %1726 = vst [vmem:[#allocation2 + $0x40] sm:$0xff] %v1713
        %1727 = vst [vmem:[#allocation2 + $0x48] sm:$0xff] %v1714
        %1728 = vst [vmem:[#allocation2 + $0x50] sm:$0xff] %v1715
        %1729 = vst [vmem:[#allocation2 + $0x58] sm:$0xff] %v1716
        %1730 = vst [vmem:[#allocation2 + $0x60] sm:$0xff] %v1717
        %v1731 = vld [vmem:[#allocation2] sm:$0xff]
        %v1732 = vld [vmem:[#allocation2 + $0x8] sm:$0xff]
        %v1733 = vld [vmem:[#allocation2 + $0x10] sm:$0xff]
        %v1734 = vld [vmem:[#allocation2 + $0x18] sm:$0xff]
        %v1735 = vld [vmem:[#allocation2 + $0x20] sm:$0xff]
        %v1736 = vld [vmem:[#allocation2 + $0x28] sm:$0xff]
        %v1737 = vld [vmem:[#allocation2 + $0x30] sm:$0xff]
        %v1738 = vld [vmem:[#allocation2 + $0x38] sm:$0xff]
        %v1739 = vld [vmem:[#allocation2 + $0x40] sm:$0xff]
        %v1740 = vld [vmem:[#allocation2 + $0x48] sm:$0xff]
        %v1741 = vld [vmem:[#allocation2 + $0x50] sm:$0xff]
        %v1742 = vld [vmem:[#allocation2 + $0x58] sm:$0xff]
        %v1743 = vld [vmem:[#allocation2 + $0x60] sm:$0xff]
        %v1744 = vld [vmem:[%s195 + $0x7] sm:$0xff]
        %v1745 = vld [vmem:[%s195 + $0xf] sm:$0xff]
        %v1746 = vld [vmem:[%s195 + $0x17] sm:$0xff]
        %v1747 = vld [vmem:[%s195 + $0x1f] sm:$0xff]
        %v1748 = vld [vmem:[%s195 + $0x27] sm:$0xff]
        %v1749 = vld [vmem:[%s195 + $0x2f] sm:$0xff]
        %v1750 = vld [vmem:[%s195 + $0x37] sm:$0xff]
        %v1751 = vld [vmem:[%s195 + $0x3f] sm:$0xff]
        %v1752 = vld [vmem:[%s195 + $0x47] sm:$0xff]
        %v1753 = vld [vmem:[%s195 + $0x4f] sm:$0xff]
        %v1754 = vld [vmem:[%s195 + $0x57] sm:$0xff]
        %v1755 = vld [vmem:[%s195 + $0x5f] sm:$0xff]
        %v1756 = vld [vmem:[%s195 + $0x67] sm:$0xff]
        %s1757 = scalar_lea.vmem %s1, 56
        %v1758 = vld [vmem:[%s1757] sm:$0xff]
        %v1760 = vsel %vm210, %v1744, 0
        %v1763 = vsel %vm210, %v1745, 0
        %v1766 = vsel %vm210, %v1746, 0
        %v1769 = vsel %vm210, %v1747, 0
        %v1772 = vsel %vm210, %v1748, 0
        %v1775 = vsel %vm210, %v1749, 0
        %v1778 = vsel %vm210, %v1750, 0
        %v1781 = vsel %vm210, %v1751, 0
        %v1784 = vsel %vm210, %v1752, 0
        %v1787 = vsel %vm210, %v1753, 0
        %v1790 = vsel %vm210, %v1754, 0
        %v1793 = vsel %vm210, %v1755, 0
        %v1796 = vsel %vm210, %v1756, 0
        %1798 = vmatprep.subr.mxu0 0.0
        %1799 = vmatpush1.msra.mxu0 %v1758
        %1800 = vmatprep.subr.mxu0 0.0
        %1801 = vmatpush1.msra.mxu0 0.0
        %1802 = vmatprep.subr.mxu0 0.0
        %1803 = vmatpush1.msra.mxu0 0.0
        %1804 = vmatprep.subr.mxu0 0.0
        %1805 = vmatpush1.msra.mxu0 0.0
        %1806 = vmatprep.subr.mxu0 0.0
        %1807 = vmatpush1.msra.mxu0 0.0
        %1808 = vmatprep.subr.mxu0 0.0
        %1809 = vmatpush1.msra.mxu0 0.0
        %1810 = vmatprep.subr.mxu0 0.0
        %1811 = vmatpush1.msra.mxu0 0.0
        %1812 = vmatprep.subr.mxu0 0.0
        %1813 = vmatpush1.msra.mxu0 0.0
        %1814 = vmatprep.subr.mxu0 0.0
        %1815 = vmatpush1.msra.mxu0 0.0
        %1816 = vmatprep.subr.mxu0 0.0
        %1817 = vmatpush1.msra.mxu0 0.0
        %1818 = vmatprep.subr.mxu0 0.0
        %1819 = vmatpush1.msra.mxu0 0.0
        %1820 = vmatprep.subr.mxu0 0.0
        %1821 = vmatpush1.msra.mxu0 0.0
        %1822 = vmatprep.subr.mxu0 0.0
        %1823 = vmatpush1.msra.mxu0 0.0
        %1824 = vmatprep.subr.mxu0 0.0
        %1825 = vmatpush1.msra.mxu0 0.0
        %1826 = vmatprep.subr.mxu0 0.0
        %1827 = vmatpush1.msra.mxu0 0.0
        %1828 = vmatprep.subr.mxu0 0.0
        %1829 = vmatpush1.msra.mxu0 0.0
        %1830 = vmatprep.subr.mxu0 0.0
        %1831 = vmatpush1.msra.mxu0 0.0
        %1832 = vmatprep.subr.mxu0 0.0
        %1833 = vmatpush1.msra.mxu0 0.0
        %1834 = vmatprep.subr.mxu0 0.0
        %1835 = vmatpush1.msra.mxu0 0.0
        %1836 = vmatprep.subr.mxu0 0.0
        %1837 = vmatpush1.msra.mxu0 0.0
        %1838 = vmatprep.subr.mxu0 0.0
        %1839 = vmatpush1.msra.mxu0 0.0
        %1840 = vmatprep.subr.mxu0 0.0
        %1841 = vmatpush1.msra.mxu0 0.0
        %1842 = vmatprep.subr.mxu0 0.0
        %1843 = vmatpush1.msra.mxu0 0.0
        %1844 = vmatprep.subr.mxu0 0.0
        %1845 = vmatpush1.msra.mxu0 0.0
        %1846 = vmatprep.subr.mxu0 0.0
        %1847 = vmatpush1.msra.mxu0 0.0
        %1848 = vmatprep.subr.mxu0 0.0
        %1849 = vmatpush1.msra.mxu0 0.0
        %1850 = vmatprep.subr.mxu0 0.0
        %1851 = vmatpush1.msra.mxu0 0.0
        %1852 = vmatprep.subr.mxu0 0.0
        %1853 = vmatpush1.msra.mxu0 0.0
        %1854 = vmatprep.subr.mxu0 0.0
        %1855 = vmatpush1.msra.mxu0 0.0
        %1856 = vmatprep.subr.mxu0 0.0
        %1857 = vmatpush1.msra.mxu0 0.0
        %1858 = vmatprep.subr.mxu0 0.0
        %1859 = vmatpush1.msra.mxu0 0.0
        %1860 = vmatprep.subr.mxu0 0.0
        %1861 = vmatpush1.msra.mxu0 0.0
        %1862 = vmatprep.mubr.f32.mxu0 0.0
        %1863 = vmatmul.mubr.f32.gmra.mrb[0].mxu0 %v1760
        %v1864 = vpop.f32.mrb[0].mxu0
        %v1865 = vadd.f32 0.0, %v1864
        %v1866 = vpop.f32.mrb[0].mxu0
        %1867 = vmatprep.mubr.f32.mxu0 0.0
        %1868 = vmatmul.mubr.f32.gmra.mrb[0].mxu0 %v1763
        %v1869 = vpop.f32.mrb[0].mxu0
        %v1870 = vadd.f32 0.0, %v1869
        %v1871 = vpop.f32.mrb[0].mxu0
        %1872 = vmatprep.mubr.f32.mxu0 0.0
        %1873 = vmatmul.mubr.f32.gmra.mrb[0].mxu0 %v1766
        %v1874 = vpop.f32.mrb[0].mxu0
        %v1875 = vadd.f32 0.0, %v1874
        %v1876 = vpop.f32.mrb[0].mxu0
        %1877 = vmatprep.mubr.f32.mxu0 0.0
        %1878 = vmatmul.mubr.f32.gmra.mrb[0].mxu0 %v1769
        %v1879 = vpop.f32.mrb[0].mxu0
        %v1880 = vadd.f32 0.0, %v1879
        %v1881 = vpop.f32.mrb[0].mxu0
        %1882 = vmatprep.mubr.f32.mxu0 0.0
        %1883 = vmatmul.mubr.f32.gmra.mrb[0].mxu0 %v1772
        %v1884 = vpop.f32.mrb[0].mxu0
        %v1885 = vadd.f32 0.0, %v1884
        %v1886 = vpop.f32.mrb[0].mxu0
        %1887 = vmatprep.mubr.f32.mxu0 0.0
        %1888 = vmatmul.mubr.f32.gmra.mrb[0].mxu0 %v1775
        %v1889 = vpop.f32.mrb[0].mxu0
        %v1890 = vadd.f32 0.0, %v1889
        %v1891 = vpop.f32.mrb[0].mxu0
        %1892 = vmatprep.mubr.f32.mxu0 0.0
        %1893 = vmatmul.mubr.f32.gmra.mrb[0].mxu0 %v1778
        %v1894 = vpop.f32.mrb[0].mxu0
        %v1895 = vadd.f32 0.0, %v1894
        %v1896 = vpop.f32.mrb[0].mxu0
        %1897 = vmatprep.mubr.f32.mxu0 0.0
        %1898 = vmatmul.mubr.f32.gmra.mrb[0].mxu0 %v1781
        %v1899 = vpop.f32.mrb[0].mxu0
        %v1900 = vadd.f32 0.0, %v1899
        %v1901 = vpop.f32.mrb[0].mxu0
        %1902 = vmatprep.mubr.f32.mxu0 0.0
        %1903 = vmatmul.mubr.f32.gmra.mrb[0].mxu0 %v1784
        %v1904 = vpop.f32.mrb[0].mxu0
        %v1905 = vadd.f32 0.0, %v1904
        %v1906 = vpop.f32.mrb[0].mxu0
        %1907 = vmatprep.mubr.f32.mxu0 0.0
        %1908 = vmatmul.mubr.f32.gmra.mrb[0].mxu0 %v1787
        %v1909 = vpop.f32.mrb[0].mxu0
        %v1910 = vadd.f32 0.0, %v1909
        %v1911 = vpop.f32.mrb[0].mxu0
        %1912 = vmatprep.mubr.f32.mxu0 0.0
        %1913 = vmatmul.mubr.f32.gmra.mrb[0].mxu0 %v1790
        %v1914 = vpop.f32.mrb[0].mxu0
        %v1915 = vadd.f32 0.0, %v1914
        %v1916 = vpop.f32.mrb[0].mxu0
        %1917 = vmatprep.mubr.f32.mxu0 0.0
        %1918 = vmatmul.mubr.f32.gmra.mrb[0].mxu0 %v1793
        %v1919 = vpop.f32.mrb[0].mxu0
        %v1920 = vadd.f32 0.0, %v1919
        %v1921 = vpop.f32.mrb[0].mxu0
        %1922 = vmatprep.mubr.f32.mxu0 0.0
        %1923 = vmatmul.mubr.f32.gmra.mrb[0].mxu0 %v1796
        %v1924 = vpop.f32.mrb[0].mxu0
        %v1925 = vadd.f32 0.0, %v1924
        %v1926 = vpop.f32.mrb[0].mxu0
        %1927 = vdwg.mxu0
        %v1928 = vadd.f32 %v1731, %v1865
        %v1929 = vadd.f32 %v1732, %v1870
        %v1930 = vadd.f32 %v1733, %v1875
        %v1931 = vadd.f32 %v1734, %v1880
        %v1932 = vadd.f32 %v1735, %v1885
        %v1933 = vadd.f32 %v1736, %v1890
        %v1934 = vadd.f32 %v1737, %v1895
        %v1935 = vadd.f32 %v1738, %v1900
        %v1936 = vadd.f32 %v1739, %v1905
        %v1937 = vadd.f32 %v1740, %v1910
        %v1938 = vadd.f32 %v1741, %v1915
        %v1939 = vadd.f32 %v1742, %v1920
        %v1940 = vadd.f32 %v1743, %v1925
        %1941 = vst [vmem:[#allocation2] sm:$0xff] %v1928
        %1942 = vst [vmem:[#allocation2 + $0x8] sm:$0xff] %v1929
        %1943 = vst [vmem:[#allocation2 + $0x10] sm:$0xff] %v1930
        %1944 = vst [vmem:[#allocation2 + $0x18] sm:$0xff] %v1931
        %1945 = vst [vmem:[#allocation2 + $0x20] sm:$0xff] %v1932
        %1946 = vst [vmem:[#allocation2 + $0x28] sm:$0xff] %v1933
        %1947 = vst [vmem:[#allocation2 + $0x30] sm:$0xff] %v1934
        %1948 = vst [vmem:[#allocation2 + $0x38] sm:$0xff] %v1935
        %1949 = vst [vmem:[#allocation2 + $0x40] sm:$0xff] %v1936
        %1950 = vst [vmem:[#allocation2 + $0x48] sm:$0xff] %v1937
        %1951 = vst [vmem:[#allocation2 + $0x50] sm:$0xff] %v1938
        %1952 = vst [vmem:[#allocation2 + $0x58] sm:$0xff] %v1939
        %1953 = vst [vmem:[#allocation2 + $0x60] sm:$0xff] %v1940
        %v1954 = vld [vmem:[#allocation2] sm:$0xff]
        %v1955 = vld [vmem:[#allocation2 + $0x8] sm:$0xff]
        %v1956 = vld [vmem:[#allocation2 + $0x10] sm:$0xff]
        %v1957 = vld [vmem:[#allocation2 + $0x18] sm:$0xff]
        %v1958 = vld [vmem:[#allocation2 + $0x20] sm:$0xff]
        %v1959 = vld [vmem:[#allocation2 + $0x28] sm:$0xff]
        %v1960 = vld [vmem:[#allocation2 + $0x30] sm:$0xff]
        %v1961 = vld [vmem:[#allocation2 + $0x38] sm:$0xff]
        %v1962 = vld [vmem:[#allocation2 + $0x40] sm:$0xff]
        %v1963 = vld [vmem:[#allocation2 + $0x48] sm:$0xff]
        %v1964 = vld [vmem:[#allocation2 + $0x50] sm:$0xff]
        %v1965 = vld [vmem:[#allocation2 + $0x58] sm:$0xff]
        %v1966 = vld [vmem:[#allocation2 + $0x60] sm:$0xff]
        %v1967 = vld [vmem:[%s195 + $0x8] sm:$0xff]
        %v1968 = vld [vmem:[%s195 + $0x10] sm:$0xff]
        %v1969 = vld [vmem:[%s195 + $0x18] sm:$0xff]
        %v1970 = vld [vmem:[%s195 + $0x20] sm:$0xff]
        %v1971 = vld [vmem:[%s195 + $0x28] sm:$0xff]
        %v1972 = vld [vmem:[%s195 + $0x30] sm:$0xff]
        %v1973 = vld [vmem:[%s195 + $0x38] sm:$0xff]
        %v1974 = vld [vmem:[%s195 + $0x40] sm:$0xff]
        %v1975 = vld [vmem:[%s195 + $0x48] sm:$0xff]
        %v1976 = vld [vmem:[%s195 + $0x50] sm:$0xff]
        %v1977 = vld [vmem:[%s195 + $0x58] sm:$0xff]
        %v1978 = vld [vmem:[%s195 + $0x60] sm:$0xff]
        %v1979 = vld [vmem:[%s195 + $0x68] sm:$0xff]
        %s1980 = scalar_lea.vmem %s1, 64
        %v1981 = vld [vmem:[%s1980] sm:$0xff]
        %v1983 = vsel %vm210, %v1967, 0
        %v1986 = vsel %vm210, %v1968, 0
        %v1989 = vsel %vm210, %v1969, 0
        %v1992 = vsel %vm210, %v1970, 0
        %v1995 = vsel %vm210, %v1971, 0
        %v1998 = vsel %vm210, %v1972, 0
        %v2001 = vsel %vm210, %v1973, 0
        %v2004 = vsel %vm210, %v1974, 0
        %v2007 = vsel %vm210, %v1975, 0
        %v2010 = vsel %vm210, %v1976, 0
        %v2013 = vsel %vm210, %v1977, 0
        %v2016 = vsel %vm210, %v1978, 0
        %v2019 = vsel %vm210, %v1979, 0
        %2021 = vmatprep.subr.mxu0 0.0
        %2022 = vmatpush1.msra.mxu0 %v1981
        %2023 = vmatprep.subr.mxu0 0.0
        %2024 = vmatpush1.msra.mxu0 0.0
        %2025 = vmatprep.subr.mxu0 0.0
        %2026 = vmatpush1.msra.mxu0 0.0
        %2027 = vmatprep.subr.mxu0 0.0
        %2028 = vmatpush1.msra.mxu0 0.0
        %2029 = vmatprep.subr.mxu0 0.0
        %2030 = vmatpush1.msra.mxu0 0.0
        %2031 = vmatprep.subr.mxu0 0.0
        %2032 = vmatpush1.msra.mxu0 0.0
        %2033 = vmatprep.subr.mxu0 0.0
        %2034 = vmatpush1.msra.mxu0 0.0
        %2035 = vmatprep.subr.mxu0 0.0
        %2036 = vmatpush1.msra.mxu0 0.0
        %2037 = vmatprep.subr.mxu0 0.0
        %2038 = vmatpush1.msra.mxu0 0.0
        %2039 = vmatprep.subr.mxu0 0.0
        %2040 = vmatpush1.msra.mxu0 0.0
        %2041 = vmatprep.subr.mxu0 0.0
        %2042 = vmatpush1.msra.mxu0 0.0
        %2043 = vmatprep.subr.mxu0 0.0
        %2044 = vmatpush1.msra.mxu0 0.0
        %2045 = vmatprep.subr.mxu0 0.0
        %2046 = vmatpush1.msra.mxu0 0.0
        %2047 = vmatprep.subr.mxu0 0.0
        %2048 = vmatpush1.msra.mxu0 0.0
        %2049 = vmatprep.subr.mxu0 0.0
        %2050 = vmatpush1.msra.mxu0 0.0
        %2051 = vmatprep.subr.mxu0 0.0
        %2052 = vmatpush1.msra.mxu0 0.0
        %2053 = vmatprep.subr.mxu0 0.0
        %2054 = vmatpush1.msra.mxu0 0.0
        %2055 = vmatprep.subr.mxu0 0.0
        %2056 = vmatpush1.msra.mxu0 0.0
        %2057 = vmatprep.subr.mxu0 0.0
        %2058 = vmatpush1.msra.mxu0 0.0
        %2059 = vmatprep.subr.mxu0 0.0
        %2060 = vmatpush1.msra.mxu0 0.0
        %2061 = vmatprep.subr.mxu0 0.0
        %2062 = vmatpush1.msra.mxu0 0.0
        %2063 = vmatprep.subr.mxu0 0.0
        %2064 = vmatpush1.msra.mxu0 0.0
        %2065 = vmatprep.subr.mxu0 0.0
        %2066 = vmatpush1.msra.mxu0 0.0
        %2067 = vmatprep.subr.mxu0 0.0
        %2068 = vmatpush1.msra.mxu0 0.0
        %2069 = vmatprep.subr.mxu0 0.0
        %2070 = vmatpush1.msra.mxu0 0.0
        %2071 = vmatprep.subr.mxu0 0.0
        %2072 = vmatpush1.msra.mxu0 0.0
        %2073 = vmatprep.subr.mxu0 0.0
        %2074 = vmatpush1.msra.mxu0 0.0
        %2075 = vmatprep.subr.mxu0 0.0
        %2076 = vmatpush1.msra.mxu0 0.0
        %2077 = vmatprep.subr.mxu0 0.0
        %2078 = vmatpush1.msra.mxu0 0.0
        %2079 = vmatprep.subr.mxu0 0.0
        %2080 = vmatpush1.msra.mxu0 0.0
        %2081 = vmatprep.subr.mxu0 0.0
        %2082 = vmatpush1.msra.mxu0 0.0
        %2083 = vmatprep.subr.mxu0 0.0
        %2084 = vmatpush1.msra.mxu0 0.0
        %2085 = vmatprep.mubr.f32.mxu0 0.0
        %2086 = vmatmul.mubr.f32.gmra.mrb[0].mxu0 %v1983
        %v2087 = vpop.f32.mrb[0].mxu0
        %v2088 = vadd.f32 0.0, %v2087
        %v2089 = vpop.f32.mrb[0].mxu0
        %2090 = vmatprep.mubr.f32.mxu0 0.0
        %2091 = vmatmul.mubr.f32.gmra.mrb[0].mxu0 %v1986
        %v2092 = vpop.f32.mrb[0].mxu0
        %v2093 = vadd.f32 0.0, %v2092
        %v2094 = vpop.f32.mrb[0].mxu0
        %2095 = vmatprep.mubr.f32.mxu0 0.0
        %2096 = vmatmul.mubr.f32.gmra.mrb[0].mxu0 %v1989
        %v2097 = vpop.f32.mrb[0].mxu0
        %v2098 = vadd.f32 0.0, %v2097
        %v2099 = vpop.f32.mrb[0].mxu0
        %2100 = vmatprep.mubr.f32.mxu0 0.0
        %2101 = vmatmul.mubr.f32.gmra.mrb[0].mxu0 %v1992
        %v2102 = vpop.f32.mrb[0].mxu0
        %v2103 = vadd.f32 0.0, %v2102
        %v2104 = vpop.f32.mrb[0].mxu0
        %2105 = vmatprep.mubr.f32.mxu0 0.0
        %2106 = vmatmul.mubr.f32.gmra.mrb[0].mxu0 %v1995
        %v2107 = vpop.f32.mrb[0].mxu0
        %v2108 = vadd.f32 0.0, %v2107
        %v2109 = vpop.f32.mrb[0].mxu0
        %2110 = vmatprep.mubr.f32.mxu0 0.0
        %2111 = vmatmul.mubr.f32.gmra.mrb[0].mxu0 %v1998
        %v2112 = vpop.f32.mrb[0].mxu0
        %v2113 = vadd.f32 0.0, %v2112
        %v2114 = vpop.f32.mrb[0].mxu0
        %2115 = vmatprep.mubr.f32.mxu0 0.0
        %2116 = vmatmul.mubr.f32.gmra.mrb[0].mxu0 %v2001
        %v2117 = vpop.f32.mrb[0].mxu0
        %v2118 = vadd.f32 0.0, %v2117
        %v2119 = vpop.f32.mrb[0].mxu0
        %2120 = vmatprep.mubr.f32.mxu0 0.0
        %2121 = vmatmul.mubr.f32.gmra.mrb[0].mxu0 %v2004
        %v2122 = vpop.f32.mrb[0].mxu0
        %v2123 = vadd.f32 0.0, %v2122
        %v2124 = vpop.f32.mrb[0].mxu0
        %2125 = vmatprep.mubr.f32.mxu0 0.0
        %2126 = vmatmul.mubr.f32.gmra.mrb[0].mxu0 %v2007
        %v2127 = vpop.f32.mrb[0].mxu0
        %v2128 = vadd.f32 0.0, %v2127
        %v2129 = vpop.f32.mrb[0].mxu0
        %2130 = vmatprep.mubr.f32.mxu0 0.0
        %2131 = vmatmul.mubr.f32.gmra.mrb[0].mxu0 %v2010
        %v2132 = vpop.f32.mrb[0].mxu0
        %v2133 = vadd.f32 0.0, %v2132
        %v2134 = vpop.f32.mrb[0].mxu0
        %2135 = vmatprep.mubr.f32.mxu0 0.0
        %2136 = vmatmul.mubr.f32.gmra.mrb[0].mxu0 %v2013
        %v2137 = vpop.f32.mrb[0].mxu0
        %v2138 = vadd.f32 0.0, %v2137
        %v2139 = vpop.f32.mrb[0].mxu0
        %2140 = vmatprep.mubr.f32.mxu0 0.0
        %2141 = vmatmul.mubr.f32.gmra.mrb[0].mxu0 %v2016
        %v2142 = vpop.f32.mrb[0].mxu0
        %v2143 = vadd.f32 0.0, %v2142
        %v2144 = vpop.f32.mrb[0].mxu0
        %2145 = vmatprep.mubr.f32.mxu0 0.0
        %2146 = vmatmul.mubr.f32.gmra.mrb[0].mxu0 %v2019
        %v2147 = vpop.f32.mrb[0].mxu0
        %v2148 = vadd.f32 0.0, %v2147
        %v2149 = vpop.f32.mrb[0].mxu0
        %2150 = vdwg.mxu0
        %v2151 = vadd.f32 %v1954, %v2088
        %v2152 = vadd.f32 %v1955, %v2093
        %v2153 = vadd.f32 %v1956, %v2098
        %v2154 = vadd.f32 %v1957, %v2103
        %v2155 = vadd.f32 %v1958, %v2108
        %v2156 = vadd.f32 %v1959, %v2113
        %v2157 = vadd.f32 %v1960, %v2118
        %v2158 = vadd.f32 %v1961, %v2123
        %v2159 = vadd.f32 %v1962, %v2128
        %v2160 = vadd.f32 %v1963, %v2133
        %v2161 = vadd.f32 %v1964, %v2138
        %v2162 = vadd.f32 %v1965, %v2143
        %v2163 = vadd.f32 %v1966, %v2148
        %2164 = vst [vmem:[#allocation2] sm:$0xff] %v2151
        %2165 = vst [vmem:[#allocation2 + $0x8] sm:$0xff] %v2152
        %2166 = vst [vmem:[#allocation2 + $0x10] sm:$0xff] %v2153
        %2167 = vst [vmem:[#allocation2 + $0x18] sm:$0xff] %v2154
        %2168 = vst [vmem:[#allocation2 + $0x20] sm:$0xff] %v2155
        %2169 = vst [vmem:[#allocation2 + $0x28] sm:$0xff] %v2156
        %2170 = vst [vmem:[#allocation2 + $0x30] sm:$0xff] %v2157
        %2171 = vst [vmem:[#allocation2 + $0x38] sm:$0xff] %v2158
        %2172 = vst [vmem:[#allocation2 + $0x40] sm:$0xff] %v2159
        %2173 = vst [vmem:[#allocation2 + $0x48] sm:$0xff] %v2160
        %2174 = vst [vmem:[#allocation2 + $0x50] sm:$0xff] %v2161
        %2175 = vst [vmem:[#allocation2 + $0x58] sm:$0xff] %v2162
        %2176 = vst [vmem:[#allocation2 + $0x60] sm:$0xff] %v2163
        %v2177 = vld [vmem:[#allocation2] sm:$0xff]
        %v2178 = vld [vmem:[#allocation2 + $0x8] sm:$0xff]
        %v2179 = vld [vmem:[#allocation2 + $0x10] sm:$0xff]
        %v2180 = vld [vmem:[#allocation2 + $0x18] sm:$0xff]
        %v2181 = vld [vmem:[#allocation2 + $0x20] sm:$0xff]
        %v2182 = vld [vmem:[#allocation2 + $0x28] sm:$0xff]
        %v2183 = vld [vmem:[#allocation2 + $0x30] sm:$0xff]
        %v2184 = vld [vmem:[#allocation2 + $0x38] sm:$0xff]
        %v2185 = vld [vmem:[#allocation2 + $0x40] sm:$0xff]
        %v2186 = vld [vmem:[#allocation2 + $0x48] sm:$0xff]
        %v2187 = vld [vmem:[#allocation2 + $0x50] sm:$0xff]
        %v2188 = vld [vmem:[#allocation2 + $0x58] sm:$0xff]
        %v2189 = vld [vmem:[#allocation2 + $0x60] sm:$0xff]
        %v2190 = vld [vmem:[%s195 + $0x9] sm:$0xff]
        %v2191 = vld [vmem:[%s195 + $0x11] sm:$0xff]
        %v2192 = vld [vmem:[%s195 + $0x19] sm:$0xff]
        %v2193 = vld [vmem:[%s195 + $0x21] sm:$0xff]
        %v2194 = vld [vmem:[%s195 + $0x29] sm:$0xff]
        %v2195 = vld [vmem:[%s195 + $0x31] sm:$0xff]
        %v2196 = vld [vmem:[%s195 + $0x39] sm:$0xff]
        %v2197 = vld [vmem:[%s195 + $0x41] sm:$0xff]
        %v2198 = vld [vmem:[%s195 + $0x49] sm:$0xff]
        %v2199 = vld [vmem:[%s195 + $0x51] sm:$0xff]
        %v2200 = vld [vmem:[%s195 + $0x59] sm:$0xff]
        %v2201 = vld [vmem:[%s195 + $0x61] sm:$0xff]
        %v2202 = vld [vmem:[%s195 + $0x69] sm:$0xff]
        %s2203 = scalar_lea.vmem %s1, 72
        %v2204 = vld [vmem:[%s2203] sm:$0xff]
        %v2206 = vsel %vm210, %v2190, 0
        %v2209 = vsel %vm210, %v2191, 0
        %v2212 = vsel %vm210, %v2192, 0
        %v2215 = vsel %vm210, %v2193, 0
        %v2218 = vsel %vm210, %v2194, 0
        %v2221 = vsel %vm210, %v2195, 0
        %v2224 = vsel %vm210, %v2196, 0
        %v2227 = vsel %vm210, %v2197, 0
        %v2230 = vsel %vm210, %v2198, 0
        %v2233 = vsel %vm210, %v2199, 0
        %v2236 = vsel %vm210, %v2200, 0
        %v2239 = vsel %vm210, %v2201, 0
        %v2242 = vsel %vm210, %v2202, 0
        %2244 = vmatprep.subr.mxu0 0.0
        %2245 = vmatpush1.msra.mxu0 %v2204
        %2246 = vmatprep.subr.mxu0 0.0
        %2247 = vmatpush1.msra.mxu0 0.0
        %2248 = vmatprep.subr.mxu0 0.0
        %2249 = vmatpush1.msra.mxu0 0.0
        %2250 = vmatprep.subr.mxu0 0.0
        %2251 = vmatpush1.msra.mxu0 0.0
        %2252 = vmatprep.subr.mxu0 0.0
        %2253 = vmatpush1.msra.mxu0 0.0
        %2254 = vmatprep.subr.mxu0 0.0
        %2255 = vmatpush1.msra.mxu0 0.0
        %2256 = vmatprep.subr.mxu0 0.0
        %2257 = vmatpush1.msra.mxu0 0.0
        %2258 = vmatprep.subr.mxu0 0.0
        %2259 = vmatpush1.msra.mxu0 0.0
        %2260 = vmatprep.subr.mxu0 0.0
        %2261 = vmatpush1.msra.mxu0 0.0
        %2262 = vmatprep.subr.mxu0 0.0
        %2263 = vmatpush1.msra.mxu0 0.0
        %2264 = vmatprep.subr.mxu0 0.0
        %2265 = vmatpush1.msra.mxu0 0.0
        %2266 = vmatprep.subr.mxu0 0.0
        %2267 = vmatpush1.msra.mxu0 0.0
        %2268 = vmatprep.subr.mxu0 0.0
        %2269 = vmatpush1.msra.mxu0 0.0
        %2270 = vmatprep.subr.mxu0 0.0
        %2271 = vmatpush1.msra.mxu0 0.0
        %2272 = vmatprep.subr.mxu0 0.0
        %2273 = vmatpush1.msra.mxu0 0.0
        %2274 = vmatprep.subr.mxu0 0.0
        %2275 = vmatpush1.msra.mxu0 0.0
        %2276 = vmatprep.subr.mxu0 0.0
        %2277 = vmatpush1.msra.mxu0 0.0
        %2278 = vmatprep.subr.mxu0 0.0
        %2279 = vmatpush1.msra.mxu0 0.0
        %2280 = vmatprep.subr.mxu0 0.0
        %2281 = vmatpush1.msra.mxu0 0.0
        %2282 = vmatprep.subr.mxu0 0.0
        %2283 = vmatpush1.msra.mxu0 0.0
        %2284 = vmatprep.subr.mxu0 0.0
        %2285 = vmatpush1.msra.mxu0 0.0
        %2286 = vmatprep.subr.mxu0 0.0
        %2287 = vmatpush1.msra.mxu0 0.0
        %2288 = vmatprep.subr.mxu0 0.0
        %2289 = vmatpush1.msra.mxu0 0.0
        %2290 = vmatprep.subr.mxu0 0.0
        %2291 = vmatpush1.msra.mxu0 0.0
        %2292 = vmatprep.subr.mxu0 0.0
        %2293 = vmatpush1.msra.mxu0 0.0
        %2294 = vmatprep.subr.mxu0 0.0
        %2295 = vmatpush1.msra.mxu0 0.0
        %2296 = vmatprep.subr.mxu0 0.0
        %2297 = vmatpush1.msra.mxu0 0.0
        %2298 = vmatprep.subr.mxu0 0.0
        %2299 = vmatpush1.msra.mxu0 0.0
        %2300 = vmatprep.subr.mxu0 0.0
        %2301 = vmatpush1.msra.mxu0 0.0
        %2302 = vmatprep.subr.mxu0 0.0
        %2303 = vmatpush1.msra.mxu0 0.0
        %2304 = vmatprep.subr.mxu0 0.0
        %2305 = vmatpush1.msra.mxu0 0.0
        %2306 = vmatprep.subr.mxu0 0.0
        %2307 = vmatpush1.msra.mxu0 0.0
        %2308 = vmatprep.mubr.f32.mxu0 0.0
        %2309 = vmatmul.mubr.f32.gmra.mrb[0].mxu0 %v2206
        %v2310 = vpop.f32.mrb[0].mxu0
        %v2311 = vadd.f32 0.0, %v2310
        %v2312 = vpop.f32.mrb[0].mxu0
        %2313 = vmatprep.mubr.f32.mxu0 0.0
        %2314 = vmatmul.mubr.f32.gmra.mrb[0].mxu0 %v2209
        %v2315 = vpop.f32.mrb[0].mxu0
        %v2316 = vadd.f32 0.0, %v2315
        %v2317 = vpop.f32.mrb[0].mxu0
        %2318 = vmatprep.mubr.f32.mxu0 0.0
        %2319 = vmatmul.mubr.f32.gmra.mrb[0].mxu0 %v2212
        %v2320 = vpop.f32.mrb[0].mxu0
        %v2321 = vadd.f32 0.0, %v2320
        %v2322 = vpop.f32.mrb[0].mxu0
        %2323 = vmatprep.mubr.f32.mxu0 0.0
        %2324 = vmatmul.mubr.f32.gmra.mrb[0].mxu0 %v2215
        %v2325 = vpop.f32.mrb[0].mxu0
        %v2326 = vadd.f32 0.0, %v2325
        %v2327 = vpop.f32.mrb[0].mxu0
        %2328 = vmatprep.mubr.f32.mxu0 0.0
        %2329 = vmatmul.mubr.f32.gmra.mrb[0].mxu0 %v2218
        %v2330 = vpop.f32.mrb[0].mxu0
        %v2331 = vadd.f32 0.0, %v2330
        %v2332 = vpop.f32.mrb[0].mxu0
        %2333 = vmatprep.mubr.f32.mxu0 0.0
        %2334 = vmatmul.mubr.f32.gmra.mrb[0].mxu0 %v2221
        %v2335 = vpop.f32.mrb[0].mxu0
        %v2336 = vadd.f32 0.0, %v2335
        %v2337 = vpop.f32.mrb[0].mxu0
        %2338 = vmatprep.mubr.f32.mxu0 0.0
        %2339 = vmatmul.mubr.f32.gmra.mrb[0].mxu0 %v2224
        %v2340 = vpop.f32.mrb[0].mxu0
        %v2341 = vadd.f32 0.0, %v2340
        %v2342 = vpop.f32.mrb[0].mxu0
        %2343 = vmatprep.mubr.f32.mxu0 0.0
        %2344 = vmatmul.mubr.f32.gmra.mrb[0].mxu0 %v2227
        %v2345 = vpop.f32.mrb[0].mxu0
        %v2346 = vadd.f32 0.0, %v2345
        %v2347 = vpop.f32.mrb[0].mxu0
        %2348 = vmatprep.mubr.f32.mxu0 0.0
        %2349 = vmatmul.mubr.f32.gmra.mrb[0].mxu0 %v2230
        %v2350 = vpop.f32.mrb[0].mxu0
        %v2351 = vadd.f32 0.0, %v2350
        %v2352 = vpop.f32.mrb[0].mxu0
        %2353 = vmatprep.mubr.f32.mxu0 0.0
        %2354 = vmatmul.mubr.f32.gmra.mrb[0].mxu0 %v2233
        %v2355 = vpop.f32.mrb[0].mxu0
        %v2356 = vadd.f32 0.0, %v2355
        %v2357 = vpop.f32.mrb[0].mxu0
        %2358 = vmatprep.mubr.f32.mxu0 0.0
        %2359 = vmatmul.mubr.f32.gmra.mrb[0].mxu0 %v2236
        %v2360 = vpop.f32.mrb[0].mxu0
        %v2361 = vadd.f32 0.0, %v2360
        %v2362 = vpop.f32.mrb[0].mxu0
        %2363 = vmatprep.mubr.f32.mxu0 0.0
        %2364 = vmatmul.mubr.f32.gmra.mrb[0].mxu0 %v2239
        %v2365 = vpop.f32.mrb[0].mxu0
        %v2366 = vadd.f32 0.0, %v2365
        %v2367 = vpop.f32.mrb[0].mxu0
        %2368 = vmatprep.mubr.f32.mxu0 0.0
        %2369 = vmatmul.mubr.f32.gmra.mrb[0].mxu0 %v2242
        %v2370 = vpop.f32.mrb[0].mxu0
        %v2371 = vadd.f32 0.0, %v2370
        %v2372 = vpop.f32.mrb[0].mxu0
        %2373 = vdwg.mxu0
        %v2374 = vadd.f32 %v2177, %v2311
        %v2375 = vadd.f32 %v2178, %v2316
        %v2376 = vadd.f32 %v2179, %v2321
        %v2377 = vadd.f32 %v2180, %v2326
        %v2378 = vadd.f32 %v2181, %v2331
        %v2379 = vadd.f32 %v2182, %v2336
        %v2380 = vadd.f32 %v2183, %v2341
        %v2381 = vadd.f32 %v2184, %v2346
        %v2382 = vadd.f32 %v2185, %v2351
        %v2383 = vadd.f32 %v2186, %v2356
        %v2384 = vadd.f32 %v2187, %v2361
        %v2385 = vadd.f32 %v2188, %v2366
        %v2386 = vadd.f32 %v2189, %v2371
        %2387 = vst [vmem:[#allocation2] sm:$0xff] %v2374
        %2388 = vst [vmem:[#allocation2 + $0x8] sm:$0xff] %v2375
        %2389 = vst [vmem:[#allocation2 + $0x10] sm:$0xff] %v2376
        %2390 = vst [vmem:[#allocation2 + $0x18] sm:$0xff] %v2377
        %2391 = vst [vmem:[#allocation2 + $0x20] sm:$0xff] %v2378
        %2392 = vst [vmem:[#allocation2 + $0x28] sm:$0xff] %v2379
        %2393 = vst [vmem:[#allocation2 + $0x30] sm:$0xff] %v2380
        %2394 = vst [vmem:[#allocation2 + $0x38] sm:$0xff] %v2381
        %2395 = vst [vmem:[#allocation2 + $0x40] sm:$0xff] %v2382
        %2396 = vst [vmem:[#allocation2 + $0x48] sm:$0xff] %v2383
        %2397 = vst [vmem:[#allocation2 + $0x50] sm:$0xff] %v2384
        %2398 = vst [vmem:[#allocation2 + $0x58] sm:$0xff] %v2385
        %2399 = vst [vmem:[#allocation2 + $0x60] sm:$0xff] %v2386
        %v2400 = vld [vmem:[#allocation2] sm:$0xff]
        %v2401 = vld [vmem:[#allocation2 + $0x8] sm:$0xff]
        %v2402 = vld [vmem:[#allocation2 + $0x10] sm:$0xff]
        %v2403 = vld [vmem:[#allocation2 + $0x18] sm:$0xff]
        %v2404 = vld [vmem:[#allocation2 + $0x20] sm:$0xff]
        %v2405 = vld [vmem:[#allocation2 + $0x28] sm:$0xff]
        %v2406 = vld [vmem:[#allocation2 + $0x30] sm:$0xff]
        %v2407 = vld [vmem:[#allocation2 + $0x38] sm:$0xff]
        %v2408 = vld [vmem:[#allocation2 + $0x40] sm:$0xff]
        %v2409 = vld [vmem:[#allocation2 + $0x48] sm:$0xff]
        %v2410 = vld [vmem:[#allocation2 + $0x50] sm:$0xff]
        %v2411 = vld [vmem:[#allocation2 + $0x58] sm:$0xff]
        %v2412 = vld [vmem:[#allocation2 + $0x60] sm:$0xff]
        %v2413 = vld [vmem:[%s195 + $0xa] sm:$0xff]
        %v2414 = vld [vmem:[%s195 + $0x12] sm:$0xff]
        %v2415 = vld [vmem:[%s195 + $0x1a] sm:$0xff]
        %v2416 = vld [vmem:[%s195 + $0x22] sm:$0xff]
        %v2417 = vld [vmem:[%s195 + $0x2a] sm:$0xff]
        %v2418 = vld [vmem:[%s195 + $0x32] sm:$0xff]
        %v2419 = vld [vmem:[%s195 + $0x3a] sm:$0xff]
        %v2420 = vld [vmem:[%s195 + $0x42] sm:$0xff]
        %v2421 = vld [vmem:[%s195 + $0x4a] sm:$0xff]
        %v2422 = vld [vmem:[%s195 + $0x52] sm:$0xff]
        %v2423 = vld [vmem:[%s195 + $0x5a] sm:$0xff]
        %v2424 = vld [vmem:[%s195 + $0x62] sm:$0xff]
        %v2425 = vld [vmem:[%s195 + $0x6a] sm:$0xff]
        %s2426 = scalar_lea.vmem %s1, 80
        %v2427 = vld [vmem:[%s2426] sm:$0xff]
        %v2429 = vsel %vm210, %v2413, 0
        %v2432 = vsel %vm210, %v2414, 0
        %v2435 = vsel %vm210, %v2415, 0
        %v2438 = vsel %vm210, %v2416, 0
        %v2441 = vsel %vm210, %v2417, 0
        %v2444 = vsel %vm210, %v2418, 0
        %v2447 = vsel %vm210, %v2419, 0
        %v2450 = vsel %vm210, %v2420, 0
        %v2453 = vsel %vm210, %v2421, 0
        %v2456 = vsel %vm210, %v2422, 0
        %v2459 = vsel %vm210, %v2423, 0
        %v2462 = vsel %vm210, %v2424, 0
        %v2465 = vsel %vm210, %v2425, 0
        %2467 = vmatprep.subr.mxu0 0.0
        %2468 = vmatpush1.msra.mxu0 %v2427
        %2469 = vmatprep.subr.mxu0 0.0
        %2470 = vmatpush1.msra.mxu0 0.0
        %2471 = vmatprep.subr.mxu0 0.0
        %2472 = vmatpush1.msra.mxu0 0.0
        %2473 = vmatprep.subr.mxu0 0.0
        %2474 = vmatpush1.msra.mxu0 0.0
        %2475 = vmatprep.subr.mxu0 0.0
        %2476 = vmatpush1.msra.mxu0 0.0
        %2477 = vmatprep.subr.mxu0 0.0
        %2478 = vmatpush1.msra.mxu0 0.0
        %2479 = vmatprep.subr.mxu0 0.0
        %2480 = vmatpush1.msra.mxu0 0.0
        %2481 = vmatprep.subr.mxu0 0.0
        %2482 = vmatpush1.msra.mxu0 0.0
        %2483 = vmatprep.subr.mxu0 0.0
        %2484 = vmatpush1.msra.mxu0 0.0
        %2485 = vmatprep.subr.mxu0 0.0
        %2486 = vmatpush1.msra.mxu0 0.0
        %2487 = vmatprep.subr.mxu0 0.0
        %2488 = vmatpush1.msra.mxu0 0.0
        %2489 = vmatprep.subr.mxu0 0.0
        %2490 = vmatpush1.msra.mxu0 0.0
        %2491 = vmatprep.subr.mxu0 0.0
        %2492 = vmatpush1.msra.mxu0 0.0
        %2493 = vmatprep.subr.mxu0 0.0
        %2494 = vmatpush1.msra.mxu0 0.0
        %2495 = vmatprep.subr.mxu0 0.0
        %2496 = vmatpush1.msra.mxu0 0.0
        %2497 = vmatprep.subr.mxu0 0.0
        %2498 = vmatpush1.msra.mxu0 0.0
        %2499 = vmatprep.subr.mxu0 0.0
        %2500 = vmatpush1.msra.mxu0 0.0
        %2501 = vmatprep.subr.mxu0 0.0
        %2502 = vmatpush1.msra.mxu0 0.0
        %2503 = vmatprep.subr.mxu0 0.0
        %2504 = vmatpush1.msra.mxu0 0.0
        %2505 = vmatprep.subr.mxu0 0.0
        %2506 = vmatpush1.msra.mxu0 0.0
        %2507 = vmatprep.subr.mxu0 0.0
        %2508 = vmatpush1.msra.mxu0 0.0
        %2509 = vmatprep.subr.mxu0 0.0
        %2510 = vmatpush1.msra.mxu0 0.0
        %2511 = vmatprep.subr.mxu0 0.0
        %2512 = vmatpush1.msra.mxu0 0.0
        %2513 = vmatprep.subr.mxu0 0.0
        %2514 = vmatpush1.msra.mxu0 0.0
        %2515 = vmatprep.subr.mxu0 0.0
        %2516 = vmatpush1.msra.mxu0 0.0
        %2517 = vmatprep.subr.mxu0 0.0
        %2518 = vmatpush1.msra.mxu0 0.0
        %2519 = vmatprep.subr.mxu0 0.0
        %2520 = vmatpush1.msra.mxu0 0.0
        %2521 = vmatprep.subr.mxu0 0.0
        %2522 = vmatpush1.msra.mxu0 0.0
        %2523 = vmatprep.subr.mxu0 0.0
        %2524 = vmatpush1.msra.mxu0 0.0
        %2525 = vmatprep.subr.mxu0 0.0
        %2526 = vmatpush1.msra.mxu0 0.0
        %2527 = vmatprep.subr.mxu0 0.0
        %2528 = vmatpush1.msra.mxu0 0.0
        %2529 = vmatprep.subr.mxu0 0.0
        %2530 = vmatpush1.msra.mxu0 0.0
        %2531 = vmatprep.mubr.f32.mxu0 0.0
        %2532 = vmatmul.mubr.f32.gmra.mrb[0].mxu0 %v2429
        %v2533 = vpop.f32.mrb[0].mxu0
        %v2534 = vadd.f32 0.0, %v2533
        %v2535 = vpop.f32.mrb[0].mxu0
        %2536 = vmatprep.mubr.f32.mxu0 0.0
        %2537 = vmatmul.mubr.f32.gmra.mrb[0].mxu0 %v2432
        %v2538 = vpop.f32.mrb[0].mxu0
        %v2539 = vadd.f32 0.0, %v2538
        %v2540 = vpop.f32.mrb[0].mxu0
        %2541 = vmatprep.mubr.f32.mxu0 0.0
        %2542 = vmatmul.mubr.f32.gmra.mrb[0].mxu0 %v2435
        %v2543 = vpop.f32.mrb[0].mxu0
        %v2544 = vadd.f32 0.0, %v2543
        %v2545 = vpop.f32.mrb[0].mxu0
        %2546 = vmatprep.mubr.f32.mxu0 0.0
        %2547 = vmatmul.mubr.f32.gmra.mrb[0].mxu0 %v2438
        %v2548 = vpop.f32.mrb[0].mxu0
        %v2549 = vadd.f32 0.0, %v2548
        %v2550 = vpop.f32.mrb[0].mxu0
        %2551 = vmatprep.mubr.f32.mxu0 0.0
        %2552 = vmatmul.mubr.f32.gmra.mrb[0].mxu0 %v2441
        %v2553 = vpop.f32.mrb[0].mxu0
        %v2554 = vadd.f32 0.0, %v2553
        %v2555 = vpop.f32.mrb[0].mxu0
        %2556 = vmatprep.mubr.f32.mxu0 0.0
        %2557 = vmatmul.mubr.f32.gmra.mrb[0].mxu0 %v2444
        %v2558 = vpop.f32.mrb[0].mxu0
        %v2559 = vadd.f32 0.0, %v2558
        %v2560 = vpop.f32.mrb[0].mxu0
        %2561 = vmatprep.mubr.f32.mxu0 0.0
        %2562 = vmatmul.mubr.f32.gmra.mrb[0].mxu0 %v2447
        %v2563 = vpop.f32.mrb[0].mxu0
        %v2564 = vadd.f32 0.0, %v2563
        %v2565 = vpop.f32.mrb[0].mxu0
        %2566 = vmatprep.mubr.f32.mxu0 0.0
        %2567 = vmatmul.mubr.f32.gmra.mrb[0].mxu0 %v2450
        %v2568 = vpop.f32.mrb[0].mxu0
        %v2569 = vadd.f32 0.0, %v2568
        %v2570 = vpop.f32.mrb[0].mxu0
        %2571 = vmatprep.mubr.f32.mxu0 0.0
        %2572 = vmatmul.mubr.f32.gmra.mrb[0].mxu0 %v2453
        %v2573 = vpop.f32.mrb[0].mxu0
        %v2574 = vadd.f32 0.0, %v2573
        %v2575 = vpop.f32.mrb[0].mxu0
        %2576 = vmatprep.mubr.f32.mxu0 0.0
        %2577 = vmatmul.mubr.f32.gmra.mrb[0].mxu0 %v2456
        %v2578 = vpop.f32.mrb[0].mxu0
        %v2579 = vadd.f32 0.0, %v2578
        %v2580 = vpop.f32.mrb[0].mxu0
        %2581 = vmatprep.mubr.f32.mxu0 0.0
        %2582 = vmatmul.mubr.f32.gmra.mrb[0].mxu0 %v2459
        %v2583 = vpop.f32.mrb[0].mxu0
        %v2584 = vadd.f32 0.0, %v2583
        %v2585 = vpop.f32.mrb[0].mxu0
        %2586 = vmatprep.mubr.f32.mxu0 0.0
        %2587 = vmatmul.mubr.f32.gmra.mrb[0].mxu0 %v2462
        %v2588 = vpop.f32.mrb[0].mxu0
        %v2589 = vadd.f32 0.0, %v2588
        %v2590 = vpop.f32.mrb[0].mxu0
        %2591 = vmatprep.mubr.f32.mxu0 0.0
        %2592 = vmatmul.mubr.f32.gmra.mrb[0].mxu0 %v2465
        %v2593 = vpop.f32.mrb[0].mxu0
        %v2594 = vadd.f32 0.0, %v2593
        %v2595 = vpop.f32.mrb[0].mxu0
        %2596 = vdwg.mxu0
        %v2597 = vadd.f32 %v2400, %v2534
        %v2598 = vadd.f32 %v2401, %v2539
        %v2599 = vadd.f32 %v2402, %v2544
        %v2600 = vadd.f32 %v2403, %v2549
        %v2601 = vadd.f32 %v2404, %v2554
        %v2602 = vadd.f32 %v2405, %v2559
        %v2603 = vadd.f32 %v2406, %v2564
        %v2604 = vadd.f32 %v2407, %v2569
        %v2605 = vadd.f32 %v2408, %v2574
        %v2606 = vadd.f32 %v2409, %v2579
        %v2607 = vadd.f32 %v2410, %v2584
        %v2608 = vadd.f32 %v2411, %v2589
        %v2609 = vadd.f32 %v2412, %v2594
        %2610 = vst [vmem:[#allocation2] sm:$0xff] %v2597
        %2611 = vst [vmem:[#allocation2 + $0x8] sm:$0xff] %v2598
        %2612 = vst [vmem:[#allocation2 + $0x10] sm:$0xff] %v2599
        %2613 = vst [vmem:[#allocation2 + $0x18] sm:$0xff] %v2600
        %2614 = vst [vmem:[#allocation2 + $0x20] sm:$0xff] %v2601
        %2615 = vst [vmem:[#allocation2 + $0x28] sm:$0xff] %v2602
        %2616 = vst [vmem:[#allocation2 + $0x30] sm:$0xff] %v2603
        %2617 = vst [vmem:[#allocation2 + $0x38] sm:$0xff] %v2604
        %2618 = vst [vmem:[#allocation2 + $0x40] sm:$0xff] %v2605
        %2619 = vst [vmem:[#allocation2 + $0x48] sm:$0xff] %v2606
        %2620 = vst [vmem:[#allocation2 + $0x50] sm:$0xff] %v2607
        %2621 = vst [vmem:[#allocation2 + $0x58] sm:$0xff] %v2608
        %2622 = vst [vmem:[#allocation2 + $0x60] sm:$0xff] %v2609
        %v2623 = vld [vmem:[#allocation2] sm:$0xff]
        %v2624 = vld [vmem:[#allocation2 + $0x8] sm:$0xff]
        %v2625 = vld [vmem:[#allocation2 + $0x10] sm:$0xff]
        %v2626 = vld [vmem:[#allocation2 + $0x18] sm:$0xff]
        %v2627 = vld [vmem:[#allocation2 + $0x20] sm:$0xff]
        %v2628 = vld [vmem:[#allocation2 + $0x28] sm:$0xff]
        %v2629 = vld [vmem:[#allocation2 + $0x30] sm:$0xff]
        %v2630 = vld [vmem:[#allocation2 + $0x38] sm:$0xff]
        %v2631 = vld [vmem:[#allocation2 + $0x40] sm:$0xff]
        %v2632 = vld [vmem:[#allocation2 + $0x48] sm:$0xff]
        %v2633 = vld [vmem:[#allocation2 + $0x50] sm:$0xff]
        %v2634 = vld [vmem:[#allocation2 + $0x58] sm:$0xff]
        %v2635 = vld [vmem:[#allocation2 + $0x60] sm:$0xff]
        %v2636 = vld [vmem:[%s195 + $0xb] sm:$0xff]
        %v2637 = vld [vmem:[%s195 + $0x13] sm:$0xff]
        %v2638 = vld [vmem:[%s195 + $0x1b] sm:$0xff]
        %v2639 = vld [vmem:[%s195 + $0x23] sm:$0xff]
        %v2640 = vld [vmem:[%s195 + $0x2b] sm:$0xff]
        %v2641 = vld [vmem:[%s195 + $0x33] sm:$0xff]
        %v2642 = vld [vmem:[%s195 + $0x3b] sm:$0xff]
        %v2643 = vld [vmem:[%s195 + $0x43] sm:$0xff]
        %v2644 = vld [vmem:[%s195 + $0x4b] sm:$0xff]
        %v2645 = vld [vmem:[%s195 + $0x53] sm:$0xff]
        %v2646 = vld [vmem:[%s195 + $0x5b] sm:$0xff]
        %v2647 = vld [vmem:[%s195 + $0x63] sm:$0xff]
        %v2648 = vld [vmem:[%s195 + $0x6b] sm:$0xff]
        %s2649 = scalar_lea.vmem %s1, 88
        %v2650 = vld [vmem:[%s2649] sm:$0xff]
        %v2652 = vsel %vm210, %v2636, 0
        %v2655 = vsel %vm210, %v2637, 0
        %v2658 = vsel %vm210, %v2638, 0
        %v2661 = vsel %vm210, %v2639, 0
        %v2664 = vsel %vm210, %v2640, 0
        %v2667 = vsel %vm210, %v2641, 0
        %v2670 = vsel %vm210, %v2642, 0
        %v2673 = vsel %vm210, %v2643, 0
        %v2676 = vsel %vm210, %v2644, 0
        %v2679 = vsel %vm210, %v2645, 0
        %v2682 = vsel %vm210, %v2646, 0
        %v2685 = vsel %vm210, %v2647, 0
        %v2688 = vsel %vm210, %v2648, 0
        %2690 = vmatprep.subr.mxu0 0.0
        %2691 = vmatpush1.msra.mxu0 %v2650
        %2692 = vmatprep.subr.mxu0 0.0
        %2693 = vmatpush1.msra.mxu0 0.0
        %2694 = vmatprep.subr.mxu0 0.0
        %2695 = vmatpush1.msra.mxu0 0.0
        %2696 = vmatprep.subr.mxu0 0.0
        %2697 = vmatpush1.msra.mxu0 0.0
        %2698 = vmatprep.subr.mxu0 0.0
        %2699 = vmatpush1.msra.mxu0 0.0
        %2700 = vmatprep.subr.mxu0 0.0
        %2701 = vmatpush1.msra.mxu0 0.0
        %2702 = vmatprep.subr.mxu0 0.0
        %2703 = vmatpush1.msra.mxu0 0.0
        %2704 = vmatprep.subr.mxu0 0.0
        %2705 = vmatpush1.msra.mxu0 0.0
        %2706 = vmatprep.subr.mxu0 0.0
        %2707 = vmatpush1.msra.mxu0 0.0
        %2708 = vmatprep.subr.mxu0 0.0
        %2709 = vmatpush1.msra.mxu0 0.0
        %2710 = vmatprep.subr.mxu0 0.0
        %2711 = vmatpush1.msra.mxu0 0.0
        %2712 = vmatprep.subr.mxu0 0.0
        %2713 = vmatpush1.msra.mxu0 0.0
        %2714 = vmatprep.subr.mxu0 0.0
        %2715 = vmatpush1.msra.mxu0 0.0
        %2716 = vmatprep.subr.mxu0 0.0
        %2717 = vmatpush1.msra.mxu0 0.0
        %2718 = vmatprep.subr.mxu0 0.0
        %2719 = vmatpush1.msra.mxu0 0.0
        %2720 = vmatprep.subr.mxu0 0.0
        %2721 = vmatpush1.msra.mxu0 0.0
        %2722 = vmatprep.subr.mxu0 0.0
        %2723 = vmatpush1.msra.mxu0 0.0
        %2724 = vmatprep.subr.mxu0 0.0
        %2725 = vmatpush1.msra.mxu0 0.0
        %2726 = vmatprep.subr.mxu0 0.0
        %2727 = vmatpush1.msra.mxu0 0.0
        %2728 = vmatprep.subr.mxu0 0.0
        %2729 = vmatpush1.msra.mxu0 0.0
        %2730 = vmatprep.subr.mxu0 0.0
        %2731 = vmatpush1.msra.mxu0 0.0
        %2732 = vmatprep.subr.mxu0 0.0
        %2733 = vmatpush1.msra.mxu0 0.0
        %2734 = vmatprep.subr.mxu0 0.0
        %2735 = vmatpush1.msra.mxu0 0.0
        %2736 = vmatprep.subr.mxu0 0.0
        %2737 = vmatpush1.msra.mxu0 0.0
        %2738 = vmatprep.subr.mxu0 0.0
        %2739 = vmatpush1.msra.mxu0 0.0
        %2740 = vmatprep.subr.mxu0 0.0
        %2741 = vmatpush1.msra.mxu0 0.0
        %2742 = vmatprep.subr.mxu0 0.0
        %2743 = vmatpush1.msra.mxu0 0.0
        %2744 = vmatprep.subr.mxu0 0.0
        %2745 = vmatpush1.msra.mxu0 0.0
        %2746 = vmatprep.subr.mxu0 0.0
        %2747 = vmatpush1.msra.mxu0 0.0
        %2748 = vmatprep.subr.mxu0 0.0
        %2749 = vmatpush1.msra.mxu0 0.0
        %2750 = vmatprep.subr.mxu0 0.0
        %2751 = vmatpush1.msra.mxu0 0.0
        %2752 = vmatprep.subr.mxu0 0.0
        %2753 = vmatpush1.msra.mxu0 0.0
        %2754 = vmatprep.mubr.f32.mxu0 0.0
        %2755 = vmatmul.mubr.f32.gmra.mrb[0].mxu0 %v2652
        %v2756 = vpop.f32.mrb[0].mxu0
        %v2757 = vadd.f32 0.0, %v2756
        %v2758 = vpop.f32.mrb[0].mxu0
        %2759 = vmatprep.mubr.f32.mxu0 0.0
        %2760 = vmatmul.mubr.f32.gmra.mrb[0].mxu0 %v2655
        %v2761 = vpop.f32.mrb[0].mxu0
        %v2762 = vadd.f32 0.0, %v2761
        %v2763 = vpop.f32.mrb[0].mxu0
        %2764 = vmatprep.mubr.f32.mxu0 0.0
        %2765 = vmatmul.mubr.f32.gmra.mrb[0].mxu0 %v2658
        %v2766 = vpop.f32.mrb[0].mxu0
        %v2767 = vadd.f32 0.0, %v2766
        %v2768 = vpop.f32.mrb[0].mxu0
        %2769 = vmatprep.mubr.f32.mxu0 0.0
        %2770 = vmatmul.mubr.f32.gmra.mrb[0].mxu0 %v2661
        %v2771 = vpop.f32.mrb[0].mxu0
        %v2772 = vadd.f32 0.0, %v2771
        %v2773 = vpop.f32.mrb[0].mxu0
        %2774 = vmatprep.mubr.f32.mxu0 0.0
        %2775 = vmatmul.mubr.f32.gmra.mrb[0].mxu0 %v2664
        %v2776 = vpop.f32.mrb[0].mxu0
        %v2777 = vadd.f32 0.0, %v2776
        %v2778 = vpop.f32.mrb[0].mxu0
        %2779 = vmatprep.mubr.f32.mxu0 0.0
        %2780 = vmatmul.mubr.f32.gmra.mrb[0].mxu0 %v2667
        %v2781 = vpop.f32.mrb[0].mxu0
        %v2782 = vadd.f32 0.0, %v2781
        %v2783 = vpop.f32.mrb[0].mxu0
        %2784 = vmatprep.mubr.f32.mxu0 0.0
        %2785 = vmatmul.mubr.f32.gmra.mrb[0].mxu0 %v2670
        %v2786 = vpop.f32.mrb[0].mxu0
        %v2787 = vadd.f32 0.0, %v2786
        %v2788 = vpop.f32.mrb[0].mxu0
        %2789 = vmatprep.mubr.f32.mxu0 0.0
        %2790 = vmatmul.mubr.f32.gmra.mrb[0].mxu0 %v2673
        %v2791 = vpop.f32.mrb[0].mxu0
        %v2792 = vadd.f32 0.0, %v2791
        %v2793 = vpop.f32.mrb[0].mxu0
        %2794 = vmatprep.mubr.f32.mxu0 0.0
        %2795 = vmatmul.mubr.f32.gmra.mrb[0].mxu0 %v2676
        %v2796 = vpop.f32.mrb[0].mxu0
        %v2797 = vadd.f32 0.0, %v2796
        %v2798 = vpop.f32.mrb[0].mxu0
        %2799 = vmatprep.mubr.f32.mxu0 0.0
        %2800 = vmatmul.mubr.f32.gmra.mrb[0].mxu0 %v2679
        %v2801 = vpop.f32.mrb[0].mxu0
        %v2802 = vadd.f32 0.0, %v2801
        %v2803 = vpop.f32.mrb[0].mxu0
        %2804 = vmatprep.mubr.f32.mxu0 0.0
        %2805 = vmatmul.mubr.f32.gmra.mrb[0].mxu0 %v2682
        %v2806 = vpop.f32.mrb[0].mxu0
        %v2807 = vadd.f32 0.0, %v2806
        %v2808 = vpop.f32.mrb[0].mxu0
        %2809 = vmatprep.mubr.f32.mxu0 0.0
        %2810 = vmatmul.mubr.f32.gmra.mrb[0].mxu0 %v2685
        %v2811 = vpop.f32.mrb[0].mxu0
        %v2812 = vadd.f32 0.0, %v2811
        %v2813 = vpop.f32.mrb[0].mxu0
        %2814 = vmatprep.mubr.f32.mxu0 0.0
        %2815 = vmatmul.mubr.f32.gmra.mrb[0].mxu0 %v2688
        %v2816 = vpop.f32.mrb[0].mxu0
        %v2817 = vadd.f32 0.0, %v2816
        %v2818 = vpop.f32.mrb[0].mxu0
        %2819 = vdwg.mxu0
        %v2820 = vadd.f32 %v2623, %v2757
        %v2821 = vadd.f32 %v2624, %v2762
        %v2822 = vadd.f32 %v2625, %v2767
        %v2823 = vadd.f32 %v2626, %v2772
        %v2824 = vadd.f32 %v2627, %v2777
        %v2825 = vadd.f32 %v2628, %v2782
        %v2826 = vadd.f32 %v2629, %v2787
        %v2827 = vadd.f32 %v2630, %v2792
        %v2828 = vadd.f32 %v2631, %v2797
        %v2829 = vadd.f32 %v2632, %v2802
        %v2830 = vadd.f32 %v2633, %v2807
        %v2831 = vadd.f32 %v2634, %v2812
        %v2832 = vadd.f32 %v2635, %v2817
        %2833 = vst [vmem:[#allocation2] sm:$0xff] %v2820
        %2834 = vst [vmem:[#allocation2 + $0x8] sm:$0xff] %v2821
        %2835 = vst [vmem:[#allocation2 + $0x10] sm:$0xff] %v2822
        %2836 = vst [vmem:[#allocation2 + $0x18] sm:$0xff] %v2823
        %2837 = vst [vmem:[#allocation2 + $0x20] sm:$0xff] %v2824
        %2838 = vst [vmem:[#allocation2 + $0x28] sm:$0xff] %v2825
        %2839 = vst [vmem:[#allocation2 + $0x30] sm:$0xff] %v2826
        %2840 = vst [vmem:[#allocation2 + $0x38] sm:$0xff] %v2827
        %2841 = vst [vmem:[#allocation2 + $0x40] sm:$0xff] %v2828
        %2842 = vst [vmem:[#allocation2 + $0x48] sm:$0xff] %v2829
        %2843 = vst [vmem:[#allocation2 + $0x50] sm:$0xff] %v2830
        %2844 = vst [vmem:[#allocation2 + $0x58] sm:$0xff] %v2831
        %2845 = vst [vmem:[#allocation2 + $0x60] sm:$0xff] %v2832
        %v2846 = vld [vmem:[#allocation2] sm:$0xff]
        %v2847 = vld [vmem:[#allocation2 + $0x8] sm:$0xff]
        %v2848 = vld [vmem:[#allocation2 + $0x10] sm:$0xff]
        %v2849 = vld [vmem:[#allocation2 + $0x18] sm:$0xff]
        %v2850 = vld [vmem:[#allocation2 + $0x20] sm:$0xff]
        %v2851 = vld [vmem:[#allocation2 + $0x28] sm:$0xff]
        %v2852 = vld [vmem:[#allocation2 + $0x30] sm:$0xff]
        %v2853 = vld [vmem:[#allocation2 + $0x38] sm:$0xff]
        %v2854 = vld [vmem:[#allocation2 + $0x40] sm:$0xff]
        %v2855 = vld [vmem:[#allocation2 + $0x48] sm:$0xff]
        %v2856 = vld [vmem:[#allocation2 + $0x50] sm:$0xff]
        %v2857 = vld [vmem:[#allocation2 + $0x58] sm:$0xff]
        %v2858 = vld [vmem:[#allocation2 + $0x60] sm:$0xff]
        %v2859 = vld [vmem:[%s195 + $0xc] sm:$0xff]
        %v2860 = vld [vmem:[%s195 + $0x14] sm:$0xff]
        %v2861 = vld [vmem:[%s195 + $0x1c] sm:$0xff]
        %v2862 = vld [vmem:[%s195 + $0x24] sm:$0xff]
        %v2863 = vld [vmem:[%s195 + $0x2c] sm:$0xff]
        %v2864 = vld [vmem:[%s195 + $0x34] sm:$0xff]
        %v2865 = vld [vmem:[%s195 + $0x3c] sm:$0xff]
        %v2866 = vld [vmem:[%s195 + $0x44] sm:$0xff]
        %v2867 = vld [vmem:[%s195 + $0x4c] sm:$0xff]
        %v2868 = vld [vmem:[%s195 + $0x54] sm:$0xff]
        %v2869 = vld [vmem:[%s195 + $0x5c] sm:$0xff]
        %v2870 = vld [vmem:[%s195 + $0x64] sm:$0xff]
        %v2871 = vld [vmem:[%s195 + $0x6c] sm:$0xff]
        %s2872 = scalar_lea.vmem %s1, 96
        %v2873 = vld [vmem:[%s2872] sm:$0xff]
        %v2875 = vsel %vm210, %v2859, 0
        %v2878 = vsel %vm210, %v2860, 0
        %v2881 = vsel %vm210, %v2861, 0
        %v2884 = vsel %vm210, %v2862, 0
        %v2887 = vsel %vm210, %v2863, 0
        %v2890 = vsel %vm210, %v2864, 0
        %v2893 = vsel %vm210, %v2865, 0
        %v2896 = vsel %vm210, %v2866, 0
        %v2899 = vsel %vm210, %v2867, 0
        %v2902 = vsel %vm210, %v2868, 0
        %v2905 = vsel %vm210, %v2869, 0
        %v2908 = vsel %vm210, %v2870, 0
        %v2911 = vsel %vm210, %v2871, 0
        %2913 = vmatprep.subr.mxu0 0.0
        %2914 = vmatpush1.msra.mxu0 %v2873
        %2915 = vmatprep.subr.mxu0 0.0
        %2916 = vmatpush1.msra.mxu0 0.0
        %2917 = vmatprep.subr.mxu0 0.0
        %2918 = vmatpush1.msra.mxu0 0.0
        %2919 = vmatprep.subr.mxu0 0.0
        %2920 = vmatpush1.msra.mxu0 0.0
        %2921 = vmatprep.subr.mxu0 0.0
        %2922 = vmatpush1.msra.mxu0 0.0
        %2923 = vmatprep.subr.mxu0 0.0
        %2924 = vmatpush1.msra.mxu0 0.0
        %2925 = vmatprep.subr.mxu0 0.0
        %2926 = vmatpush1.msra.mxu0 0.0
        %2927 = vmatprep.subr.mxu0 0.0
        %2928 = vmatpush1.msra.mxu0 0.0
        %2929 = vmatprep.subr.mxu0 0.0
        %2930 = vmatpush1.msra.mxu0 0.0
        %2931 = vmatprep.subr.mxu0 0.0
        %2932 = vmatpush1.msra.mxu0 0.0
        %2933 = vmatprep.subr.mxu0 0.0
        %2934 = vmatpush1.msra.mxu0 0.0
        %2935 = vmatprep.subr.mxu0 0.0
        %2936 = vmatpush1.msra.mxu0 0.0
        %2937 = vmatprep.subr.mxu0 0.0
        %2938 = vmatpush1.msra.mxu0 0.0
        %2939 = vmatprep.subr.mxu0 0.0
        %2940 = vmatpush1.msra.mxu0 0.0
        %2941 = vmatprep.subr.mxu0 0.0
        %2942 = vmatpush1.msra.mxu0 0.0
        %2943 = vmatprep.subr.mxu0 0.0
        %2944 = vmatpush1.msra.mxu0 0.0
        %2945 = vmatprep.subr.mxu0 0.0
        %2946 = vmatpush1.msra.mxu0 0.0
        %2947 = vmatprep.subr.mxu0 0.0
        %2948 = vmatpush1.msra.mxu0 0.0
        %2949 = vmatprep.subr.mxu0 0.0
        %2950 = vmatpush1.msra.mxu0 0.0
        %2951 = vmatprep.subr.mxu0 0.0
        %2952 = vmatpush1.msra.mxu0 0.0
        %2953 = vmatprep.subr.mxu0 0.0
        %2954 = vmatpush1.msra.mxu0 0.0
        %2955 = vmatprep.subr.mxu0 0.0
        %2956 = vmatpush1.msra.mxu0 0.0
        %2957 = vmatprep.subr.mxu0 0.0
        %2958 = vmatpush1.msra.mxu0 0.0
        %2959 = vmatprep.subr.mxu0 0.0
        %2960 = vmatpush1.msra.mxu0 0.0
        %2961 = vmatprep.subr.mxu0 0.0
        %2962 = vmatpush1.msra.mxu0 0.0
        %2963 = vmatprep.subr.mxu0 0.0
        %2964 = vmatpush1.msra.mxu0 0.0
        %2965 = vmatprep.subr.mxu0 0.0
        %2966 = vmatpush1.msra.mxu0 0.0
        %2967 = vmatprep.subr.mxu0 0.0
        %2968 = vmatpush1.msra.mxu0 0.0
        %2969 = vmatprep.subr.mxu0 0.0
        %2970 = vmatpush1.msra.mxu0 0.0
        %2971 = vmatprep.subr.mxu0 0.0
        %2972 = vmatpush1.msra.mxu0 0.0
        %2973 = vmatprep.subr.mxu0 0.0
        %2974 = vmatpush1.msra.mxu0 0.0
        %2975 = vmatprep.subr.mxu0 0.0
        %2976 = vmatpush1.msra.mxu0 0.0
        %2977 = vmatprep.mubr.f32.mxu0 0.0
        %2978 = vmatmul.mubr.f32.gmra.mrb[0].mxu0 %v2875
        %v2979 = vpop.f32.mrb[0].mxu0
        %v2980 = vadd.f32 0.0, %v2979
        %v2981 = vpop.f32.mrb[0].mxu0
        %2982 = vmatprep.mubr.f32.mxu0 0.0
        %2983 = vmatmul.mubr.f32.gmra.mrb[0].mxu0 %v2878
        %v2984 = vpop.f32.mrb[0].mxu0
        %v2985 = vadd.f32 0.0, %v2984
        %v2986 = vpop.f32.mrb[0].mxu0
        %2987 = vmatprep.mubr.f32.mxu0 0.0
        %2988 = vmatmul.mubr.f32.gmra.mrb[0].mxu0 %v2881
        %v2989 = vpop.f32.mrb[0].mxu0
        %v2990 = vadd.f32 0.0, %v2989
        %v2991 = vpop.f32.mrb[0].mxu0
        %2992 = vmatprep.mubr.f32.mxu0 0.0
        %2993 = vmatmul.mubr.f32.gmra.mrb[0].mxu0 %v2884
        %v2994 = vpop.f32.mrb[0].mxu0
        %v2995 = vadd.f32 0.0, %v2994
        %v2996 = vpop.f32.mrb[0].mxu0
        %2997 = vmatprep.mubr.f32.mxu0 0.0
        %2998 = vmatmul.mubr.f32.gmra.mrb[0].mxu0 %v2887
        %v2999 = vpop.f32.mrb[0].mxu0
        %v3000 = vadd.f32 0.0, %v2999
        %v3001 = vpop.f32.mrb[0].mxu0
        %3002 = vmatprep.mubr.f32.mxu0 0.0
        %3003 = vmatmul.mubr.f32.gmra.mrb[0].mxu0 %v2890
        %v3004 = vpop.f32.mrb[0].mxu0
        %v3005 = vadd.f32 0.0, %v3004
        %v3006 = vpop.f32.mrb[0].mxu0
        %3007 = vmatprep.mubr.f32.mxu0 0.0
        %3008 = vmatmul.mubr.f32.gmra.mrb[0].mxu0 %v2893
        %v3009 = vpop.f32.mrb[0].mxu0
        %v3010 = vadd.f32 0.0, %v3009
        %v3011 = vpop.f32.mrb[0].mxu0
        %3012 = vmatprep.mubr.f32.mxu0 0.0
        %3013 = vmatmul.mubr.f32.gmra.mrb[0].mxu0 %v2896
        %v3014 = vpop.f32.mrb[0].mxu0
        %v3015 = vadd.f32 0.0, %v3014
        %v3016 = vpop.f32.mrb[0].mxu0
        %3017 = vmatprep.mubr.f32.mxu0 0.0
        %3018 = vmatmul.mubr.f32.gmra.mrb[0].mxu0 %v2899
        %v3019 = vpop.f32.mrb[0].mxu0
        %v3020 = vadd.f32 0.0, %v3019
        %v3021 = vpop.f32.mrb[0].mxu0
        %3022 = vmatprep.mubr.f32.mxu0 0.0
        %3023 = vmatmul.mubr.f32.gmra.mrb[0].mxu0 %v2902
        %v3024 = vpop.f32.mrb[0].mxu0
        %v3025 = vadd.f32 0.0, %v3024
        %v3026 = vpop.f32.mrb[0].mxu0
        %3027 = vmatprep.mubr.f32.mxu0 0.0
        %3028 = vmatmul.mubr.f32.gmra.mrb[0].mxu0 %v2905
        %v3029 = vpop.f32.mrb[0].mxu0
        %v3030 = vadd.f32 0.0, %v3029
        %v3031 = vpop.f32.mrb[0].mxu0
        %3032 = vmatprep.mubr.f32.mxu0 0.0
        %3033 = vmatmul.mubr.f32.gmra.mrb[0].mxu0 %v2908
        %v3034 = vpop.f32.mrb[0].mxu0
        %v3035 = vadd.f32 0.0, %v3034
        %v3036 = vpop.f32.mrb[0].mxu0
        %3037 = vmatprep.mubr.f32.mxu0 0.0
        %3038 = vmatmul.mubr.f32.gmra.mrb[0].mxu0 %v2911
        %v3039 = vpop.f32.mrb[0].mxu0
        %v3040 = vadd.f32 0.0, %v3039
        %v3041 = vpop.f32.mrb[0].mxu0
        %3042 = vdwg.mxu0
        %v3043 = vadd.f32 %v2846, %v2980
        %v3044 = vadd.f32 %v2847, %v2985
        %v3045 = vadd.f32 %v2848, %v2990
        %v3046 = vadd.f32 %v2849, %v2995
        %v3047 = vadd.f32 %v2850, %v3000
        %v3048 = vadd.f32 %v2851, %v3005
        %v3049 = vadd.f32 %v2852, %v3010
        %v3050 = vadd.f32 %v2853, %v3015
        %v3051 = vadd.f32 %v2854, %v3020
        %v3052 = vadd.f32 %v2855, %v3025
        %v3053 = vadd.f32 %v2856, %v3030
        %v3054 = vadd.f32 %v2857, %v3035
        %v3055 = vadd.f32 %v2858, %v3040
        %3056 = vst [vmem:[#allocation2] sm:$0xff] %v3043
        %3057 = vst [vmem:[#allocation2 + $0x8] sm:$0xff] %v3044
        %3058 = vst [vmem:[#allocation2 + $0x10] sm:$0xff] %v3045
        %3059 = vst [vmem:[#allocation2 + $0x18] sm:$0xff] %v3046
        %3060 = vst [vmem:[#allocation2 + $0x20] sm:$0xff] %v3047
        %3061 = vst [vmem:[#allocation2 + $0x28] sm:$0xff] %v3048
        %3062 = vst [vmem:[#allocation2 + $0x30] sm:$0xff] %v3049
        %3063 = vst [vmem:[#allocation2 + $0x38] sm:$0xff] %v3050
        %3064 = vst [vmem:[#allocation2 + $0x40] sm:$0xff] %v3051
        %3065 = vst [vmem:[#allocation2 + $0x48] sm:$0xff] %v3052
        %3066 = vst [vmem:[#allocation2 + $0x50] sm:$0xff] %v3053
        %3067 = vst [vmem:[#allocation2 + $0x58] sm:$0xff] %v3054
        %3068 = vst [vmem:[#allocation2 + $0x60] sm:$0xff] %v3055
        %v3069 = vld [vmem:[#allocation2] sm:$0xff]
        %v3070 = vld [vmem:[#allocation2 + $0x8] sm:$0xff]
        %v3071 = vld [vmem:[#allocation2 + $0x10] sm:$0xff]
        %v3072 = vld [vmem:[#allocation2 + $0x18] sm:$0xff]
        %v3073 = vld [vmem:[#allocation2 + $0x20] sm:$0xff]
        %v3074 = vld [vmem:[#allocation2 + $0x28] sm:$0xff]
        %v3075 = vld [vmem:[#allocation2 + $0x30] sm:$0xff]
        %v3076 = vld [vmem:[#allocation2 + $0x38] sm:$0xff]
        %v3077 = vld [vmem:[#allocation2 + $0x40] sm:$0xff]
        %v3078 = vld [vmem:[#allocation2 + $0x48] sm:$0xff]
        %v3079 = vld [vmem:[#allocation2 + $0x50] sm:$0xff]
        %v3080 = vld [vmem:[#allocation2 + $0x58] sm:$0xff]
        %v3081 = vld [vmem:[#allocation2 + $0x60] sm:$0xff]
        %v3082 = vld [vmem:[%s195 + $0xd] sm:$0xff]
        %v3083 = vld [vmem:[%s195 + $0x15] sm:$0xff]
        %v3084 = vld [vmem:[%s195 + $0x1d] sm:$0xff]
        %v3085 = vld [vmem:[%s195 + $0x25] sm:$0xff]
        %v3086 = vld [vmem:[%s195 + $0x2d] sm:$0xff]
        %v3087 = vld [vmem:[%s195 + $0x35] sm:$0xff]
        %v3088 = vld [vmem:[%s195 + $0x3d] sm:$0xff]
        %v3089 = vld [vmem:[%s195 + $0x45] sm:$0xff]
        %v3090 = vld [vmem:[%s195 + $0x4d] sm:$0xff]
        %v3091 = vld [vmem:[%s195 + $0x55] sm:$0xff]
        %v3092 = vld [vmem:[%s195 + $0x5d] sm:$0xff]
        %v3093 = vld [vmem:[%s195 + $0x65] sm:$0xff]
        %v3094 = vld [vmem:[%s195 + $0x6d] sm:$0xff]
        %s3095 = scalar_lea.vmem %s1, 104
        %v3096 = vld [vmem:[%s3095] sm:$0xff]
        %v3098 = vsel %vm210, %v3082, 0
        %v3101 = vsel %vm210, %v3083, 0
        %v3104 = vsel %vm210, %v3084, 0
        %v3107 = vsel %vm210, %v3085, 0
        %v3110 = vsel %vm210, %v3086, 0
        %v3113 = vsel %vm210, %v3087, 0
        %v3116 = vsel %vm210, %v3088, 0
        %v3119 = vsel %vm210, %v3089, 0
        %v3122 = vsel %vm210, %v3090, 0
        %v3125 = vsel %vm210, %v3091, 0
        %v3128 = vsel %vm210, %v3092, 0
        %v3131 = vsel %vm210, %v3093, 0
        %v3134 = vsel %vm210, %v3094, 0
        %3136 = vmatprep.subr.mxu0 0.0
        %3137 = vmatpush1.msra.mxu0 %v3096
        %3138 = vmatprep.subr.mxu0 0.0
        %3139 = vmatpush1.msra.mxu0 0.0
        %3140 = vmatprep.subr.mxu0 0.0
        %3141 = vmatpush1.msra.mxu0 0.0
        %3142 = vmatprep.subr.mxu0 0.0
        %3143 = vmatpush1.msra.mxu0 0.0
        %3144 = vmatprep.subr.mxu0 0.0
        %3145 = vmatpush1.msra.mxu0 0.0
        %3146 = vmatprep.subr.mxu0 0.0
        %3147 = vmatpush1.msra.mxu0 0.0
        %3148 = vmatprep.subr.mxu0 0.0
        %3149 = vmatpush1.msra.mxu0 0.0
        %3150 = vmatprep.subr.mxu0 0.0
        %3151 = vmatpush1.msra.mxu0 0.0
        %3152 = vmatprep.subr.mxu0 0.0
        %3153 = vmatpush1.msra.mxu0 0.0
        %3154 = vmatprep.subr.mxu0 0.0
        %3155 = vmatpush1.msra.mxu0 0.0
        %3156 = vmatprep.subr.mxu0 0.0
        %3157 = vmatpush1.msra.mxu0 0.0
        %3158 = vmatprep.subr.mxu0 0.0
        %3159 = vmatpush1.msra.mxu0 0.0
        %3160 = vmatprep.subr.mxu0 0.0
        %3161 = vmatpush1.msra.mxu0 0.0
        %3162 = vmatprep.subr.mxu0 0.0
        %3163 = vmatpush1.msra.mxu0 0.0
        %3164 = vmatprep.subr.mxu0 0.0
        %3165 = vmatpush1.msra.mxu0 0.0
        %3166 = vmatprep.subr.mxu0 0.0
        %3167 = vmatpush1.msra.mxu0 0.0
        %3168 = vmatprep.subr.mxu0 0.0
        %3169 = vmatpush1.msra.mxu0 0.0
        %3170 = vmatprep.subr.mxu0 0.0
        %3171 = vmatpush1.msra.mxu0 0.0
        %3172 = vmatprep.subr.mxu0 0.0
        %3173 = vmatpush1.msra.mxu0 0.0
        %3174 = vmatprep.subr.mxu0 0.0
        %3175 = vmatpush1.msra.mxu0 0.0
        %3176 = vmatprep.subr.mxu0 0.0
        %3177 = vmatpush1.msra.mxu0 0.0
        %3178 = vmatprep.subr.mxu0 0.0
        %3179 = vmatpush1.msra.mxu0 0.0
        %3180 = vmatprep.subr.mxu0 0.0
        %3181 = vmatpush1.msra.mxu0 0.0
        %3182 = vmatprep.subr.mxu0 0.0
        %3183 = vmatpush1.msra.mxu0 0.0
        %3184 = vmatprep.subr.mxu0 0.0
        %3185 = vmatpush1.msra.mxu0 0.0
        %3186 = vmatprep.subr.mxu0 0.0
        %3187 = vmatpush1.msra.mxu0 0.0
        %3188 = vmatprep.subr.mxu0 0.0
        %3189 = vmatpush1.msra.mxu0 0.0
        %3190 = vmatprep.subr.mxu0 0.0
        %3191 = vmatpush1.msra.mxu0 0.0
        %3192 = vmatprep.subr.mxu0 0.0
        %3193 = vmatpush1.msra.mxu0 0.0
        %3194 = vmatprep.subr.mxu0 0.0
        %3195 = vmatpush1.msra.mxu0 0.0
        %3196 = vmatprep.subr.mxu0 0.0
        %3197 = vmatpush1.msra.mxu0 0.0
        %3198 = vmatprep.subr.mxu0 0.0
        %3199 = vmatpush1.msra.mxu0 0.0
        %3200 = vmatprep.mubr.f32.mxu0 0.0
        %3201 = vmatmul.mubr.f32.gmra.mrb[0].mxu0 %v3098
        %v3202 = vpop.f32.mrb[0].mxu0
        %v3203 = vadd.f32 0.0, %v3202
        %v3204 = vpop.f32.mrb[0].mxu0
        %3205 = vmatprep.mubr.f32.mxu0 0.0
        %3206 = vmatmul.mubr.f32.gmra.mrb[0].mxu0 %v3101
        %v3207 = vpop.f32.mrb[0].mxu0
        %v3208 = vadd.f32 0.0, %v3207
        %v3209 = vpop.f32.mrb[0].mxu0
        %3210 = vmatprep.mubr.f32.mxu0 0.0
        %3211 = vmatmul.mubr.f32.gmra.mrb[0].mxu0 %v3104
        %v3212 = vpop.f32.mrb[0].mxu0
        %v3213 = vadd.f32 0.0, %v3212
        %v3214 = vpop.f32.mrb[0].mxu0
        %3215 = vmatprep.mubr.f32.mxu0 0.0
        %3216 = vmatmul.mubr.f32.gmra.mrb[0].mxu0 %v3107
        %v3217 = vpop.f32.mrb[0].mxu0
        %v3218 = vadd.f32 0.0, %v3217
        %v3219 = vpop.f32.mrb[0].mxu0
        %3220 = vmatprep.mubr.f32.mxu0 0.0
        %3221 = vmatmul.mubr.f32.gmra.mrb[0].mxu0 %v3110
        %v3222 = vpop.f32.mrb[0].mxu0
        %v3223 = vadd.f32 0.0, %v3222
        %v3224 = vpop.f32.mrb[0].mxu0
        %3225 = vmatprep.mubr.f32.mxu0 0.0
        %3226 = vmatmul.mubr.f32.gmra.mrb[0].mxu0 %v3113
        %v3227 = vpop.f32.mrb[0].mxu0
        %v3228 = vadd.f32 0.0, %v3227
        %v3229 = vpop.f32.mrb[0].mxu0
        %3230 = vmatprep.mubr.f32.mxu0 0.0
        %3231 = vmatmul.mubr.f32.gmra.mrb[0].mxu0 %v3116
        %v3232 = vpop.f32.mrb[0].mxu0
        %v3233 = vadd.f32 0.0, %v3232
        %v3234 = vpop.f32.mrb[0].mxu0
        %3235 = vmatprep.mubr.f32.mxu0 0.0
        %3236 = vmatmul.mubr.f32.gmra.mrb[0].mxu0 %v3119
        %v3237 = vpop.f32.mrb[0].mxu0
        %v3238 = vadd.f32 0.0, %v3237
        %v3239 = vpop.f32.mrb[0].mxu0
        %3240 = vmatprep.mubr.f32.mxu0 0.0
        %3241 = vmatmul.mubr.f32.gmra.mrb[0].mxu0 %v3122
        %v3242 = vpop.f32.mrb[0].mxu0
        %v3243 = vadd.f32 0.0, %v3242
        %v3244 = vpop.f32.mrb[0].mxu0
        %3245 = vmatprep.mubr.f32.mxu0 0.0
        %3246 = vmatmul.mubr.f32.gmra.mrb[0].mxu0 %v3125
        %v3247 = vpop.f32.mrb[0].mxu0
        %v3248 = vadd.f32 0.0, %v3247
        %v3249 = vpop.f32.mrb[0].mxu0
        %3250 = vmatprep.mubr.f32.mxu0 0.0
        %3251 = vmatmul.mubr.f32.gmra.mrb[0].mxu0 %v3128
        %v3252 = vpop.f32.mrb[0].mxu0
        %v3253 = vadd.f32 0.0, %v3252
        %v3254 = vpop.f32.mrb[0].mxu0
        %3255 = vmatprep.mubr.f32.mxu0 0.0
        %3256 = vmatmul.mubr.f32.gmra.mrb[0].mxu0 %v3131
        %v3257 = vpop.f32.mrb[0].mxu0
        %v3258 = vadd.f32 0.0, %v3257
        %v3259 = vpop.f32.mrb[0].mxu0
        %3260 = vmatprep.mubr.f32.mxu0 0.0
        %3261 = vmatmul.mubr.f32.gmra.mrb[0].mxu0 %v3134
        %v3262 = vpop.f32.mrb[0].mxu0
        %v3263 = vadd.f32 0.0, %v3262
        %v3264 = vpop.f32.mrb[0].mxu0
        %3265 = vdwg.mxu0
        %v3266 = vadd.f32 %v3069, %v3203
        %v3267 = vadd.f32 %v3070, %v3208
        %v3268 = vadd.f32 %v3071, %v3213
        %v3269 = vadd.f32 %v3072, %v3218
        %v3270 = vadd.f32 %v3073, %v3223
        %v3271 = vadd.f32 %v3074, %v3228
        %v3272 = vadd.f32 %v3075, %v3233
        %v3273 = vadd.f32 %v3076, %v3238
        %v3274 = vadd.f32 %v3077, %v3243
        %v3275 = vadd.f32 %v3078, %v3248
        %v3276 = vadd.f32 %v3079, %v3253
        %v3277 = vadd.f32 %v3080, %v3258
        %v3278 = vadd.f32 %v3081, %v3263
        %3279 = vst [vmem:[#allocation2] sm:$0xff] %v3266
        %3280 = vst [vmem:[#allocation2 + $0x8] sm:$0xff] %v3267
        %3281 = vst [vmem:[#allocation2 + $0x10] sm:$0xff] %v3268
        %3282 = vst [vmem:[#allocation2 + $0x18] sm:$0xff] %v3269
        %3283 = vst [vmem:[#allocation2 + $0x20] sm:$0xff] %v3270
        %3284 = vst [vmem:[#allocation2 + $0x28] sm:$0xff] %v3271
        %3285 = vst [vmem:[#allocation2 + $0x30] sm:$0xff] %v3272
        %3286 = vst [vmem:[#allocation2 + $0x38] sm:$0xff] %v3273
        %3287 = vst [vmem:[#allocation2 + $0x40] sm:$0xff] %v3274
        %3288 = vst [vmem:[#allocation2 + $0x48] sm:$0xff] %v3275
        %3289 = vst [vmem:[#allocation2 + $0x50] sm:$0xff] %v3276
        %3290 = vst [vmem:[#allocation2 + $0x58] sm:$0xff] %v3277
        %3291 = vst [vmem:[#allocation2 + $0x60] sm:$0xff] %v3278
        %v3292 = vld [vmem:[#allocation2] sm:$0xff]
        %v3293 = vld [vmem:[#allocation2 + $0x8] sm:$0xff]
        %v3294 = vld [vmem:[#allocation2 + $0x10] sm:$0xff]
        %v3295 = vld [vmem:[#allocation2 + $0x18] sm:$0xff]
        %v3296 = vld [vmem:[#allocation2 + $0x20] sm:$0xff]
        %v3297 = vld [vmem:[#allocation2 + $0x28] sm:$0xff]
        %v3298 = vld [vmem:[#allocation2 + $0x30] sm:$0xff]
        %v3299 = vld [vmem:[#allocation2 + $0x38] sm:$0xff]
        %v3300 = vld [vmem:[#allocation2 + $0x40] sm:$0xff]
        %v3301 = vld [vmem:[#allocation2 + $0x48] sm:$0xff]
        %v3302 = vld [vmem:[#allocation2 + $0x50] sm:$0xff]
        %v3303 = vld [vmem:[#allocation2 + $0x58] sm:$0xff]
        %v3304 = vld [vmem:[#allocation2 + $0x60] sm:$0xff]
        %v3305 = vld [vmem:[%s195 + $0xe] sm:$0xff]
        %v3306 = vld [vmem:[%s195 + $0x16] sm:$0xff]
        %v3307 = vld [vmem:[%s195 + $0x1e] sm:$0xff]
        %v3308 = vld [vmem:[%s195 + $0x26] sm:$0xff]
        %v3309 = vld [vmem:[%s195 + $0x2e] sm:$0xff]
        %v3310 = vld [vmem:[%s195 + $0x36] sm:$0xff]
        %v3311 = vld [vmem:[%s195 + $0x3e] sm:$0xff]
        %v3312 = vld [vmem:[%s195 + $0x46] sm:$0xff]
        %v3313 = vld [vmem:[%s195 + $0x4e] sm:$0xff]
        %v3314 = vld [vmem:[%s195 + $0x56] sm:$0xff]
        %v3315 = vld [vmem:[%s195 + $0x5e] sm:$0xff]
        %v3316 = vld [vmem:[%s195 + $0x66] sm:$0xff]
        %v3317 = vld [vmem:[%s195 + $0x6e] sm:$0xff]
        %s3318 = scalar_lea.vmem %s1, 112
        %v3319 = vld [vmem:[%s3318] sm:$0xff]
        %v3321 = vsel %vm210, %v3305, 0
        %v3324 = vsel %vm210, %v3306, 0
        %v3327 = vsel %vm210, %v3307, 0
        %v3330 = vsel %vm210, %v3308, 0
        %v3333 = vsel %vm210, %v3309, 0
        %v3336 = vsel %vm210, %v3310, 0
        %v3339 = vsel %vm210, %v3311, 0
        %v3342 = vsel %vm210, %v3312, 0
        %v3345 = vsel %vm210, %v3313, 0
        %v3348 = vsel %vm210, %v3314, 0
        %v3351 = vsel %vm210, %v3315, 0
        %v3354 = vsel %vm210, %v3316, 0
        %v3357 = vsel %vm210, %v3317, 0
        %3359 = vmatprep.subr.mxu0 0.0
        %3360 = vmatpush1.msra.mxu0 %v3319
        %3361 = vmatprep.subr.mxu0 0.0
        %3362 = vmatpush1.msra.mxu0 0.0
        %3363 = vmatprep.subr.mxu0 0.0
        %3364 = vmatpush1.msra.mxu0 0.0
        %3365 = vmatprep.subr.mxu0 0.0
        %3366 = vmatpush1.msra.mxu0 0.0
        %3367 = vmatprep.subr.mxu0 0.0
        %3368 = vmatpush1.msra.mxu0 0.0
        %3369 = vmatprep.subr.mxu0 0.0
        %3370 = vmatpush1.msra.mxu0 0.0
        %3371 = vmatprep.subr.mxu0 0.0
        %3372 = vmatpush1.msra.mxu0 0.0
        %3373 = vmatprep.subr.mxu0 0.0
        %3374 = vmatpush1.msra.mxu0 0.0
        %3375 = vmatprep.subr.mxu0 0.0
        %3376 = vmatpush1.msra.mxu0 0.0
        %3377 = vmatprep.subr.mxu0 0.0
        %3378 = vmatpush1.msra.mxu0 0.0
        %3379 = vmatprep.subr.mxu0 0.0
        %3380 = vmatpush1.msra.mxu0 0.0
        %3381 = vmatprep.subr.mxu0 0.0
        %3382 = vmatpush1.msra.mxu0 0.0
        %3383 = vmatprep.subr.mxu0 0.0
        %3384 = vmatpush1.msra.mxu0 0.0
        %3385 = vmatprep.subr.mxu0 0.0
        %3386 = vmatpush1.msra.mxu0 0.0
        %3387 = vmatprep.subr.mxu0 0.0
        %3388 = vmatpush1.msra.mxu0 0.0
        %3389 = vmatprep.subr.mxu0 0.0
        %3390 = vmatpush1.msra.mxu0 0.0
        %3391 = vmatprep.subr.mxu0 0.0
        %3392 = vmatpush1.msra.mxu0 0.0
        %3393 = vmatprep.subr.mxu0 0.0
        %3394 = vmatpush1.msra.mxu0 0.0
        %3395 = vmatprep.subr.mxu0 0.0
        %3396 = vmatpush1.msra.mxu0 0.0
        %3397 = vmatprep.subr.mxu0 0.0
        %3398 = vmatpush1.msra.mxu0 0.0
        %3399 = vmatprep.subr.mxu0 0.0
        %3400 = vmatpush1.msra.mxu0 0.0
        %3401 = vmatprep.subr.mxu0 0.0
        %3402 = vmatpush1.msra.mxu0 0.0
        %3403 = vmatprep.subr.mxu0 0.0
        %3404 = vmatpush1.msra.mxu0 0.0
        %3405 = vmatprep.subr.mxu0 0.0
        %3406 = vmatpush1.msra.mxu0 0.0
        %3407 = vmatprep.subr.mxu0 0.0
        %3408 = vmatpush1.msra.mxu0 0.0
        %3409 = vmatprep.subr.mxu0 0.0
        %3410 = vmatpush1.msra.mxu0 0.0
        %3411 = vmatprep.subr.mxu0 0.0
        %3412 = vmatpush1.msra.mxu0 0.0
        %3413 = vmatprep.subr.mxu0 0.0
        %3414 = vmatpush1.msra.mxu0 0.0
        %3415 = vmatprep.subr.mxu0 0.0
        %3416 = vmatpush1.msra.mxu0 0.0
        %3417 = vmatprep.subr.mxu0 0.0
        %3418 = vmatpush1.msra.mxu0 0.0
        %3419 = vmatprep.subr.mxu0 0.0
        %3420 = vmatpush1.msra.mxu0 0.0
        %3421 = vmatprep.subr.mxu0 0.0
        %3422 = vmatpush1.msra.mxu0 0.0
        %3423 = vmatprep.mubr.f32.mxu0 0.0
        %3424 = vmatmul.mubr.f32.gmra.mrb[0].mxu0 %v3321
        %v3425 = vpop.f32.mrb[0].mxu0
        %v3426 = vadd.f32 0.0, %v3425
        %v3427 = vpop.f32.mrb[0].mxu0
        %3428 = vmatprep.mubr.f32.mxu0 0.0
        %3429 = vmatmul.mubr.f32.gmra.mrb[0].mxu0 %v3324
        %v3430 = vpop.f32.mrb[0].mxu0
        %v3431 = vadd.f32 0.0, %v3430
        %v3432 = vpop.f32.mrb[0].mxu0
        %3433 = vmatprep.mubr.f32.mxu0 0.0
        %3434 = vmatmul.mubr.f32.gmra.mrb[0].mxu0 %v3327
        %v3435 = vpop.f32.mrb[0].mxu0
        %v3436 = vadd.f32 0.0, %v3435
        %v3437 = vpop.f32.mrb[0].mxu0
        %3438 = vmatprep.mubr.f32.mxu0 0.0
        %3439 = vmatmul.mubr.f32.gmra.mrb[0].mxu0 %v3330
        %v3440 = vpop.f32.mrb[0].mxu0
        %v3441 = vadd.f32 0.0, %v3440
        %v3442 = vpop.f32.mrb[0].mxu0
        %3443 = vmatprep.mubr.f32.mxu0 0.0
        %3444 = vmatmul.mubr.f32.gmra.mrb[0].mxu0 %v3333
        %v3445 = vpop.f32.mrb[0].mxu0
        %v3446 = vadd.f32 0.0, %v3445
        %v3447 = vpop.f32.mrb[0].mxu0
        %3448 = vmatprep.mubr.f32.mxu0 0.0
        %3449 = vmatmul.mubr.f32.gmra.mrb[0].mxu0 %v3336
        %v3450 = vpop.f32.mrb[0].mxu0
        %v3451 = vadd.f32 0.0, %v3450
        %v3452 = vpop.f32.mrb[0].mxu0
        %3453 = vmatprep.mubr.f32.mxu0 0.0
        %3454 = vmatmul.mubr.f32.gmra.mrb[0].mxu0 %v3339
        %v3455 = vpop.f32.mrb[0].mxu0
        %v3456 = vadd.f32 0.0, %v3455
        %v3457 = vpop.f32.mrb[0].mxu0
        %3458 = vmatprep.mubr.f32.mxu0 0.0
        %3459 = vmatmul.mubr.f32.gmra.mrb[0].mxu0 %v3342
        %v3460 = vpop.f32.mrb[0].mxu0
        %v3461 = vadd.f32 0.0, %v3460
        %v3462 = vpop.f32.mrb[0].mxu0
        %3463 = vmatprep.mubr.f32.mxu0 0.0
        %3464 = vmatmul.mubr.f32.gmra.mrb[0].mxu0 %v3345
        %v3465 = vpop.f32.mrb[0].mxu0
        %v3466 = vadd.f32 0.0, %v3465
        %v3467 = vpop.f32.mrb[0].mxu0
        %3468 = vmatprep.mubr.f32.mxu0 0.0
        %3469 = vmatmul.mubr.f32.gmra.mrb[0].mxu0 %v3348
        %v3470 = vpop.f32.mrb[0].mxu0
        %v3471 = vadd.f32 0.0, %v3470
        %v3472 = vpop.f32.mrb[0].mxu0
        %3473 = vmatprep.mubr.f32.mxu0 0.0
        %3474 = vmatmul.mubr.f32.gmra.mrb[0].mxu0 %v3351
        %v3475 = vpop.f32.mrb[0].mxu0
        %v3476 = vadd.f32 0.0, %v3475
        %v3477 = vpop.f32.mrb[0].mxu0
        %3478 = vmatprep.mubr.f32.mxu0 0.0
        %3479 = vmatmul.mubr.f32.gmra.mrb[0].mxu0 %v3354
        %v3480 = vpop.f32.mrb[0].mxu0
        %v3481 = vadd.f32 0.0, %v3480
        %v3482 = vpop.f32.mrb[0].mxu0
        %3483 = vmatprep.mubr.f32.mxu0 0.0
        %3484 = vmatmul.mubr.f32.gmra.mrb[0].mxu0 %v3357
        %v3485 = vpop.f32.mrb[0].mxu0
        %v3486 = vadd.f32 0.0, %v3485
        %v3487 = vpop.f32.mrb[0].mxu0
        %3488 = vdwg.mxu0
        %v3489 = vadd.f32 %v3292, %v3426
        %v3490 = vadd.f32 %v3293, %v3431
        %v3491 = vadd.f32 %v3294, %v3436
        %v3492 = vadd.f32 %v3295, %v3441
        %v3493 = vadd.f32 %v3296, %v3446
        %v3494 = vadd.f32 %v3297, %v3451
        %v3495 = vadd.f32 %v3298, %v3456
        %v3496 = vadd.f32 %v3299, %v3461
        %v3497 = vadd.f32 %v3300, %v3466
        %v3498 = vadd.f32 %v3301, %v3471
        %v3499 = vadd.f32 %v3302, %v3476
        %v3500 = vadd.f32 %v3303, %v3481
        %v3501 = vadd.f32 %v3304, %v3486
        %3502 = vst [vmem:[#allocation2] sm:$0xff] %v3489
        %3503 = vst [vmem:[#allocation2 + $0x8] sm:$0xff] %v3490
        %3504 = vst [vmem:[#allocation2 + $0x10] sm:$0xff] %v3491
        %3505 = vst [vmem:[#allocation2 + $0x18] sm:$0xff] %v3492
        %3506 = vst [vmem:[#allocation2 + $0x20] sm:$0xff] %v3493
        %3507 = vst [vmem:[#allocation2 + $0x28] sm:$0xff] %v3494
        %3508 = vst [vmem:[#allocation2 + $0x30] sm:$0xff] %v3495
        %3509 = vst [vmem:[#allocation2 + $0x38] sm:$0xff] %v3496
        %3510 = vst [vmem:[#allocation2 + $0x40] sm:$0xff] %v3497
        %3511 = vst [vmem:[#allocation2 + $0x48] sm:$0xff] %v3498
        %3512 = vst [vmem:[#allocation2 + $0x50] sm:$0xff] %v3499
        %3513 = vst [vmem:[#allocation2 + $0x58] sm:$0xff] %v3500
        %3514 = vst [vmem:[#allocation2 + $0x60] sm:$0xff] %v3501
        %v3515 = vld [vmem:[#allocation2] sm:$0xff]
        %v3516 = vld [vmem:[#allocation2 + $0x8] sm:$0xff]
        %v3517 = vld [vmem:[#allocation2 + $0x10] sm:$0xff]
        %v3518 = vld [vmem:[#allocation2 + $0x18] sm:$0xff]
        %v3519 = vld [vmem:[#allocation2 + $0x20] sm:$0xff]
        %v3520 = vld [vmem:[#allocation2 + $0x28] sm:$0xff]
        %v3521 = vld [vmem:[#allocation2 + $0x30] sm:$0xff]
        %v3522 = vld [vmem:[#allocation2 + $0x38] sm:$0xff]
        %v3523 = vld [vmem:[#allocation2 + $0x40] sm:$0xff]
        %v3524 = vld [vmem:[#allocation2 + $0x48] sm:$0xff]
        %v3525 = vld [vmem:[#allocation2 + $0x50] sm:$0xff]
        %v3526 = vld [vmem:[#allocation2 + $0x58] sm:$0xff]
        %v3527 = vld [vmem:[#allocation2 + $0x60] sm:$0xff]
        %v3528 = vld [vmem:[%s195 + $0xf] sm:$0xff]
        %v3529 = vld [vmem:[%s195 + $0x17] sm:$0xff]
        %v3530 = vld [vmem:[%s195 + $0x1f] sm:$0xff]
        %v3531 = vld [vmem:[%s195 + $0x27] sm:$0xff]
        %v3532 = vld [vmem:[%s195 + $0x2f] sm:$0xff]
        %v3533 = vld [vmem:[%s195 + $0x37] sm:$0xff]
        %v3534 = vld [vmem:[%s195 + $0x3f] sm:$0xff]
        %v3535 = vld [vmem:[%s195 + $0x47] sm:$0xff]
        %v3536 = vld [vmem:[%s195 + $0x4f] sm:$0xff]
        %v3537 = vld [vmem:[%s195 + $0x57] sm:$0xff]
        %v3538 = vld [vmem:[%s195 + $0x5f] sm:$0xff]
        %v3539 = vld [vmem:[%s195 + $0x67] sm:$0xff]
        %v3540 = vld [vmem:[%s195 + $0x6f] sm:$0xff]
        %s3541 = scalar_lea.vmem %s1, 120
        %v3542 = vld [vmem:[%s3541] sm:$0xff]
        %v3544 = vsel %vm210, %v3528, 0
        %v3547 = vsel %vm210, %v3529, 0
        %v3550 = vsel %vm210, %v3530, 0
        %v3553 = vsel %vm210, %v3531, 0
        %v3556 = vsel %vm210, %v3532, 0
        %v3559 = vsel %vm210, %v3533, 0
        %v3562 = vsel %vm210, %v3534, 0
        %v3565 = vsel %vm210, %v3535, 0
        %v3568 = vsel %vm210, %v3536, 0
        %v3571 = vsel %vm210, %v3537, 0
        %v3574 = vsel %vm210, %v3538, 0
        %v3577 = vsel %vm210, %v3539, 0
        %v3580 = vsel %vm210, %v3540, 0
        %3582 = vmatprep.subr.mxu0 0.0
        %3583 = vmatpush1.msra.mxu0 %v3542
        %3584 = vmatprep.subr.mxu0 0.0
        %3585 = vmatpush1.msra.mxu0 0.0
        %3586 = vmatprep.subr.mxu0 0.0
        %3587 = vmatpush1.msra.mxu0 0.0
        %3588 = vmatprep.subr.mxu0 0.0
        %3589 = vmatpush1.msra.mxu0 0.0
        %3590 = vmatprep.subr.mxu0 0.0
        %3591 = vmatpush1.msra.mxu0 0.0
        %3592 = vmatprep.subr.mxu0 0.0
        %3593 = vmatpush1.msra.mxu0 0.0
        %3594 = vmatprep.subr.mxu0 0.0
        %3595 = vmatpush1.msra.mxu0 0.0
        %3596 = vmatprep.subr.mxu0 0.0
        %3597 = vmatpush1.msra.mxu0 0.0
        %3598 = vmatprep.subr.mxu0 0.0
        %3599 = vmatpush1.msra.mxu0 0.0
        %3600 = vmatprep.subr.mxu0 0.0
        %3601 = vmatpush1.msra.mxu0 0.0
        %3602 = vmatprep.subr.mxu0 0.0
        %3603 = vmatpush1.msra.mxu0 0.0
        %3604 = vmatprep.subr.mxu0 0.0
        %3605 = vmatpush1.msra.mxu0 0.0
        %3606 = vmatprep.subr.mxu0 0.0
        %3607 = vmatpush1.msra.mxu0 0.0
        %3608 = vmatprep.subr.mxu0 0.0
        %3609 = vmatpush1.msra.mxu0 0.0
        %3610 = vmatprep.subr.mxu0 0.0
        %3611 = vmatpush1.msra.mxu0 0.0
        %3612 = vmatprep.subr.mxu0 0.0
        %3613 = vmatpush1.msra.mxu0 0.0
        %3614 = vmatprep.subr.mxu0 0.0
        %3615 = vmatpush1.msra.mxu0 0.0
        %3616 = vmatprep.subr.mxu0 0.0
        %3617 = vmatpush1.msra.mxu0 0.0
        %3618 = vmatprep.subr.mxu0 0.0
        %3619 = vmatpush1.msra.mxu0 0.0
        %3620 = vmatprep.subr.mxu0 0.0
        %3621 = vmatpush1.msra.mxu0 0.0
        %3622 = vmatprep.subr.mxu0 0.0
        %3623 = vmatpush1.msra.mxu0 0.0
        %3624 = vmatprep.subr.mxu0 0.0
        %3625 = vmatpush1.msra.mxu0 0.0
        %3626 = vmatprep.subr.mxu0 0.0
        %3627 = vmatpush1.msra.mxu0 0.0
        %3628 = vmatprep.subr.mxu0 0.0
        %3629 = vmatpush1.msra.mxu0 0.0
        %3630 = vmatprep.subr.mxu0 0.0
        %3631 = vmatpush1.msra.mxu0 0.0
        %3632 = vmatprep.subr.mxu0 0.0
        %3633 = vmatpush1.msra.mxu0 0.0
        %3634 = vmatprep.subr.mxu0 0.0
        %3635 = vmatpush1.msra.mxu0 0.0
        %3636 = vmatprep.subr.mxu0 0.0
        %3637 = vmatpush1.msra.mxu0 0.0
        %3638 = vmatprep.subr.mxu0 0.0
        %3639 = vmatpush1.msra.mxu0 0.0
        %3640 = vmatprep.subr.mxu0 0.0
        %3641 = vmatpush1.msra.mxu0 0.0
        %3642 = vmatprep.subr.mxu0 0.0
        %3643 = vmatpush1.msra.mxu0 0.0
        %3644 = vmatprep.subr.mxu0 0.0
        %3645 = vmatpush1.msra.mxu0 0.0
        %3646 = vmatprep.mubr.f32.mxu0 0.0
        %3647 = vmatmul.mubr.f32.gmra.mrb[0].mxu0 %v3544
        %v3648 = vpop.f32.mrb[0].mxu0
        %v3649 = vadd.f32 0.0, %v3648
        %v3650 = vpop.f32.mrb[0].mxu0
        %3651 = vmatprep.mubr.f32.mxu0 0.0
        %3652 = vmatmul.mubr.f32.gmra.mrb[0].mxu0 %v3547
        %v3653 = vpop.f32.mrb[0].mxu0
        %v3654 = vadd.f32 0.0, %v3653
        %v3655 = vpop.f32.mrb[0].mxu0
        %3656 = vmatprep.mubr.f32.mxu0 0.0
        %3657 = vmatmul.mubr.f32.gmra.mrb[0].mxu0 %v3550
        %v3658 = vpop.f32.mrb[0].mxu0
        %v3659 = vadd.f32 0.0, %v3658
        %v3660 = vpop.f32.mrb[0].mxu0
        %3661 = vmatprep.mubr.f32.mxu0 0.0
        %3662 = vmatmul.mubr.f32.gmra.mrb[0].mxu0 %v3553
        %v3663 = vpop.f32.mrb[0].mxu0
        %v3664 = vadd.f32 0.0, %v3663
        %v3665 = vpop.f32.mrb[0].mxu0
        %3666 = vmatprep.mubr.f32.mxu0 0.0
        %3667 = vmatmul.mubr.f32.gmra.mrb[0].mxu0 %v3556
        %v3668 = vpop.f32.mrb[0].mxu0
        %v3669 = vadd.f32 0.0, %v3668
        %v3670 = vpop.f32.mrb[0].mxu0
        %3671 = vmatprep.mubr.f32.mxu0 0.0
        %3672 = vmatmul.mubr.f32.gmra.mrb[0].mxu0 %v3559
        %v3673 = vpop.f32.mrb[0].mxu0
        %v3674 = vadd.f32 0.0, %v3673
        %v3675 = vpop.f32.mrb[0].mxu0
        %3676 = vmatprep.mubr.f32.mxu0 0.0
        %3677 = vmatmul.mubr.f32.gmra.mrb[0].mxu0 %v3562
        %v3678 = vpop.f32.mrb[0].mxu0
        %v3679 = vadd.f32 0.0, %v3678
        %v3680 = vpop.f32.mrb[0].mxu0
        %3681 = vmatprep.mubr.f32.mxu0 0.0
        %3682 = vmatmul.mubr.f32.gmra.mrb[0].mxu0 %v3565
        %v3683 = vpop.f32.mrb[0].mxu0
        %v3684 = vadd.f32 0.0, %v3683
        %v3685 = vpop.f32.mrb[0].mxu0
        %3686 = vmatprep.mubr.f32.mxu0 0.0
        %3687 = vmatmul.mubr.f32.gmra.mrb[0].mxu0 %v3568
        %v3688 = vpop.f32.mrb[0].mxu0
        %v3689 = vadd.f32 0.0, %v3688
        %v3690 = vpop.f32.mrb[0].mxu0
        %3691 = vmatprep.mubr.f32.mxu0 0.0
        %3692 = vmatmul.mubr.f32.gmra.mrb[0].mxu0 %v3571
        %v3693 = vpop.f32.mrb[0].mxu0
        %v3694 = vadd.f32 0.0, %v3693
        %v3695 = vpop.f32.mrb[0].mxu0
        %3696 = vmatprep.mubr.f32.mxu0 0.0
        %3697 = vmatmul.mubr.f32.gmra.mrb[0].mxu0 %v3574
        %v3698 = vpop.f32.mrb[0].mxu0
        %v3699 = vadd.f32 0.0, %v3698
        %v3700 = vpop.f32.mrb[0].mxu0
        %3701 = vmatprep.mubr.f32.mxu0 0.0
        %3702 = vmatmul.mubr.f32.gmra.mrb[0].mxu0 %v3577
        %v3703 = vpop.f32.mrb[0].mxu0
        %v3704 = vadd.f32 0.0, %v3703
        %v3705 = vpop.f32.mrb[0].mxu0
        %3706 = vmatprep.mubr.f32.mxu0 0.0
        %3707 = vmatmul.mubr.f32.gmra.mrb[0].mxu0 %v3580
        %v3708 = vpop.f32.mrb[0].mxu0
        %v3709 = vadd.f32 0.0, %v3708
        %v3710 = vpop.f32.mrb[0].mxu0
        %3711 = vdwg.mxu0
        %v3712 = vadd.f32 %v3515, %v3649
        %v3713 = vadd.f32 %v3516, %v3654
        %v3714 = vadd.f32 %v3517, %v3659
        %v3715 = vadd.f32 %v3518, %v3664
        %v3716 = vadd.f32 %v3519, %v3669
        %v3717 = vadd.f32 %v3520, %v3674
        %v3718 = vadd.f32 %v3521, %v3679
        %v3719 = vadd.f32 %v3522, %v3684
        %v3720 = vadd.f32 %v3523, %v3689
        %v3721 = vadd.f32 %v3524, %v3694
        %v3722 = vadd.f32 %v3525, %v3699
        %v3723 = vadd.f32 %v3526, %v3704
        %v3724 = vadd.f32 %v3527, %v3709
        %3725 = vst [vmem:[#allocation2] sm:$0xff] %v3712
        %3726 = vst [vmem:[#allocation2 + $0x8] sm:$0xff] %v3713
        %3727 = vst [vmem:[#allocation2 + $0x10] sm:$0xff] %v3714
        %3728 = vst [vmem:[#allocation2 + $0x18] sm:$0xff] %v3715
        %3729 = vst [vmem:[#allocation2 + $0x20] sm:$0xff] %v3716
        %3730 = vst [vmem:[#allocation2 + $0x28] sm:$0xff] %v3717
        %3731 = vst [vmem:[#allocation2 + $0x30] sm:$0xff] %v3718
        %3732 = vst [vmem:[#allocation2 + $0x38] sm:$0xff] %v3719
        %3733 = vst [vmem:[#allocation2 + $0x40] sm:$0xff] %v3720
        %3734 = vst [vmem:[#allocation2 + $0x48] sm:$0xff] %v3721
        %3735 = vst [vmem:[#allocation2 + $0x50] sm:$0xff] %v3722
        %3736 = vst [vmem:[#allocation2 + $0x58] sm:$0xff] %v3723
        %3737 = vst [vmem:[#allocation2 + $0x60] sm:$0xff] %v3724
        %v3738 = vld [vmem:[#allocation2] sm:$0xff]
        %v3739 = vld [vmem:[#allocation2 + $0x8] sm:$0xff]
        %v3740 = vld [vmem:[#allocation2 + $0x10] sm:$0xff]
        %v3741 = vld [vmem:[#allocation2 + $0x18] sm:$0xff]
        %v3742 = vld [vmem:[#allocation2 + $0x20] sm:$0xff]
        %v3743 = vld [vmem:[#allocation2 + $0x28] sm:$0xff]
        %v3744 = vld [vmem:[#allocation2 + $0x30] sm:$0xff]
        %v3745 = vld [vmem:[#allocation2 + $0x38] sm:$0xff]
        %v3746 = vld [vmem:[#allocation2 + $0x40] sm:$0xff]
        %v3747 = vld [vmem:[#allocation2 + $0x48] sm:$0xff]
        %v3748 = vld [vmem:[#allocation2 + $0x50] sm:$0xff]
        %v3749 = vld [vmem:[#allocation2 + $0x58] sm:$0xff]
        %v3750 = vld [vmem:[#allocation2 + $0x60] sm:$0xff]
        %v3751 = vld [vmem:[%s195 + $0x10] sm:$0xff]
        %v3752 = vld [vmem:[%s195 + $0x18] sm:$0xff]
        %v3753 = vld [vmem:[%s195 + $0x20] sm:$0xff]
        %v3754 = vld [vmem:[%s195 + $0x28] sm:$0xff]
        %v3755 = vld [vmem:[%s195 + $0x30] sm:$0xff]
        %v3756 = vld [vmem:[%s195 + $0x38] sm:$0xff]
        %v3757 = vld [vmem:[%s195 + $0x40] sm:$0xff]
        %v3758 = vld [vmem:[%s195 + $0x48] sm:$0xff]
        %v3759 = vld [vmem:[%s195 + $0x50] sm:$0xff]
        %v3760 = vld [vmem:[%s195 + $0x58] sm:$0xff]
        %v3761 = vld [vmem:[%s195 + $0x60] sm:$0xff]
        %v3762 = vld [vmem:[%s195 + $0x68] sm:$0xff]
        %v3763 = vld [vmem:[%s195 + $0x70] sm:$0xff]
        %s3764 = scalar_lea.vmem %s1, 128
        %v3765 = vld [vmem:[%s3764] sm:$0xff]
        %v3767 = vsel %vm210, %v3751, 0
        %v3770 = vsel %vm210, %v3752, 0
        %v3773 = vsel %vm210, %v3753, 0
        %v3776 = vsel %vm210, %v3754, 0
        %v3779 = vsel %vm210, %v3755, 0
        %v3782 = vsel %vm210, %v3756, 0
        %v3785 = vsel %vm210, %v3757, 0
        %v3788 = vsel %vm210, %v3758, 0
        %v3791 = vsel %vm210, %v3759, 0
        %v3794 = vsel %vm210, %v3760, 0
        %v3797 = vsel %vm210, %v3761, 0
        %v3800 = vsel %vm210, %v3762, 0
        %v3803 = vsel %vm210, %v3763, 0
        %3805 = vmatprep.subr.mxu0 0.0
        %3806 = vmatpush1.msra.mxu0 %v3765
        %3807 = vmatprep.subr.mxu0 0.0
        %3808 = vmatpush1.msra.mxu0 0.0
        %3809 = vmatprep.subr.mxu0 0.0
        %3810 = vmatpush1.msra.mxu0 0.0
        %3811 = vmatprep.subr.mxu0 0.0
        %3812 = vmatpush1.msra.mxu0 0.0
        %3813 = vmatprep.subr.mxu0 0.0
        %3814 = vmatpush1.msra.mxu0 0.0
        %3815 = vmatprep.subr.mxu0 0.0
        %3816 = vmatpush1.msra.mxu0 0.0
        %3817 = vmatprep.subr.mxu0 0.0
        %3818 = vmatpush1.msra.mxu0 0.0
        %3819 = vmatprep.subr.mxu0 0.0
        %3820 = vmatpush1.msra.mxu0 0.0
        %3821 = vmatprep.subr.mxu0 0.0
        %3822 = vmatpush1.msra.mxu0 0.0
        %3823 = vmatprep.subr.mxu0 0.0
        %3824 = vmatpush1.msra.mxu0 0.0
        %3825 = vmatprep.subr.mxu0 0.0
        %3826 = vmatpush1.msra.mxu0 0.0
        %3827 = vmatprep.subr.mxu0 0.0
        %3828 = vmatpush1.msra.mxu0 0.0
        %3829 = vmatprep.subr.mxu0 0.0
        %3830 = vmatpush1.msra.mxu0 0.0
        %3831 = vmatprep.subr.mxu0 0.0
        %3832 = vmatpush1.msra.mxu0 0.0
        %3833 = vmatprep.subr.mxu0 0.0
        %3834 = vmatpush1.msra.mxu0 0.0
        %3835 = vmatprep.subr.mxu0 0.0
        %3836 = vmatpush1.msra.mxu0 0.0
        %3837 = vmatprep.subr.mxu0 0.0
        %3838 = vmatpush1.msra.mxu0 0.0
        %3839 = vmatprep.subr.mxu0 0.0
        %3840 = vmatpush1.msra.mxu0 0.0
        %3841 = vmatprep.subr.mxu0 0.0
        %3842 = vmatpush1.msra.mxu0 0.0
        %3843 = vmatprep.subr.mxu0 0.0
        %3844 = vmatpush1.msra.mxu0 0.0
        %3845 = vmatprep.subr.mxu0 0.0
        %3846 = vmatpush1.msra.mxu0 0.0
        %3847 = vmatprep.subr.mxu0 0.0
        %3848 = vmatpush1.msra.mxu0 0.0
        %3849 = vmatprep.subr.mxu0 0.0
        %3850 = vmatpush1.msra.mxu0 0.0
        %3851 = vmatprep.subr.mxu0 0.0
        %3852 = vmatpush1.msra.mxu0 0.0
        %3853 = vmatprep.subr.mxu0 0.0
        %3854 = vmatpush1.msra.mxu0 0.0
        %3855 = vmatprep.subr.mxu0 0.0
        %3856 = vmatpush1.msra.mxu0 0.0
        %3857 = vmatprep.subr.mxu0 0.0
        %3858 = vmatpush1.msra.mxu0 0.0
        %3859 = vmatprep.subr.mxu0 0.0
        %3860 = vmatpush1.msra.mxu0 0.0
        %3861 = vmatprep.subr.mxu0 0.0
        %3862 = vmatpush1.msra.mxu0 0.0
        %3863 = vmatprep.subr.mxu0 0.0
        %3864 = vmatpush1.msra.mxu0 0.0
        %3865 = vmatprep.subr.mxu0 0.0
        %3866 = vmatpush1.msra.mxu0 0.0
        %3867 = vmatprep.subr.mxu0 0.0
        %3868 = vmatpush1.msra.mxu0 0.0
        %3869 = vmatprep.mubr.f32.mxu0 0.0
        %3870 = vmatmul.mubr.f32.gmra.mrb[0].mxu0 %v3767
        %v3871 = vpop.f32.mrb[0].mxu0
        %v3872 = vadd.f32 0.0, %v3871
        %v3873 = vpop.f32.mrb[0].mxu0
        %3874 = vmatprep.mubr.f32.mxu0 0.0
        %3875 = vmatmul.mubr.f32.gmra.mrb[0].mxu0 %v3770
        %v3876 = vpop.f32.mrb[0].mxu0
        %v3877 = vadd.f32 0.0, %v3876
        %v3878 = vpop.f32.mrb[0].mxu0
        %3879 = vmatprep.mubr.f32.mxu0 0.0
        %3880 = vmatmul.mubr.f32.gmra.mrb[0].mxu0 %v3773
        %v3881 = vpop.f32.mrb[0].mxu0
        %v3882 = vadd.f32 0.0, %v3881
        %v3883 = vpop.f32.mrb[0].mxu0
        %3884 = vmatprep.mubr.f32.mxu0 0.0
        %3885 = vmatmul.mubr.f32.gmra.mrb[0].mxu0 %v3776
        %v3886 = vpop.f32.mrb[0].mxu0
        %v3887 = vadd.f32 0.0, %v3886
        %v3888 = vpop.f32.mrb[0].mxu0
        %3889 = vmatprep.mubr.f32.mxu0 0.0
        %3890 = vmatmul.mubr.f32.gmra.mrb[0].mxu0 %v3779
        %v3891 = vpop.f32.mrb[0].mxu0
        %v3892 = vadd.f32 0.0, %v3891
        %v3893 = vpop.f32.mrb[0].mxu0
        %3894 = vmatprep.mubr.f32.mxu0 0.0
        %3895 = vmatmul.mubr.f32.gmra.mrb[0].mxu0 %v3782
        %v3896 = vpop.f32.mrb[0].mxu0
        %v3897 = vadd.f32 0.0, %v3896
        %v3898 = vpop.f32.mrb[0].mxu0
        %3899 = vmatprep.mubr.f32.mxu0 0.0
        %3900 = vmatmul.mubr.f32.gmra.mrb[0].mxu0 %v3785
        %v3901 = vpop.f32.mrb[0].mxu0
        %v3902 = vadd.f32 0.0, %v3901
        %v3903 = vpop.f32.mrb[0].mxu0
        %3904 = vmatprep.mubr.f32.mxu0 0.0
        %3905 = vmatmul.mubr.f32.gmra.mrb[0].mxu0 %v3788
        %v3906 = vpop.f32.mrb[0].mxu0
        %v3907 = vadd.f32 0.0, %v3906
        %v3908 = vpop.f32.mrb[0].mxu0
        %3909 = vmatprep.mubr.f32.mxu0 0.0
        %3910 = vmatmul.mubr.f32.gmra.mrb[0].mxu0 %v3791
        %v3911 = vpop.f32.mrb[0].mxu0
        %v3912 = vadd.f32 0.0, %v3911
        %v3913 = vpop.f32.mrb[0].mxu0
        %3914 = vmatprep.mubr.f32.mxu0 0.0
        %3915 = vmatmul.mubr.f32.gmra.mrb[0].mxu0 %v3794
        %v3916 = vpop.f32.mrb[0].mxu0
        %v3917 = vadd.f32 0.0, %v3916
        %v3918 = vpop.f32.mrb[0].mxu0
        %3919 = vmatprep.mubr.f32.mxu0 0.0
        %3920 = vmatmul.mubr.f32.gmra.mrb[0].mxu0 %v3797
        %v3921 = vpop.f32.mrb[0].mxu0
        %v3922 = vadd.f32 0.0, %v3921
        %v3923 = vpop.f32.mrb[0].mxu0
        %3924 = vmatprep.mubr.f32.mxu0 0.0
        %3925 = vmatmul.mubr.f32.gmra.mrb[0].mxu0 %v3800
        %v3926 = vpop.f32.mrb[0].mxu0
        %v3927 = vadd.f32 0.0, %v3926
        %v3928 = vpop.f32.mrb[0].mxu0
        %3929 = vmatprep.mubr.f32.mxu0 0.0
        %3930 = vmatmul.mubr.f32.gmra.mrb[0].mxu0 %v3803
        %v3931 = vpop.f32.mrb[0].mxu0
        %v3932 = vadd.f32 0.0, %v3931
        %v3933 = vpop.f32.mrb[0].mxu0
        %3934 = vdwg.mxu0
        %v3935 = vadd.f32 %v3738, %v3872
        %v3936 = vadd.f32 %v3739, %v3877
        %v3937 = vadd.f32 %v3740, %v3882
        %v3938 = vadd.f32 %v3741, %v3887
        %v3939 = vadd.f32 %v3742, %v3892
        %v3940 = vadd.f32 %v3743, %v3897
        %v3941 = vadd.f32 %v3744, %v3902
        %v3942 = vadd.f32 %v3745, %v3907
        %v3943 = vadd.f32 %v3746, %v3912
        %v3944 = vadd.f32 %v3747, %v3917
        %v3945 = vadd.f32 %v3748, %v3922
        %v3946 = vadd.f32 %v3749, %v3927
        %v3947 = vadd.f32 %v3750, %v3932
        %3948 = vst [vmem:[#allocation2] sm:$0xff] %v3935
        %3949 = vst [vmem:[#allocation2 + $0x8] sm:$0xff] %v3936
        %3950 = vst [vmem:[#allocation2 + $0x10] sm:$0xff] %v3937
        %3951 = vst [vmem:[#allocation2 + $0x18] sm:$0xff] %v3938
        %3952 = vst [vmem:[#allocation2 + $0x20] sm:$0xff] %v3939
        %3953 = vst [vmem:[#allocation2 + $0x28] sm:$0xff] %v3940
        %3954 = vst [vmem:[#allocation2 + $0x30] sm:$0xff] %v3941
        %3955 = vst [vmem:[#allocation2 + $0x38] sm:$0xff] %v3942
        %3956 = vst [vmem:[#allocation2 + $0x40] sm:$0xff] %v3943
        %3957 = vst [vmem:[#allocation2 + $0x48] sm:$0xff] %v3944
        %3958 = vst [vmem:[#allocation2 + $0x50] sm:$0xff] %v3945
        %3959 = vst [vmem:[#allocation2 + $0x58] sm:$0xff] %v3946
        %3960 = vst [vmem:[#allocation2 + $0x60] sm:$0xff] %v3947
        %v3961 = vld [vmem:[#allocation2] sm:$0xff]
        %v3962 = vld [vmem:[#allocation2 + $0x8] sm:$0xff]
        %v3963 = vld [vmem:[#allocation2 + $0x10] sm:$0xff]
        %v3964 = vld [vmem:[#allocation2 + $0x18] sm:$0xff]
        %v3965 = vld [vmem:[#allocation2 + $0x20] sm:$0xff]
        %v3966 = vld [vmem:[#allocation2 + $0x28] sm:$0xff]
        %v3967 = vld [vmem:[#allocation2 + $0x30] sm:$0xff]
        %v3968 = vld [vmem:[#allocation2 + $0x38] sm:$0xff]
        %v3969 = vld [vmem:[#allocation2 + $0x40] sm:$0xff]
        %v3970 = vld [vmem:[#allocation2 + $0x48] sm:$0xff]
        %v3971 = vld [vmem:[#allocation2 + $0x50] sm:$0xff]
        %v3972 = vld [vmem:[#allocation2 + $0x58] sm:$0xff]
        %v3973 = vld [vmem:[#allocation2 + $0x60] sm:$0xff]
        %v3974 = vld [vmem:[%s195 + $0x11] sm:$0xff]
        %v3975 = vld [vmem:[%s195 + $0x19] sm:$0xff]
        %v3976 = vld [vmem:[%s195 + $0x21] sm:$0xff]
        %v3977 = vld [vmem:[%s195 + $0x29] sm:$0xff]
        %v3978 = vld [vmem:[%s195 + $0x31] sm:$0xff]
        %v3979 = vld [vmem:[%s195 + $0x39] sm:$0xff]
        %v3980 = vld [vmem:[%s195 + $0x41] sm:$0xff]
        %v3981 = vld [vmem:[%s195 + $0x49] sm:$0xff]
        %v3982 = vld [vmem:[%s195 + $0x51] sm:$0xff]
        %v3983 = vld [vmem:[%s195 + $0x59] sm:$0xff]
        %v3984 = vld [vmem:[%s195 + $0x61] sm:$0xff]
        %v3985 = vld [vmem:[%s195 + $0x69] sm:$0xff]
        %v3986 = vld [vmem:[%s195 + $0x71] sm:$0xff]
        %s3987 = scalar_lea.vmem %s1, 136
        %v3988 = vld [vmem:[%s3987] sm:$0xff]
        %v3990 = vsel %vm210, %v3974, 0
        %v3993 = vsel %vm210, %v3975, 0
        %v3996 = vsel %vm210, %v3976, 0
        %v3999 = vsel %vm210, %v3977, 0
        %v4002 = vsel %vm210, %v3978, 0
        %v4005 = vsel %vm210, %v3979, 0
        %v4008 = vsel %vm210, %v3980, 0
        %v4011 = vsel %vm210, %v3981, 0
        %v4014 = vsel %vm210, %v3982, 0
        %v4017 = vsel %vm210, %v3983, 0
        %v4020 = vsel %vm210, %v3984, 0
        %v4023 = vsel %vm210, %v3985, 0
        %v4026 = vsel %vm210, %v3986, 0
        %4028 = vmatprep.subr.mxu0 0.0
        %4029 = vmatpush1.msra.mxu0 %v3988
        %4030 = vmatprep.subr.mxu0 0.0
        %4031 = vmatpush1.msra.mxu0 0.0
        %4032 = vmatprep.subr.mxu0 0.0
        %4033 = vmatpush1.msra.mxu0 0.0
        %4034 = vmatprep.subr.mxu0 0.0
        %4035 = vmatpush1.msra.mxu0 0.0
        %4036 = vmatprep.subr.mxu0 0.0
        %4037 = vmatpush1.msra.mxu0 0.0
        %4038 = vmatprep.subr.mxu0 0.0
        %4039 = vmatpush1.msra.mxu0 0.0
        %4040 = vmatprep.subr.mxu0 0.0
        %4041 = vmatpush1.msra.mxu0 0.0
        %4042 = vmatprep.subr.mxu0 0.0
        %4043 = vmatpush1.msra.mxu0 0.0
        %4044 = vmatprep.subr.mxu0 0.0
        %4045 = vmatpush1.msra.mxu0 0.0
        %4046 = vmatprep.subr.mxu0 0.0
        %4047 = vmatpush1.msra.mxu0 0.0
        %4048 = vmatprep.subr.mxu0 0.0
        %4049 = vmatpush1.msra.mxu0 0.0
        %4050 = vmatprep.subr.mxu0 0.0
        %4051 = vmatpush1.msra.mxu0 0.0
        %4052 = vmatprep.subr.mxu0 0.0
        %4053 = vmatpush1.msra.mxu0 0.0
        %4054 = vmatprep.subr.mxu0 0.0
        %4055 = vmatpush1.msra.mxu0 0.0
        %4056 = vmatprep.subr.mxu0 0.0
        %4057 = vmatpush1.msra.mxu0 0.0
        %4058 = vmatprep.subr.mxu0 0.0
        %4059 = vmatpush1.msra.mxu0 0.0
        %4060 = vmatprep.subr.mxu0 0.0
        %4061 = vmatpush1.msra.mxu0 0.0
        %4062 = vmatprep.subr.mxu0 0.0
        %4063 = vmatpush1.msra.mxu0 0.0
        %4064 = vmatprep.subr.mxu0 0.0
        %4065 = vmatpush1.msra.mxu0 0.0
        %4066 = vmatprep.subr.mxu0 0.0
        %4067 = vmatpush1.msra.mxu0 0.0
        %4068 = vmatprep.subr.mxu0 0.0
        %4069 = vmatpush1.msra.mxu0 0.0
        %4070 = vmatprep.subr.mxu0 0.0
        %4071 = vmatpush1.msra.mxu0 0.0
        %4072 = vmatprep.subr.mxu0 0.0
        %4073 = vmatpush1.msra.mxu0 0.0
        %4074 = vmatprep.subr.mxu0 0.0
        %4075 = vmatpush1.msra.mxu0 0.0
        %4076 = vmatprep.subr.mxu0 0.0
        %4077 = vmatpush1.msra.mxu0 0.0
        %4078 = vmatprep.subr.mxu0 0.0
        %4079 = vmatpush1.msra.mxu0 0.0
        %4080 = vmatprep.subr.mxu0 0.0
        %4081 = vmatpush1.msra.mxu0 0.0
        %4082 = vmatprep.subr.mxu0 0.0
        %4083 = vmatpush1.msra.mxu0 0.0
        %4084 = vmatprep.subr.mxu0 0.0
        %4085 = vmatpush1.msra.mxu0 0.0
        %4086 = vmatprep.subr.mxu0 0.0
        %4087 = vmatpush1.msra.mxu0 0.0
        %4088 = vmatprep.subr.mxu0 0.0
        %4089 = vmatpush1.msra.mxu0 0.0
        %4090 = vmatprep.subr.mxu0 0.0
        %4091 = vmatpush1.msra.mxu0 0.0
        %4092 = vmatprep.mubr.f32.mxu0 0.0
        %4093 = vmatmul.mubr.f32.gmra.mrb[0].mxu0 %v3990
        %v4094 = vpop.f32.mrb[0].mxu0
        %v4095 = vadd.f32 0.0, %v4094
        %v4096 = vpop.f32.mrb[0].mxu0
        %4097 = vmatprep.mubr.f32.mxu0 0.0
        %4098 = vmatmul.mubr.f32.gmra.mrb[0].mxu0 %v3993
        %v4099 = vpop.f32.mrb[0].mxu0
        %v4100 = vadd.f32 0.0, %v4099
        %v4101 = vpop.f32.mrb[0].mxu0
        %4102 = vmatprep.mubr.f32.mxu0 0.0
        %4103 = vmatmul.mubr.f32.gmra.mrb[0].mxu0 %v3996
        %v4104 = vpop.f32.mrb[0].mxu0
        %v4105 = vadd.f32 0.0, %v4104
        %v4106 = vpop.f32.mrb[0].mxu0
        %4107 = vmatprep.mubr.f32.mxu0 0.0
        %4108 = vmatmul.mubr.f32.gmra.mrb[0].mxu0 %v3999
        %v4109 = vpop.f32.mrb[0].mxu0
        %v4110 = vadd.f32 0.0, %v4109
        %v4111 = vpop.f32.mrb[0].mxu0
        %4112 = vmatprep.mubr.f32.mxu0 0.0
        %4113 = vmatmul.mubr.f32.gmra.mrb[0].mxu0 %v4002
        %v4114 = vpop.f32.mrb[0].mxu0
        %v4115 = vadd.f32 0.0, %v4114
        %v4116 = vpop.f32.mrb[0].mxu0
        %4117 = vmatprep.mubr.f32.mxu0 0.0
        %4118 = vmatmul.mubr.f32.gmra.mrb[0].mxu0 %v4005
        %v4119 = vpop.f32.mrb[0].mxu0
        %v4120 = vadd.f32 0.0, %v4119
        %v4121 = vpop.f32.mrb[0].mxu0
        %4122 = vmatprep.mubr.f32.mxu0 0.0
        %4123 = vmatmul.mubr.f32.gmra.mrb[0].mxu0 %v4008
        %v4124 = vpop.f32.mrb[0].mxu0
        %v4125 = vadd.f32 0.0, %v4124
        %v4126 = vpop.f32.mrb[0].mxu0
        %4127 = vmatprep.mubr.f32.mxu0 0.0
        %4128 = vmatmul.mubr.f32.gmra.mrb[0].mxu0 %v4011
        %v4129 = vpop.f32.mrb[0].mxu0
        %v4130 = vadd.f32 0.0, %v4129
        %v4131 = vpop.f32.mrb[0].mxu0
        %4132 = vmatprep.mubr.f32.mxu0 0.0
        %4133 = vmatmul.mubr.f32.gmra.mrb[0].mxu0 %v4014
        %v4134 = vpop.f32.mrb[0].mxu0
        %v4135 = vadd.f32 0.0, %v4134
        %v4136 = vpop.f32.mrb[0].mxu0
        %4137 = vmatprep.mubr.f32.mxu0 0.0
        %4138 = vmatmul.mubr.f32.gmra.mrb[0].mxu0 %v4017
        %v4139 = vpop.f32.mrb[0].mxu0
        %v4140 = vadd.f32 0.0, %v4139
        %v4141 = vpop.f32.mrb[0].mxu0
        %4142 = vmatprep.mubr.f32.mxu0 0.0
        %4143 = vmatmul.mubr.f32.gmra.mrb[0].mxu0 %v4020
        %v4144 = vpop.f32.mrb[0].mxu0
        %v4145 = vadd.f32 0.0, %v4144
        %v4146 = vpop.f32.mrb[0].mxu0
        %4147 = vmatprep.mubr.f32.mxu0 0.0
        %4148 = vmatmul.mubr.f32.gmra.mrb[0].mxu0 %v4023
        %v4149 = vpop.f32.mrb[0].mxu0
        %v4150 = vadd.f32 0.0, %v4149
        %v4151 = vpop.f32.mrb[0].mxu0
        %4152 = vmatprep.mubr.f32.mxu0 0.0
        %4153 = vmatmul.mubr.f32.gmra.mrb[0].mxu0 %v4026
        %v4154 = vpop.f32.mrb[0].mxu0
        %v4155 = vadd.f32 0.0, %v4154
        %v4156 = vpop.f32.mrb[0].mxu0
        %4157 = vdwg.mxu0
        %v4158 = vadd.f32 %v3961, %v4095
        %v4159 = vadd.f32 %v3962, %v4100
        %v4160 = vadd.f32 %v3963, %v4105
        %v4161 = vadd.f32 %v3964, %v4110
        %v4162 = vadd.f32 %v3965, %v4115
        %v4163 = vadd.f32 %v3966, %v4120
        %v4164 = vadd.f32 %v3967, %v4125
        %v4165 = vadd.f32 %v3968, %v4130
        %v4166 = vadd.f32 %v3969, %v4135
        %v4167 = vadd.f32 %v3970, %v4140
        %v4168 = vadd.f32 %v3971, %v4145
        %v4169 = vadd.f32 %v3972, %v4150
        %v4170 = vadd.f32 %v3973, %v4155
        %4171 = vst [vmem:[#allocation2] sm:$0xff] %v4158
        %4172 = vst [vmem:[#allocation2 + $0x8] sm:$0xff] %v4159
        %4173 = vst [vmem:[#allocation2 + $0x10] sm:$0xff] %v4160
        %4174 = vst [vmem:[#allocation2 + $0x18] sm:$0xff] %v4161
        %4175 = vst [vmem:[#allocation2 + $0x20] sm:$0xff] %v4162
        %4176 = vst [vmem:[#allocation2 + $0x28] sm:$0xff] %v4163
        %4177 = vst [vmem:[#allocation2 + $0x30] sm:$0xff] %v4164
        %4178 = vst [vmem:[#allocation2 + $0x38] sm:$0xff] %v4165
        %4179 = vst [vmem:[#allocation2 + $0x40] sm:$0xff] %v4166
        %4180 = vst [vmem:[#allocation2 + $0x48] sm:$0xff] %v4167
        %4181 = vst [vmem:[#allocation2 + $0x50] sm:$0xff] %v4168
        %4182 = vst [vmem:[#allocation2 + $0x58] sm:$0xff] %v4169
        %4183 = vst [vmem:[#allocation2 + $0x60] sm:$0xff] %v4170
        %v4184 = vld [vmem:[#allocation2] sm:$0xff]
        %v4185 = vld [vmem:[#allocation2 + $0x8] sm:$0xff]
        %v4186 = vld [vmem:[#allocation2 + $0x10] sm:$0xff]
        %v4187 = vld [vmem:[#allocation2 + $0x18] sm:$0xff]
        %v4188 = vld [vmem:[#allocation2 + $0x20] sm:$0xff]
        %v4189 = vld [vmem:[#allocation2 + $0x28] sm:$0xff]
        %v4190 = vld [vmem:[#allocation2 + $0x30] sm:$0xff]
        %v4191 = vld [vmem:[#allocation2 + $0x38] sm:$0xff]
        %v4192 = vld [vmem:[#allocation2 + $0x40] sm:$0xff]
        %v4193 = vld [vmem:[#allocation2 + $0x48] sm:$0xff]
        %v4194 = vld [vmem:[#allocation2 + $0x50] sm:$0xff]
        %v4195 = vld [vmem:[#allocation2 + $0x58] sm:$0xff]
        %v4196 = vld [vmem:[#allocation2 + $0x60] sm:$0xff]
        %v4197 = vld [vmem:[%s195 + $0x12] sm:$0xff]
        %v4198 = vld [vmem:[%s195 + $0x1a] sm:$0xff]
        %v4199 = vld [vmem:[%s195 + $0x22] sm:$0xff]
        %v4200 = vld [vmem:[%s195 + $0x2a] sm:$0xff]
        %v4201 = vld [vmem:[%s195 + $0x32] sm:$0xff]
        %v4202 = vld [vmem:[%s195 + $0x3a] sm:$0xff]
        %v4203 = vld [vmem:[%s195 + $0x42] sm:$0xff]
        %v4204 = vld [vmem:[%s195 + $0x4a] sm:$0xff]
        %v4205 = vld [vmem:[%s195 + $0x52] sm:$0xff]
        %v4206 = vld [vmem:[%s195 + $0x5a] sm:$0xff]
        %v4207 = vld [vmem:[%s195 + $0x62] sm:$0xff]
        %v4208 = vld [vmem:[%s195 + $0x6a] sm:$0xff]
        %v4209 = vld [vmem:[%s195 + $0x72] sm:$0xff]
        %s4210 = scalar_lea.vmem %s1, 144
        %v4211 = vld [vmem:[%s4210] sm:$0xff]
        %v4213 = vsel %vm210, %v4197, 0
        %v4216 = vsel %vm210, %v4198, 0
        %v4219 = vsel %vm210, %v4199, 0
        %v4222 = vsel %vm210, %v4200, 0
        %v4225 = vsel %vm210, %v4201, 0
        %v4228 = vsel %vm210, %v4202, 0
        %v4231 = vsel %vm210, %v4203, 0
        %v4234 = vsel %vm210, %v4204, 0
        %v4237 = vsel %vm210, %v4205, 0
        %v4240 = vsel %vm210, %v4206, 0
        %v4243 = vsel %vm210, %v4207, 0
        %v4246 = vsel %vm210, %v4208, 0
        %v4249 = vsel %vm210, %v4209, 0
        %4251 = vmatprep.subr.mxu0 0.0
        %4252 = vmatpush1.msra.mxu0 %v4211
        %4253 = vmatprep.subr.mxu0 0.0
        %4254 = vmatpush1.msra.mxu0 0.0
        %4255 = vmatprep.subr.mxu0 0.0
        %4256 = vmatpush1.msra.mxu0 0.0
        %4257 = vmatprep.subr.mxu0 0.0
        %4258 = vmatpush1.msra.mxu0 0.0
        %4259 = vmatprep.subr.mxu0 0.0
        %4260 = vmatpush1.msra.mxu0 0.0
        %4261 = vmatprep.subr.mxu0 0.0
        %4262 = vmatpush1.msra.mxu0 0.0
        %4263 = vmatprep.subr.mxu0 0.0
        %4264 = vmatpush1.msra.mxu0 0.0
        %4265 = vmatprep.subr.mxu0 0.0
        %4266 = vmatpush1.msra.mxu0 0.0
        %4267 = vmatprep.subr.mxu0 0.0
        %4268 = vmatpush1.msra.mxu0 0.0
        %4269 = vmatprep.subr.mxu0 0.0
        %4270 = vmatpush1.msra.mxu0 0.0
        %4271 = vmatprep.subr.mxu0 0.0
        %4272 = vmatpush1.msra.mxu0 0.0
        %4273 = vmatprep.subr.mxu0 0.0
        %4274 = vmatpush1.msra.mxu0 0.0
        %4275 = vmatprep.subr.mxu0 0.0
        %4276 = vmatpush1.msra.mxu0 0.0
        %4277 = vmatprep.subr.mxu0 0.0
        %4278 = vmatpush1.msra.mxu0 0.0
        %4279 = vmatprep.subr.mxu0 0.0
        %4280 = vmatpush1.msra.mxu0 0.0
        %4281 = vmatprep.subr.mxu0 0.0
        %4282 = vmatpush1.msra.mxu0 0.0
        %4283 = vmatprep.subr.mxu0 0.0
        %4284 = vmatpush1.msra.mxu0 0.0
        %4285 = vmatprep.subr.mxu0 0.0
        %4286 = vmatpush1.msra.mxu0 0.0
        %4287 = vmatprep.subr.mxu0 0.0
        %4288 = vmatpush1.msra.mxu0 0.0
        %4289 = vmatprep.subr.mxu0 0.0
        %4290 = vmatpush1.msra.mxu0 0.0
        %4291 = vmatprep.subr.mxu0 0.0
        %4292 = vmatpush1.msra.mxu0 0.0
        %4293 = vmatprep.subr.mxu0 0.0
        %4294 = vmatpush1.msra.mxu0 0.0
        %4295 = vmatprep.subr.mxu0 0.0
        %4296 = vmatpush1.msra.mxu0 0.0
        %4297 = vmatprep.subr.mxu0 0.0
        %4298 = vmatpush1.msra.mxu0 0.0
        %4299 = vmatprep.subr.mxu0 0.0
        %4300 = vmatpush1.msra.mxu0 0.0
        %4301 = vmatprep.subr.mxu0 0.0
        %4302 = vmatpush1.msra.mxu0 0.0
        %4303 = vmatprep.subr.mxu0 0.0
        %4304 = vmatpush1.msra.mxu0 0.0
        %4305 = vmatprep.subr.mxu0 0.0
        %4306 = vmatpush1.msra.mxu0 0.0
        %4307 = vmatprep.subr.mxu0 0.0
        %4308 = vmatpush1.msra.mxu0 0.0
        %4309 = vmatprep.subr.mxu0 0.0
        %4310 = vmatpush1.msra.mxu0 0.0
        %4311 = vmatprep.subr.mxu0 0.0
        %4312 = vmatpush1.msra.mxu0 0.0
        %4313 = vmatprep.subr.mxu0 0.0
        %4314 = vmatpush1.msra.mxu0 0.0
        %4315 = vmatprep.mubr.f32.mxu0 0.0
        %4316 = vmatmul.mubr.f32.gmra.mrb[0].mxu0 %v4213
        %v4317 = vpop.f32.mrb[0].mxu0
        %v4318 = vadd.f32 0.0, %v4317
        %v4319 = vpop.f32.mrb[0].mxu0
        %4320 = vmatprep.mubr.f32.mxu0 0.0
        %4321 = vmatmul.mubr.f32.gmra.mrb[0].mxu0 %v4216
        %v4322 = vpop.f32.mrb[0].mxu0
        %v4323 = vadd.f32 0.0, %v4322
        %v4324 = vpop.f32.mrb[0].mxu0
        %4325 = vmatprep.mubr.f32.mxu0 0.0
        %4326 = vmatmul.mubr.f32.gmra.mrb[0].mxu0 %v4219
        %v4327 = vpop.f32.mrb[0].mxu0
        %v4328 = vadd.f32 0.0, %v4327
        %v4329 = vpop.f32.mrb[0].mxu0
        %4330 = vmatprep.mubr.f32.mxu0 0.0
        %4331 = vmatmul.mubr.f32.gmra.mrb[0].mxu0 %v4222
        %v4332 = vpop.f32.mrb[0].mxu0
        %v4333 = vadd.f32 0.0, %v4332
        %v4334 = vpop.f32.mrb[0].mxu0
        %4335 = vmatprep.mubr.f32.mxu0 0.0
        %4336 = vmatmul.mubr.f32.gmra.mrb[0].mxu0 %v4225
        %v4337 = vpop.f32.mrb[0].mxu0
        %v4338 = vadd.f32 0.0, %v4337
        %v4339 = vpop.f32.mrb[0].mxu0
        %4340 = vmatprep.mubr.f32.mxu0 0.0
        %4341 = vmatmul.mubr.f32.gmra.mrb[0].mxu0 %v4228
        %v4342 = vpop.f32.mrb[0].mxu0
        %v4343 = vadd.f32 0.0, %v4342
        %v4344 = vpop.f32.mrb[0].mxu0
        %4345 = vmatprep.mubr.f32.mxu0 0.0
        %4346 = vmatmul.mubr.f32.gmra.mrb[0].mxu0 %v4231
        %v4347 = vpop.f32.mrb[0].mxu0
        %v4348 = vadd.f32 0.0, %v4347
        %v4349 = vpop.f32.mrb[0].mxu0
        %4350 = vmatprep.mubr.f32.mxu0 0.0
        %4351 = vmatmul.mubr.f32.gmra.mrb[0].mxu0 %v4234
        %v4352 = vpop.f32.mrb[0].mxu0
        %v4353 = vadd.f32 0.0, %v4352
        %v4354 = vpop.f32.mrb[0].mxu0
        %4355 = vmatprep.mubr.f32.mxu0 0.0
        %4356 = vmatmul.mubr.f32.gmra.mrb[0].mxu0 %v4237
        %v4357 = vpop.f32.mrb[0].mxu0
        %v4358 = vadd.f32 0.0, %v4357
        %v4359 = vpop.f32.mrb[0].mxu0
        %4360 = vmatprep.mubr.f32.mxu0 0.0
        %4361 = vmatmul.mubr.f32.gmra.mrb[0].mxu0 %v4240
        %v4362 = vpop.f32.mrb[0].mxu0
        %v4363 = vadd.f32 0.0, %v4362
        %v4364 = vpop.f32.mrb[0].mxu0
        %4365 = vmatprep.mubr.f32.mxu0 0.0
        %4366 = vmatmul.mubr.f32.gmra.mrb[0].mxu0 %v4243
        %v4367 = vpop.f32.mrb[0].mxu0
        %v4368 = vadd.f32 0.0, %v4367
        %v4369 = vpop.f32.mrb[0].mxu0
        %4370 = vmatprep.mubr.f32.mxu0 0.0
        %4371 = vmatmul.mubr.f32.gmra.mrb[0].mxu0 %v4246
        %v4372 = vpop.f32.mrb[0].mxu0
        %v4373 = vadd.f32 0.0, %v4372
        %v4374 = vpop.f32.mrb[0].mxu0
        %4375 = vmatprep.mubr.f32.mxu0 0.0
        %4376 = vmatmul.mubr.f32.gmra.mrb[0].mxu0 %v4249
        %v4377 = vpop.f32.mrb[0].mxu0
        %v4378 = vadd.f32 0.0, %v4377
        %v4379 = vpop.f32.mrb[0].mxu0
        %4380 = vdwg.mxu0
        %v4381 = vadd.f32 %v4184, %v4318
        %v4382 = vadd.f32 %v4185, %v4323
        %v4383 = vadd.f32 %v4186, %v4328
        %v4384 = vadd.f32 %v4187, %v4333
        %v4385 = vadd.f32 %v4188, %v4338
        %v4386 = vadd.f32 %v4189, %v4343
        %v4387 = vadd.f32 %v4190, %v4348
        %v4388 = vadd.f32 %v4191, %v4353
        %v4389 = vadd.f32 %v4192, %v4358
        %v4390 = vadd.f32 %v4193, %v4363
        %v4391 = vadd.f32 %v4194, %v4368
        %v4392 = vadd.f32 %v4195, %v4373
        %v4393 = vadd.f32 %v4196, %v4378
        %4394 = vst [vmem:[#allocation2] sm:$0xff] %v4381
        %4395 = vst [vmem:[#allocation2 + $0x8] sm:$0xff] %v4382
        %4396 = vst [vmem:[#allocation2 + $0x10] sm:$0xff] %v4383
        %4397 = vst [vmem:[#allocation2 + $0x18] sm:$0xff] %v4384
        %4398 = vst [vmem:[#allocation2 + $0x20] sm:$0xff] %v4385
        %4399 = vst [vmem:[#allocation2 + $0x28] sm:$0xff] %v4386
        %4400 = vst [vmem:[#allocation2 + $0x30] sm:$0xff] %v4387
        %4401 = vst [vmem:[#allocation2 + $0x38] sm:$0xff] %v4388
        %4402 = vst [vmem:[#allocation2 + $0x40] sm:$0xff] %v4389
        %4403 = vst [vmem:[#allocation2 + $0x48] sm:$0xff] %v4390
        %4404 = vst [vmem:[#allocation2 + $0x50] sm:$0xff] %v4391
        %4405 = vst [vmem:[#allocation2 + $0x58] sm:$0xff] %v4392
        %4406 = vst [vmem:[#allocation2 + $0x60] sm:$0xff] %v4393
        %v4407 = vld [vmem:[#allocation2] sm:$0xff]
        %v4408 = vld [vmem:[#allocation2 + $0x8] sm:$0xff]
        %v4409 = vld [vmem:[#allocation2 + $0x10] sm:$0xff]
        %v4410 = vld [vmem:[#allocation2 + $0x18] sm:$0xff]
        %v4411 = vld [vmem:[#allocation2 + $0x20] sm:$0xff]
        %v4412 = vld [vmem:[#allocation2 + $0x28] sm:$0xff]
        %v4413 = vld [vmem:[#allocation2 + $0x30] sm:$0xff]
        %v4414 = vld [vmem:[#allocation2 + $0x38] sm:$0xff]
        %v4415 = vld [vmem:[#allocation2 + $0x40] sm:$0xff]
        %v4416 = vld [vmem:[#allocation2 + $0x48] sm:$0xff]
        %v4417 = vld [vmem:[#allocation2 + $0x50] sm:$0xff]
        %v4418 = vld [vmem:[#allocation2 + $0x58] sm:$0xff]
        %v4419 = vld [vmem:[#allocation2 + $0x60] sm:$0xff]
        %v4420 = vld [vmem:[%s195 + $0x13] sm:$0xff]
        %v4421 = vld [vmem:[%s195 + $0x1b] sm:$0xff]
        %v4422 = vld [vmem:[%s195 + $0x23] sm:$0xff]
        %v4423 = vld [vmem:[%s195 + $0x2b] sm:$0xff]
        %v4424 = vld [vmem:[%s195 + $0x33] sm:$0xff]
        %v4425 = vld [vmem:[%s195 + $0x3b] sm:$0xff]
        %v4426 = vld [vmem:[%s195 + $0x43] sm:$0xff]
        %v4427 = vld [vmem:[%s195 + $0x4b] sm:$0xff]
        %v4428 = vld [vmem:[%s195 + $0x53] sm:$0xff]
        %v4429 = vld [vmem:[%s195 + $0x5b] sm:$0xff]
        %v4430 = vld [vmem:[%s195 + $0x63] sm:$0xff]
        %v4431 = vld [vmem:[%s195 + $0x6b] sm:$0xff]
        %v4432 = vld [vmem:[%s195 + $0x73] sm:$0xff]
        %s4433 = scalar_lea.vmem %s1, 152
        %v4434 = vld [vmem:[%s4433] sm:$0xff]
        %v4436 = vsel %vm210, %v4420, 0
        %v4439 = vsel %vm210, %v4421, 0
        %v4442 = vsel %vm210, %v4422, 0
        %v4445 = vsel %vm210, %v4423, 0
        %v4448 = vsel %vm210, %v4424, 0
        %v4451 = vsel %vm210, %v4425, 0
        %v4454 = vsel %vm210, %v4426, 0
        %v4457 = vsel %vm210, %v4427, 0
        %v4460 = vsel %vm210, %v4428, 0
        %v4463 = vsel %vm210, %v4429, 0
        %v4466 = vsel %vm210, %v4430, 0
        %v4469 = vsel %vm210, %v4431, 0
        %v4472 = vsel %vm210, %v4432, 0
        %4474 = vmatprep.subr.mxu0 0.0
        %4475 = vmatpush1.msra.mxu0 %v4434
        %4476 = vmatprep.subr.mxu0 0.0
        %4477 = vmatpush1.msra.mxu0 0.0
        %4478 = vmatprep.subr.mxu0 0.0
        %4479 = vmatpush1.msra.mxu0 0.0
        %4480 = vmatprep.subr.mxu0 0.0
        %4481 = vmatpush1.msra.mxu0 0.0
        %4482 = vmatprep.subr.mxu0 0.0
        %4483 = vmatpush1.msra.mxu0 0.0
        %4484 = vmatprep.subr.mxu0 0.0
        %4485 = vmatpush1.msra.mxu0 0.0
        %4486 = vmatprep.subr.mxu0 0.0
        %4487 = vmatpush1.msra.mxu0 0.0
        %4488 = vmatprep.subr.mxu0 0.0
        %4489 = vmatpush1.msra.mxu0 0.0
        %4490 = vmatprep.subr.mxu0 0.0
        %4491 = vmatpush1.msra.mxu0 0.0
        %4492 = vmatprep.subr.mxu0 0.0
        %4493 = vmatpush1.msra.mxu0 0.0
        %4494 = vmatprep.subr.mxu0 0.0
        %4495 = vmatpush1.msra.mxu0 0.0
        %4496 = vmatprep.subr.mxu0 0.0
        %4497 = vmatpush1.msra.mxu0 0.0
        %4498 = vmatprep.subr.mxu0 0.0
        %4499 = vmatpush1.msra.mxu0 0.0
        %4500 = vmatprep.subr.mxu0 0.0
        %4501 = vmatpush1.msra.mxu0 0.0
        %4502 = vmatprep.subr.mxu0 0.0
        %4503 = vmatpush1.msra.mxu0 0.0
        %4504 = vmatprep.subr.mxu0 0.0
        %4505 = vmatpush1.msra.mxu0 0.0
        %4506 = vmatprep.subr.mxu0 0.0
        %4507 = vmatpush1.msra.mxu0 0.0
        %4508 = vmatprep.subr.mxu0 0.0
        %4509 = vmatpush1.msra.mxu0 0.0
        %4510 = vmatprep.subr.mxu0 0.0
        %4511 = vmatpush1.msra.mxu0 0.0
        %4512 = vmatprep.subr.mxu0 0.0
        %4513 = vmatpush1.msra.mxu0 0.0
        %4514 = vmatprep.subr.mxu0 0.0
        %4515 = vmatpush1.msra.mxu0 0.0
        %4516 = vmatprep.subr.mxu0 0.0
        %4517 = vmatpush1.msra.mxu0 0.0
        %4518 = vmatprep.subr.mxu0 0.0
        %4519 = vmatpush1.msra.mxu0 0.0
        %4520 = vmatprep.subr.mxu0 0.0
        %4521 = vmatpush1.msra.mxu0 0.0
        %4522 = vmatprep.subr.mxu0 0.0
        %4523 = vmatpush1.msra.mxu0 0.0
        %4524 = vmatprep.subr.mxu0 0.0
        %4525 = vmatpush1.msra.mxu0 0.0
        %4526 = vmatprep.subr.mxu0 0.0
        %4527 = vmatpush1.msra.mxu0 0.0
        %4528 = vmatprep.subr.mxu0 0.0
        %4529 = vmatpush1.msra.mxu0 0.0
        %4530 = vmatprep.subr.mxu0 0.0
        %4531 = vmatpush1.msra.mxu0 0.0
        %4532 = vmatprep.subr.mxu0 0.0
        %4533 = vmatpush1.msra.mxu0 0.0
        %4534 = vmatprep.subr.mxu0 0.0
        %4535 = vmatpush1.msra.mxu0 0.0
        %4536 = vmatprep.subr.mxu0 0.0
        %4537 = vmatpush1.msra.mxu0 0.0
        %4538 = vmatprep.mubr.f32.mxu0 0.0
        %4539 = vmatmul.mubr.f32.gmra.mrb[0].mxu0 %v4436
        %v4540 = vpop.f32.mrb[0].mxu0
        %v4541 = vadd.f32 0.0, %v4540
        %v4542 = vpop.f32.mrb[0].mxu0
        %4543 = vmatprep.mubr.f32.mxu0 0.0
        %4544 = vmatmul.mubr.f32.gmra.mrb[0].mxu0 %v4439
        %v4545 = vpop.f32.mrb[0].mxu0
        %v4546 = vadd.f32 0.0, %v4545
        %v4547 = vpop.f32.mrb[0].mxu0
        %4548 = vmatprep.mubr.f32.mxu0 0.0
        %4549 = vmatmul.mubr.f32.gmra.mrb[0].mxu0 %v4442
        %v4550 = vpop.f32.mrb[0].mxu0
        %v4551 = vadd.f32 0.0, %v4550
        %v4552 = vpop.f32.mrb[0].mxu0
        %4553 = vmatprep.mubr.f32.mxu0 0.0
        %4554 = vmatmul.mubr.f32.gmra.mrb[0].mxu0 %v4445
        %v4555 = vpop.f32.mrb[0].mxu0
        %v4556 = vadd.f32 0.0, %v4555
        %v4557 = vpop.f32.mrb[0].mxu0
        %4558 = vmatprep.mubr.f32.mxu0 0.0
        %4559 = vmatmul.mubr.f32.gmra.mrb[0].mxu0 %v4448
        %v4560 = vpop.f32.mrb[0].mxu0
        %v4561 = vadd.f32 0.0, %v4560
        %v4562 = vpop.f32.mrb[0].mxu0
        %4563 = vmatprep.mubr.f32.mxu0 0.0
        %4564 = vmatmul.mubr.f32.gmra.mrb[0].mxu0 %v4451
        %v4565 = vpop.f32.mrb[0].mxu0
        %v4566 = vadd.f32 0.0, %v4565
        %v4567 = vpop.f32.mrb[0].mxu0
        %4568 = vmatprep.mubr.f32.mxu0 0.0
        %4569 = vmatmul.mubr.f32.gmra.mrb[0].mxu0 %v4454
        %v4570 = vpop.f32.mrb[0].mxu0
        %v4571 = vadd.f32 0.0, %v4570
        %v4572 = vpop.f32.mrb[0].mxu0
        %4573 = vmatprep.mubr.f32.mxu0 0.0
        %4574 = vmatmul.mubr.f32.gmra.mrb[0].mxu0 %v4457
        %v4575 = vpop.f32.mrb[0].mxu0
        %v4576 = vadd.f32 0.0, %v4575
        %v4577 = vpop.f32.mrb[0].mxu0
        %4578 = vmatprep.mubr.f32.mxu0 0.0
        %4579 = vmatmul.mubr.f32.gmra.mrb[0].mxu0 %v4460
        %v4580 = vpop.f32.mrb[0].mxu0
        %v4581 = vadd.f32 0.0, %v4580
        %v4582 = vpop.f32.mrb[0].mxu0
        %4583 = vmatprep.mubr.f32.mxu0 0.0
        %4584 = vmatmul.mubr.f32.gmra.mrb[0].mxu0 %v4463
        %v4585 = vpop.f32.mrb[0].mxu0
        %v4586 = vadd.f32 0.0, %v4585
        %v4587 = vpop.f32.mrb[0].mxu0
        %4588 = vmatprep.mubr.f32.mxu0 0.0
        %4589 = vmatmul.mubr.f32.gmra.mrb[0].mxu0 %v4466
        %v4590 = vpop.f32.mrb[0].mxu0
        %v4591 = vadd.f32 0.0, %v4590
        %v4592 = vpop.f32.mrb[0].mxu0
        %4593 = vmatprep.mubr.f32.mxu0 0.0
        %4594 = vmatmul.mubr.f32.gmra.mrb[0].mxu0 %v4469
        %v4595 = vpop.f32.mrb[0].mxu0
        %v4596 = vadd.f32 0.0, %v4595
        %v4597 = vpop.f32.mrb[0].mxu0
        %4598 = vmatprep.mubr.f32.mxu0 0.0
        %4599 = vmatmul.mubr.f32.gmra.mrb[0].mxu0 %v4472
        %v4600 = vpop.f32.mrb[0].mxu0
        %v4601 = vadd.f32 0.0, %v4600
        %v4602 = vpop.f32.mrb[0].mxu0
        %4603 = vdwg.mxu0
        %v4604 = vadd.f32 %v4407, %v4541
        %v4605 = vadd.f32 %v4408, %v4546
        %v4606 = vadd.f32 %v4409, %v4551
        %v4607 = vadd.f32 %v4410, %v4556
        %v4608 = vadd.f32 %v4411, %v4561
        %v4609 = vadd.f32 %v4412, %v4566
        %v4610 = vadd.f32 %v4413, %v4571
        %v4611 = vadd.f32 %v4414, %v4576
        %v4612 = vadd.f32 %v4415, %v4581
        %v4613 = vadd.f32 %v4416, %v4586
        %v4614 = vadd.f32 %v4417, %v4591
        %v4615 = vadd.f32 %v4418, %v4596
        %v4616 = vadd.f32 %v4419, %v4601
        %4617 = vst [vmem:[#allocation2] sm:$0xff] %v4604
        %4618 = vst [vmem:[#allocation2 + $0x8] sm:$0xff] %v4605
        %4619 = vst [vmem:[#allocation2 + $0x10] sm:$0xff] %v4606
        %4620 = vst [vmem:[#allocation2 + $0x18] sm:$0xff] %v4607
        %4621 = vst [vmem:[#allocation2 + $0x20] sm:$0xff] %v4608
        %4622 = vst [vmem:[#allocation2 + $0x28] sm:$0xff] %v4609
        %4623 = vst [vmem:[#allocation2 + $0x30] sm:$0xff] %v4610
        %4624 = vst [vmem:[#allocation2 + $0x38] sm:$0xff] %v4611
        %4625 = vst [vmem:[#allocation2 + $0x40] sm:$0xff] %v4612
        %4626 = vst [vmem:[#allocation2 + $0x48] sm:$0xff] %v4613
        %4627 = vst [vmem:[#allocation2 + $0x50] sm:$0xff] %v4614
        %4628 = vst [vmem:[#allocation2 + $0x58] sm:$0xff] %v4615
        %4629 = vst [vmem:[#allocation2 + $0x60] sm:$0xff] %v4616
        %v4630 = vld [vmem:[#allocation2] sm:$0xff]
        %v4631 = vld [vmem:[#allocation2 + $0x8] sm:$0xff]
        %v4632 = vld [vmem:[#allocation2 + $0x10] sm:$0xff]
        %v4633 = vld [vmem:[#allocation2 + $0x18] sm:$0xff]
        %v4634 = vld [vmem:[#allocation2 + $0x20] sm:$0xff]
        %v4635 = vld [vmem:[#allocation2 + $0x28] sm:$0xff]
        %v4636 = vld [vmem:[#allocation2 + $0x30] sm:$0xff]
        %v4637 = vld [vmem:[#allocation2 + $0x38] sm:$0xff]
        %v4638 = vld [vmem:[#allocation2 + $0x40] sm:$0xff]
        %v4639 = vld [vmem:[#allocation2 + $0x48] sm:$0xff]
        %v4640 = vld [vmem:[#allocation2 + $0x50] sm:$0xff]
        %v4641 = vld [vmem:[#allocation2 + $0x58] sm:$0xff]
        %v4642 = vld [vmem:[#allocation2 + $0x60] sm:$0xff]
        %v4643 = vld [vmem:[%s195 + $0x14] sm:$0xff]
        %v4644 = vld [vmem:[%s195 + $0x1c] sm:$0xff]
        %v4645 = vld [vmem:[%s195 + $0x24] sm:$0xff]
        %v4646 = vld [vmem:[%s195 + $0x2c] sm:$0xff]
        %v4647 = vld [vmem:[%s195 + $0x34] sm:$0xff]
        %v4648 = vld [vmem:[%s195 + $0x3c] sm:$0xff]
        %v4649 = vld [vmem:[%s195 + $0x44] sm:$0xff]
        %v4650 = vld [vmem:[%s195 + $0x4c] sm:$0xff]
        %v4651 = vld [vmem:[%s195 + $0x54] sm:$0xff]
        %v4652 = vld [vmem:[%s195 + $0x5c] sm:$0xff]
        %v4653 = vld [vmem:[%s195 + $0x64] sm:$0xff]
        %v4654 = vld [vmem:[%s195 + $0x6c] sm:$0xff]
        %v4655 = vld [vmem:[%s195 + $0x74] sm:$0xff]
        %s4656 = scalar_lea.vmem %s1, 160
        %v4657 = vld [vmem:[%s4656] sm:$0xff]
        %v4659 = vsel %vm210, %v4643, 0
        %v4662 = vsel %vm210, %v4644, 0
        %v4665 = vsel %vm210, %v4645, 0
        %v4668 = vsel %vm210, %v4646, 0
        %v4671 = vsel %vm210, %v4647, 0
        %v4674 = vsel %vm210, %v4648, 0
        %v4677 = vsel %vm210, %v4649, 0
        %v4680 = vsel %vm210, %v4650, 0
        %v4683 = vsel %vm210, %v4651, 0
        %v4686 = vsel %vm210, %v4652, 0
        %v4689 = vsel %vm210, %v4653, 0
        %v4692 = vsel %vm210, %v4654, 0
        %v4695 = vsel %vm210, %v4655, 0
        %4697 = vmatprep.subr.mxu0 0.0
        %4698 = vmatpush1.msra.mxu0 %v4657
        %4699 = vmatprep.subr.mxu0 0.0
        %4700 = vmatpush1.msra.mxu0 0.0
        %4701 = vmatprep.subr.mxu0 0.0
        %4702 = vmatpush1.msra.mxu0 0.0
        %4703 = vmatprep.subr.mxu0 0.0
        %4704 = vmatpush1.msra.mxu0 0.0
        %4705 = vmatprep.subr.mxu0 0.0
        %4706 = vmatpush1.msra.mxu0 0.0
        %4707 = vmatprep.subr.mxu0 0.0
        %4708 = vmatpush1.msra.mxu0 0.0
        %4709 = vmatprep.subr.mxu0 0.0
        %4710 = vmatpush1.msra.mxu0 0.0
        %4711 = vmatprep.subr.mxu0 0.0
        %4712 = vmatpush1.msra.mxu0 0.0
        %4713 = vmatprep.subr.mxu0 0.0
        %4714 = vmatpush1.msra.mxu0 0.0
        %4715 = vmatprep.subr.mxu0 0.0
        %4716 = vmatpush1.msra.mxu0 0.0
        %4717 = vmatprep.subr.mxu0 0.0
        %4718 = vmatpush1.msra.mxu0 0.0
        %4719 = vmatprep.subr.mxu0 0.0
        %4720 = vmatpush1.msra.mxu0 0.0
        %4721 = vmatprep.subr.mxu0 0.0
        %4722 = vmatpush1.msra.mxu0 0.0
        %4723 = vmatprep.subr.mxu0 0.0
        %4724 = vmatpush1.msra.mxu0 0.0
        %4725 = vmatprep.subr.mxu0 0.0
        %4726 = vmatpush1.msra.mxu0 0.0
        %4727 = vmatprep.subr.mxu0 0.0
        %4728 = vmatpush1.msra.mxu0 0.0
        %4729 = vmatprep.subr.mxu0 0.0
        %4730 = vmatpush1.msra.mxu0 0.0
        %4731 = vmatprep.subr.mxu0 0.0
        %4732 = vmatpush1.msra.mxu0 0.0
        %4733 = vmatprep.subr.mxu0 0.0
        %4734 = vmatpush1.msra.mxu0 0.0
        %4735 = vmatprep.subr.mxu0 0.0
        %4736 = vmatpush1.msra.mxu0 0.0
        %4737 = vmatprep.subr.mxu0 0.0
        %4738 = vmatpush1.msra.mxu0 0.0
        %4739 = vmatprep.subr.mxu0 0.0
        %4740 = vmatpush1.msra.mxu0 0.0
        %4741 = vmatprep.subr.mxu0 0.0
        %4742 = vmatpush1.msra.mxu0 0.0
        %4743 = vmatprep.subr.mxu0 0.0
        %4744 = vmatpush1.msra.mxu0 0.0
        %4745 = vmatprep.subr.mxu0 0.0
        %4746 = vmatpush1.msra.mxu0 0.0
        %4747 = vmatprep.subr.mxu0 0.0
        %4748 = vmatpush1.msra.mxu0 0.0
        %4749 = vmatprep.subr.mxu0 0.0
        %4750 = vmatpush1.msra.mxu0 0.0
        %4751 = vmatprep.subr.mxu0 0.0
        %4752 = vmatpush1.msra.mxu0 0.0
        %4753 = vmatprep.subr.mxu0 0.0
        %4754 = vmatpush1.msra.mxu0 0.0
        %4755 = vmatprep.subr.mxu0 0.0
        %4756 = vmatpush1.msra.mxu0 0.0
        %4757 = vmatprep.subr.mxu0 0.0
        %4758 = vmatpush1.msra.mxu0 0.0
        %4759 = vmatprep.subr.mxu0 0.0
        %4760 = vmatpush1.msra.mxu0 0.0
        %4761 = vmatprep.mubr.f32.mxu0 0.0
        %4762 = vmatmul.mubr.f32.gmra.mrb[0].mxu0 %v4659
        %v4763 = vpop.f32.mrb[0].mxu0
        %v4764 = vadd.f32 0.0, %v4763
        %v4765 = vpop.f32.mrb[0].mxu0
        %4766 = vmatprep.mubr.f32.mxu0 0.0
        %4767 = vmatmul.mubr.f32.gmra.mrb[0].mxu0 %v4662
        %v4768 = vpop.f32.mrb[0].mxu0
        %v4769 = vadd.f32 0.0, %v4768
        %v4770 = vpop.f32.mrb[0].mxu0
        %4771 = vmatprep.mubr.f32.mxu0 0.0
        %4772 = vmatmul.mubr.f32.gmra.mrb[0].mxu0 %v4665
        %v4773 = vpop.f32.mrb[0].mxu0
        %v4774 = vadd.f32 0.0, %v4773
        %v4775 = vpop.f32.mrb[0].mxu0
        %4776 = vmatprep.mubr.f32.mxu0 0.0
        %4777 = vmatmul.mubr.f32.gmra.mrb[0].mxu0 %v4668
        %v4778 = vpop.f32.mrb[0].mxu0
        %v4779 = vadd.f32 0.0, %v4778
        %v4780 = vpop.f32.mrb[0].mxu0
        %4781 = vmatprep.mubr.f32.mxu0 0.0
        %4782 = vmatmul.mubr.f32.gmra.mrb[0].mxu0 %v4671
        %v4783 = vpop.f32.mrb[0].mxu0
        %v4784 = vadd.f32 0.0, %v4783
        %v4785 = vpop.f32.mrb[0].mxu0
        %4786 = vmatprep.mubr.f32.mxu0 0.0
        %4787 = vmatmul.mubr.f32.gmra.mrb[0].mxu0 %v4674
        %v4788 = vpop.f32.mrb[0].mxu0
        %v4789 = vadd.f32 0.0, %v4788
        %v4790 = vpop.f32.mrb[0].mxu0
        %4791 = vmatprep.mubr.f32.mxu0 0.0
        %4792 = vmatmul.mubr.f32.gmra.mrb[0].mxu0 %v4677
        %v4793 = vpop.f32.mrb[0].mxu0
        %v4794 = vadd.f32 0.0, %v4793
        %v4795 = vpop.f32.mrb[0].mxu0
        %4796 = vmatprep.mubr.f32.mxu0 0.0
        %4797 = vmatmul.mubr.f32.gmra.mrb[0].mxu0 %v4680
        %v4798 = vpop.f32.mrb[0].mxu0
        %v4799 = vadd.f32 0.0, %v4798
        %v4800 = vpop.f32.mrb[0].mxu0
        %4801 = vmatprep.mubr.f32.mxu0 0.0
        %4802 = vmatmul.mubr.f32.gmra.mrb[0].mxu0 %v4683
        %v4803 = vpop.f32.mrb[0].mxu0
        %v4804 = vadd.f32 0.0, %v4803
        %v4805 = vpop.f32.mrb[0].mxu0
        %4806 = vmatprep.mubr.f32.mxu0 0.0
        %4807 = vmatmul.mubr.f32.gmra.mrb[0].mxu0 %v4686
        %v4808 = vpop.f32.mrb[0].mxu0
        %v4809 = vadd.f32 0.0, %v4808
        %v4810 = vpop.f32.mrb[0].mxu0
        %4811 = vmatprep.mubr.f32.mxu0 0.0
        %4812 = vmatmul.mubr.f32.gmra.mrb[0].mxu0 %v4689
        %v4813 = vpop.f32.mrb[0].mxu0
        %v4814 = vadd.f32 0.0, %v4813
        %v4815 = vpop.f32.mrb[0].mxu0
        %4816 = vmatprep.mubr.f32.mxu0 0.0
        %4817 = vmatmul.mubr.f32.gmra.mrb[0].mxu0 %v4692
        %v4818 = vpop.f32.mrb[0].mxu0
        %v4819 = vadd.f32 0.0, %v4818
        %v4820 = vpop.f32.mrb[0].mxu0
        %4821 = vmatprep.mubr.f32.mxu0 0.0
        %4822 = vmatmul.mubr.f32.gmra.mrb[0].mxu0 %v4695
        %v4823 = vpop.f32.mrb[0].mxu0
        %v4824 = vadd.f32 0.0, %v4823
        %v4825 = vpop.f32.mrb[0].mxu0
        %4826 = vdwg.mxu0
        %v4827 = vadd.f32 %v4630, %v4764
        %v4828 = vadd.f32 %v4631, %v4769
        %v4829 = vadd.f32 %v4632, %v4774
        %v4830 = vadd.f32 %v4633, %v4779
        %v4831 = vadd.f32 %v4634, %v4784
        %v4832 = vadd.f32 %v4635, %v4789
        %v4833 = vadd.f32 %v4636, %v4794
        %v4834 = vadd.f32 %v4637, %v4799
        %v4835 = vadd.f32 %v4638, %v4804
        %v4836 = vadd.f32 %v4639, %v4809
        %v4837 = vadd.f32 %v4640, %v4814
        %v4838 = vadd.f32 %v4641, %v4819
        %v4839 = vadd.f32 %v4642, %v4824
        %4840 = vst [vmem:[#allocation2] sm:$0xff] %v4827
        %4841 = vst [vmem:[#allocation2 + $0x8] sm:$0xff] %v4828
        %4842 = vst [vmem:[#allocation2 + $0x10] sm:$0xff] %v4829
        %4843 = vst [vmem:[#allocation2 + $0x18] sm:$0xff] %v4830
        %4844 = vst [vmem:[#allocation2 + $0x20] sm:$0xff] %v4831
        %4845 = vst [vmem:[#allocation2 + $0x28] sm:$0xff] %v4832
        %4846 = vst [vmem:[#allocation2 + $0x30] sm:$0xff] %v4833
        %4847 = vst [vmem:[#allocation2 + $0x38] sm:$0xff] %v4834
        %4848 = vst [vmem:[#allocation2 + $0x40] sm:$0xff] %v4835
        %4849 = vst [vmem:[#allocation2 + $0x48] sm:$0xff] %v4836
        %4850 = vst [vmem:[#allocation2 + $0x50] sm:$0xff] %v4837
        %4851 = vst [vmem:[#allocation2 + $0x58] sm:$0xff] %v4838
        %4852 = vst [vmem:[#allocation2 + $0x60] sm:$0xff] %v4839
        %v4853 = vld [vmem:[#allocation2] sm:$0xff]
        %v4854 = vld [vmem:[#allocation2 + $0x8] sm:$0xff]
        %v4855 = vld [vmem:[#allocation2 + $0x10] sm:$0xff]
        %v4856 = vld [vmem:[#allocation2 + $0x18] sm:$0xff]
        %v4857 = vld [vmem:[#allocation2 + $0x20] sm:$0xff]
        %v4858 = vld [vmem:[#allocation2 + $0x28] sm:$0xff]
        %v4859 = vld [vmem:[#allocation2 + $0x30] sm:$0xff]
        %v4860 = vld [vmem:[#allocation2 + $0x38] sm:$0xff]
        %v4861 = vld [vmem:[#allocation2 + $0x40] sm:$0xff]
        %v4862 = vld [vmem:[#allocation2 + $0x48] sm:$0xff]
        %v4863 = vld [vmem:[#allocation2 + $0x50] sm:$0xff]
        %v4864 = vld [vmem:[#allocation2 + $0x58] sm:$0xff]
        %v4865 = vld [vmem:[#allocation2 + $0x60] sm:$0xff]
        %v4866 = vld [vmem:[%s195 + $0x15] sm:$0xff]
        %v4867 = vld [vmem:[%s195 + $0x1d] sm:$0xff]
        %v4868 = vld [vmem:[%s195 + $0x25] sm:$0xff]
        %v4869 = vld [vmem:[%s195 + $0x2d] sm:$0xff]
        %v4870 = vld [vmem:[%s195 + $0x35] sm:$0xff]
        %v4871 = vld [vmem:[%s195 + $0x3d] sm:$0xff]
        %v4872 = vld [vmem:[%s195 + $0x45] sm:$0xff]
        %v4873 = vld [vmem:[%s195 + $0x4d] sm:$0xff]
        %v4874 = vld [vmem:[%s195 + $0x55] sm:$0xff]
        %v4875 = vld [vmem:[%s195 + $0x5d] sm:$0xff]
        %v4876 = vld [vmem:[%s195 + $0x65] sm:$0xff]
        %v4877 = vld [vmem:[%s195 + $0x6d] sm:$0xff]
        %v4878 = vld [vmem:[%s195 + $0x75] sm:$0xff]
        %s4879 = scalar_lea.vmem %s1, 168
        %v4880 = vld [vmem:[%s4879] sm:$0xff]
        %v4882 = vsel %vm210, %v4866, 0
        %v4885 = vsel %vm210, %v4867, 0
        %v4888 = vsel %vm210, %v4868, 0
        %v4891 = vsel %vm210, %v4869, 0
        %v4894 = vsel %vm210, %v4870, 0
        %v4897 = vsel %vm210, %v4871, 0
        %v4900 = vsel %vm210, %v4872, 0
        %v4903 = vsel %vm210, %v4873, 0
        %v4906 = vsel %vm210, %v4874, 0
        %v4909 = vsel %vm210, %v4875, 0
        %v4912 = vsel %vm210, %v4876, 0
        %v4915 = vsel %vm210, %v4877, 0
        %v4918 = vsel %vm210, %v4878, 0
        %4920 = vmatprep.subr.mxu0 0.0
        %4921 = vmatpush1.msra.mxu0 %v4880
        %4922 = vmatprep.subr.mxu0 0.0
        %4923 = vmatpush1.msra.mxu0 0.0
        %4924 = vmatprep.subr.mxu0 0.0
        %4925 = vmatpush1.msra.mxu0 0.0
        %4926 = vmatprep.subr.mxu0 0.0
        %4927 = vmatpush1.msra.mxu0 0.0
        %4928 = vmatprep.subr.mxu0 0.0
        %4929 = vmatpush1.msra.mxu0 0.0
        %4930 = vmatprep.subr.mxu0 0.0
        %4931 = vmatpush1.msra.mxu0 0.0
        %4932 = vmatprep.subr.mxu0 0.0
        %4933 = vmatpush1.msra.mxu0 0.0
        %4934 = vmatprep.subr.mxu0 0.0
        %4935 = vmatpush1.msra.mxu0 0.0
        %4936 = vmatprep.subr.mxu0 0.0
        %4937 = vmatpush1.msra.mxu0 0.0
        %4938 = vmatprep.subr.mxu0 0.0
        %4939 = vmatpush1.msra.mxu0 0.0
        %4940 = vmatprep.subr.mxu0 0.0
        %4941 = vmatpush1.msra.mxu0 0.0
        %4942 = vmatprep.subr.mxu0 0.0
        %4943 = vmatpush1.msra.mxu0 0.0
        %4944 = vmatprep.subr.mxu0 0.0
        %4945 = vmatpush1.msra.mxu0 0.0
        %4946 = vmatprep.subr.mxu0 0.0
        %4947 = vmatpush1.msra.mxu0 0.0
        %4948 = vmatprep.subr.mxu0 0.0
        %4949 = vmatpush1.msra.mxu0 0.0
        %4950 = vmatprep.subr.mxu0 0.0
        %4951 = vmatpush1.msra.mxu0 0.0
        %4952 = vmatprep.subr.mxu0 0.0
        %4953 = vmatpush1.msra.mxu0 0.0
        %4954 = vmatprep.subr.mxu0 0.0
        %4955 = vmatpush1.msra.mxu0 0.0
        %4956 = vmatprep.subr.mxu0 0.0
        %4957 = vmatpush1.msra.mxu0 0.0
        %4958 = vmatprep.subr.mxu0 0.0
        %4959 = vmatpush1.msra.mxu0 0.0
        %4960 = vmatprep.subr.mxu0 0.0
        %4961 = vmatpush1.msra.mxu0 0.0
        %4962 = vmatprep.subr.mxu0 0.0
        %4963 = vmatpush1.msra.mxu0 0.0
        %4964 = vmatprep.subr.mxu0 0.0
        %4965 = vmatpush1.msra.mxu0 0.0
        %4966 = vmatprep.subr.mxu0 0.0
        %4967 = vmatpush1.msra.mxu0 0.0
        %4968 = vmatprep.subr.mxu0 0.0
        %4969 = vmatpush1.msra.mxu0 0.0
        %4970 = vmatprep.subr.mxu0 0.0
        %4971 = vmatpush1.msra.mxu0 0.0
        %4972 = vmatprep.subr.mxu0 0.0
        %4973 = vmatpush1.msra.mxu0 0.0
        %4974 = vmatprep.subr.mxu0 0.0
        %4975 = vmatpush1.msra.mxu0 0.0
        %4976 = vmatprep.subr.mxu0 0.0
        %4977 = vmatpush1.msra.mxu0 0.0
        %4978 = vmatprep.subr.mxu0 0.0
        %4979 = vmatpush1.msra.mxu0 0.0
        %4980 = vmatprep.subr.mxu0 0.0
        %4981 = vmatpush1.msra.mxu0 0.0
        %4982 = vmatprep.subr.mxu0 0.0
        %4983 = vmatpush1.msra.mxu0 0.0
        %4984 = vmatprep.mubr.f32.mxu0 0.0
        %4985 = vmatmul.mubr.f32.gmra.mrb[0].mxu0 %v4882
        %v4986 = vpop.f32.mrb[0].mxu0
        %v4987 = vadd.f32 0.0, %v4986
        %v4988 = vpop.f32.mrb[0].mxu0
        %4989 = vmatprep.mubr.f32.mxu0 0.0
        %4990 = vmatmul.mubr.f32.gmra.mrb[0].mxu0 %v4885
        %v4991 = vpop.f32.mrb[0].mxu0
        %v4992 = vadd.f32 0.0, %v4991
        %v4993 = vpop.f32.mrb[0].mxu0
        %4994 = vmatprep.mubr.f32.mxu0 0.0
        %4995 = vmatmul.mubr.f32.gmra.mrb[0].mxu0 %v4888
        %v4996 = vpop.f32.mrb[0].mxu0
        %v4997 = vadd.f32 0.0, %v4996
        %v4998 = vpop.f32.mrb[0].mxu0
        %4999 = vmatprep.mubr.f32.mxu0 0.0
        %5000 = vmatmul.mubr.f32.gmra.mrb[0].mxu0 %v4891
        %v5001 = vpop.f32.mrb[0].mxu0
        %v5002 = vadd.f32 0.0, %v5001
        %v5003 = vpop.f32.mrb[0].mxu0
        %5004 = vmatprep.mubr.f32.mxu0 0.0
        %5005 = vmatmul.mubr.f32.gmra.mrb[0].mxu0 %v4894
        %v5006 = vpop.f32.mrb[0].mxu0
        %v5007 = vadd.f32 0.0, %v5006
        %v5008 = vpop.f32.mrb[0].mxu0
        %5009 = vmatprep.mubr.f32.mxu0 0.0
        %5010 = vmatmul.mubr.f32.gmra.mrb[0].mxu0 %v4897
        %v5011 = vpop.f32.mrb[0].mxu0
        %v5012 = vadd.f32 0.0, %v5011
        %v5013 = vpop.f32.mrb[0].mxu0
        %5014 = vmatprep.mubr.f32.mxu0 0.0
        %5015 = vmatmul.mubr.f32.gmra.mrb[0].mxu0 %v4900
        %v5016 = vpop.f32.mrb[0].mxu0
        %v5017 = vadd.f32 0.0, %v5016
        %v5018 = vpop.f32.mrb[0].mxu0
        %5019 = vmatprep.mubr.f32.mxu0 0.0
        %5020 = vmatmul.mubr.f32.gmra.mrb[0].mxu0 %v4903
        %v5021 = vpop.f32.mrb[0].mxu0
        %v5022 = vadd.f32 0.0, %v5021
        %v5023 = vpop.f32.mrb[0].mxu0
        %5024 = vmatprep.mubr.f32.mxu0 0.0
        %5025 = vmatmul.mubr.f32.gmra.mrb[0].mxu0 %v4906
        %v5026 = vpop.f32.mrb[0].mxu0
        %v5027 = vadd.f32 0.0, %v5026
        %v5028 = vpop.f32.mrb[0].mxu0
        %5029 = vmatprep.mubr.f32.mxu0 0.0
        %5030 = vmatmul.mubr.f32.gmra.mrb[0].mxu0 %v4909
        %v5031 = vpop.f32.mrb[0].mxu0
        %v5032 = vadd.f32 0.0, %v5031
        %v5033 = vpop.f32.mrb[0].mxu0
        %5034 = vmatprep.mubr.f32.mxu0 0.0
        %5035 = vmatmul.mubr.f32.gmra.mrb[0].mxu0 %v4912
        %v5036 = vpop.f32.mrb[0].mxu0
        %v5037 = vadd.f32 0.0, %v5036
        %v5038 = vpop.f32.mrb[0].mxu0
        %5039 = vmatprep.mubr.f32.mxu0 0.0
        %5040 = vmatmul.mubr.f32.gmra.mrb[0].mxu0 %v4915
        %v5041 = vpop.f32.mrb[0].mxu0
        %v5042 = vadd.f32 0.0, %v5041
        %v5043 = vpop.f32.mrb[0].mxu0
        %5044 = vmatprep.mubr.f32.mxu0 0.0
        %5045 = vmatmul.mubr.f32.gmra.mrb[0].mxu0 %v4918
        %v5046 = vpop.f32.mrb[0].mxu0
        %v5047 = vadd.f32 0.0, %v5046
        %v5048 = vpop.f32.mrb[0].mxu0
        %5049 = vdwg.mxu0
        %v5050 = vadd.f32 %v4853, %v4987
        %v5051 = vadd.f32 %v4854, %v4992
        %v5052 = vadd.f32 %v4855, %v4997
        %v5053 = vadd.f32 %v4856, %v5002
        %v5054 = vadd.f32 %v4857, %v5007
        %v5055 = vadd.f32 %v4858, %v5012
        %v5056 = vadd.f32 %v4859, %v5017
        %v5057 = vadd.f32 %v4860, %v5022
        %v5058 = vadd.f32 %v4861, %v5027
        %v5059 = vadd.f32 %v4862, %v5032
        %v5060 = vadd.f32 %v4863, %v5037
        %v5061 = vadd.f32 %v4864, %v5042
        %v5062 = vadd.f32 %v4865, %v5047
        %5063 = vst [vmem:[#allocation2] sm:$0xff] %v5050
        %5064 = vst [vmem:[#allocation2 + $0x8] sm:$0xff] %v5051
        %5065 = vst [vmem:[#allocation2 + $0x10] sm:$0xff] %v5052
        %5066 = vst [vmem:[#allocation2 + $0x18] sm:$0xff] %v5053
        %5067 = vst [vmem:[#allocation2 + $0x20] sm:$0xff] %v5054
        %5068 = vst [vmem:[#allocation2 + $0x28] sm:$0xff] %v5055
        %5069 = vst [vmem:[#allocation2 + $0x30] sm:$0xff] %v5056
        %5070 = vst [vmem:[#allocation2 + $0x38] sm:$0xff] %v5057
        %5071 = vst [vmem:[#allocation2 + $0x40] sm:$0xff] %v5058
        %5072 = vst [vmem:[#allocation2 + $0x48] sm:$0xff] %v5059
        %5073 = vst [vmem:[#allocation2 + $0x50] sm:$0xff] %v5060
        %5074 = vst [vmem:[#allocation2 + $0x58] sm:$0xff] %v5061
        %5075 = vst [vmem:[#allocation2 + $0x60] sm:$0xff] %v5062
        %v5076 = vld [vmem:[#allocation2] sm:$0xff]
        %v5077 = vld [vmem:[#allocation2 + $0x8] sm:$0xff]
        %v5078 = vld [vmem:[#allocation2 + $0x10] sm:$0xff]
        %v5079 = vld [vmem:[#allocation2 + $0x18] sm:$0xff]
        %v5080 = vld [vmem:[#allocation2 + $0x20] sm:$0xff]
        %v5081 = vld [vmem:[#allocation2 + $0x28] sm:$0xff]
        %v5082 = vld [vmem:[#allocation2 + $0x30] sm:$0xff]
        %v5083 = vld [vmem:[#allocation2 + $0x38] sm:$0xff]
        %v5084 = vld [vmem:[#allocation2 + $0x40] sm:$0xff]
        %v5085 = vld [vmem:[#allocation2 + $0x48] sm:$0xff]
        %v5086 = vld [vmem:[#allocation2 + $0x50] sm:$0xff]
        %v5087 = vld [vmem:[#allocation2 + $0x58] sm:$0xff]
        %v5088 = vld [vmem:[#allocation2 + $0x60] sm:$0xff]
        %v5089 = vld [vmem:[%s195 + $0x16] sm:$0xff]
        %v5090 = vld [vmem:[%s195 + $0x1e] sm:$0xff]
        %v5091 = vld [vmem:[%s195 + $0x26] sm:$0xff]
        %v5092 = vld [vmem:[%s195 + $0x2e] sm:$0xff]
        %v5093 = vld [vmem:[%s195 + $0x36] sm:$0xff]
        %v5094 = vld [vmem:[%s195 + $0x3e] sm:$0xff]
        %v5095 = vld [vmem:[%s195 + $0x46] sm:$0xff]
        %v5096 = vld [vmem:[%s195 + $0x4e] sm:$0xff]
        %v5097 = vld [vmem:[%s195 + $0x56] sm:$0xff]
        %v5098 = vld [vmem:[%s195 + $0x5e] sm:$0xff]
        %v5099 = vld [vmem:[%s195 + $0x66] sm:$0xff]
        %v5100 = vld [vmem:[%s195 + $0x6e] sm:$0xff]
        %v5101 = vld [vmem:[%s195 + $0x76] sm:$0xff]
        %s5102 = scalar_lea.vmem %s1, 176
        %v5103 = vld [vmem:[%s5102] sm:$0xff]
        %v5105 = vsel %vm210, %v5089, 0
        %v5108 = vsel %vm210, %v5090, 0
        %v5111 = vsel %vm210, %v5091, 0
        %v5114 = vsel %vm210, %v5092, 0
        %v5117 = vsel %vm210, %v5093, 0
        %v5120 = vsel %vm210, %v5094, 0
        %v5123 = vsel %vm210, %v5095, 0
        %v5126 = vsel %vm210, %v5096, 0
        %v5129 = vsel %vm210, %v5097, 0
        %v5132 = vsel %vm210, %v5098, 0
        %v5135 = vsel %vm210, %v5099, 0
        %v5138 = vsel %vm210, %v5100, 0
        %v5141 = vsel %vm210, %v5101, 0
        %5143 = vmatprep.subr.mxu0 0.0
        %5144 = vmatpush1.msra.mxu0 %v5103
        %5145 = vmatprep.subr.mxu0 0.0
        %5146 = vmatpush1.msra.mxu0 0.0
        %5147 = vmatprep.subr.mxu0 0.0
        %5148 = vmatpush1.msra.mxu0 0.0
        %5149 = vmatprep.subr.mxu0 0.0
        %5150 = vmatpush1.msra.mxu0 0.0
        %5151 = vmatprep.subr.mxu0 0.0
        %5152 = vmatpush1.msra.mxu0 0.0
        %5153 = vmatprep.subr.mxu0 0.0
        %5154 = vmatpush1.msra.mxu0 0.0
        %5155 = vmatprep.subr.mxu0 0.0
        %5156 = vmatpush1.msra.mxu0 0.0
        %5157 = vmatprep.subr.mxu0 0.0
        %5158 = vmatpush1.msra.mxu0 0.0
        %5159 = vmatprep.subr.mxu0 0.0
        %5160 = vmatpush1.msra.mxu0 0.0
        %5161 = vmatprep.subr.mxu0 0.0
        %5162 = vmatpush1.msra.mxu0 0.0
        %5163 = vmatprep.subr.mxu0 0.0
        %5164 = vmatpush1.msra.mxu0 0.0
        %5165 = vmatprep.subr.mxu0 0.0
        %5166 = vmatpush1.msra.mxu0 0.0
        %5167 = vmatprep.subr.mxu0 0.0
        %5168 = vmatpush1.msra.mxu0 0.0
        %5169 = vmatprep.subr.mxu0 0.0
        %5170 = vmatpush1.msra.mxu0 0.0
        %5171 = vmatprep.subr.mxu0 0.0
        %5172 = vmatpush1.msra.mxu0 0.0
        %5173 = vmatprep.subr.mxu0 0.0
        %5174 = vmatpush1.msra.mxu0 0.0
        %5175 = vmatprep.subr.mxu0 0.0
        %5176 = vmatpush1.msra.mxu0 0.0
        %5177 = vmatprep.subr.mxu0 0.0
        %5178 = vmatpush1.msra.mxu0 0.0
        %5179 = vmatprep.subr.mxu0 0.0
        %5180 = vmatpush1.msra.mxu0 0.0
        %5181 = vmatprep.subr.mxu0 0.0
        %5182 = vmatpush1.msra.mxu0 0.0
        %5183 = vmatprep.subr.mxu0 0.0
        %5184 = vmatpush1.msra.mxu0 0.0
        %5185 = vmatprep.subr.mxu0 0.0
        %5186 = vmatpush1.msra.mxu0 0.0
        %5187 = vmatprep.subr.mxu0 0.0
        %5188 = vmatpush1.msra.mxu0 0.0
        %5189 = vmatprep.subr.mxu0 0.0
        %5190 = vmatpush1.msra.mxu0 0.0
        %5191 = vmatprep.subr.mxu0 0.0
        %5192 = vmatpush1.msra.mxu0 0.0
        %5193 = vmatprep.subr.mxu0 0.0
        %5194 = vmatpush1.msra.mxu0 0.0
        %5195 = vmatprep.subr.mxu0 0.0
        %5196 = vmatpush1.msra.mxu0 0.0
        %5197 = vmatprep.subr.mxu0 0.0
        %5198 = vmatpush1.msra.mxu0 0.0
        %5199 = vmatprep.subr.mxu0 0.0
        %5200 = vmatpush1.msra.mxu0 0.0
        %5201 = vmatprep.subr.mxu0 0.0
        %5202 = vmatpush1.msra.mxu0 0.0
        %5203 = vmatprep.subr.mxu0 0.0
        %5204 = vmatpush1.msra.mxu0 0.0
        %5205 = vmatprep.subr.mxu0 0.0
        %5206 = vmatpush1.msra.mxu0 0.0
        %5207 = vmatprep.mubr.f32.mxu0 0.0
        %5208 = vmatmul.mubr.f32.gmra.mrb[0].mxu0 %v5105
        %v5209 = vpop.f32.mrb[0].mxu0
        %v5210 = vadd.f32 0.0, %v5209
        %v5211 = vpop.f32.mrb[0].mxu0
        %5212 = vmatprep.mubr.f32.mxu0 0.0
        %5213 = vmatmul.mubr.f32.gmra.mrb[0].mxu0 %v5108
        %v5214 = vpop.f32.mrb[0].mxu0
        %v5215 = vadd.f32 0.0, %v5214
        %v5216 = vpop.f32.mrb[0].mxu0
        %5217 = vmatprep.mubr.f32.mxu0 0.0
        %5218 = vmatmul.mubr.f32.gmra.mrb[0].mxu0 %v5111
        %v5219 = vpop.f32.mrb[0].mxu0
        %v5220 = vadd.f32 0.0, %v5219
        %v5221 = vpop.f32.mrb[0].mxu0
        %5222 = vmatprep.mubr.f32.mxu0 0.0
        %5223 = vmatmul.mubr.f32.gmra.mrb[0].mxu0 %v5114
        %v5224 = vpop.f32.mrb[0].mxu0
        %v5225 = vadd.f32 0.0, %v5224
        %v5226 = vpop.f32.mrb[0].mxu0
        %5227 = vmatprep.mubr.f32.mxu0 0.0
        %5228 = vmatmul.mubr.f32.gmra.mrb[0].mxu0 %v5117
        %v5229 = vpop.f32.mrb[0].mxu0
        %v5230 = vadd.f32 0.0, %v5229
        %v5231 = vpop.f32.mrb[0].mxu0
        %5232 = vmatprep.mubr.f32.mxu0 0.0
        %5233 = vmatmul.mubr.f32.gmra.mrb[0].mxu0 %v5120
        %v5234 = vpop.f32.mrb[0].mxu0
        %v5235 = vadd.f32 0.0, %v5234
        %v5236 = vpop.f32.mrb[0].mxu0
        %5237 = vmatprep.mubr.f32.mxu0 0.0
        %5238 = vmatmul.mubr.f32.gmra.mrb[0].mxu0 %v5123
        %v5239 = vpop.f32.mrb[0].mxu0
        %v5240 = vadd.f32 0.0, %v5239
        %v5241 = vpop.f32.mrb[0].mxu0
        %5242 = vmatprep.mubr.f32.mxu0 0.0
        %5243 = vmatmul.mubr.f32.gmra.mrb[0].mxu0 %v5126
        %v5244 = vpop.f32.mrb[0].mxu0
        %v5245 = vadd.f32 0.0, %v5244
        %v5246 = vpop.f32.mrb[0].mxu0
        %5247 = vmatprep.mubr.f32.mxu0 0.0
        %5248 = vmatmul.mubr.f32.gmra.mrb[0].mxu0 %v5129
        %v5249 = vpop.f32.mrb[0].mxu0
        %v5250 = vadd.f32 0.0, %v5249
        %v5251 = vpop.f32.mrb[0].mxu0
        %5252 = vmatprep.mubr.f32.mxu0 0.0
        %5253 = vmatmul.mubr.f32.gmra.mrb[0].mxu0 %v5132
        %v5254 = vpop.f32.mrb[0].mxu0
        %v5255 = vadd.f32 0.0, %v5254
        %v5256 = vpop.f32.mrb[0].mxu0
        %5257 = vmatprep.mubr.f32.mxu0 0.0
        %5258 = vmatmul.mubr.f32.gmra.mrb[0].mxu0 %v5135
        %v5259 = vpop.f32.mrb[0].mxu0
        %v5260 = vadd.f32 0.0, %v5259
        %v5261 = vpop.f32.mrb[0].mxu0
        %5262 = vmatprep.mubr.f32.mxu0 0.0
        %5263 = vmatmul.mubr.f32.gmra.mrb[0].mxu0 %v5138
        %v5264 = vpop.f32.mrb[0].mxu0
        %v5265 = vadd.f32 0.0, %v5264
        %v5266 = vpop.f32.mrb[0].mxu0
        %5267 = vmatprep.mubr.f32.mxu0 0.0
        %5268 = vmatmul.mubr.f32.gmra.mrb[0].mxu0 %v5141
        %v5269 = vpop.f32.mrb[0].mxu0
        %v5270 = vadd.f32 0.0, %v5269
        %v5271 = vpop.f32.mrb[0].mxu0
        %5272 = vdwg.mxu0
        %v5273 = vadd.f32 %v5076, %v5210
        %v5274 = vadd.f32 %v5077, %v5215
        %v5275 = vadd.f32 %v5078, %v5220
        %v5276 = vadd.f32 %v5079, %v5225
        %v5277 = vadd.f32 %v5080, %v5230
        %v5278 = vadd.f32 %v5081, %v5235
        %v5279 = vadd.f32 %v5082, %v5240
        %v5280 = vadd.f32 %v5083, %v5245
        %v5281 = vadd.f32 %v5084, %v5250
        %v5282 = vadd.f32 %v5085, %v5255
        %v5283 = vadd.f32 %v5086, %v5260
        %v5284 = vadd.f32 %v5087, %v5265
        %v5285 = vadd.f32 %v5088, %v5270
        %5286 = vst [vmem:[#allocation2] sm:$0xff] %v5273
        %5287 = vst [vmem:[#allocation2 + $0x8] sm:$0xff] %v5274
        %5288 = vst [vmem:[#allocation2 + $0x10] sm:$0xff] %v5275
        %5289 = vst [vmem:[#allocation2 + $0x18] sm:$0xff] %v5276
        %5290 = vst [vmem:[#allocation2 + $0x20] sm:$0xff] %v5277
        %5291 = vst [vmem:[#allocation2 + $0x28] sm:$0xff] %v5278
        %5292 = vst [vmem:[#allocation2 + $0x30] sm:$0xff] %v5279
        %5293 = vst [vmem:[#allocation2 + $0x38] sm:$0xff] %v5280
        %5294 = vst [vmem:[#allocation2 + $0x40] sm:$0xff] %v5281
        %5295 = vst [vmem:[#allocation2 + $0x48] sm:$0xff] %v5282
        %5296 = vst [vmem:[#allocation2 + $0x50] sm:$0xff] %v5283
        %5297 = vst [vmem:[#allocation2 + $0x58] sm:$0xff] %v5284
        %5298 = vst [vmem:[#allocation2 + $0x60] sm:$0xff] %v5285
        %v5299 = vld [vmem:[#allocation2] sm:$0xff]
        %v5300 = vld [vmem:[#allocation2 + $0x8] sm:$0xff]
        %v5301 = vld [vmem:[#allocation2 + $0x10] sm:$0xff]
        %v5302 = vld [vmem:[#allocation2 + $0x18] sm:$0xff]
        %v5303 = vld [vmem:[#allocation2 + $0x20] sm:$0xff]
        %v5304 = vld [vmem:[#allocation2 + $0x28] sm:$0xff]
        %v5305 = vld [vmem:[#allocation2 + $0x30] sm:$0xff]
        %v5306 = vld [vmem:[#allocation2 + $0x38] sm:$0xff]
        %v5307 = vld [vmem:[#allocation2 + $0x40] sm:$0xff]
        %v5308 = vld [vmem:[#allocation2 + $0x48] sm:$0xff]
        %v5309 = vld [vmem:[#allocation2 + $0x50] sm:$0xff]
        %v5310 = vld [vmem:[#allocation2 + $0x58] sm:$0xff]
        %v5311 = vld [vmem:[#allocation2 + $0x60] sm:$0xff]
        %v5312 = vld [vmem:[%s195 + $0x17] sm:$0xff]
        %v5313 = vld [vmem:[%s195 + $0x1f] sm:$0xff]
        %v5314 = vld [vmem:[%s195 + $0x27] sm:$0xff]
        %v5315 = vld [vmem:[%s195 + $0x2f] sm:$0xff]
        %v5316 = vld [vmem:[%s195 + $0x37] sm:$0xff]
        %v5317 = vld [vmem:[%s195 + $0x3f] sm:$0xff]
        %v5318 = vld [vmem:[%s195 + $0x47] sm:$0xff]
        %v5319 = vld [vmem:[%s195 + $0x4f] sm:$0xff]
        %v5320 = vld [vmem:[%s195 + $0x57] sm:$0xff]
        %v5321 = vld [vmem:[%s195 + $0x5f] sm:$0xff]
        %v5322 = vld [vmem:[%s195 + $0x67] sm:$0xff]
        %v5323 = vld [vmem:[%s195 + $0x6f] sm:$0xff]
        %v5324 = vld [vmem:[%s195 + $0x77] sm:$0xff]
        %s5325 = scalar_lea.vmem %s1, 184
        %v5326 = vld [vmem:[%s5325] sm:$0xff]
        %v5328 = vsel %vm210, %v5312, 0
        %v5331 = vsel %vm210, %v5313, 0
        %v5334 = vsel %vm210, %v5314, 0
        %v5337 = vsel %vm210, %v5315, 0
        %v5340 = vsel %vm210, %v5316, 0
        %v5343 = vsel %vm210, %v5317, 0
        %v5346 = vsel %vm210, %v5318, 0
        %v5349 = vsel %vm210, %v5319, 0
        %v5352 = vsel %vm210, %v5320, 0
        %v5355 = vsel %vm210, %v5321, 0
        %v5358 = vsel %vm210, %v5322, 0
        %v5361 = vsel %vm210, %v5323, 0
        %v5364 = vsel %vm210, %v5324, 0
        %5366 = vmatprep.subr.mxu0 0.0
        %5367 = vmatpush1.msra.mxu0 %v5326
        %5368 = vmatprep.subr.mxu0 0.0
        %5369 = vmatpush1.msra.mxu0 0.0
        %5370 = vmatprep.subr.mxu0 0.0
        %5371 = vmatpush1.msra.mxu0 0.0
        %5372 = vmatprep.subr.mxu0 0.0
        %5373 = vmatpush1.msra.mxu0 0.0
        %5374 = vmatprep.subr.mxu0 0.0
        %5375 = vmatpush1.msra.mxu0 0.0
        %5376 = vmatprep.subr.mxu0 0.0
        %5377 = vmatpush1.msra.mxu0 0.0
        %5378 = vmatprep.subr.mxu0 0.0
        %5379 = vmatpush1.msra.mxu0 0.0
        %5380 = vmatprep.subr.mxu0 0.0
        %5381 = vmatpush1.msra.mxu0 0.0
        %5382 = vmatprep.subr.mxu0 0.0
        %5383 = vmatpush1.msra.mxu0 0.0
        %5384 = vmatprep.subr.mxu0 0.0
        %5385 = vmatpush1.msra.mxu0 0.0
        %5386 = vmatprep.subr.mxu0 0.0
        %5387 = vmatpush1.msra.mxu0 0.0
        %5388 = vmatprep.subr.mxu0 0.0
        %5389 = vmatpush1.msra.mxu0 0.0
        %5390 = vmatprep.subr.mxu0 0.0
        %5391 = vmatpush1.msra.mxu0 0.0
        %5392 = vmatprep.subr.mxu0 0.0
        %5393 = vmatpush1.msra.mxu0 0.0
        %5394 = vmatprep.subr.mxu0 0.0
        %5395 = vmatpush1.msra.mxu0 0.0
        %5396 = vmatprep.subr.mxu0 0.0
        %5397 = vmatpush1.msra.mxu0 0.0
        %5398 = vmatprep.subr.mxu0 0.0
        %5399 = vmatpush1.msra.mxu0 0.0
        %5400 = vmatprep.subr.mxu0 0.0
        %5401 = vmatpush1.msra.mxu0 0.0
        %5402 = vmatprep.subr.mxu0 0.0
        %5403 = vmatpush1.msra.mxu0 0.0
        %5404 = vmatprep.subr.mxu0 0.0
        %5405 = vmatpush1.msra.mxu0 0.0
        %5406 = vmatprep.subr.mxu0 0.0
        %5407 = vmatpush1.msra.mxu0 0.0
        %5408 = vmatprep.subr.mxu0 0.0
        %5409 = vmatpush1.msra.mxu0 0.0
        %5410 = vmatprep.subr.mxu0 0.0
        %5411 = vmatpush1.msra.mxu0 0.0
        %5412 = vmatprep.subr.mxu0 0.0
        %5413 = vmatpush1.msra.mxu0 0.0
        %5414 = vmatprep.subr.mxu0 0.0
        %5415 = vmatpush1.msra.mxu0 0.0
        %5416 = vmatprep.subr.mxu0 0.0
        %5417 = vmatpush1.msra.mxu0 0.0
        %5418 = vmatprep.subr.mxu0 0.0
        %5419 = vmatpush1.msra.mxu0 0.0
        %5420 = vmatprep.subr.mxu0 0.0
        %5421 = vmatpush1.msra.mxu0 0.0
        %5422 = vmatprep.subr.mxu0 0.0
        %5423 = vmatpush1.msra.mxu0 0.0
        %5424 = vmatprep.subr.mxu0 0.0
        %5425 = vmatpush1.msra.mxu0 0.0
        %5426 = vmatprep.subr.mxu0 0.0
        %5427 = vmatpush1.msra.mxu0 0.0
        %5428 = vmatprep.subr.mxu0 0.0
        %5429 = vmatpush1.msra.mxu0 0.0
        %5430 = vmatprep.mubr.f32.mxu0 0.0
        %5431 = vmatmul.mubr.f32.gmra.mrb[0].mxu0 %v5328
        %v5432 = vpop.f32.mrb[0].mxu0
        %v5433 = vadd.f32 0.0, %v5432
        %v5434 = vpop.f32.mrb[0].mxu0
        %5435 = vmatprep.mubr.f32.mxu0 0.0
        %5436 = vmatmul.mubr.f32.gmra.mrb[0].mxu0 %v5331
        %v5437 = vpop.f32.mrb[0].mxu0
        %v5438 = vadd.f32 0.0, %v5437
        %v5439 = vpop.f32.mrb[0].mxu0
        %5440 = vmatprep.mubr.f32.mxu0 0.0
        %5441 = vmatmul.mubr.f32.gmra.mrb[0].mxu0 %v5334
        %v5442 = vpop.f32.mrb[0].mxu0
        %v5443 = vadd.f32 0.0, %v5442
        %v5444 = vpop.f32.mrb[0].mxu0
        %5445 = vmatprep.mubr.f32.mxu0 0.0
        %5446 = vmatmul.mubr.f32.gmra.mrb[0].mxu0 %v5337
        %v5447 = vpop.f32.mrb[0].mxu0
        %v5448 = vadd.f32 0.0, %v5447
        %v5449 = vpop.f32.mrb[0].mxu0
        %5450 = vmatprep.mubr.f32.mxu0 0.0
        %5451 = vmatmul.mubr.f32.gmra.mrb[0].mxu0 %v5340
        %v5452 = vpop.f32.mrb[0].mxu0
        %v5453 = vadd.f32 0.0, %v5452
        %v5454 = vpop.f32.mrb[0].mxu0
        %5455 = vmatprep.mubr.f32.mxu0 0.0
        %5456 = vmatmul.mubr.f32.gmra.mrb[0].mxu0 %v5343
        %v5457 = vpop.f32.mrb[0].mxu0
        %v5458 = vadd.f32 0.0, %v5457
        %v5459 = vpop.f32.mrb[0].mxu0
        %5460 = vmatprep.mubr.f32.mxu0 0.0
        %5461 = vmatmul.mubr.f32.gmra.mrb[0].mxu0 %v5346
        %v5462 = vpop.f32.mrb[0].mxu0
        %v5463 = vadd.f32 0.0, %v5462
        %v5464 = vpop.f32.mrb[0].mxu0
        %5465 = vmatprep.mubr.f32.mxu0 0.0
        %5466 = vmatmul.mubr.f32.gmra.mrb[0].mxu0 %v5349
        %v5467 = vpop.f32.mrb[0].mxu0
        %v5468 = vadd.f32 0.0, %v5467
        %v5469 = vpop.f32.mrb[0].mxu0
        %5470 = vmatprep.mubr.f32.mxu0 0.0
        %5471 = vmatmul.mubr.f32.gmra.mrb[0].mxu0 %v5352
        %v5472 = vpop.f32.mrb[0].mxu0
        %v5473 = vadd.f32 0.0, %v5472
        %v5474 = vpop.f32.mrb[0].mxu0
        %5475 = vmatprep.mubr.f32.mxu0 0.0
        %5476 = vmatmul.mubr.f32.gmra.mrb[0].mxu0 %v5355
        %v5477 = vpop.f32.mrb[0].mxu0
        %v5478 = vadd.f32 0.0, %v5477
        %v5479 = vpop.f32.mrb[0].mxu0
        %5480 = vmatprep.mubr.f32.mxu0 0.0
        %5481 = vmatmul.mubr.f32.gmra.mrb[0].mxu0 %v5358
        %v5482 = vpop.f32.mrb[0].mxu0
        %v5483 = vadd.f32 0.0, %v5482
        %v5484 = vpop.f32.mrb[0].mxu0
        %5485 = vmatprep.mubr.f32.mxu0 0.0
        %5486 = vmatmul.mubr.f32.gmra.mrb[0].mxu0 %v5361
        %v5487 = vpop.f32.mrb[0].mxu0
        %v5488 = vadd.f32 0.0, %v5487
        %v5489 = vpop.f32.mrb[0].mxu0
        %5490 = vmatprep.mubr.f32.mxu0 0.0
        %5491 = vmatmul.mubr.f32.gmra.mrb[0].mxu0 %v5364
        %v5492 = vpop.f32.mrb[0].mxu0
        %v5493 = vadd.f32 0.0, %v5492
        %v5494 = vpop.f32.mrb[0].mxu0
        %5495 = vdwg.mxu0
        %v5496 = vadd.f32 %v5299, %v5433
        %v5497 = vadd.f32 %v5300, %v5438
        %v5498 = vadd.f32 %v5301, %v5443
        %v5499 = vadd.f32 %v5302, %v5448
        %v5500 = vadd.f32 %v5303, %v5453
        %v5501 = vadd.f32 %v5304, %v5458
        %v5502 = vadd.f32 %v5305, %v5463
        %v5503 = vadd.f32 %v5306, %v5468
        %v5504 = vadd.f32 %v5307, %v5473
        %v5505 = vadd.f32 %v5308, %v5478
        %v5506 = vadd.f32 %v5309, %v5483
        %v5507 = vadd.f32 %v5310, %v5488
        %v5508 = vadd.f32 %v5311, %v5493
        %5509 = vst [vmem:[#allocation2] sm:$0xff] %v5496
        %5510 = vst [vmem:[#allocation2 + $0x8] sm:$0xff] %v5497
        %5511 = vst [vmem:[#allocation2 + $0x10] sm:$0xff] %v5498
        %5512 = vst [vmem:[#allocation2 + $0x18] sm:$0xff] %v5499
        %5513 = vst [vmem:[#allocation2 + $0x20] sm:$0xff] %v5500
        %5514 = vst [vmem:[#allocation2 + $0x28] sm:$0xff] %v5501
        %5515 = vst [vmem:[#allocation2 + $0x30] sm:$0xff] %v5502
        %5516 = vst [vmem:[#allocation2 + $0x38] sm:$0xff] %v5503
        %5517 = vst [vmem:[#allocation2 + $0x40] sm:$0xff] %v5504
        %5518 = vst [vmem:[#allocation2 + $0x48] sm:$0xff] %v5505
        %5519 = vst [vmem:[#allocation2 + $0x50] sm:$0xff] %v5506
        %5520 = vst [vmem:[#allocation2 + $0x58] sm:$0xff] %v5507
        %5521 = vst [vmem:[#allocation2 + $0x60] sm:$0xff] %v5508
        %v5522 = vld [vmem:[#allocation2] sm:$0xff]
        %v5523 = vld [vmem:[#allocation2 + $0x8] sm:$0xff]
        %v5524 = vld [vmem:[#allocation2 + $0x10] sm:$0xff]
        %v5525 = vld [vmem:[#allocation2 + $0x18] sm:$0xff]
        %v5526 = vld [vmem:[#allocation2 + $0x20] sm:$0xff]
        %v5527 = vld [vmem:[#allocation2 + $0x28] sm:$0xff]
        %v5528 = vld [vmem:[#allocation2 + $0x30] sm:$0xff]
        %v5529 = vld [vmem:[#allocation2 + $0x38] sm:$0xff]
        %v5530 = vld [vmem:[#allocation2 + $0x40] sm:$0xff]
        %v5531 = vld [vmem:[#allocation2 + $0x48] sm:$0xff]
        %v5532 = vld [vmem:[#allocation2 + $0x50] sm:$0xff]
        %v5533 = vld [vmem:[#allocation2 + $0x58] sm:$0xff]
        %v5534 = vld [vmem:[#allocation2 + $0x60] sm:$0xff]
        %v5535 = vld [vmem:[%s195 + $0x18] sm:$0xff]
        %v5536 = vld [vmem:[%s195 + $0x20] sm:$0xff]
        %v5537 = vld [vmem:[%s195 + $0x28] sm:$0xff]
        %v5538 = vld [vmem:[%s195 + $0x30] sm:$0xff]
        %v5539 = vld [vmem:[%s195 + $0x38] sm:$0xff]
        %v5540 = vld [vmem:[%s195 + $0x40] sm:$0xff]
        %v5541 = vld [vmem:[%s195 + $0x48] sm:$0xff]
        %v5542 = vld [vmem:[%s195 + $0x50] sm:$0xff]
        %v5543 = vld [vmem:[%s195 + $0x58] sm:$0xff]
        %v5544 = vld [vmem:[%s195 + $0x60] sm:$0xff]
        %v5545 = vld [vmem:[%s195 + $0x68] sm:$0xff]
        %v5546 = vld [vmem:[%s195 + $0x70] sm:$0xff]
        %v5547 = vld [vmem:[%s195 + $0x78] sm:$0xff]
        %s5548 = scalar_lea.vmem %s1, 192
        %v5549 = vld [vmem:[%s5548] sm:$0xff]
        %v5551 = vsel %vm210, %v5535, 0
        %v5554 = vsel %vm210, %v5536, 0
        %v5557 = vsel %vm210, %v5537, 0
        %v5560 = vsel %vm210, %v5538, 0
        %v5563 = vsel %vm210, %v5539, 0
        %v5566 = vsel %vm210, %v5540, 0
        %v5569 = vsel %vm210, %v5541, 0
        %v5572 = vsel %vm210, %v5542, 0
        %v5575 = vsel %vm210, %v5543, 0
        %v5578 = vsel %vm210, %v5544, 0
        %v5581 = vsel %vm210, %v5545, 0
        %v5584 = vsel %vm210, %v5546, 0
        %v5587 = vsel %vm210, %v5547, 0
        %5589 = vmatprep.subr.mxu0 0.0
        %5590 = vmatpush1.msra.mxu0 %v5549
        %5591 = vmatprep.subr.mxu0 0.0
        %5592 = vmatpush1.msra.mxu0 0.0
        %5593 = vmatprep.subr.mxu0 0.0
        %5594 = vmatpush1.msra.mxu0 0.0
        %5595 = vmatprep.subr.mxu0 0.0
        %5596 = vmatpush1.msra.mxu0 0.0
        %5597 = vmatprep.subr.mxu0 0.0
        %5598 = vmatpush1.msra.mxu0 0.0
        %5599 = vmatprep.subr.mxu0 0.0
        %5600 = vmatpush1.msra.mxu0 0.0
        %5601 = vmatprep.subr.mxu0 0.0
        %5602 = vmatpush1.msra.mxu0 0.0
        %5603 = vmatprep.subr.mxu0 0.0
        %5604 = vmatpush1.msra.mxu0 0.0
        %5605 = vmatprep.subr.mxu0 0.0
        %5606 = vmatpush1.msra.mxu0 0.0
        %5607 = vmatprep.subr.mxu0 0.0
        %5608 = vmatpush1.msra.mxu0 0.0
        %5609 = vmatprep.subr.mxu0 0.0
        %5610 = vmatpush1.msra.mxu0 0.0
        %5611 = vmatprep.subr.mxu0 0.0
        %5612 = vmatpush1.msra.mxu0 0.0
        %5613 = vmatprep.subr.mxu0 0.0
        %5614 = vmatpush1.msra.mxu0 0.0
        %5615 = vmatprep.subr.mxu0 0.0
        %5616 = vmatpush1.msra.mxu0 0.0
        %5617 = vmatprep.subr.mxu0 0.0
        %5618 = vmatpush1.msra.mxu0 0.0
        %5619 = vmatprep.subr.mxu0 0.0
        %5620 = vmatpush1.msra.mxu0 0.0
        %5621 = vmatprep.subr.mxu0 0.0
        %5622 = vmatpush1.msra.mxu0 0.0
        %5623 = vmatprep.subr.mxu0 0.0
        %5624 = vmatpush1.msra.mxu0 0.0
        %5625 = vmatprep.subr.mxu0 0.0
        %5626 = vmatpush1.msra.mxu0 0.0
        %5627 = vmatprep.subr.mxu0 0.0
        %5628 = vmatpush1.msra.mxu0 0.0
        %5629 = vmatprep.subr.mxu0 0.0
        %5630 = vmatpush1.msra.mxu0 0.0
        %5631 = vmatprep.subr.mxu0 0.0
        %5632 = vmatpush1.msra.mxu0 0.0
        %5633 = vmatprep.subr.mxu0 0.0
        %5634 = vmatpush1.msra.mxu0 0.0
        %5635 = vmatprep.subr.mxu0 0.0
        %5636 = vmatpush1.msra.mxu0 0.0
        %5637 = vmatprep.subr.mxu0 0.0
        %5638 = vmatpush1.msra.mxu0 0.0
        %5639 = vmatprep.subr.mxu0 0.0
        %5640 = vmatpush1.msra.mxu0 0.0
        %5641 = vmatprep.subr.mxu0 0.0
        %5642 = vmatpush1.msra.mxu0 0.0
        %5643 = vmatprep.subr.mxu0 0.0
        %5644 = vmatpush1.msra.mxu0 0.0
        %5645 = vmatprep.subr.mxu0 0.0
        %5646 = vmatpush1.msra.mxu0 0.0
        %5647 = vmatprep.subr.mxu0 0.0
        %5648 = vmatpush1.msra.mxu0 0.0
        %5649 = vmatprep.subr.mxu0 0.0
        %5650 = vmatpush1.msra.mxu0 0.0
        %5651 = vmatprep.subr.mxu0 0.0
        %5652 = vmatpush1.msra.mxu0 0.0
        %5653 = vmatprep.mubr.f32.mxu0 0.0
        %5654 = vmatmul.mubr.f32.gmra.mrb[0].mxu0 %v5551
        %v5655 = vpop.f32.mrb[0].mxu0
        %v5656 = vadd.f32 0.0, %v5655
        %v5657 = vpop.f32.mrb[0].mxu0
        %5658 = vmatprep.mubr.f32.mxu0 0.0
        %5659 = vmatmul.mubr.f32.gmra.mrb[0].mxu0 %v5554
        %v5660 = vpop.f32.mrb[0].mxu0
        %v5661 = vadd.f32 0.0, %v5660
        %v5662 = vpop.f32.mrb[0].mxu0
        %5663 = vmatprep.mubr.f32.mxu0 0.0
        %5664 = vmatmul.mubr.f32.gmra.mrb[0].mxu0 %v5557
        %v5665 = vpop.f32.mrb[0].mxu0
        %v5666 = vadd.f32 0.0, %v5665
        %v5667 = vpop.f32.mrb[0].mxu0
        %5668 = vmatprep.mubr.f32.mxu0 0.0
        %5669 = vmatmul.mubr.f32.gmra.mrb[0].mxu0 %v5560
        %v5670 = vpop.f32.mrb[0].mxu0
        %v5671 = vadd.f32 0.0, %v5670
        %v5672 = vpop.f32.mrb[0].mxu0
        %5673 = vmatprep.mubr.f32.mxu0 0.0
        %5674 = vmatmul.mubr.f32.gmra.mrb[0].mxu0 %v5563
        %v5675 = vpop.f32.mrb[0].mxu0
        %v5676 = vadd.f32 0.0, %v5675
        %v5677 = vpop.f32.mrb[0].mxu0
        %5678 = vmatprep.mubr.f32.mxu0 0.0
        %5679 = vmatmul.mubr.f32.gmra.mrb[0].mxu0 %v5566
        %v5680 = vpop.f32.mrb[0].mxu0
        %v5681 = vadd.f32 0.0, %v5680
        %v5682 = vpop.f32.mrb[0].mxu0
        %5683 = vmatprep.mubr.f32.mxu0 0.0
        %5684 = vmatmul.mubr.f32.gmra.mrb[0].mxu0 %v5569
        %v5685 = vpop.f32.mrb[0].mxu0
        %v5686 = vadd.f32 0.0, %v5685
        %v5687 = vpop.f32.mrb[0].mxu0
        %5688 = vmatprep.mubr.f32.mxu0 0.0
        %5689 = vmatmul.mubr.f32.gmra.mrb[0].mxu0 %v5572
        %v5690 = vpop.f32.mrb[0].mxu0
        %v5691 = vadd.f32 0.0, %v5690
        %v5692 = vpop.f32.mrb[0].mxu0
        %5693 = vmatprep.mubr.f32.mxu0 0.0
        %5694 = vmatmul.mubr.f32.gmra.mrb[0].mxu0 %v5575
        %v5695 = vpop.f32.mrb[0].mxu0
        %v5696 = vadd.f32 0.0, %v5695
        %v5697 = vpop.f32.mrb[0].mxu0
        %5698 = vmatprep.mubr.f32.mxu0 0.0
        %5699 = vmatmul.mubr.f32.gmra.mrb[0].mxu0 %v5578
        %v5700 = vpop.f32.mrb[0].mxu0
        %v5701 = vadd.f32 0.0, %v5700
        %v5702 = vpop.f32.mrb[0].mxu0
        %5703 = vmatprep.mubr.f32.mxu0 0.0
        %5704 = vmatmul.mubr.f32.gmra.mrb[0].mxu0 %v5581
        %v5705 = vpop.f32.mrb[0].mxu0
        %v5706 = vadd.f32 0.0, %v5705
        %v5707 = vpop.f32.mrb[0].mxu0
        %5708 = vmatprep.mubr.f32.mxu0 0.0
        %5709 = vmatmul.mubr.f32.gmra.mrb[0].mxu0 %v5584
        %v5710 = vpop.f32.mrb[0].mxu0
        %v5711 = vadd.f32 0.0, %v5710
        %v5712 = vpop.f32.mrb[0].mxu0
        %5713 = vmatprep.mubr.f32.mxu0 0.0
        %5714 = vmatmul.mubr.f32.gmra.mrb[0].mxu0 %v5587
        %v5715 = vpop.f32.mrb[0].mxu0
        %v5716 = vadd.f32 0.0, %v5715
        %v5717 = vpop.f32.mrb[0].mxu0
        %5718 = vdwg.mxu0
        %v5719 = vadd.f32 %v5522, %v5656
        %v5720 = vadd.f32 %v5523, %v5661
        %v5721 = vadd.f32 %v5524, %v5666
        %v5722 = vadd.f32 %v5525, %v5671
        %v5723 = vadd.f32 %v5526, %v5676
        %v5724 = vadd.f32 %v5527, %v5681
        %v5725 = vadd.f32 %v5528, %v5686
        %v5726 = vadd.f32 %v5529, %v5691
        %v5727 = vadd.f32 %v5530, %v5696
        %v5728 = vadd.f32 %v5531, %v5701
        %v5729 = vadd.f32 %v5532, %v5706
        %v5730 = vadd.f32 %v5533, %v5711
        %v5731 = vadd.f32 %v5534, %v5716
        %5732 = vst [vmem:[#allocation2] sm:$0xff] %v5719
        %5733 = vst [vmem:[#allocation2 + $0x8] sm:$0xff] %v5720
        %5734 = vst [vmem:[#allocation2 + $0x10] sm:$0xff] %v5721
        %5735 = vst [vmem:[#allocation2 + $0x18] sm:$0xff] %v5722
        %5736 = vst [vmem:[#allocation2 + $0x20] sm:$0xff] %v5723
        %5737 = vst [vmem:[#allocation2 + $0x28] sm:$0xff] %v5724
        %5738 = vst [vmem:[#allocation2 + $0x30] sm:$0xff] %v5725
        %5739 = vst [vmem:[#allocation2 + $0x38] sm:$0xff] %v5726
        %5740 = vst [vmem:[#allocation2 + $0x40] sm:$0xff] %v5727
        %5741 = vst [vmem:[#allocation2 + $0x48] sm:$0xff] %v5728
        %5742 = vst [vmem:[#allocation2 + $0x50] sm:$0xff] %v5729
        %5743 = vst [vmem:[#allocation2 + $0x58] sm:$0xff] %v5730
        %5744 = vst [vmem:[#allocation2 + $0x60] sm:$0xff] %v5731
        %v5745 = vld [vmem:[#allocation2] sm:$0xff]
        %v5746 = vld [vmem:[#allocation2 + $0x8] sm:$0xff]
        %v5747 = vld [vmem:[#allocation2 + $0x10] sm:$0xff]
        %v5748 = vld [vmem:[#allocation2 + $0x18] sm:$0xff]
        %v5749 = vld [vmem:[#allocation2 + $0x20] sm:$0xff]
        %v5750 = vld [vmem:[#allocation2 + $0x28] sm:$0xff]
        %v5751 = vld [vmem:[#allocation2 + $0x30] sm:$0xff]
        %v5752 = vld [vmem:[#allocation2 + $0x38] sm:$0xff]
        %v5753 = vld [vmem:[#allocation2 + $0x40] sm:$0xff]
        %v5754 = vld [vmem:[#allocation2 + $0x48] sm:$0xff]
        %v5755 = vld [vmem:[#allocation2 + $0x50] sm:$0xff]
        %v5756 = vld [vmem:[#allocation2 + $0x58] sm:$0xff]
        %v5757 = vld [vmem:[#allocation2 + $0x60] sm:$0xff]
        %v5758 = vld [vmem:[%s2] sm:$0x1]
        %v5760 = vlaneseq
        %v5761 = vshrl.u32 %v5760, 7
        %v5762 = vsub.s32 0, %v5761
        %v5763 = vrot.slane %v5758, %v5762
        %v5765 = vadd.f32 %v5745, %v5763
        %v5766 = vadd.f32 %v5746, %v5763
        %v5767 = vadd.f32 %v5747, %v5763
        %v5768 = vadd.f32 %v5748, %v5763
        %v5769 = vadd.f32 %v5749, %v5763
        %v5770 = vadd.f32 %v5750, %v5763
        %v5771 = vadd.f32 %v5751, %v5763
        %v5772 = vadd.f32 %v5752, %v5763
        %v5773 = vadd.f32 %v5753, %v5763
        %v5774 = vadd.f32 %v5754, %v5763
        %v5775 = vadd.f32 %v5755, %v5763
        %v5776 = vadd.f32 %v5756, %v5763
        %v5777 = vadd.f32 %v5757, %v5763
        %v5778 = vmul.f32 %v5765, %v5765
        %v5779 = vmul.f32 %v5766, %v5766
        %v5780 = vmul.f32 %v5767, %v5767
        %v5781 = vmul.f32 %v5768, %v5768
        %v5782 = vmul.f32 %v5769, %v5769
        %v5783 = vmul.f32 %v5770, %v5770
        %v5784 = vmul.f32 %v5771, %v5771
        %v5785 = vmul.f32 %v5772, %v5772
        %v5786 = vmul.f32 %v5773, %v5773
        %v5787 = vmul.f32 %v5774, %v5774
        %v5788 = vmul.f32 %v5775, %v5775
        %v5789 = vmul.f32 %v5776, %v5776
        %v5790 = vmul.f32 %v5777, %v5777
        %v5791 = vld [vmem:[%s3] sm:$0x3]
        %vm5792 = vcmask 850944
        %v5794 = vsel %vm5792, %v5791, 0
        %5796 = vmatprep.subr.mxu0 0.0
        %5797 = vmatpush1.msra.mxu0 %v5778
        %5798 = vmatprep.subr.mxu0 0.0
        %5799 = vmatpush1.msra.mxu0 %v5779
        %5800 = vmatprep.subr.mxu0 0.0
        %5801 = vmatpush1.msra.mxu0 %v5780
        %5802 = vmatprep.subr.mxu0 0.0
        %5803 = vmatpush1.msra.mxu0 %v5781
        %5804 = vmatprep.subr.mxu0 0.0
        %5805 = vmatpush1.msra.mxu0 %v5782
        %5806 = vmatprep.subr.mxu0 0.0
        %5807 = vmatpush1.msra.mxu0 %v5783
        %5808 = vmatprep.subr.mxu0 0.0
        %5809 = vmatpush1.msra.mxu0 %v5784
        %5810 = vmatprep.subr.mxu0 0.0
        %5811 = vmatpush1.msra.mxu0 %v5785
        %5812 = vmatprep.subr.mxu0 0.0
        %5813 = vmatpush1.msra.mxu0 %v5786
        %5814 = vmatprep.subr.mxu0 0.0
        %5815 = vmatpush1.msra.mxu0 %v5787
        %5816 = vmatprep.subr.mxu0 0.0
        %5817 = vmatpush1.msra.mxu0 %v5788
        %5818 = vmatprep.subr.mxu0 0.0
        %5819 = vmatpush1.msra.mxu0 %v5789
        %5820 = vmatprep.subr.mxu0 0.0
        %5821 = vmatpush1.msra.mxu0 %v5790
        %5822 = vmatprep.subr.mxu0 0.0
        %5823 = vmatpush1.msra.mxu0 0.0
        %5824 = vmatprep.subr.mxu0 0.0
        %5825 = vmatpush1.msra.mxu0 0.0
        %5826 = vmatprep.subr.mxu0 0.0
        %5827 = vmatpush1.msra.mxu0 0.0
        %5828 = vmatprep.subr.mxu0 0.0
        %5829 = vmatpush1.msra.mxu0 0.0
        %5830 = vmatprep.subr.mxu0 0.0
        %5831 = vmatpush1.msra.mxu0 0.0
        %5832 = vmatprep.subr.mxu0 0.0
        %5833 = vmatpush1.msra.mxu0 0.0
        %5834 = vmatprep.subr.mxu0 0.0
        %5835 = vmatpush1.msra.mxu0 0.0
        %5836 = vmatprep.subr.mxu0 0.0
        %5837 = vmatpush1.msra.mxu0 0.0
        %5838 = vmatprep.subr.mxu0 0.0
        %5839 = vmatpush1.msra.mxu0 0.0
        %5840 = vmatprep.subr.mxu0 0.0
        %5841 = vmatpush1.msra.mxu0 0.0
        %5842 = vmatprep.subr.mxu0 0.0
        %5843 = vmatpush1.msra.mxu0 0.0
        %5844 = vmatprep.subr.mxu0 0.0
        %5845 = vmatpush1.msra.mxu0 0.0
        %5846 = vmatprep.subr.mxu0 0.0
        %5847 = vmatpush1.msra.mxu0 0.0
        %5848 = vmatprep.subr.mxu0 0.0
        %5849 = vmatpush1.msra.mxu0 0.0
        %5850 = vmatprep.subr.mxu0 0.0
        %5851 = vmatpush1.msra.mxu0 0.0
        %5852 = vmatprep.subr.mxu0 0.0
        %5853 = vmatpush1.msra.mxu0 0.0
        %5854 = vmatprep.subr.mxu0 0.0
        %5855 = vmatpush1.msra.mxu0 0.0
        %5856 = vmatprep.subr.mxu0 0.0
        %5857 = vmatpush1.msra.mxu0 0.0
        %5858 = vmatprep.subr.mxu0 0.0
        %5859 = vmatpush1.msra.mxu0 0.0
        %5860 = vmatprep.mubr.f32.mxu0 0.0
        %5861 = vmatmul.mubr.f32.gmra.mrb[0].mxu0 %v5794
        %v5862 = vpop.f32.mrb[0].mxu0
        %v5863 = vadd.f32 0.0, %v5862
        %v5864 = vpop.f32.mrb[0].mxu0
        %5865 = vdwg.mxu0
        %v5866 = vmax.f32 %v5863, 1e-06
        %v5867 = vlog2.pop %v5866
        %v5868 = vmul.f32 %v5867, 0.6931472
        %5869 = vst [vmem:[%s190] sm:$0x3] %v5868
        %s5870 = sand.u32 %s115, 1
        %s5871 = scalar_lea.sflag [#allocation4], %s5870
        %s5872 = sand.u32 %s115, 1
        %s5873 = smul.addr %s5872, 2
        %s5874 = scalar_lea.vmem [#allocation3], %s5873
        // Predicated region
        $region37: #{create_base_forward.1} parent=35 // pred_check
          %p5875 = pneg %p125
        $region38: #{create_base_forward.1} parent=35 // pred_check_branch
          %5877 = sbr.rel (%p5875) target = $region40
        $region39: #{create_base_forward.1} parent=35 // pred_region
          %s5879 = ssub.s32 32, 32
          %5880 = vsyncadd %s5871, %s5879
          %s5881 = smul.addr %s18, 32
          %s5882 = scalar_lea.hbm %s4, %s5881
          %s5884 = sshll.u32 %s5874, 4
          %s5885 = int_to_ptr.vmem [resolvable:$true] %s5884
          %5887 = dma.vmem_to_hbm [thread:$0]  %s5885, 32, %s5882, %s5871
        $region40: #{create_base_forward.1} parent=35 // pred_fallthru
          _
      $region36: #{create_base_forward.1} parent=5 // pred_fallthru
        _
      %p5888 = scmp.le.s32.totalorder 2, %s13
      // Predicated region
      $region41: #{create_base_forward.1} parent=5 // pred_check
        %p5889 = pneg %p5888
      $region42: #{create_base_forward.1} parent=5 // pred_check_branch
        %5891 = sbr.rel (%p5889) target = $region44
      $region43: #{create_base_forward.1} parent=5 // pred_region
        %s5892 = ssub.s32 %s13, 2
        // Predicated region
        $region45: #{create_base_forward.1} parent=43 // pred_check
          %p5893 = pneg %p131
        $region46: #{create_base_forward.1} parent=43 // pred_check_branch
          %5895 = sbr.rel (%p5893) target = $region48
        $region47: #{create_base_forward.1} parent=43 // pred_region
          %s5896 = sand.u32 %s116, 1
          %s5897 = scalar_lea.sflag [#allocation4], %s5896
          %s5898 = sand.u32 %s116, 1
          %s5899 = smul.addr %s5898, 2
          %s5900 = scalar_lea.vmem [#allocation3], %s5899
          %5901 = dma.done %s5897, 32
        $region48: #{create_base_forward.1} parent=43 // pred_fallthru
          _
      $region44: #{create_base_forward.1} parent=5 // pred_fallthru
        _
    $region6: #{create_base_forward.1} parent=1 // loop_footer
      %s17 = sadd.s32 1, %s13
    $region7: #{create_base_forward.1} parent=1 // loop_footer_branch
      %12 = sbr.rel target = $region3
    $region8: #{create_base_forward.1} parent=1 // loop_exit
      _
    %5902 = vsyncpa [#allocation4], 1
    %s5903 = scalar_lea.sflag [#allocation4], 1
    %5904 = vsyncpa %s5903, 1

</llo_original>
